<compile_context>
chip_gen: v7x
topology: tpu7x:2x2x1
jax: 0.10.0
libtpu: 0.0.40
codegen_flags: <defaults>
</compile_context>

<pallas_src>
import functools

import jax
import jax.numpy as jnp
from jax.experimental import pallas as pl
from jax.experimental.pallas import tpu as pltpu

EPS = 1e-5
_ROW_TARGET = 2048   # target matmul rows per grid step


def _tpu_kind():
    try:
        return jax.devices()[0].device_kind.lower()
    except Exception:
        return ""


_KIND = _tpu_kind()
# bf16 VALU exists on v6e / v7x; keep the depthwise MAC in f32 elsewhere.
_DW_DTYPE = (jnp.bfloat16
             if any(t in _KIND for t in ("v6", "v7", "7x"))
             else jnp.float32)


def _vmem_limit():
    if any(t in _KIND for t in ("v4", "v5", "v6")):
        return 96 * 1024 * 1024          # 128 MiB physical VMEM per core
    if any(t in _KIND for t in ("v7", "7x")):
        return 48 * 1024 * 1024          # v7x: 64 MiB physical VMEM
    return None                          # unknown: keep the compiler default


_VMEM_LIMIT = _vmem_limit()


def _cparams(dims=None):
    kw = {}
    if dims is not None:
        kw["dimension_semantics"] = dims
    if _VMEM_LIMIT is not None:
        kw["vmem_limit_bytes"] = _VMEM_LIMIT
    return pltpu.CompilerParams(**kw)


def _hardswish(x):
    # torch.nn.Hardswish: x * relu6(x + 3) / 6
    return x * jnp.clip(x + 3.0, 0.0, 6.0) * (1.0 / 6.0)


def _hardsigmoid(x):
    # torch.nn.Hardsigmoid: relu6(x + 3) / 6
    return jnp.clip(x + 3.0, 0.0, 6.0) * (1.0 / 6.0)


def _pick_tile(total, target):
    """Row-tile picker: largest multiple-of-8 divisor of `total` <= target,
    else the whole extent when the overshoot is modest, else the largest
    divisor (avoids degenerate tiny tiles where possible)."""
    if total <= target:
        return total
    start = target - (target % 8)
    for d in range(start, 7, -8):
        if total % d == 0:
            return d
    if total <= 4 * target:
        return total
    for d in range(target, 0, -1):
        if total % d == 0:
            return d
    return 1


def _full_spec(shape):
    rank = len(shape)
    return pl.BlockSpec(shape, lambda *_: (0,) * rank)


def _row_start(th):
    h0 = pl.program_id(1) * th
    if th % 8 == 0:
        h0 = pl.multiple_of(h0, 8)
    return h0


# ----------------------------- Pallas kernels ------------------------------


def _dw3x3_tile(x_refs, w9, dsc, dbi, *, stride, th, wo, act, h0):
    """3x3 depthwise conv + folded BN (+optional hardswish) for one output
    row-tile.  Taps are read directly from the VMEM-resident (phase-split)
    padded input — no im2col in HBM.  `w9` (9, C) / `dsc` / `dbi` are hoisted
    values (loaded once per tile).  MAC runs in w9.dtype (bf16 on v6e/v7x,
    f32 on v5e); BN epilogue is f32.  Returns an f32 (th, wo, C) tile."""
    acc = None
    for kh in range(3):
        for kw in range(3):
            if stride == 1:
                ref, hs, ws = x_refs[0], h0 + kh, kw
            else:  # stride 2: phase (kh%2, kw%2) holds rows 2i+kh%2, cols 2j+kw%2
                ref = x_refs[(kh % 2) * 2 + (kw % 2)]
                hs, ws = h0 + kh // 2, kw // 2
            tap = ref[0, pl.ds(hs, th), pl.ds(ws, wo), :].astype(w9.dtype)
            term = tap * w9[3 * kh + kw]
            acc = term if acc is None else acc + term
    y = acc.astype(jnp.float32) * dsc + dbi
    if act:
        y = _hardswish(y)
    return y


def _dw_pw_kernel(*refs, stride, th, wo, act_dw, act_pw):
    # fused: depthwise 3x3 + BN (+act) -> 1x1 conv (bf16 MXU) + BN + act
    n_phase = 4 if stride == 2 else 1
    x_refs = refs[:n_phase]
    w9_ref, dsc_ref, dbi_ref, pw_ref, psc_ref, pbi_ref, out_ref = refs[n_phase:]
    y = _dw3x3_tile(x_refs, w9_ref[...], dsc_ref[0, :], dbi_ref[0, :],
                    stride=stride, th=th, wo=wo, act=act_dw, h0=_row_start(th))
    cin = y.shape[-1]
    lhs = y.reshape(th * wo, cin).astype(jnp.bfloat16)
    z = jnp.dot(lhs, pw_ref[...], preferred_element_type=jnp.float32)
    z = z * psc_ref[...] + pbi_ref[...]
    if act_pw:
        z = _hardswish(z)
    out_ref[0] = z.reshape(th, wo, -1).astype(out_ref.dtype)


def _dw_sum_kernel(*refs, stride, th, wo, act):
    # depthwise 3x3 + BN (+act); also accumulates per-sample channel sums
    # (SE global average pool) across the row-tile grid axis.
    n_phase = 4 if stride == 2 else 1
    x_refs = refs[:n_phase]
    w9_ref, dsc_ref, dbi_ref, y_ref, sum_ref = refs[n_phase:]
    t = pl.program_id(1)
    y = _dw3x3_tile(x_refs, w9_ref[...], dsc_ref[0, :], dbi_ref[0, :],
                    stride=stride, th=th, wo=wo, act=act, h0=_row_start(th))
    y_ref[0] = y.astype(y_ref.dtype)

    @pl.when(t == 0)
    def _():
        sum_ref[...] = jnp.zeros_like(sum_ref)

    sum_ref[...] += jnp.sum(y, axis=(0, 1)).reshape(1, 1, -1)


def _pw_kernel(*refs, act, fuse_se):
    # 1x1 conv (bf16 MXU) + folded BN (+act); optionally multiplies the input
    # rows by a per-sample SE channel scale first (SE rescale fused, in bf16).
    if fuse_se:
        x_ref, rs_ref, w_ref, sc_ref, bi_ref, out_ref = refs
        lhs = x_ref[0] * rs_ref[0]          # bf16 * bf16, no f32 round-trip
    else:
        x_ref, w_ref, sc_ref, bi_ref, out_ref = refs
        lhs = x_ref[0]
    z = jnp.dot(lhs.astype(jnp.bfloat16), w_ref[...],
                preferred_element_type=jnp.float32)
    z = z * sc_ref[...] + bi_ref[...]
    if act:
        z = _hardswish(z)
    out_ref[0] = z.astype(out_ref.dtype)


def _concat_dw_pw_kernel(x1_ref, x2_ref,
                         w9a_ref, dsca_ref, dbia_ref,
                         w9b_ref, dscb_ref, dbib_ref,
                         pwa_ref, pwb_ref, psc_ref, pbi_ref, out_ref,
                         *, th, wo):
    # fused: concat(x1, x2, ch) -> dw 3x3 (s=1) + BN + hswish -> 1x1 + BN +
    # hswish.  The concat is folded away: depthwise conv is per-channel so the
    # two branches use their own weight/BN slices, and the 1x1 weight is split
    # along its input channels into two MXU dots that are summed.
    h0 = _row_start(th)
    y1 = _dw3x3_tile((x1_ref,), w9a_ref[...], dsca_ref[0, :], dbia_ref[0, :],
                     stride=1, th=th, wo=wo, act=True, h0=h0)
    y2 = _dw3x3_tile((x2_ref,), w9b_ref[...], dscb_ref[0, :], dbib_ref[0, :],
                     stride=1, th=th, wo=wo, act=True, h0=h0)
    lhs1 = y1.reshape(th * wo, y1.shape[-1]).astype(jnp.bfloat16)
    lhs2 = y2.reshape(th * wo, y2.shape[-1]).astype(jnp.bfloat16)
    z = jnp.dot(lhs1, pwa_ref[...], preferred_element_type=jnp.float32)
    z = z + jnp.dot(lhs2, pwb_ref[...], preferred_element_type=jnp.float32)
    z = z * psc_ref[...] + pbi_ref[...]
    z = _hardswish(z)
    out_ref[0] = z.reshape(th, wo, -1).astype(out_ref.dtype)


def _se_fc_kernel(sum_ref, w1_ref, b1_ref, w2_ref, b2_ref, scale_ref, *, inv_hw):
    # SE: mean -> FC -> ReLU -> FC -> hardsigmoid on (N, C) scalars (MXU dots).
    m = sum_ref[...][:, 0, :] * inv_hw                                   # (N, C)
    s = jnp.dot(m, w1_ref[...], preferred_element_type=jnp.float32) + b1_ref[...]
    s = jnp.maximum(s, 0.0)
    s = jnp.dot(s, w2_ref[...], preferred_element_type=jnp.float32) + b2_ref[...]
    scale_ref[...] = _hardsigmoid(s)[:, None, :]


# ------------------------------- wrappers ----------------------------------


def _pad_and_phase(x, stride):
    """Pad by 1 (3x3, pad=1).  For stride 2, split into the four space-to-depth
    phases so all in-kernel tap reads are unit-stride."""
    xp = jnp.pad(x, ((0, 0), (1, 1), (1, 1), (0, 0)))
    if stride == 1:
        return [xp]
    return [xp[:, a::2, b::2, :] for a in (0, 1) for b in (0, 1)]


def fused_dw_pw_conv(x, dw_w, dw_scale, dw_bias, pw_w, pw_scale, pw_bias, *,
                     stride, act_dw, act_pw, out_dtype=jnp.bfloat16):
    """dw 3x3 + BN (+opt act) fused with 1x1 conv + BN (+act).  x: (N,H,W,Cin)."""
    N, H, W, C = x.shape
    Cout = pw_w.shape[0]
    Ho = (H + 2 - 3) // stride + 1
    Wo = (W + 2 - 3) // stride + 1
    th = _pick_tile(Ho, max(1, _ROW_TARGET // Wo))
    grid = (N, Ho // th)

    phases = _pad_and_phase(x, stride)
    w9 = jnp.transpose(dw_w, (1, 2, 0)).reshape(9, C).astype(_DW_DTYPE)
    args = phases + [
        w9,
        dw_scale.reshape(1, C).astype(jnp.float32),
        dw_bias.reshape(1, C).astype(jnp.float32),
        pw_w.T.astype(jnp.bfloat16),
        pw_scale.reshape(1, Cout).astype(jnp.float32),
        pw_bias.reshape(1, Cout).astype(jnp.float32),
    ]
    in_specs = [pl.BlockSpec((1,) + p.shape[1:], lambda n, t: (n, 0, 0, 0))
                for p in phases]
    in_specs += [_full_spec(a.shape) for a in args[len(phases):]]

    return pl.pallas_call(
        functools.partial(_dw_pw_kernel, stride=stride, th=th, wo=Wo,
                          act_dw=act_dw, act_pw=act_pw),
        grid=grid,
        in_specs=in_specs,
        out_specs=pl.BlockSpec((1, th, Wo, Cout), lambda n, t: (n, t, 0, 0)),
        out_shape=jax.ShapeDtypeStruct((N, Ho, Wo, Cout), out_dtype),
        compiler_params=_cparams(("parallel", "parallel")),
    )(*args)


def dw_conv_bn_sums(x, dw_w, dw_scale, dw_bias, *, stride, act):
    """dw 3x3 + BN (+opt act); also returns per-sample channel sums (SE pool)."""
    N, H, W, C = x.shape
    Ho = (H + 2 - 3) // stride + 1
    Wo = (W + 2 - 3) // stride + 1
    th = _pick_tile(Ho, max(1, _ROW_TARGET // Wo))
    grid = (N, Ho // th)

    phases = _pad_and_phase(x, stride)
    w9 = jnp.transpose(dw_w, (1, 2, 0)).reshape(9, C).astype(_DW_DTYPE)
    args = phases + [
        w9,
        dw_scale.reshape(1, C).astype(jnp.float32),
        dw_bias.reshape(1, C).astype(jnp.float32),
    ]
    in_specs = [pl.BlockSpec((1,) + p.shape[1:], lambda n, t: (n, 0, 0, 0))
                for p in phases]
    in_specs += [_full_spec(a.shape) for a in args[len(phases):]]

    y, sums = pl.pallas_call(
        functools.partial(_dw_sum_kernel, stride=stride, th=th, wo=Wo, act=act),
        grid=grid,
        in_specs=in_specs,
        out_specs=(
            pl.BlockSpec((1, th, Wo, C), lambda n, t: (n, t, 0, 0)),
            pl.BlockSpec((1, 1, C), lambda n, t: (n, 0, 0)),
        ),
        out_shape=(
            jax.ShapeDtypeStruct((N, Ho, Wo, C), jnp.bfloat16),
            jax.ShapeDtypeStruct((N, 1, C), jnp.float32),
        ),
        compiler_params=_cparams(("parallel", "arbitrary")),
    )(*args)
    return y, sums


def pointwise_conv_bn(x, w, scale, bias, *, act=True, row_scale=None):
    """1x1 conv + folded BN (+act) as a gridded bf16 MXU matmul.
    x: (N,H,W,Cin); w: (Cout,Cin); row_scale: optional (N,1,Cin) SE scale."""
    N, H, W, C = x.shape
    Cout = w.shape[0]
    HW = H * W
    tm = _pick_tile(HW, _ROW_TARGET)
    grid = (N, HW // tm)

    args = [x.reshape(N, HW, C)]
    in_specs = [pl.BlockSpec((1, tm, C), lambda n, t: (n, t, 0))]
    if row_scale is not None:
        args.append(row_scale.astype(jnp.bfloat16).reshape(N, 1, C))
        in_specs.append(pl.BlockSpec((1, 1, C), lambda n, t: (n, 0, 0)))
    args += [
        w.T.astype(jnp.bfloat16),
        scale.reshape(1, Cout).astype(jnp.float32),
        bias.reshape(1, Cout).astype(jnp.float32),
    ]
    in_specs += [_full_spec(a.shape) for a in args[-3:]]

    out = pl.pallas_call(
        functools.partial(_pw_kernel, act=act, fuse_se=row_scale is not None),
        grid=grid,
        in_specs=in_specs,
        out_specs=pl.BlockSpec((1, tm, Cout), lambda n, t: (n, t, 0)),
        out_shape=jax.ShapeDtypeStruct((N, HW, Cout), jnp.bfloat16),
        compiler_params=_cparams(("parallel", "parallel")),
    )(*args)
    return out.reshape(N, H, W, Cout)


def fused_concat_dw_pw_conv(x1, x2, dw_w, dw_scale, dw_bias,
                            pw_w, pw_scale, pw_bias, *, out_dtype=jnp.bfloat16):
    """concat([x1,x2], ch) -> dw 3x3 (s=1) + BN + hswish -> 1x1 + BN + hswish,
    with the concat fused away (never written to HBM): per-branch dw/BN slices
    and a channel-split 1x1 weight (two accumulated MXU dots)."""
    N, H, W, C1 = x1.shape
    C2 = x2.shape[3]
    C = C1 + C2
    Cout = pw_w.shape[0]
    Ho, Wo = H, W                       # 3x3, stride 1, pad 1
    th = _pick_tile(Ho, max(1, _ROW_TARGET // Wo))
    grid = (N, Ho // th)

    x1p = jnp.pad(x1, ((0, 0), (1, 1), (1, 1), (0, 0)))
    x2p = jnp.pad(x2, ((0, 0), (1, 1), (1, 1), (0, 0)))
    w9 = jnp.transpose(dw_w, (1, 2, 0)).reshape(9, C)

    args = [
        x1p, x2p,
        w9[:, :C1].astype(_DW_DTYPE),
        dw_scale[:C1].reshape(1, C1).astype(jnp.float32),
        dw_bias[:C1].reshape(1, C1).astype(jnp.float32),
        w9[:, C1:].astype(_DW_DTYPE),
        dw_scale[C1:].reshape(1, C2).astype(jnp.float32),
        dw_bias[C1:].reshape(1, C2).astype(jnp.float32),
        pw_w[:, :C1].T.astype(jnp.bfloat16),
        pw_w[:, C1:].T.astype(jnp.bfloat16),
        pw_scale.reshape(1, Cout).astype(jnp.float32),
        pw_bias.reshape(1, Cout).astype(jnp.float32),
    ]
    in_specs = [pl.BlockSpec((1,) + x1p.shape[1:], lambda n, t: (n, 0, 0, 0)),
                pl.BlockSpec((1,) + x2p.shape[1:], lambda n, t: (n, 0, 0, 0))]
    in_specs += [_full_spec(a.shape) for a in args[2:]]

    return pl.pallas_call(
        functools.partial(_concat_dw_pw_kernel, th=th, wo=Wo),
        grid=grid,
        in_specs=in_specs,
        out_specs=pl.BlockSpec((1, th, Wo, Cout), lambda n, t: (n, t, 0, 0)),
        out_shape=jax.ShapeDtypeStruct((N, Ho, Wo, Cout), out_dtype),
        compiler_params=_cparams(("parallel", "parallel")),
    )(*args)


def se_channel_scale(sums, w1, b1, w2, b2, *, hw):
    """SE FC stack on pooled (N,1,C) sums -> per-sample channel scale (N,1,C)."""
    N, _, C = sums.shape
    Cmid = w1.shape[0]
    vmem = lambda: pl.BlockSpec(memory_space=pltpu.MemorySpace.VMEM)
    return pl.pallas_call(
        functools.partial(_se_fc_kernel, inv_hw=1.0 / float(hw)),
        in_specs=[vmem() for _ in range(5)],
        out_specs=vmem(),
        out_shape=jax.ShapeDtypeStruct((N, 1, C), jnp.float32),
        compiler_params=_cparams(),
    )(sums, w1.T.astype(jnp.float32), b1.reshape(1, Cmid).astype(jnp.float32),
      w2.T.astype(jnp.float32), b2.reshape(1, C).astype(jnp.float32))


# ------------------------------ parameters ---------------------------------


def _fold_bn(gamma, beta, mean, var):
    scale = gamma / jnp.sqrt(var + EPS)
    return scale, beta - mean * scale


def _bn_params(key, c):
    k1, k2, k3, k4 = jax.random.split(key, 4)
    gamma = 1.0 + 0.1 * jax.random.normal(k1, (c,), jnp.float32)
    beta = 0.05 * jax.random.normal(k2, (c,), jnp.float32)
    mean = 0.1 * jax.random.normal(k3, (c,), jnp.float32)
    var = 1.0 + 0.1 * jax.random.uniform(k4, (c,), jnp.float32)
    return _fold_bn(gamma, beta, mean, var)


def init_params(key, cin, cout):
    c2 = cout // 2
    cmid = max(c2 // 4, 1)
    ks = jax.random.split(key, 20)

    def conv(k, shape, fan_in):
        return jax.random.normal(k, shape, jnp.float32) / jnp.sqrt(float(fan_in))

    p = {}
    s, b = _bn_params(ks[1], cin)
    p["dw_1"] = dict(w=conv(ks[0], (cin, 3, 3), 9), scale=s, bias=b)
    s, b = _bn_params(ks[3], c2)
    p["pw_1"] = dict(w=conv(ks[2], (c2, cin), cin), scale=s, bias=b)
    s, b = _bn_params(ks[5], c2)
    p["pw_2_1"] = dict(w=conv(ks[4], (c2, cin), cin), scale=s, bias=b)
    s, b = _bn_params(ks[7], c2)
    p["dw_2"] = dict(w=conv(ks[6], (c2, 3, 3), 9), scale=s, bias=b)
    p["se"] = dict(
        w1=conv(ks[8], (cmid, c2), c2),
        b1=0.01 * jax.random.normal(ks[9], (cmid,), jnp.float32),
        w2=conv(ks[10], (c2, cmid), cmid),
        b2=0.01 * jax.random.normal(ks[11], (c2,), jnp.float32),
    )
    s, b = _bn_params(ks[13], c2)
    p["pw_2_2"] = dict(w=conv(ks[12], (c2, c2), c2), scale=s, bias=b)
    s, b = _bn_params(ks[15], cout)
    p["concat_dw"] = dict(w=conv(ks[14], (cout, 3, 3), 9), scale=s, bias=b)
    s, b = _bn_params(ks[17], cout)
    p["concat_pw"] = dict(w=conv(ks[16], (cout, cout), cout), scale=s, bias=b)
    return p


# ------------------------------ ESBlock2 fwd --------------------------------


def esblock2_forward(params, x_nchw):
    p = params
    # NCHW -> NHWC; activations travel between kernels in bf16.
    x = jnp.transpose(x_nchw, (0, 2, 3, 1)).astype(jnp.bfloat16)

    # branch 1: dw_1 (3x3, s=2, no act) fused with pw_1 (1x1, hardswish)
    x1 = fused_dw_pw_conv(x, p["dw_1"]["w"], p["dw_1"]["scale"], p["dw_1"]["bias"],
                          p["pw_1"]["w"], p["pw_1"]["scale"], p["pw_1"]["bias"],
                          stride=2, act_dw=False, act_pw=True)

    # branch 2: pw_2_1 -> dw_2 (s=2, no act; emits SE pooling sums)
    #           -> SE FC scale -> pw_2_2 with the SE rescale fused in
    x2 = pointwise_conv_bn(x, p["pw_2_1"]["w"], p["pw_2_1"]["scale"],
                           p["pw_2_1"]["bias"], act=True)
    y2, sums = dw_conv_bn_sums(x2, p["dw_2"]["w"], p["dw_2"]["scale"],
                               p["dw_2"]["bias"], stride=2, act=False)
    se_scale = se_channel_scale(sums, p["se"]["w1"], p["se"]["b1"],
                                p["se"]["w2"], p["se"]["b2"],
                                hw=y2.shape[1] * y2.shape[2])
    x2 = pointwise_conv_bn(y2, p["pw_2_2"]["w"], p["pw_2_2"]["scale"],
                           p["pw_2_2"]["bias"], act=True, row_scale=se_scale)

    # concat (torch.cat dim=1) + concat_dw + concat_pw in ONE kernel; the
    # concatenated tensor never hits HBM (per-branch dw/BN slices + split pw).
    out = fused_concat_dw_pw_conv(
        x1, x2,
        p["concat_dw"]["w"], p["concat_dw"]["scale"], p["concat_dw"]["bias"],
        p["concat_pw"]["w"], p["concat_pw"]["scale"], p["concat_pw"]["bias"])

    return jnp.transpose(out, (0, 3, 1, 2)).astype(jnp.float32)  # NHWC -> NCHW


if __name__ == "__main__":
    N, CIN, COUT, H, W = 2, 4, 8, 16, 16
    key = jax.random.PRNGKey(0)
    kx, kp = jax.random.split(key)
    x = jax.random.normal(kx, (N, CIN, H, W), jnp.float32)  # NCHW, like PyTorch
    params = init_params(kp, CIN, COUT)

    out = jax.jit(esblock2_forward)(params, x)
    out = jax.block_until_ready(out)

    assert out.shape == (N, COUT, H // 2, W // 2), out.shape
    assert bool(jnp.all(jnp.isfinite(out)))
    print("KERNEL_OK")
</pallas_src>

<mosaic_0001>
module attributes {stable_mosaic.version = 11 : i64} {
  func.func @_pw_kernel(%arg0: i32, %arg1: i32, %arg2: memref<1x256x4xbf16, #tpu.memory_space<vmem>>, %arg3: memref<4x4xbf16, #tpu.memory_space<vmem>>, %arg4: memref<1x4xf32, #tpu.memory_space<vmem>>, %arg5: memref<1x4xf32, #tpu.memory_space<vmem>>, %arg6: memref<1x256x4xbf16, #tpu.memory_space<vmem>>) attributes {dimension_semantics = [#tpu.dimension_semantics<parallel>, #tpu.dimension_semantics<parallel>], iteration_bounds = array<i64: 2, 1>, scalar_prefetch = 0 : i64, scratch_operands = 0 : i64, tpu.core_type = #tpu.core_type<tc>, window_params = [{transform_indices = @transform_0, window_bounds = array<i64: 1, 256, 4>}, {pipeline_mode = #tpu.pipeline_mode<synchronous>, transform_indices = @transform_1, window_bounds = array<i64: 4, 4>}, {pipeline_mode = #tpu.pipeline_mode<synchronous>, transform_indices = @transform_2, window_bounds = array<i64: 1, 4>}, {pipeline_mode = #tpu.pipeline_mode<synchronous>, transform_indices = @transform_3, window_bounds = array<i64: 1, 4>}, {transform_indices = @transform_4, window_bounds = array<i64: 1, 256, 4>}]} {
    %c0 = arith.constant 0 : index
    %c0_0 = arith.constant 0 : index
    %c0_1 = arith.constant 0 : index
    %0 = vector.load %arg2[%c0, %c0_0, %c0_1] : memref<1x256x4xbf16, #tpu.memory_space<vmem>>, vector<1x256x4xbf16>
    %1 = vector.shape_cast %0 : vector<1x256x4xbf16> to vector<256x4xbf16>
    %c0_2 = arith.constant 0 : index
    %c0_3 = arith.constant 0 : index
    %2 = vector.load %arg3[%c0_2, %c0_3] : memref<4x4xbf16, #tpu.memory_space<vmem>>, vector<4x4xbf16>
    %cst = arith.constant dense<0.000000e+00> : vector<256x4xf32>
    %3 = tpu.matmul %1, %2, %cst {dimension_numbers = #tpu.dot_dimension_numbers<[1], [0], [0], [1], [0, 0, 1, 1], [], []>} : vector<256x4xbf16>, vector<4x4xbf16>, vector<256x4xf32> -> vector<256x4xf32>
    %c0_4 = arith.constant 0 : index
    %c0_5 = arith.constant 0 : index
    %4 = vector.load %arg4[%c0_4, %c0_5] : memref<1x4xf32, #tpu.memory_space<vmem>>, vector<1x4xf32>
    %5 = vector.broadcast %4 : vector<1x4xf32> to vector<256x4xf32>
    %6 = arith.mulf %3, %5 : vector<256x4xf32>
    %c0_6 = arith.constant 0 : index
    %c0_7 = arith.constant 0 : index
    %7 = vector.load %arg5[%c0_6, %c0_7] : memref<1x4xf32, #tpu.memory_space<vmem>>, vector<1x4xf32>
    %8 = vector.broadcast %7 : vector<1x4xf32> to vector<256x4xf32>
    %9 = arith.addf %6, %8 : vector<256x4xf32>
    %cst_8 = arith.constant 3.000000e+00 : f32
    %10 = vector.broadcast %cst_8 : f32 to vector<256x4xf32>
    %11 = arith.addf %9, %10 : vector<256x4xf32>
    %cst_9 = arith.constant 0.000000e+00 : f32
    %cst_10 = arith.constant 6.000000e+00 : f32
    %12 = vector.broadcast %cst_9 : f32 to vector<256x4xf32>
    %13 = arith.maximumf %12, %11 : vector<256x4xf32>
    %14 = vector.broadcast %cst_10 : f32 to vector<256x4xf32>
    %15 = arith.minimumf %14, %13 : vector<256x4xf32>
    %16 = arith.mulf %9, %15 : vector<256x4xf32>
    %cst_11 = arith.constant 0.166666672 : f32
    %17 = vector.broadcast %cst_11 : f32 to vector<256x4xf32>
    %18 = arith.mulf %16, %17 : vector<256x4xf32>
    %19 = arith.truncf %18 : vector<256x4xf32> to vector<256x4xbf16>
    %c0_12 = arith.constant 0 : index
    %c0_13 = arith.constant 0 : index
    %c0_14 = arith.constant 0 : index
    %20 = vector.load %arg6[%c0_12, %c0_13, %c0_14] : memref<1x256x4xbf16, #tpu.memory_space<vmem>>, vector<1x256x4xbf16>
    %21 = vector.shape_cast %20 : vector<1x256x4xbf16> to vector<256x4xbf16>
    %22 = vector.shape_cast %19 : vector<256x4xbf16> to vector<1x256x4xbf16>
    tpu.vector_store %arg6[%c0_12, %c0_13, %c0_14], %22 {strides = array<i32>} : memref<1x256x4xbf16, #tpu.memory_space<vmem>>, vector<1x256x4xbf16>,
    return
  }
  func.func @transform_0(%arg0: i32, %arg1: i32) -> (i32, i32, i32) {
    %c0_i32 = arith.constant 0 : i32
    %c0_i32_0 = arith.constant 0 : i32
    return %arg0, %arg1, %c0_i32 : i32, i32, i32
  }
  func.func @transform_1(%arg0: i32, %arg1: i32) -> (i32, i32) {
    %c0_i32 = arith.constant 0 : i32
    %c0_i32_0 = arith.constant 0 : i32
    %c0_i32_1 = arith.constant 0 : i32
    return %c0_i32, %c0_i32_0 : i32, i32
  }
  func.func @transform_2(%arg0: i32, %arg1: i32) -> (i32, i32) {
    %c0_i32 = arith.constant 0 : i32
    %c0_i32_0 = arith.constant 0 : i32
    %c0_i32_1 = arith.constant 0 : i32
    return %c0_i32, %c0_i32_0 : i32, i32
  }
  func.func @transform_3(%arg0: i32, %arg1: i32) -> (i32, i32) {
    %c0_i32 = arith.constant 0 : i32
    %c0_i32_0 = arith.constant 0 : i32
    %c0_i32_1 = arith.constant 0 : i32
    return %c0_i32, %c0_i32_0 : i32, i32
  }
  func.func @transform_4(%arg0: i32, %arg1: i32) -> (i32, i32, i32) {
    %c0_i32 = arith.constant 0 : i32
    %c0_i32_0 = arith.constant 0 : i32
    return %arg0, %arg1, %c0_i32 : i32, i32, i32
  }
}

module attributes {stable_mosaic.version = 11 : i64} {
  func.func @_dw_sum_kernel(%arg0: i32, %arg1: i32, %arg2: memref<1x9x9x4xbf16, #tpu.memory_space<vmem>>, %arg3: memref<1x9x9x4xbf16, #tpu.memory_space<vmem>>, %arg4: memref<1x9x9x4xbf16, #tpu.memory_space<vmem>>, %arg5: memref<1x9x9x4xbf16, #tpu.memory_space<vmem>>, %arg6: memref<9x4xf32, #tpu.memory_space<vmem>>, %arg7: memref<1x4xf32, #tpu.memory_space<vmem>>, %arg8: memref<1x4xf32, #tpu.memory_space<vmem>>, %arg9: memref<1x8x8x4xbf16, #tpu.memory_space<vmem>>, %arg10: memref<1x1x4xf32, #tpu.memory_space<vmem>>) attributes {dimension_semantics = [#tpu.dimension_semantics<parallel>, #tpu.dimension_semantics<arbitrary>], iteration_bounds = array<i64: 2, 1>, scalar_prefetch = 0 : i64, scratch_operands = 0 : i64, tpu.core_type = #tpu.core_type<tc>, window_params = [{transform_indices = @transform_0, window_bounds = array<i64: 1, 9, 9, 4>}, {transform_indices = @transform_1, window_bounds = array<i64: 1, 9, 9, 4>}, {transform_indices = @transform_2, window_bounds = array<i64: 1, 9, 9, 4>}, {transform_indices = @transform_3, window_bounds = array<i64: 1, 9, 9, 4>}, {pipeline_mode = #tpu.pipeline_mode<synchronous>, transform_indices = @transform_4, window_bounds = array<i64: 9, 4>}, {pipeline_mode = #tpu.pipeline_mode<synchronous>, transform_indices = @transform_5, window_bounds = array<i64: 1, 4>}, {pipeline_mode = #tpu.pipeline_mode<synchronous>, transform_indices = @transform_6, window_bounds = array<i64: 1, 4>}, {transform_indices = @transform_7, window_bounds = array<i64: 1, 8, 8, 4>}, {transform_indices = @transform_8, window_bounds = array<i64: 1, 1, 4>}]} {
    %c0 = arith.constant 0 : index
    %c0_0 = arith.constant 0 : index
    %0 = vector.load %arg6[%c0, %c0_0] : memref<9x4xf32, #tpu.memory_space<vmem>>, vector<9x4xf32>
    %c0_1 = arith.constant 0 : index
    %c0_2 = arith.constant 0 : index
    %1 = vector.load %arg7[%c0_1, %c0_2] : memref<1x4xf32, #tpu.memory_space<vmem>>, vector<1x4xf32>
    %2 = vector.shape_cast %1 : vector<1x4xf32> to vector<4xf32>
    %c0_3 = arith.constant 0 : index
    %c0_4 = arith.constant 0 : index
    %3 = vector.load %arg8[%c0_3, %c0_4] : memref<1x4xf32, #tpu.memory_space<vmem>>, vector<1x4xf32>
    %4 = vector.shape_cast %3 : vector<1x4xf32> to vector<4xf32>
    %c8_i32 = arith.constant 8 : i32
    %5 = arith.muli %arg1, %c8_i32 : i32
    %6 = tpu.assume_multiple %5, 8 : i32
    %c0_i32 = arith.constant 0 : i32
    %7 = arith.addi %6, %c0_i32 : i32
    %c0_5 = arith.constant 0 : index
    %8 = arith.index_cast %7 : i32 to index
    %c0_6 = arith.constant 0 : index
    %c0_7 = arith.constant 0 : index
    %9 = vector.load %arg2[%c0_5, %8, %c0_6, %c0_7] : memref<1x9x9x4xbf16, #tpu.memory_space<vmem>>, vector<1x8x8x4xbf16>
    %10 = vector.shape_cast %9 : vector<1x8x8x4xbf16> to vector<8x8x4xbf16>
    %11 = arith.extf %10 : vector<8x8x4xbf16> to vector<8x8x4xf32>
    %12 = vector.extract_strided_slice %0 {offsets = [0, 0], sizes = [1, 4], strides = [1, 1]} : vector<9x4xf32> to vector<1x4xf32>
    %13 = vector.shape_cast %12 : vector<1x4xf32> to vector<4xf32>
    %14 = vector.shape_cast %13 : vector<4xf32> to vector<1x1x4xf32>
    %15 = vector.broadcast %14 : vector<1x1x4xf32> to vector<8x8x4xf32>
    %16 = arith.mulf %11, %15 : vector<8x8x4xf32>
    %c0_i32_8 = arith.constant 0 : i32
    %17 = arith.addi %6, %c0_i32_8 : i32
    %c0_9 = arith.constant 0 : index
    %18 = arith.index_cast %17 : i32 to index
    %c0_10 = arith.constant 0 : index
    %c0_11 = arith.constant 0 : index
    %19 = vector.load %arg3[%c0_9, %18, %c0_10, %c0_11] : memref<1x9x9x4xbf16, #tpu.memory_space<vmem>>, vector<1x8x8x4xbf16>
    %20 = vector.shape_cast %19 : vector<1x8x8x4xbf16> to vector<8x8x4xbf16>
    %21 = arith.extf %20 : vector<8x8x4xbf16> to vector<8x8x4xf32>
    %22 = vector.extract_strided_slice %0 {offsets = [1, 0], sizes = [1, 4], strides = [1, 1]} : vector<9x4xf32> to vector<1x4xf32>
    %23 = vector.shape_cast %22 : vector<1x4xf32> to vector<4xf32>
    %24 = vector.shape_cast %23 : vector<4xf32> to vector<1x1x4xf32>
    %25 = vector.broadcast %24 : vector<1x1x4xf32> to vector<8x8x4xf32>
    %26 = arith.mulf %21, %25 : vector<8x8x4xf32>
    %27 = arith.addf %16, %26 : vector<8x8x4xf32>
    %c0_i32_12 = arith.constant 0 : i32
    %28 = arith.addi %6, %c0_i32_12 : i32
    %c0_13 = arith.constant 0 : index
    %29 = arith.index_cast %28 : i32 to index
    %c1 = arith.constant 1 : index
    %c0_14 = arith.constant 0 : index
    %30 = vector.load %arg2[%c0_13, %29, %c1, %c0_14] : memref<1x9x9x4xbf16, #tpu.memory_space<vmem>>, vector<1x8x8x4xbf16>
    %31 = vector.shape_cast %30 : vector<1x8x8x4xbf16> to vector<8x8x4xbf16>
    %32 = arith.extf %31 : vector<8x8x4xbf16> to vector<8x8x4xf32>
    %33 = vector.extract_strided_slice %0 {offsets = [2, 0], sizes = [1, 4], strides = [1, 1]} : vector<9x4xf32> to vector<1x4xf32>
    %34 = vector.shape_cast %33 : vector<1x4xf32> to vector<4xf32>
    %35 = vector.shape_cast %34 : vector<4xf32> to vector<1x1x4xf32>
    %36 = vector.broadcast %35 : vector<1x1x4xf32> to vector<8x8x4xf32>
    %37 = arith.mulf %32, %36 : vector<8x8x4xf32>
    %38 = arith.addf %27, %37 : vector<8x8x4xf32>
    %c0_i32_15 = arith.constant 0 : i32
    %39 = arith.addi %6, %c0_i32_15 : i32
    %c0_16 = arith.constant 0 : index
    %40 = arith.index_cast %39 : i32 to index
    %c0_17 = arith.constant 0 : index
    %c0_18 = arith.constant 0 : index
    %41 = vector.load %arg4[%c0_16, %40, %c0_17, %c0_18] : memref<1x9x9x4xbf16, #tpu.memory_space<vmem>>, vector<1x8x8x4xbf16>
    %42 = vector.shape_cast %41 : vector<1x8x8x4xbf16> to vector<8x8x4xbf16>
    %43 = arith.extf %42 : vector<8x8x4xbf16> to vector<8x8x4xf32>
    %44 = vector.extract_strided_slice %0 {offsets = [3, 0], sizes = [1, 4], strides = [1, 1]} : vector<9x4xf32> to vector<1x4xf32>
    %45 = vector.shape_cast %44 : vector<1x4xf32> to vector<4xf32>
    %46 = vector.shape_cast %45 : vector<4xf32> to vector<1x1x4xf32>
    %47 = vector.broadcast %46 : vector<1x1x4xf32> to vector<8x8x4xf32>
    %48 = arith.mulf %43, %47 : vector<8x8x4xf32>
    %49 = arith.addf %38, %48 : vector<8x8x4xf32>
    %c0_i32_19 = arith.constant 0 : i32
    %50 = arith.addi %6, %c0_i32_19 : i32
    %c0_20 = arith.constant 0 : index
    %51 = arith.index_cast %50 : i32 to index
    %c0_21 = arith.constant 0 : index
    %c0_22 = arith.constant 0 : index
    %52 = vector.load %arg5[%c0_20, %51, %c0_21, %c0_22] : memref<1x9x9x4xbf16, #tpu.memory_space<vmem>>, vector<1x8x8x4xbf16>
    %53 = vector.shape_cast %52 : vector<1x8x8x4xbf16> to vector<8x8x4xbf16>
    %54 = arith.extf %53 : vector<8x8x4xbf16> to vector<8x8x4xf32>
    %55 = vector.extract_strided_slice %0 {offsets = [4, 0], sizes = [1, 4], strides = [1, 1]} : vector<9x4xf32> to vector<1x4xf32>
    %56 = vector.shape_cast %55 : vector<1x4xf32> to vector<4xf32>
    %57 = vector.shape_cast %56 : vector<4xf32> to vector<1x1x4xf32>
    %58 = vector.broadcast %57 : vector<1x1x4xf32> to vector<8x8x4xf32>
    %59 = arith.mulf %54, %58 : vector<8x8x4xf32>
    %60 = arith.addf %49, %59 : vector<8x8x4xf32>
    %c0_i32_23 = arith.constant 0 : i32
    %61 = arith.addi %6, %c0_i32_23 : i32
    %c0_24 = arith.constant 0 : index
    %62 = arith.index_cast %61 : i32 to index
    %c1_25 = arith.constant 1 : index
    %c0_26 = arith.constant 0 : index
    %63 = vector.load %arg4[%c0_24, %62, %c1_25, %c0_26] : memref<1x9x9x4xbf16, #tpu.memory_space<vmem>>, vector<1x8x8x4xbf16>
    %64 = vector.shape_cast %63 : vector<1x8x8x4xbf16> to vector<8x8x4xbf16>
    %65 = arith.extf %64 : vector<8x8x4xbf16> to vector<8x8x4xf32>
    %66 = vector.extract_strided_slice %0 {offsets = [5, 0], sizes = [1, 4], strides = [1, 1]} : vector<9x4xf32> to vector<1x4xf32>
    %67 = vector.shape_cast %66 : vector<1x4xf32> to vector<4xf32>
    %68 = vector.shape_cast %67 : vector<4xf32> to vector<1x1x4xf32>
    %69 = vector.broadcast %68 : vector<1x1x4xf32> to vector<8x8x4xf32>
    %70 = arith.mulf %65, %69 : vector<8x8x4xf32>
    %71 = arith.addf %60, %70 : vector<8x8x4xf32>
    %c1_i32 = arith.constant 1 : i32
    %72 = arith.addi %6, %c1_i32 : i32
    %c0_27 = arith.constant 0 : index
    %73 = arith.index_cast %72 : i32 to index
    %c0_28 = arith.constant 0 : index
    %c0_29 = arith.constant 0 : index
    %74 = vector.load %arg2[%c0_27, %73, %c0_28, %c0_29] : memref<1x9x9x4xbf16, #tpu.memory_space<vmem>>, vector<1x8x8x4xbf16>
    %75 = vector.shape_cast %74 : vector<1x8x8x4xbf16> to vector<8x8x4xbf16>
    %76 = arith.extf %75 : vector<8x8x4xbf16> to vector<8x8x4xf32>
    %77 = vector.extract_strided_slice %0 {offsets = [6, 0], sizes = [1, 4], strides = [1, 1]} : vector<9x4xf32> to vector<1x4xf32>
    %78 = vector.shape_cast %77 : vector<1x4xf32> to vector<4xf32>
    %79 = vector.shape_cast %78 : vector<4xf32> to vector<1x1x4xf32>
    %80 = vector.broadcast %79 : vector<1x1x4xf32> to vector<8x8x4xf32>
    %81 = arith.mulf %76, %80 : vector<8x8x4xf32>
    %82 = arith.addf %71, %81 : vector<8x8x4xf32>
    %c1_i32_30 = arith.constant 1 : i32
    %83 = arith.addi %6, %c1_i32_30 : i32
    %c0_31 = arith.constant 0 : index
    %84 = arith.index_cast %83 : i32 to index
    %c0_32 = arith.constant 0 : index
    %c0_33 = arith.constant 0 : index
    %85 = vector.load %arg3[%c0_31, %84, %c0_32, %c0_33] : memref<1x9x9x4xbf16, #tpu.memory_space<vmem>>, vector<1x8x8x4xbf16>
    %86 = vector.shape_cast %85 : vector<1x8x8x4xbf16> to vector<8x8x4xbf16>
    %87 = arith.extf %86 : vector<8x8x4xbf16> to vector<8x8x4xf32>
    %88 = vector.extract_strided_slice %0 {offsets = [7, 0], sizes = [1, 4], strides = [1, 1]} : vector<9x4xf32> to vector<1x4xf32>
    %89 = vector.shape_cast %88 : vector<1x4xf32> to vector<4xf32>
    %90 = vector.shape_cast %89 : vector<4xf32> to vector<1x1x4xf32>
    %91 = vector.broadcast %90 : vector<1x1x4xf32> to vector<8x8x4xf32>
    %92 = arith.mulf %87, %91 : vector<8x8x4xf32>
    %93 = arith.addf %82, %92 : vector<8x8x4xf32>
    %c1_i32_34 = arith.constant 1 : i32
    %94 = arith.addi %6, %c1_i32_34 : i32
    %c0_35 = arith.constant 0 : index
    %95 = arith.index_cast %94 : i32 to index
    %c1_36 = arith.constant 1 : index
    %c0_37 = arith.constant 0 : index
    %96 = vector.load %arg2[%c0_35, %95, %c1_36, %c0_37] : memref<1x9x9x4xbf16, #tpu.memory_space<vmem>>, vector<1x8x8x4xbf16>
    %97 = vector.shape_cast %96 : vector<1x8x8x4xbf16> to vector<8x8x4xbf16>
    %98 = arith.extf %97 : vector<8x8x4xbf16> to vector<8x8x4xf32>
    %99 = vector.extract_strided_slice %0 {offsets = [8, 0], sizes = [1, 4], strides = [1, 1]} : vector<9x4xf32> to vector<1x4xf32>
    %100 = vector.shape_cast %99 : vector<1x4xf32> to vector<4xf32>
    %101 = vector.shape_cast %100 : vector<4xf32> to vector<1x1x4xf32>
    %102 = vector.broadcast %101 : vector<1x1x4xf32> to vector<8x8x4xf32>
    %103 = arith.mulf %98, %102 : vector<8x8x4xf32>
    %104 = arith.addf %93, %103 : vector<8x8x4xf32>
    %105 = vector.shape_cast %2 : vector<4xf32> to vector<1x1x4xf32>
    %106 = vector.broadcast %105 : vector<1x1x4xf32> to vector<8x8x4xf32>
    %107 = arith.mulf %104, %106 : vector<8x8x4xf32>
    %108 = vector.shape_cast %4 : vector<4xf32> to vector<1x1x4xf32>
    %109 = vector.broadcast %108 : vector<1x1x4xf32> to vector<8x8x4xf32>
    %110 = arith.addf %107, %109 : vector<8x8x4xf32>
    %111 = arith.truncf %110 : vector<8x8x4xf32> to vector<8x8x4xbf16>
    %c0_38 = arith.constant 0 : index
    %c0_39 = arith.constant 0 : index
    %c0_40 = arith.constant 0 : index
    %c0_41 = arith.constant 0 : index
    %112 = vector.load %arg9[%c0_38, %c0_39, %c0_40, %c0_41] : memref<1x8x8x4xbf16, #tpu.memory_space<vmem>>, vector<1x8x8x4xbf16>
    %113 = vector.shape_cast %112 : vector<1x8x8x4xbf16> to vector<8x8x4xbf16>
    %114 = vector.shape_cast %111 : vector<8x8x4xbf16> to vector<1x8x8x4xbf16>
    tpu.vector_store %arg9[%c0_38, %c0_39, %c0_40, %c0_41], %114 {strides = array<i32>} : memref<1x8x8x4xbf16, #tpu.memory_space<vmem>>, vector<1x8x8x4xbf16>,
    %c0_i32_42 = arith.constant 0 : i32
    %115 = arith.cmpi eq, %arg1, %c0_i32_42 : i32
    %116 = arith.extui %115 : i1 to i32
    %c0_i32_43 = arith.constant 0 : i32
    %117 = arith.cmpi ne, %116, %c0_i32_43 : i32
    scf.if %117 {
      %cst_50 = arith.constant 0.000000e+00 : f32
      %123 = vector.broadcast %cst_50 : f32 to vector<1x1x4xf32>
      %c0_51 = arith.constant 0 : index
      %c0_52 = arith.constant 0 : index
      %c0_53 = arith.constant 0 : index
      %124 = vector.load %arg10[%c0_51, %c0_52, %c0_53] : memref<1x1x4xf32, #tpu.memory_space<vmem>>, vector<1x1x4xf32>
      tpu.vector_store %arg10[%c0_51, %c0_52, %c0_53], %123 {strides = array<i32>} : memref<1x1x4xf32, #tpu.memory_space<vmem>>, vector<1x1x4xf32>,
    } else {
    }
    %c0_44 = arith.constant 0 : index
    %c0_45 = arith.constant 0 : index
    %c0_46 = arith.constant 0 : index
    %118 = vector.load %arg10[%c0_44, %c0_45, %c0_46] : memref<1x1x4xf32, #tpu.memory_space<vmem>>, vector<1x1x4xf32>
    %cst = arith.constant dense<0.000000e+00> : vector<4xf32>
    %119 = vector.multi_reduction <add>, %110, %cst [0, 1] : vector<8x8x4xf32> to vector<4xf32>
    %120 = vector.shape_cast %119 : vector<4xf32> to vector<1x1x4xf32>
    %121 = arith.addf %118, %120 : vector<1x1x4xf32>
    %c0_47 = arith.constant 0 : index
    %c0_48 = arith.constant 0 : index
    %c0_49 = arith.constant 0 : index
    %122 = vector.load %arg10[%c0_47, %c0_48, %c0_49] : memref<1x1x4xf32, #tpu.memory_space<vmem>>, vector<1x1x4xf32>
    tpu.vector_store %arg10[%c0_47, %c0_48, %c0_49], %121 {strides = array<i32>} : memref<1x1x4xf32, #tpu.memory_space<vmem>>, vector<1x1x4xf32>,
    return
  }
  func.func @transform_0(%arg0: i32, %arg1: i32) -> (i32, i32, i32, i32) {
    %c0_i32 = arith.constant 0 : i32
    %c0_i32_0 = arith.constant 0 : i32
    %c0_i32_1 = arith.constant 0 : i32
    %c0_i32_2 = arith.constant 0 : i32
    return %arg0, %c0_i32, %c0_i32_0, %c0_i32_1 : i32, i32, i32, i32
  }
  func.func @transform_1(%arg0: i32, %arg1: i32) -> (i32, i32, i32, i32) {
    %c0_i32 = arith.constant 0 : i32
    %c0_i32_0 = arith.constant 0 : i32
    %c0_i32_1 = arith.constant 0 : i32
    %c0_i32_2 = arith.constant 0 : i32
    return %arg0, %c0_i32, %c0_i32_0, %c0_i32_1 : i32, i32, i32, i32
  }
  func.func @transform_2(%arg0: i32, %arg1: i32) -> (i32, i32, i32, i32) {
    %c0_i32 = arith.constant 0 : i32
    %c0_i32_0 = arith.constant 0 : i32
    %c0_i32_1 = arith.constant 0 : i32
    %c0_i32_2 = arith.constant 0 : i32
    return %arg0, %c0_i32, %c0_i32_0, %c0_i32_1 : i32, i32, i32, i32
  }
  func.func @transform_3(%arg0: i32, %arg1: i32) -> (i32, i32, i32, i32) {
    %c0_i32 = arith.constant 0 : i32
    %c0_i32_0 = arith.constant 0 : i32
    %c0_i32_1 = arith.constant 0 : i32
    %c0_i32_2 = arith.constant 0 : i32
    return %arg0, %c0_i32, %c0_i32_0, %c0_i32_1 : i32, i32, i32, i32
  }
  func.func @transform_4(%arg0: i32, %arg1: i32) -> (i32, i32) {
    %c0_i32 = arith.constant 0 : i32
    %c0_i32_0 = arith.constant 0 : i32
    %c0_i32_1 = arith.constant 0 : i32
    return %c0_i32, %c0_i32_0 : i32, i32
  }
  func.func @transform_5(%arg0: i32, %arg1: i32) -> (i32, i32) {
    %c0_i32 = arith.constant 0 : i32
    %c0_i32_0 = arith.constant 0 : i32
    %c0_i32_1 = arith.constant 0 : i32
    return %c0_i32, %c0_i32_0 : i32, i32
  }
  func.func @transform_6(%arg0: i32, %arg1: i32) -> (i32, i32) {
    %c0_i32 = arith.constant 0 : i32
    %c0_i32_0 = arith.constant 0 : i32
    %c0_i32_1 = arith.constant 0 : i32
    return %c0_i32, %c0_i32_0 : i32, i32
  }
  func.func @transform_7(%arg0: i32, %arg1: i32) -> (i32, i32, i32, i32) {
    %c0_i32 = arith.constant 0 : i32
    %c0_i32_0 = arith.constant 0 : i32
    %c0_i32_1 = arith.constant 0 : i32
    return %arg0, %arg1, %c0_i32, %c0_i32_0 : i32, i32, i32, i32
  }
  func.func @transform_8(%arg0: i32, %arg1: i32) -> (i32, i32, i32) {
    %c0_i32 = arith.constant 0 : i32
    %c0_i32_0 = arith.constant 0 : i32
    %c0_i32_1 = arith.constant 0 : i32
    return %arg0, %c0_i32, %c0_i32_0 : i32, i32, i32
  }
}

module attributes {stable_mosaic.version = 11 : i64} {
  func.func @_se_fc_kernel(%arg0: memref<2x1x4xf32, #tpu.memory_space<vmem>>, %arg1: memref<4x1xf32, #tpu.memory_space<vmem>>, %arg2: memref<1x1xf32, #tpu.memory_space<vmem>>, %arg3: memref<1x4xf32, #tpu.memory_space<vmem>>, %arg4: memref<1x4xf32, #tpu.memory_space<vmem>>, %arg5: memref<2x1x4xf32, #tpu.memory_space<vmem>>) attributes {dimension_semantics = [], scalar_prefetch = 0 : i64, scratch_operands = 0 : i64, tpu.core_type = #tpu.core_type<tc>} {
    %c0 = arith.constant 0 : index
    %c0_0 = arith.constant 0 : index
    %c0_1 = arith.constant 0 : index
    %0 = vector.load %arg0[%c0, %c0_0, %c0_1] : memref<2x1x4xf32, #tpu.memory_space<vmem>>, vector<2x1x4xf32>
    %1 = vector.shape_cast %0 : vector<2x1x4xf32> to vector<2x4xf32>
    %cst = arith.constant 1.562500e-02 : f32
    %2 = vector.broadcast %cst : f32 to vector<2x4xf32>
    %3 = arith.mulf %1, %2 : vector<2x4xf32>
    %c0_2 = arith.constant 0 : index
    %c0_3 = arith.constant 0 : index
    %4 = vector.load %arg1[%c0_2, %c0_3] : memref<4x1xf32, #tpu.memory_space<vmem>>, vector<4x1xf32>
    %cst_4 = arith.constant dense<0.000000e+00> : vector<2x1xf32>
    %5 = tpu.matmul %3, %4, %cst_4 {dimension_numbers = #tpu.dot_dimension_numbers<[1], [0], [0], [1], [0, 0, 1, 1], [], []>} : vector<2x4xf32>, vector<4x1xf32>, vector<2x1xf32> -> vector<2x1xf32>
    %c0_5 = arith.constant 0 : index
    %c0_6 = arith.constant 0 : index
    %6 = vector.load %arg2[%c0_5, %c0_6] : memref<1x1xf32, #tpu.memory_space<vmem>>, vector<1x1xf32>
    %7 = vector.broadcast %6 : vector<1x1xf32> to vector<2x1xf32>
    %8 = arith.addf %5, %7 : vector<2x1xf32>
    %cst_7 = arith.constant 0.000000e+00 : f32
    %9 = vector.broadcast %cst_7 : f32 to vector<2x1xf32>
    %10 = arith.maximumf %8, %9 : vector<2x1xf32>
    %c0_8 = arith.constant 0 : index
    %c0_9 = arith.constant 0 : index
    %11 = vector.load %arg3[%c0_8, %c0_9] : memref<1x4xf32, #tpu.memory_space<vmem>>, vector<1x4xf32>
    %cst_10 = arith.constant dense<0.000000e+00> : vector<2x4xf32>
    %12 = tpu.matmul %10, %11, %cst_10 {dimension_numbers = #tpu.dot_dimension_numbers<[1], [0], [0], [1], [0, 0, 1, 1], [], []>} : vector<2x1xf32>, vector<1x4xf32>, vector<2x4xf32> -> vector<2x4xf32>
    %c0_11 = arith.constant 0 : index
    %c0_12 = arith.constant 0 : index
    %13 = vector.load %arg4[%c0_11, %c0_12] : memref<1x4xf32, #tpu.memory_space<vmem>>, vector<1x4xf32>
    %14 = vector.broadcast %13 : vector<1x4xf32> to vector<2x4xf32>
    %15 = arith.addf %12, %14 : vector<2x4xf32>
    %cst_13 = arith.constant 3.000000e+00 : f32
    %16 = vector.broadcast %cst_13 : f32 to vector<2x4xf32>
    %17 = arith.addf %15, %16 : vector<2x4xf32>
    %cst_14 = arith.constant 0.000000e+00 : f32
    %cst_15 = arith.constant 6.000000e+00 : f32
    %18 = vector.broadcast %cst_14 : f32 to vector<2x4xf32>
    %19 = arith.maximumf %18, %17 : vector<2x4xf32>
    %20 = vector.broadcast %cst_15 : f32 to vector<2x4xf32>
    %21 = arith.minimumf %20, %19 : vector<2x4xf32>
    %cst_16 = arith.constant 0.166666672 : f32
    %22 = vector.broadcast %cst_16 : f32 to vector<2x4xf32>
    %23 = arith.mulf %21, %22 : vector<2x4xf32>
    %24 = vector.shape_cast %23 : vector<2x4xf32> to vector<2x1x4xf32>
    %c0_17 = arith.constant 0 : index
    %c0_18 = arith.constant 0 : index
    %c0_19 = arith.constant 0 : index
    %25 = vector.load %arg5[%c0_17, %c0_18, %c0_19] : memref<2x1x4xf32, #tpu.memory_space<vmem>>, vector<2x1x4xf32>
    tpu.vector_store %arg5[%c0_17, %c0_18, %c0_19], %24 {strides = array<i32>} : memref<2x1x4xf32, #tpu.memory_space<vmem>>, vector<2x1x4xf32>,
    return
  }
}

module attributes {stable_mosaic.version = 11 : i64} {
  func.func @_pw_kernel(%arg0: i32, %arg1: i32, %arg2: memref<1x64x4xbf16, #tpu.memory_space<vmem>>, %arg3: memref<1x1x4xbf16, #tpu.memory_space<vmem>>, %arg4: memref<4x4xbf16, #tpu.memory_space<vmem>>, %arg5: memref<1x4xf32, #tpu.memory_space<vmem>>, %arg6: memref<1x4xf32, #tpu.memory_space<vmem>>, %arg7: memref<1x64x4xbf16, #tpu.memory_space<vmem>>) attributes {dimension_semantics = [#tpu.dimension_semantics<parallel>, #tpu.dimension_semantics<parallel>], iteration_bounds = array<i64: 2, 1>, scalar_prefetch = 0 : i64, scratch_operands = 0 : i64, tpu.core_type = #tpu.core_type<tc>, window_params = [{transform_indices = @transform_0, window_bounds = array<i64: 1, 64, 4>}, {transform_indices = @transform_1, window_bounds = array<i64: 1, 1, 4>}, {pipeline_mode = #tpu.pipeline_mode<synchronous>, transform_indices = @transform_2, window_bounds = array<i64: 4, 4>}, {pipeline_mode = #tpu.pipeline_mode<synchronous>, transform_indices = @transform_3, window_bounds = array<i64: 1, 4>}, {pipeline_mode = #tpu.pipeline_mode<synchronous>, transform_indices = @transform_4, window_bounds = array<i64: 1, 4>}, {transform_indices = @transform_5, window_bounds = array<i64: 1, 64, 4>}]} {
    %c0 = arith.constant 0 : index
    %c0_0 = arith.constant 0 : index
    %c0_1 = arith.constant 0 : index
    %0 = vector.load %arg2[%c0, %c0_0, %c0_1] : memref<1x64x4xbf16, #tpu.memory_space<vmem>>, vector<1x64x4xbf16>
    %1 = vector.shape_cast %0 : vector<1x64x4xbf16> to vector<64x4xbf16>
    %c0_2 = arith.constant 0 : index
    %c0_3 = arith.constant 0 : index
    %c0_4 = arith.constant 0 : index
    %2 = vector.load %arg3[%c0_2, %c0_3, %c0_4] : memref<1x1x4xbf16, #tpu.memory_space<vmem>>, vector<1x1x4xbf16>
    %3 = vector.shape_cast %2 : vector<1x1x4xbf16> to vector<1x4xbf16>
    %4 = vector.broadcast %3 : vector<1x4xbf16> to vector<64x4xbf16>
    %5 = arith.mulf %1, %4 : vector<64x4xbf16>
    %c0_5 = arith.constant 0 : index
    %c0_6 = arith.constant 0 : index
    %6 = vector.load %arg4[%c0_5, %c0_6] : memref<4x4xbf16, #tpu.memory_space<vmem>>, vector<4x4xbf16>
    %cst = arith.constant dense<0.000000e+00> : vector<64x4xf32>
    %7 = tpu.matmul %5, %6, %cst {dimension_numbers = #tpu.dot_dimension_numbers<[1], [0], [0], [1], [0, 0, 1, 1], [], []>} : vector<64x4xbf16>, vector<4x4xbf16>, vector<64x4xf32> -> vector<64x4xf32>
    %c0_7 = arith.constant 0 : index
    %c0_8 = arith.constant 0 : index
    %8 = vector.load %arg5[%c0_7, %c0_8] : memref<1x4xf32, #tpu.memory_space<vmem>>, vector<1x4xf32>
    %9 = vector.broadcast %8 : vector<1x4xf32> to vector<64x4xf32>
    %10 = arith.mulf %7, %9 : vector<64x4xf32>
    %c0_9 = arith.constant 0 : index
    %c0_10 = arith.constant 0 : index
    %11 = vector.load %arg6[%c0_9, %c0_10] : memref<1x4xf32, #tpu.memory_space<vmem>>, vector<1x4xf32>
    %12 = vector.broadcast %11 : vector<1x4xf32> to vector<64x4xf32>
    %13 = arith.addf %10, %12 : vector<64x4xf32>
    %cst_11 = arith.constant 3.000000e+00 : f32
    %14 = vector.broadcast %cst_11 : f32 to vector<64x4xf32>
    %15 = arith.addf %13, %14 : vector<64x4xf32>
    %cst_12 = arith.constant 0.000000e+00 : f32
    %cst_13 = arith.constant 6.000000e+00 : f32
    %16 = vector.broadcast %cst_12 : f32 to vector<64x4xf32>
    %17 = arith.maximumf %16, %15 : vector<64x4xf32>
    %18 = vector.broadcast %cst_13 : f32 to vector<64x4xf32>
    %19 = arith.minimumf %18, %17 : vector<64x4xf32>
    %20 = arith.mulf %13, %19 : vector<64x4xf32>
    %cst_14 = arith.constant 0.166666672 : f32
    %21 = vector.broadcast %cst_14 : f32 to vector<64x4xf32>
    %22 = arith.mulf %20, %21 : vector<64x4xf32>
    %23 = arith.truncf %22 : vector<64x4xf32> to vector<64x4xbf16>
    %c0_15 = arith.constant 0 : index
    %c0_16 = arith.constant 0 : index
    %c0_17 = arith.constant 0 : index
    %24 = vector.load %arg7[%c0_15, %c0_16, %c0_17] : memref<1x64x4xbf16, #tpu.memory_space<vmem>>, vector<1x64x4xbf16>
    %25 = vector.shape_cast %24 : vector<1x64x4xbf16> to vector<64x4xbf16>
    %26 = vector.shape_cast %23 : vector<64x4xbf16> to vector<1x64x4xbf16>
    tpu.vector_store %arg7[%c0_15, %c0_16, %c0_17], %26 {strides = array<i32>} : memref<1x64x4xbf16, #tpu.memory_space<vmem>>, vector<1x64x4xbf16>,
    return
  }
  func.func @transform_0(%arg0: i32, %arg1: i32) -> (i32, i32, i32) {
    %c0_i32 = arith.constant 0 : i32
    %c0_i32_0 = arith.constant 0 : i32
    return %arg0, %arg1, %c0_i32 : i32, i32, i32
  }
  func.func @transform_1(%arg0: i32, %arg1: i32) -> (i32, i32, i32) {
    %c0_i32 = arith.constant 0 : i32
    %c0_i32_0 = arith.constant 0 : i32
    %c0_i32_1 = arith.constant 0 : i32
    return %arg0, %c0_i32, %c0_i32_0 : i32, i32, i32
  }
  func.func @transform_2(%arg0: i32, %arg1: i32) -> (i32, i32) {
    %c0_i32 = arith.constant 0 : i32
    %c0_i32_0 = arith.constant 0 : i32
    %c0_i32_1 = arith.constant 0 : i32
    return %c0_i32, %c0_i32_0 : i32, i32
  }
  func.func @transform_3(%arg0: i32, %arg1: i32) -> (i32, i32) {
    %c0_i32 = arith.constant 0 : i32
    %c0_i32_0 = arith.constant 0 : i32
    %c0_i32_1 = arith.constant 0 : i32
    return %c0_i32, %c0_i32_0 : i32, i32
  }
  func.func @transform_4(%arg0: i32, %arg1: i32) -> (i32, i32) {
    %c0_i32 = arith.constant 0 : i32
    %c0_i32_0 = arith.constant 0 : i32
    %c0_i32_1 = arith.constant 0 : i32
    return %c0_i32, %c0_i32_0 : i32, i32
  }
  func.func @transform_5(%arg0: i32, %arg1: i32) -> (i32, i32, i32) {
    %c0_i32 = arith.constant 0 : i32
    %c0_i32_0 = arith.constant 0 : i32
    return %arg0, %arg1, %c0_i32 : i32, i32, i32
  }
}

module attributes {stable_mosaic.version = 11 : i64} {
  func.func @_dw_pw_kernel(%arg0: i32, %arg1: i32, %arg2: memref<1x9x9x4xbf16, #tpu.memory_space<vmem>>, %arg3: memref<1x9x9x4xbf16, #tpu.memory_space<vmem>>, %arg4: memref<1x9x9x4xbf16, #tpu.memory_space<vmem>>, %arg5: memref<1x9x9x4xbf16, #tpu.memory_space<vmem>>, %arg6: memref<9x4xf32, #tpu.memory_space<vmem>>, %arg7: memref<1x4xf32, #tpu.memory_space<vmem>>, %arg8: memref<1x4xf32, #tpu.memory_space<vmem>>, %arg9: memref<4x4xbf16, #tpu.memory_space<vmem>>, %arg10: memref<1x4xf32, #tpu.memory_space<vmem>>, %arg11: memref<1x4xf32, #tpu.memory_space<vmem>>, %arg12: memref<1x8x8x4xbf16, #tpu.memory_space<vmem>>) attributes {dimension_semantics = [#tpu.dimension_semantics<parallel>, #tpu.dimension_semantics<parallel>], iteration_bounds = array<i64: 2, 1>, scalar_prefetch = 0 : i64, scratch_operands = 0 : i64, tpu.core_type = #tpu.core_type<tc>, window_params = [{transform_indices = @transform_0, window_bounds = array<i64: 1, 9, 9, 4>}, {transform_indices = @transform_1, window_bounds = array<i64: 1, 9, 9, 4>}, {transform_indices = @transform_2, window_bounds = array<i64: 1, 9, 9, 4>}, {transform_indices = @transform_3, window_bounds = array<i64: 1, 9, 9, 4>}, {pipeline_mode = #tpu.pipeline_mode<synchronous>, transform_indices = @transform_4, window_bounds = array<i64: 9, 4>}, {pipeline_mode = #tpu.pipeline_mode<synchronous>, transform_indices = @transform_5, window_bounds = array<i64: 1, 4>}, {pipeline_mode = #tpu.pipeline_mode<synchronous>, transform_indices = @transform_6, window_bounds = array<i64: 1, 4>}, {pipeline_mode = #tpu.pipeline_mode<synchronous>, transform_indices = @transform_7, window_bounds = array<i64: 4, 4>}, {pipeline_mode = #tpu.pipeline_mode<synchronous>, transform_indices = @transform_8, window_bounds = array<i64: 1, 4>}, {pipeline_mode = #tpu.pipeline_mode<synchronous>, transform_indices = @transform_9, window_bounds = array<i64: 1, 4>}, {transform_indices = @transform_10, window_bounds = array<i64: 1, 8, 8, 4>}]} {
    %c0 = arith.constant 0 : index
    %c0_0 = arith.constant 0 : index
    %0 = vector.load %arg6[%c0, %c0_0] : memref<9x4xf32, #tpu.memory_space<vmem>>, vector<9x4xf32>
    %c0_1 = arith.constant 0 : index
    %c0_2 = arith.constant 0 : index
    %1 = vector.load %arg7[%c0_1, %c0_2] : memref<1x4xf32, #tpu.memory_space<vmem>>, vector<1x4xf32>
    %2 = vector.shape_cast %1 : vector<1x4xf32> to vector<4xf32>
    %c0_3 = arith.constant 0 : index
    %c0_4 = arith.constant 0 : index
    %3 = vector.load %arg8[%c0_3, %c0_4] : memref<1x4xf32, #tpu.memory_space<vmem>>, vector<1x4xf32>
    %4 = vector.shape_cast %3 : vector<1x4xf32> to vector<4xf32>
    %c8_i32 = arith.constant 8 : i32
    %5 = arith.muli %arg1, %c8_i32 : i32
    %6 = tpu.assume_multiple %5, 8 : i32
    %c0_i32 = arith.constant 0 : i32
    %7 = arith.addi %6, %c0_i32 : i32
    %c0_5 = arith.constant 0 : index
    %8 = arith.index_cast %7 : i32 to index
    %c0_6 = arith.constant 0 : index
    %c0_7 = arith.constant 0 : index
    %9 = vector.load %arg2[%c0_5, %8, %c0_6, %c0_7] : memref<1x9x9x4xbf16, #tpu.memory_space<vmem>>, vector<1x8x8x4xbf16>
    %10 = vector.shape_cast %9 : vector<1x8x8x4xbf16> to vector<8x8x4xbf16>
    %11 = arith.extf %10 : vector<8x8x4xbf16> to vector<8x8x4xf32>
    %12 = vector.extract_strided_slice %0 {offsets = [0, 0], sizes = [1, 4], strides = [1, 1]} : vector<9x4xf32> to vector<1x4xf32>
    %13 = vector.shape_cast %12 : vector<1x4xf32> to vector<4xf32>
    %14 = vector.shape_cast %13 : vector<4xf32> to vector<1x1x4xf32>
    %15 = vector.broadcast %14 : vector<1x1x4xf32> to vector<8x8x4xf32>
    %16 = arith.mulf %11, %15 : vector<8x8x4xf32>
    %c0_i32_8 = arith.constant 0 : i32
    %17 = arith.addi %6, %c0_i32_8 : i32
    %c0_9 = arith.constant 0 : index
    %18 = arith.index_cast %17 : i32 to index
    %c0_10 = arith.constant 0 : index
    %c0_11 = arith.constant 0 : index
    %19 = vector.load %arg3[%c0_9, %18, %c0_10, %c0_11] : memref<1x9x9x4xbf16, #tpu.memory_space<vmem>>, vector<1x8x8x4xbf16>
    %20 = vector.shape_cast %19 : vector<1x8x8x4xbf16> to vector<8x8x4xbf16>
    %21 = arith.extf %20 : vector<8x8x4xbf16> to vector<8x8x4xf32>
    %22 = vector.extract_strided_slice %0 {offsets = [1, 0], sizes = [1, 4], strides = [1, 1]} : vector<9x4xf32> to vector<1x4xf32>
    %23 = vector.shape_cast %22 : vector<1x4xf32> to vector<4xf32>
    %24 = vector.shape_cast %23 : vector<4xf32> to vector<1x1x4xf32>
    %25 = vector.broadcast %24 : vector<1x1x4xf32> to vector<8x8x4xf32>
    %26 = arith.mulf %21, %25 : vector<8x8x4xf32>
    %27 = arith.addf %16, %26 : vector<8x8x4xf32>
    %c0_i32_12 = arith.constant 0 : i32
    %28 = arith.addi %6, %c0_i32_12 : i32
    %c0_13 = arith.constant 0 : index
    %29 = arith.index_cast %28 : i32 to index
    %c1 = arith.constant 1 : index
    %c0_14 = arith.constant 0 : index
    %30 = vector.load %arg2[%c0_13, %29, %c1, %c0_14] : memref<1x9x9x4xbf16, #tpu.memory_space<vmem>>, vector<1x8x8x4xbf16>
    %31 = vector.shape_cast %30 : vector<1x8x8x4xbf16> to vector<8x8x4xbf16>
    %32 = arith.extf %31 : vector<8x8x4xbf16> to vector<8x8x4xf32>
    %33 = vector.extract_strided_slice %0 {offsets = [2, 0], sizes = [1, 4], strides = [1, 1]} : vector<9x4xf32> to vector<1x4xf32>
    %34 = vector.shape_cast %33 : vector<1x4xf32> to vector<4xf32>
    %35 = vector.shape_cast %34 : vector<4xf32> to vector<1x1x4xf32>
    %36 = vector.broadcast %35 : vector<1x1x4xf32> to vector<8x8x4xf32>
    %37 = arith.mulf %32, %36 : vector<8x8x4xf32>
    %38 = arith.addf %27, %37 : vector<8x8x4xf32>
    %c0_i32_15 = arith.constant 0 : i32
    %39 = arith.addi %6, %c0_i32_15 : i32
    %c0_16 = arith.constant 0 : index
    %40 = arith.index_cast %39 : i32 to index
    %c0_17 = arith.constant 0 : index
    %c0_18 = arith.constant 0 : index
    %41 = vector.load %arg4[%c0_16, %40, %c0_17, %c0_18] : memref<1x9x9x4xbf16, #tpu.memory_space<vmem>>, vector<1x8x8x4xbf16>
    %42 = vector.shape_cast %41 : vector<1x8x8x4xbf16> to vector<8x8x4xbf16>
    %43 = arith.extf %42 : vector<8x8x4xbf16> to vector<8x8x4xf32>
    %44 = vector.extract_strided_slice %0 {offsets = [3, 0], sizes = [1, 4], strides = [1, 1]} : vector<9x4xf32> to vector<1x4xf32>
    %45 = vector.shape_cast %44 : vector<1x4xf32> to vector<4xf32>
    %46 = vector.shape_cast %45 : vector<4xf32> to vector<1x1x4xf32>
    %47 = vector.broadcast %46 : vector<1x1x4xf32> to vector<8x8x4xf32>
    %48 = arith.mulf %43, %47 : vector<8x8x4xf32>
    %49 = arith.addf %38, %48 : vector<8x8x4xf32>
    %c0_i32_19 = arith.constant 0 : i32
    %50 = arith.addi %6, %c0_i32_19 : i32
    %c0_20 = arith.constant 0 : index
    %51 = arith.index_cast %50 : i32 to index
    %c0_21 = arith.constant 0 : index
    %c0_22 = arith.constant 0 : index
    %52 = vector.load %arg5[%c0_20, %51, %c0_21, %c0_22] : memref<1x9x9x4xbf16, #tpu.memory_space<vmem>>, vector<1x8x8x4xbf16>
    %53 = vector.shape_cast %52 : vector<1x8x8x4xbf16> to vector<8x8x4xbf16>
    %54 = arith.extf %53 : vector<8x8x4xbf16> to vector<8x8x4xf32>
    %55 = vector.extract_strided_slice %0 {offsets = [4, 0], sizes = [1, 4], strides = [1, 1]} : vector<9x4xf32> to vector<1x4xf32>
    %56 = vector.shape_cast %55 : vector<1x4xf32> to vector<4xf32>
    %57 = vector.shape_cast %56 : vector<4xf32> to vector<1x1x4xf32>
    %58 = vector.broadcast %57 : vector<1x1x4xf32> to vector<8x8x4xf32>
    %59 = arith.mulf %54, %58 : vector<8x8x4xf32>
    %60 = arith.addf %49, %59 : vector<8x8x4xf32>
    %c0_i32_23 = arith.constant 0 : i32
    %61 = arith.addi %6, %c0_i32_23 : i32
    %c0_24 = arith.constant 0 : index
    %62 = arith.index_cast %61 : i32 to index
    %c1_25 = arith.constant 1 : index
    %c0_26 = arith.constant 0 : index
    %63 = vector.load %arg4[%c0_24, %62, %c1_25, %c0_26] : memref<1x9x9x4xbf16, #tpu.memory_space<vmem>>, vector<1x8x8x4xbf16>
    %64 = vector.shape_cast %63 : vector<1x8x8x4xbf16> to vector<8x8x4xbf16>
    %65 = arith.extf %64 : vector<8x8x4xbf16> to vector<8x8x4xf32>
    %66 = vector.extract_strided_slice %0 {offsets = [5, 0], sizes = [1, 4], strides = [1, 1]} : vector<9x4xf32> to vector<1x4xf32>
    %67 = vector.shape_cast %66 : vector<1x4xf32> to vector<4xf32>
    %68 = vector.shape_cast %67 : vector<4xf32> to vector<1x1x4xf32>
    %69 = vector.broadcast %68 : vector<1x1x4xf32> to vector<8x8x4xf32>
    %70 = arith.mulf %65, %69 : vector<8x8x4xf32>
    %71 = arith.addf %60, %70 : vector<8x8x4xf32>
    %c1_i32 = arith.constant 1 : i32
    %72 = arith.addi %6, %c1_i32 : i32
    %c0_27 = arith.constant 0 : index
    %73 = arith.index_cast %72 : i32 to index
    %c0_28 = arith.constant 0 : index
    %c0_29 = arith.constant 0 : index
    %74 = vector.load %arg2[%c0_27, %73, %c0_28, %c0_29] : memref<1x9x9x4xbf16, #tpu.memory_space<vmem>>, vector<1x8x8x4xbf16>
    %75 = vector.shape_cast %74 : vector<1x8x8x4xbf16> to vector<8x8x4xbf16>
    %76 = arith.extf %75 : vector<8x8x4xbf16> to vector<8x8x4xf32>
    %77 = vector.extract_strided_slice %0 {offsets = [6, 0], sizes = [1, 4], strides = [1, 1]} : vector<9x4xf32> to vector<1x4xf32>
    %78 = vector.shape_cast %77 : vector<1x4xf32> to vector<4xf32>
    %79 = vector.shape_cast %78 : vector<4xf32> to vector<1x1x4xf32>
    %80 = vector.broadcast %79 : vector<1x1x4xf32> to vector<8x8x4xf32>
    %81 = arith.mulf %76, %80 : vector<8x8x4xf32>
    %82 = arith.addf %71, %81 : vector<8x8x4xf32>
    %c1_i32_30 = arith.constant 1 : i32
    %83 = arith.addi %6, %c1_i32_30 : i32
    %c0_31 = arith.constant 0 : index
    %84 = arith.index_cast %83 : i32 to index
    %c0_32 = arith.constant 0 : index
    %c0_33 = arith.constant 0 : index
    %85 = vector.load %arg3[%c0_31, %84, %c0_32, %c0_33] : memref<1x9x9x4xbf16, #tpu.memory_space<vmem>>, vector<1x8x8x4xbf16>
    %86 = vector.shape_cast %85 : vector<1x8x8x4xbf16> to vector<8x8x4xbf16>
    %87 = arith.extf %86 : vector<8x8x4xbf16> to vector<8x8x4xf32>
    %88 = vector.extract_strided_slice %0 {offsets = [7, 0], sizes = [1, 4], strides = [1, 1]} : vector<9x4xf32> to vector<1x4xf32>
    %89 = vector.shape_cast %88 : vector<1x4xf32> to vector<4xf32>
    %90 = vector.shape_cast %89 : vector<4xf32> to vector<1x1x4xf32>
    %91 = vector.broadcast %90 : vector<1x1x4xf32> to vector<8x8x4xf32>
    %92 = arith.mulf %87, %91 : vector<8x8x4xf32>
    %93 = arith.addf %82, %92 : vector<8x8x4xf32>
    %c1_i32_34 = arith.constant 1 : i32
    %94 = arith.addi %6, %c1_i32_34 : i32
    %c0_35 = arith.constant 0 : index
    %95 = arith.index_cast %94 : i32 to index
    %c1_36 = arith.constant 1 : index
    %c0_37 = arith.constant 0 : index
    %96 = vector.load %arg2[%c0_35, %95, %c1_36, %c0_37] : memref<1x9x9x4xbf16, #tpu.memory_space<vmem>>, vector<1x8x8x4xbf16>
    %97 = vector.shape_cast %96 : vector<1x8x8x4xbf16> to vector<8x8x4xbf16>
    %98 = arith.extf %97 : vector<8x8x4xbf16> to vector<8x8x4xf32>
    %99 = vector.extract_strided_slice %0 {offsets = [8, 0], sizes = [1, 4], strides = [1, 1]} : vector<9x4xf32> to vector<1x4xf32>
    %100 = vector.shape_cast %99 : vector<1x4xf32> to vector<4xf32>
    %101 = vector.shape_cast %100 : vector<4xf32> to vector<1x1x4xf32>
    %102 = vector.broadcast %101 : vector<1x1x4xf32> to vector<8x8x4xf32>
    %103 = arith.mulf %98, %102 : vector<8x8x4xf32>
    %104 = arith.addf %93, %103 : vector<8x8x4xf32>
    %105 = vector.shape_cast %2 : vector<4xf32> to vector<1x1x4xf32>
    %106 = vector.broadcast %105 : vector<1x1x4xf32> to vector<8x8x4xf32>
    %107 = arith.mulf %104, %106 : vector<8x8x4xf32>
    %108 = vector.shape_cast %4 : vector<4xf32> to vector<1x1x4xf32>
    %109 = vector.broadcast %108 : vector<1x1x4xf32> to vector<8x8x4xf32>
    %110 = arith.addf %107, %109 : vector<8x8x4xf32>
    %111 = vector.shape_cast %110 : vector<8x8x4xf32> to vector<64x4xf32>
    %112 = arith.truncf %111 : vector<64x4xf32> to vector<64x4xbf16>
    %c0_38 = arith.constant 0 : index
    %c0_39 = arith.constant 0 : index
    %113 = vector.load %arg9[%c0_38, %c0_39] : memref<4x4xbf16, #tpu.memory_space<vmem>>, vector<4x4xbf16>
    %cst = arith.constant dense<0.000000e+00> : vector<64x4xf32>
    %114 = tpu.matmul %112, %113, %cst {dimension_numbers = #tpu.dot_dimension_numbers<[1], [0], [0], [1], [0, 0, 1, 1], [], []>} : vector<64x4xbf16>, vector<4x4xbf16>, vector<64x4xf32> -> vector<64x4xf32>
    %c0_40 = arith.constant 0 : index
    %c0_41 = arith.constant 0 : index
    %115 = vector.load %arg10[%c0_40, %c0_41] : memref<1x4xf32, #tpu.memory_space<vmem>>, vector<1x4xf32>
    %116 = vector.broadcast %115 : vector<1x4xf32> to vector<64x4xf32>
    %117 = arith.mulf %114, %116 : vector<64x4xf32>
    %c0_42 = arith.constant 0 : index
    %c0_43 = arith.constant 0 : index
    %118 = vector.load %arg11[%c0_42, %c0_43] : memref<1x4xf32, #tpu.memory_space<vmem>>, vector<1x4xf32>
    %119 = vector.broadcast %118 : vector<1x4xf32> to vector<64x4xf32>
    %120 = arith.addf %117, %119 : vector<64x4xf32>
    %cst_44 = arith.constant 3.000000e+00 : f32
    %121 = vector.broadcast %cst_44 : f32 to vector<64x4xf32>
    %122 = arith.addf %120, %121 : vector<64x4xf32>
    %cst_45 = arith.constant 0.000000e+00 : f32
    %cst_46 = arith.constant 6.000000e+00 : f32
    %123 = vector.broadcast %cst_45 : f32 to vector<64x4xf32>
    %124 = arith.maximumf %123, %122 : vector<64x4xf32>
    %125 = vector.broadcast %cst_46 : f32 to vector<64x4xf32>
    %126 = arith.minimumf %125, %124 : vector<64x4xf32>
    %127 = arith.mulf %120, %126 : vector<64x4xf32>
    %cst_47 = arith.constant 0.166666672 : f32
    %128 = vector.broadcast %cst_47 : f32 to vector<64x4xf32>
    %129 = arith.mulf %127, %128 : vector<64x4xf32>
    %130 = vector.shape_cast %129 : vector<64x4xf32> to vector<8x8x4xf32>
    %131 = arith.truncf %130 : vector<8x8x4xf32> to vector<8x8x4xbf16>
    %c0_48 = arith.constant 0 : index
    %c0_49 = arith.constant 0 : index
    %c0_50 = arith.constant 0 : index
    %c0_51 = arith.constant 0 : index
    %132 = vector.load %arg12[%c0_48, %c0_49, %c0_50, %c0_51] : memref<1x8x8x4xbf16, #tpu.memory_space<vmem>>, vector<1x8x8x4xbf16>
    %133 = vector.shape_cast %132 : vector<1x8x8x4xbf16> to vector<8x8x4xbf16>
    %134 = vector.shape_cast %131 : vector<8x8x4xbf16> to vector<1x8x8x4xbf16>
    tpu.vector_store %arg12[%c0_48, %c0_49, %c0_50, %c0_51], %134 {strides = array<i32>} : memref<1x8x8x4xbf16, #tpu.memory_space<vmem>>, vector<1x8x8x4xbf16>,
    return
  }
  func.func @transform_0(%arg0: i32, %arg1: i32) -> (i32, i32, i32, i32) {
    %c0_i32 = arith.constant 0 : i32
    %c0_i32_0 = arith.constant 0 : i32
    %c0_i32_1 = arith.constant 0 : i32
    %c0_i32_2 = arith.constant 0 : i32
    return %arg0, %c0_i32, %c0_i32_0, %c0_i32_1 : i32, i32, i32, i32
  }
  func.func @transform_1(%arg0: i32, %arg1: i32) -> (i32, i32, i32, i32) {
    %c0_i32 = arith.constant 0 : i32
    %c0_i32_0 = arith.constant 0 : i32
    %c0_i32_1 = arith.constant 0 : i32
    %c0_i32_2 = arith.constant 0 : i32
    return %arg0, %c0_i32, %c0_i32_0, %c0_i32_1 : i32, i32, i32, i32
  }
  func.func @transform_2(%arg0: i32, %arg1: i32) -> (i32, i32, i32, i32) {
    %c0_i32 = arith.constant 0 : i32
    %c0_i32_0 = arith.constant 0 : i32
    %c0_i32_1 = arith.constant 0 : i32
    %c0_i32_2 = arith.constant 0 : i32
    return %arg0, %c0_i32, %c0_i32_0, %c0_i32_1 : i32, i32, i32, i32
  }
  func.func @transform_3(%arg0: i32, %arg1: i32) -> (i32, i32, i32, i32) {
    %c0_i32 = arith.constant 0 : i32
    %c0_i32_0 = arith.constant 0 : i32
    %c0_i32_1 = arith.constant 0 : i32
    %c0_i32_2 = arith.constant 0 : i32
    return %arg0, %c0_i32, %c0_i32_0, %c0_i32_1 : i32, i32, i32, i32
  }
  func.func @transform_4(%arg0: i32, %arg1: i32) -> (i32, i32) {
    %c0_i32 = arith.constant 0 : i32
    %c0_i32_0 = arith.constant 0 : i32
    %c0_i32_1 = arith.constant 0 : i32
    return %c0_i32, %c0_i32_0 : i32, i32
  }
  func.func @transform_5(%arg0: i32, %arg1: i32) -> (i32, i32) {
    %c0_i32 = arith.constant 0 : i32
    %c0_i32_0 = arith.constant 0 : i32
    %c0_i32_1 = arith.constant 0 : i32
    return %c0_i32, %c0_i32_0 : i32, i32
  }
  func.func @transform_6(%arg0: i32, %arg1: i32) -> (i32, i32) {
    %c0_i32 = arith.constant 0 : i32
    %c0_i32_0 = arith.constant 0 : i32
    %c0_i32_1 = arith.constant 0 : i32
    return %c0_i32, %c0_i32_0 : i32, i32
  }
  func.func @transform_7(%arg0: i32, %arg1: i32) -> (i32, i32) {
    %c0_i32 = arith.constant 0 : i32
    %c0_i32_0 = arith.constant 0 : i32
    %c0_i32_1 = arith.constant 0 : i32
    return %c0_i32, %c0_i32_0 : i32, i32
  }
  func.func @transform_8(%arg0: i32, %arg1: i32) -> (i32, i32) {
    %c0_i32 = arith.constant 0 : i32
    %c0_i32_0 = arith.constant 0 : i32
    %c0_i32_1 = arith.constant 0 : i32
    return %c0_i32, %c0_i32_0 : i32, i32
  }
  func.func @transform_9(%arg0: i32, %arg1: i32) -> (i32, i32) {
    %c0_i32 = arith.constant 0 : i32
    %c0_i32_0 = arith.constant 0 : i32
    %c0_i32_1 = arith.constant 0 : i32
    return %c0_i32, %c0_i32_0 : i32, i32
  }
  func.func @transform_10(%arg0: i32, %arg1: i32) -> (i32, i32, i32, i32) {
    %c0_i32 = arith.constant 0 : i32
    %c0_i32_0 = arith.constant 0 : i32
    %c0_i32_1 = arith.constant 0 : i32
    return %arg0, %arg1, %c0_i32, %c0_i32_0 : i32, i32, i32, i32
  }
}

module attributes {stable_mosaic.version = 11 : i64} {
  func.func @_concat_dw_pw_kernel(%arg0: i32, %arg1: i32, %arg2: memref<1x10x10x4xbf16, #tpu.memory_space<vmem>>, %arg3: memref<1x10x10x4xbf16, #tpu.memory_space<vmem>>, %arg4: memref<9x4xf32, #tpu.memory_space<vmem>>, %arg5: memref<1x4xf32, #tpu.memory_space<vmem>>, %arg6: memref<1x4xf32, #tpu.memory_space<vmem>>, %arg7: memref<9x4xf32, #tpu.memory_space<vmem>>, %arg8: memref<1x4xf32, #tpu.memory_space<vmem>>, %arg9: memref<1x4xf32, #tpu.memory_space<vmem>>, %arg10: memref<4x8xbf16, #tpu.memory_space<vmem>>, %arg11: memref<4x8xbf16, #tpu.memory_space<vmem>>, %arg12: memref<1x8xf32, #tpu.memory_space<vmem>>, %arg13: memref<1x8xf32, #tpu.memory_space<vmem>>, %arg14: memref<1x8x8x8xbf16, #tpu.memory_space<vmem>>) attributes {dimension_semantics = [#tpu.dimension_semantics<parallel>, #tpu.dimension_semantics<parallel>], iteration_bounds = array<i64: 2, 1>, scalar_prefetch = 0 : i64, scratch_operands = 0 : i64, tpu.core_type = #tpu.core_type<tc>, window_params = [{transform_indices = @transform_0, window_bounds = array<i64: 1, 10, 10, 4>}, {transform_indices = @transform_1, window_bounds = array<i64: 1, 10, 10, 4>}, {pipeline_mode = #tpu.pipeline_mode<synchronous>, transform_indices = @transform_2, window_bounds = array<i64: 9, 4>}, {pipeline_mode = #tpu.pipeline_mode<synchronous>, transform_indices = @transform_3, window_bounds = array<i64: 1, 4>}, {pipeline_mode = #tpu.pipeline_mode<synchronous>, transform_indices = @transform_4, window_bounds = array<i64: 1, 4>}, {pipeline_mode = #tpu.pipeline_mode<synchronous>, transform_indices = @transform_5, window_bounds = array<i64: 9, 4>}, {pipeline_mode = #tpu.pipeline_mode<synchronous>, transform_indices = @transform_6, window_bounds = array<i64: 1, 4>}, {pipeline_mode = #tpu.pipeline_mode<synchronous>, transform_indices = @transform_7, window_bounds = array<i64: 1, 4>}, {pipeline_mode = #tpu.pipeline_mode<synchronous>, transform_indices = @transform_8, window_bounds = array<i64: 4, 8>}, {pipeline_mode = #tpu.pipeline_mode<synchronous>, transform_indices = @transform_9, window_bounds = array<i64: 4, 8>}, {pipeline_mode = #tpu.pipeline_mode<synchronous>, transform_indices = @transform_10, window_bounds = array<i64: 1, 8>}, {pipeline_mode = #tpu.pipeline_mode<synchronous>, transform_indices = @transform_11, window_bounds = array<i64: 1, 8>}, {transform_indices = @transform_12, window_bounds = array<i64: 1, 8, 8, 8>}]} {
    %c8_i32 = arith.constant 8 : i32
    %0 = arith.muli %arg1, %c8_i32 : i32
    %1 = tpu.assume_multiple %0, 8 : i32
    %c0 = arith.constant 0 : index
    %c0_0 = arith.constant 0 : index
    %2 = vector.load %arg4[%c0, %c0_0] : memref<9x4xf32, #tpu.memory_space<vmem>>, vector<9x4xf32>
    %c0_1 = arith.constant 0 : index
    %c0_2 = arith.constant 0 : index
    %3 = vector.load %arg5[%c0_1, %c0_2] : memref<1x4xf32, #tpu.memory_space<vmem>>, vector<1x4xf32>
    %4 = vector.shape_cast %3 : vector<1x4xf32> to vector<4xf32>
    %c0_3 = arith.constant 0 : index
    %c0_4 = arith.constant 0 : index
    %5 = vector.load %arg6[%c0_3, %c0_4] : memref<1x4xf32, #tpu.memory_space<vmem>>, vector<1x4xf32>
    %6 = vector.shape_cast %5 : vector<1x4xf32> to vector<4xf32>
    %c0_i32 = arith.constant 0 : i32
    %7 = arith.addi %1, %c0_i32 : i32
    %c0_5 = arith.constant 0 : index
    %8 = arith.index_cast %7 : i32 to index
    %c0_6 = arith.constant 0 : index
    %c0_7 = arith.constant 0 : index
    %9 = vector.load %arg2[%c0_5, %8, %c0_6, %c0_7] : memref<1x10x10x4xbf16, #tpu.memory_space<vmem>>, vector<1x8x8x4xbf16>
    %10 = vector.shape_cast %9 : vector<1x8x8x4xbf16> to vector<8x8x4xbf16>
    %11 = arith.extf %10 : vector<8x8x4xbf16> to vector<8x8x4xf32>
    %12 = vector.extract_strided_slice %2 {offsets = [0, 0], sizes = [1, 4], strides = [1, 1]} : vector<9x4xf32> to vector<1x4xf32>
    %13 = vector.shape_cast %12 : vector<1x4xf32> to vector<4xf32>
    %14 = vector.shape_cast %13 : vector<4xf32> to vector<1x1x4xf32>
    %15 = vector.broadcast %14 : vector<1x1x4xf32> to vector<8x8x4xf32>
    %16 = arith.mulf %11, %15 : vector<8x8x4xf32>
    %c0_i32_8 = arith.constant 0 : i32
    %17 = arith.addi %1, %c0_i32_8 : i32
    %c0_9 = arith.constant 0 : index
    %18 = arith.index_cast %17 : i32 to index
    %c1 = arith.constant 1 : index
    %c0_10 = arith.constant 0 : index
    %19 = vector.load %arg2[%c0_9, %18, %c1, %c0_10] : memref<1x10x10x4xbf16, #tpu.memory_space<vmem>>, vector<1x8x8x4xbf16>
    %20 = vector.shape_cast %19 : vector<1x8x8x4xbf16> to vector<8x8x4xbf16>
    %21 = arith.extf %20 : vector<8x8x4xbf16> to vector<8x8x4xf32>
    %22 = vector.extract_strided_slice %2 {offsets = [1, 0], sizes = [1, 4], strides = [1, 1]} : vector<9x4xf32> to vector<1x4xf32>
    %23 = vector.shape_cast %22 : vector<1x4xf32> to vector<4xf32>
    %24 = vector.shape_cast %23 : vector<4xf32> to vector<1x1x4xf32>
    %25 = vector.broadcast %24 : vector<1x1x4xf32> to vector<8x8x4xf32>
    %26 = arith.mulf %21, %25 : vector<8x8x4xf32>
    %27 = arith.addf %16, %26 : vector<8x8x4xf32>
    %c0_i32_11 = arith.constant 0 : i32
    %28 = arith.addi %1, %c0_i32_11 : i32
    %c0_12 = arith.constant 0 : index
    %29 = arith.index_cast %28 : i32 to index
    %c2 = arith.constant 2 : index
    %c0_13 = arith.constant 0 : index
    %30 = vector.load %arg2[%c0_12, %29, %c2, %c0_13] : memref<1x10x10x4xbf16, #tpu.memory_space<vmem>>, vector<1x8x8x4xbf16>
    %31 = vector.shape_cast %30 : vector<1x8x8x4xbf16> to vector<8x8x4xbf16>
    %32 = arith.extf %31 : vector<8x8x4xbf16> to vector<8x8x4xf32>
    %33 = vector.extract_strided_slice %2 {offsets = [2, 0], sizes = [1, 4], strides = [1, 1]} : vector<9x4xf32> to vector<1x4xf32>
    %34 = vector.shape_cast %33 : vector<1x4xf32> to vector<4xf32>
    %35 = vector.shape_cast %34 : vector<4xf32> to vector<1x1x4xf32>
    %36 = vector.broadcast %35 : vector<1x1x4xf32> to vector<8x8x4xf32>
    %37 = arith.mulf %32, %36 : vector<8x8x4xf32>
    %38 = arith.addf %27, %37 : vector<8x8x4xf32>
    %c1_i32 = arith.constant 1 : i32
    %39 = arith.addi %1, %c1_i32 : i32
    %c0_14 = arith.constant 0 : index
    %40 = arith.index_cast %39 : i32 to index
    %c0_15 = arith.constant 0 : index
    %c0_16 = arith.constant 0 : index
    %41 = vector.load %arg2[%c0_14, %40, %c0_15, %c0_16] : memref<1x10x10x4xbf16, #tpu.memory_space<vmem>>, vector<1x8x8x4xbf16>
    %42 = vector.shape_cast %41 : vector<1x8x8x4xbf16> to vector<8x8x4xbf16>
    %43 = arith.extf %42 : vector<8x8x4xbf16> to vector<8x8x4xf32>
    %44 = vector.extract_strided_slice %2 {offsets = [3, 0], sizes = [1, 4], strides = [1, 1]} : vector<9x4xf32> to vector<1x4xf32>
    %45 = vector.shape_cast %44 : vector<1x4xf32> to vector<4xf32>
    %46 = vector.shape_cast %45 : vector<4xf32> to vector<1x1x4xf32>
    %47 = vector.broadcast %46 : vector<1x1x4xf32> to vector<8x8x4xf32>
    %48 = arith.mulf %43, %47 : vector<8x8x4xf32>
    %49 = arith.addf %38, %48 : vector<8x8x4xf32>
    %c1_i32_17 = arith.constant 1 : i32
    %50 = arith.addi %1, %c1_i32_17 : i32
    %c0_18 = arith.constant 0 : index
    %51 = arith.index_cast %50 : i32 to index
    %c1_19 = arith.constant 1 : index
    %c0_20 = arith.constant 0 : index
    %52 = vector.load %arg2[%c0_18, %51, %c1_19, %c0_20] : memref<1x10x10x4xbf16, #tpu.memory_space<vmem>>, vector<1x8x8x4xbf16>
    %53 = vector.shape_cast %52 : vector<1x8x8x4xbf16> to vector<8x8x4xbf16>
    %54 = arith.extf %53 : vector<8x8x4xbf16> to vector<8x8x4xf32>
    %55 = vector.extract_strided_slice %2 {offsets = [4, 0], sizes = [1, 4], strides = [1, 1]} : vector<9x4xf32> to vector<1x4xf32>
    %56 = vector.shape_cast %55 : vector<1x4xf32> to vector<4xf32>
    %57 = vector.shape_cast %56 : vector<4xf32> to vector<1x1x4xf32>
    %58 = vector.broadcast %57 : vector<1x1x4xf32> to vector<8x8x4xf32>
    %59 = arith.mulf %54, %58 : vector<8x8x4xf32>
    %60 = arith.addf %49, %59 : vector<8x8x4xf32>
    %c1_i32_21 = arith.constant 1 : i32
    %61 = arith.addi %1, %c1_i32_21 : i32
    %c0_22 = arith.constant 0 : index
    %62 = arith.index_cast %61 : i32 to index
    %c2_23 = arith.constant 2 : index
    %c0_24 = arith.constant 0 : index
    %63 = vector.load %arg2[%c0_22, %62, %c2_23, %c0_24] : memref<1x10x10x4xbf16, #tpu.memory_space<vmem>>, vector<1x8x8x4xbf16>
    %64 = vector.shape_cast %63 : vector<1x8x8x4xbf16> to vector<8x8x4xbf16>
    %65 = arith.extf %64 : vector<8x8x4xbf16> to vector<8x8x4xf32>
    %66 = vector.extract_strided_slice %2 {offsets = [5, 0], sizes = [1, 4], strides = [1, 1]} : vector<9x4xf32> to vector<1x4xf32>
    %67 = vector.shape_cast %66 : vector<1x4xf32> to vector<4xf32>
    %68 = vector.shape_cast %67 : vector<4xf32> to vector<1x1x4xf32>
    %69 = vector.broadcast %68 : vector<1x1x4xf32> to vector<8x8x4xf32>
    %70 = arith.mulf %65, %69 : vector<8x8x4xf32>
    %71 = arith.addf %60, %70 : vector<8x8x4xf32>
    %c2_i32 = arith.constant 2 : i32
    %72 = arith.addi %1, %c2_i32 : i32
    %c0_25 = arith.constant 0 : index
    %73 = arith.index_cast %72 : i32 to index
    %c0_26 = arith.constant 0 : index
    %c0_27 = arith.constant 0 : index
    %74 = vector.load %arg2[%c0_25, %73, %c0_26, %c0_27] : memref<1x10x10x4xbf16, #tpu.memory_space<vmem>>, vector<1x8x8x4xbf16>
    %75 = vector.shape_cast %74 : vector<1x8x8x4xbf16> to vector<8x8x4xbf16>
    %76 = arith.extf %75 : vector<8x8x4xbf16> to vector<8x8x4xf32>
    %77 = vector.extract_strided_slice %2 {offsets = [6, 0], sizes = [1, 4], strides = [1, 1]} : vector<9x4xf32> to vector<1x4xf32>
    %78 = vector.shape_cast %77 : vector<1x4xf32> to vector<4xf32>
    %79 = vector.shape_cast %78 : vector<4xf32> to vector<1x1x4xf32>
    %80 = vector.broadcast %79 : vector<1x1x4xf32> to vector<8x8x4xf32>
    %81 = arith.mulf %76, %80 : vector<8x8x4xf32>
    %82 = arith.addf %71, %81 : vector<8x8x4xf32>
    %c2_i32_28 = arith.constant 2 : i32
    %83 = arith.addi %1, %c2_i32_28 : i32
    %c0_29 = arith.constant 0 : index
    %84 = arith.index_cast %83 : i32 to index
    %c1_30 = arith.constant 1 : index
    %c0_31 = arith.constant 0 : index
    %85 = vector.load %arg2[%c0_29, %84, %c1_30, %c0_31] : memref<1x10x10x4xbf16, #tpu.memory_space<vmem>>, vector<1x8x8x4xbf16>
    %86 = vector.shape_cast %85 : vector<1x8x8x4xbf16> to vector<8x8x4xbf16>
    %87 = arith.extf %86 : vector<8x8x4xbf16> to vector<8x8x4xf32>
    %88 = vector.extract_strided_slice %2 {offsets = [7, 0], sizes = [1, 4], strides = [1, 1]} : vector<9x4xf32> to vector<1x4xf32>
    %89 = vector.shape_cast %88 : vector<1x4xf32> to vector<4xf32>
    %90 = vector.shape_cast %89 : vector<4xf32> to vector<1x1x4xf32>
    %91 = vector.broadcast %90 : vector<1x1x4xf32> to vector<8x8x4xf32>
    %92 = arith.mulf %87, %91 : vector<8x8x4xf32>
    %93 = arith.addf %82, %92 : vector<8x8x4xf32>
    %c2_i32_32 = arith.constant 2 : i32
    %94 = arith.addi %1, %c2_i32_32 : i32
    %c0_33 = arith.constant 0 : index
    %95 = arith.index_cast %94 : i32 to index
    %c2_34 = arith.constant 2 : index
    %c0_35 = arith.constant 0 : index
    %96 = vector.load %arg2[%c0_33, %95, %c2_34, %c0_35] : memref<1x10x10x4xbf16, #tpu.memory_space<vmem>>, vector<1x8x8x4xbf16>
    %97 = vector.shape_cast %96 : vector<1x8x8x4xbf16> to vector<8x8x4xbf16>
    %98 = arith.extf %97 : vector<8x8x4xbf16> to vector<8x8x4xf32>
    %99 = vector.extract_strided_slice %2 {offsets = [8, 0], sizes = [1, 4], strides = [1, 1]} : vector<9x4xf32> to vector<1x4xf32>
    %100 = vector.shape_cast %99 : vector<1x4xf32> to vector<4xf32>
    %101 = vector.shape_cast %100 : vector<4xf32> to vector<1x1x4xf32>
    %102 = vector.broadcast %101 : vector<1x1x4xf32> to vector<8x8x4xf32>
    %103 = arith.mulf %98, %102 : vector<8x8x4xf32>
    %104 = arith.addf %93, %103 : vector<8x8x4xf32>
    %105 = vector.shape_cast %4 : vector<4xf32> to vector<1x1x4xf32>
    %106 = vector.broadcast %105 : vector<1x1x4xf32> to vector<8x8x4xf32>
    %107 = arith.mulf %104, %106 : vector<8x8x4xf32>
    %108 = vector.shape_cast %6 : vector<4xf32> to vector<1x1x4xf32>
    %109 = vector.broadcast %108 : vector<1x1x4xf32> to vector<8x8x4xf32>
    %110 = arith.addf %107, %109 : vector<8x8x4xf32>
    %cst = arith.constant 3.000000e+00 : f32
    %111 = vector.broadcast %cst : f32 to vector<8x8x4xf32>
    %112 = arith.addf %110, %111 : vector<8x8x4xf32>
    %cst_36 = arith.constant 0.000000e+00 : f32
    %cst_37 = arith.constant 6.000000e+00 : f32
    %113 = vector.broadcast %cst_36 : f32 to vector<8x8x4xf32>
    %114 = arith.maximumf %113, %112 : vector<8x8x4xf32>
    %115 = vector.broadcast %cst_37 : f32 to vector<8x8x4xf32>
    %116 = arith.minimumf %115, %114 : vector<8x8x4xf32>
    %117 = arith.mulf %110, %116 : vector<8x8x4xf32>
    %cst_38 = arith.constant 0.166666672 : f32
    %118 = vector.broadcast %cst_38 : f32 to vector<8x8x4xf32>
    %119 = arith.mulf %117, %118 : vector<8x8x4xf32>
    %c0_39 = arith.constant 0 : index
    %c0_40 = arith.constant 0 : index
    %120 = vector.load %arg7[%c0_39, %c0_40] : memref<9x4xf32, #tpu.memory_space<vmem>>, vector<9x4xf32>
    %c0_41 = arith.constant 0 : index
    %c0_42 = arith.constant 0 : index
    %121 = vector.load %arg8[%c0_41, %c0_42] : memref<1x4xf32, #tpu.memory_space<vmem>>, vector<1x4xf32>
    %122 = vector.shape_cast %121 : vector<1x4xf32> to vector<4xf32>
    %c0_43 = arith.constant 0 : index
    %c0_44 = arith.constant 0 : index
    %123 = vector.load %arg9[%c0_43, %c0_44] : memref<1x4xf32, #tpu.memory_space<vmem>>, vector<1x4xf32>
    %124 = vector.shape_cast %123 : vector<1x4xf32> to vector<4xf32>
    %c0_i32_45 = arith.constant 0 : i32
    %125 = arith.addi %1, %c0_i32_45 : i32
    %c0_46 = arith.constant 0 : index
    %126 = arith.index_cast %125 : i32 to index
    %c0_47 = arith.constant 0 : index
    %c0_48 = arith.constant 0 : index
    %127 = vector.load %arg3[%c0_46, %126, %c0_47, %c0_48] : memref<1x10x10x4xbf16, #tpu.memory_space<vmem>>, vector<1x8x8x4xbf16>
    %128 = vector.shape_cast %127 : vector<1x8x8x4xbf16> to vector<8x8x4xbf16>
    %129 = arith.extf %128 : vector<8x8x4xbf16> to vector<8x8x4xf32>
    %130 = vector.extract_strided_slice %120 {offsets = [0, 0], sizes = [1, 4], strides = [1, 1]} : vector<9x4xf32> to vector<1x4xf32>
    %131 = vector.shape_cast %130 : vector<1x4xf32> to vector<4xf32>
    %132 = vector.shape_cast %131 : vector<4xf32> to vector<1x1x4xf32>
    %133 = vector.broadcast %132 : vector<1x1x4xf32> to vector<8x8x4xf32>
    %134 = arith.mulf %129, %133 : vector<8x8x4xf32>
    %c0_i32_49 = arith.constant 0 : i32
    %135 = arith.addi %1, %c0_i32_49 : i32
    %c0_50 = arith.constant 0 : index
    %136 = arith.index_cast %135 : i32 to index
    %c1_51 = arith.constant 1 : index
    %c0_52 = arith.constant 0 : index
    %137 = vector.load %arg3[%c0_50, %136, %c1_51, %c0_52] : memref<1x10x10x4xbf16, #tpu.memory_space<vmem>>, vector<1x8x8x4xbf16>
    %138 = vector.shape_cast %137 : vector<1x8x8x4xbf16> to vector<8x8x4xbf16>
    %139 = arith.extf %138 : vector<8x8x4xbf16> to vector<8x8x4xf32>
    %140 = vector.extract_strided_slice %120 {offsets = [1, 0], sizes = [1, 4], strides = [1, 1]} : vector<9x4xf32> to vector<1x4xf32>
    %141 = vector.shape_cast %140 : vector<1x4xf32> to vector<4xf32>
    %142 = vector.shape_cast %141 : vector<4xf32> to vector<1x1x4xf32>
    %143 = vector.broadcast %142 : vector<1x1x4xf32> to vector<8x8x4xf32>
    %144 = arith.mulf %139, %143 : vector<8x8x4xf32>
    %145 = arith.addf %134, %144 : vector<8x8x4xf32>
    %c0_i32_53 = arith.constant 0 : i32
    %146 = arith.addi %1, %c0_i32_53 : i32
    %c0_54 = arith.constant 0 : index
    %147 = arith.index_cast %146 : i32 to index
    %c2_55 = arith.constant 2 : index
    %c0_56 = arith.constant 0 : index
    %148 = vector.load %arg3[%c0_54, %147, %c2_55, %c0_56] : memref<1x10x10x4xbf16, #tpu.memory_space<vmem>>, vector<1x8x8x4xbf16>
    %149 = vector.shape_cast %148 : vector<1x8x8x4xbf16> to vector<8x8x4xbf16>
    %150 = arith.extf %149 : vector<8x8x4xbf16> to vector<8x8x4xf32>
    %151 = vector.extract_strided_slice %120 {offsets = [2, 0], sizes = [1, 4], strides = [1, 1]} : vector<9x4xf32> to vector<1x4xf32>
    %152 = vector.shape_cast %151 : vector<1x4xf32> to vector<4xf32>
    %153 = vector.shape_cast %152 : vector<4xf32> to vector<1x1x4xf32>
    %154 = vector.broadcast %153 : vector<1x1x4xf32> to vector<8x8x4xf32>
    %155 = arith.mulf %150, %154 : vector<8x8x4xf32>
    %156 = arith.addf %145, %155 : vector<8x8x4xf32>
    %c1_i32_57 = arith.constant 1 : i32
    %157 = arith.addi %1, %c1_i32_57 : i32
    %c0_58 = arith.constant 0 : index
    %158 = arith.index_cast %157 : i32 to index
    %c0_59 = arith.constant 0 : index
    %c0_60 = arith.constant 0 : index
    %159 = vector.load %arg3[%c0_58, %158, %c0_59, %c0_60] : memref<1x10x10x4xbf16, #tpu.memory_space<vmem>>, vector<1x8x8x4xbf16>
    %160 = vector.shape_cast %159 : vector<1x8x8x4xbf16> to vector<8x8x4xbf16>
    %161 = arith.extf %160 : vector<8x8x4xbf16> to vector<8x8x4xf32>
    %162 = vector.extract_strided_slice %120 {offsets = [3, 0], sizes = [1, 4], strides = [1, 1]} : vector<9x4xf32> to vector<1x4xf32>
    %163 = vector.shape_cast %162 : vector<1x4xf32> to vector<4xf32>
    %164 = vector.shape_cast %163 : vector<4xf32> to vector<1x1x4xf32>
    %165 = vector.broadcast %164 : vector<1x1x4xf32> to vector<8x8x4xf32>
    %166 = arith.mulf %161, %165 : vector<8x8x4xf32>
    %167 = arith.addf %156, %166 : vector<8x8x4xf32>
    %c1_i32_61 = arith.constant 1 : i32
    %168 = arith.addi %1, %c1_i32_61 : i32
    %c0_62 = arith.constant 0 : index
    %169 = arith.index_cast %168 : i32 to index
    %c1_63 = arith.constant 1 : index
    %c0_64 = arith.constant 0 : index
    %170 = vector.load %arg3[%c0_62, %169, %c1_63, %c0_64] : memref<1x10x10x4xbf16, #tpu.memory_space<vmem>>, vector<1x8x8x4xbf16>
    %171 = vector.shape_cast %170 : vector<1x8x8x4xbf16> to vector<8x8x4xbf16>
    %172 = arith.extf %171 : vector<8x8x4xbf16> to vector<8x8x4xf32>
    %173 = vector.extract_strided_slice %120 {offsets = [4, 0], sizes = [1, 4], strides = [1, 1]} : vector<9x4xf32> to vector<1x4xf32>
    %174 = vector.shape_cast %173 : vector<1x4xf32> to vector<4xf32>
    %175 = vector.shape_cast %174 : vector<4xf32> to vector<1x1x4xf32>
    %176 = vector.broadcast %175 : vector<1x1x4xf32> to vector<8x8x4xf32>
    %177 = arith.mulf %172, %176 : vector<8x8x4xf32>
    %178 = arith.addf %167, %177 : vector<8x8x4xf32>
    %c1_i32_65 = arith.constant 1 : i32
    %179 = arith.addi %1, %c1_i32_65 : i32
    %c0_66 = arith.constant 0 : index
    %180 = arith.index_cast %179 : i32 to index
    %c2_67 = arith.constant 2 : index
    %c0_68 = arith.constant 0 : index
    %181 = vector.load %arg3[%c0_66, %180, %c2_67, %c0_68] : memref<1x10x10x4xbf16, #tpu.memory_space<vmem>>, vector<1x8x8x4xbf16>
    %182 = vector.shape_cast %181 : vector<1x8x8x4xbf16> to vector<8x8x4xbf16>
    %183 = arith.extf %182 : vector<8x8x4xbf16> to vector<8x8x4xf32>
    %184 = vector.extract_strided_slice %120 {offsets = [5, 0], sizes = [1, 4], strides = [1, 1]} : vector<9x4xf32> to vector<1x4xf32>
    %185 = vector.shape_cast %184 : vector<1x4xf32> to vector<4xf32>
    %186 = vector.shape_cast %185 : vector<4xf32> to vector<1x1x4xf32>
    %187 = vector.broadcast %186 : vector<1x1x4xf32> to vector<8x8x4xf32>
    %188 = arith.mulf %183, %187 : vector<8x8x4xf32>
    %189 = arith.addf %178, %188 : vector<8x8x4xf32>
    %c2_i32_69 = arith.constant 2 : i32
    %190 = arith.addi %1, %c2_i32_69 : i32
    %c0_70 = arith.constant 0 : index
    %191 = arith.index_cast %190 : i32 to index
    %c0_71 = arith.constant 0 : index
    %c0_72 = arith.constant 0 : index
    %192 = vector.load %arg3[%c0_70, %191, %c0_71, %c0_72] : memref<1x10x10x4xbf16, #tpu.memory_space<vmem>>, vector<1x8x8x4xbf16>
    %193 = vector.shape_cast %192 : vector<1x8x8x4xbf16> to vector<8x8x4xbf16>
    %194 = arith.extf %193 : vector<8x8x4xbf16> to vector<8x8x4xf32>
    %195 = vector.extract_strided_slice %120 {offsets = [6, 0], sizes = [1, 4], strides = [1, 1]} : vector<9x4xf32> to vector<1x4xf32>
    %196 = vector.shape_cast %195 : vector<1x4xf32> to vector<4xf32>
    %197 = vector.shape_cast %196 : vector<4xf32> to vector<1x1x4xf32>
    %198 = vector.broadcast %197 : vector<1x1x4xf32> to vector<8x8x4xf32>
    %199 = arith.mulf %194, %198 : vector<8x8x4xf32>
    %200 = arith.addf %189, %199 : vector<8x8x4xf32>
    %c2_i32_73 = arith.constant 2 : i32
    %201 = arith.addi %1, %c2_i32_73 : i32
    %c0_74 = arith.constant 0 : index
    %202 = arith.index_cast %201 : i32 to index
    %c1_75 = arith.constant 1 : index
    %c0_76 = arith.constant 0 : index
    %203 = vector.load %arg3[%c0_74, %202, %c1_75, %c0_76] : memref<1x10x10x4xbf16, #tpu.memory_space<vmem>>, vector<1x8x8x4xbf16>
    %204 = vector.shape_cast %203 : vector<1x8x8x4xbf16> to vector<8x8x4xbf16>
    %205 = arith.extf %204 : vector<8x8x4xbf16> to vector<8x8x4xf32>
    %206 = vector.extract_strided_slice %120 {offsets = [7, 0], sizes = [1, 4], strides = [1, 1]} : vector<9x4xf32> to vector<1x4xf32>
    %207 = vector.shape_cast %206 : vector<1x4xf32> to vector<4xf32>
    %208 = vector.shape_cast %207 : vector<4xf32> to vector<1x1x4xf32>
    %209 = vector.broadcast %208 : vector<1x1x4xf32> to vector<8x8x4xf32>
    %210 = arith.mulf %205, %209 : vector<8x8x4xf32>
    %211 = arith.addf %200, %210 : vector<8x8x4xf32>
    %c2_i32_77 = arith.constant 2 : i32
    %212 = arith.addi %1, %c2_i32_77 : i32
    %c0_78 = arith.constant 0 : index
    %213 = arith.index_cast %212 : i32 to index
    %c2_79 = arith.constant 2 : index
    %c0_80 = arith.constant 0 : index
    %214 = vector.load %arg3[%c0_78, %213, %c2_79, %c0_80] : memref<1x10x10x4xbf16, #tpu.memory_space<vmem>>, vector<1x8x8x4xbf16>
    %215 = vector.shape_cast %214 : vector<1x8x8x4xbf16> to vector<8x8x4xbf16>
    %216 = arith.extf %215 : vector<8x8x4xbf16> to vector<8x8x4xf32>
    %217 = vector.extract_strided_slice %120 {offsets = [8, 0], sizes = [1, 4], strides = [1, 1]} : vector<9x4xf32> to vector<1x4xf32>
    %218 = vector.shape_cast %217 : vector<1x4xf32> to vector<4xf32>
    %219 = vector.shape_cast %218 : vector<4xf32> to vector<1x1x4xf32>
    %220 = vector.broadcast %219 : vector<1x1x4xf32> to vector<8x8x4xf32>
    %221 = arith.mulf %216, %220 : vector<8x8x4xf32>
    %222 = arith.addf %211, %221 : vector<8x8x4xf32>
    %223 = vector.shape_cast %122 : vector<4xf32> to vector<1x1x4xf32>
    %224 = vector.broadcast %223 : vector<1x1x4xf32> to vector<8x8x4xf32>
    %225 = arith.mulf %222, %224 : vector<8x8x4xf32>
    %226 = vector.shape_cast %124 : vector<4xf32> to vector<1x1x4xf32>
    %227 = vector.broadcast %226 : vector<1x1x4xf32> to vector<8x8x4xf32>
    %228 = arith.addf %225, %227 : vector<8x8x4xf32>
    %cst_81 = arith.constant 3.000000e+00 : f32
    %229 = vector.broadcast %cst_81 : f32 to vector<8x8x4xf32>
    %230 = arith.addf %228, %229 : vector<8x8x4xf32>
    %cst_82 = arith.constant 0.000000e+00 : f32
    %cst_83 = arith.constant 6.000000e+00 : f32
    %231 = vector.broadcast %cst_82 : f32 to vector<8x8x4xf32>
    %232 = arith.maximumf %231, %230 : vector<8x8x4xf32>
    %233 = vector.broadcast %cst_83 : f32 to vector<8x8x4xf32>
    %234 = arith.minimumf %233, %232 : vector<8x8x4xf32>
    %235 = arith.mulf %228, %234 : vector<8x8x4xf32>
    %cst_84 = arith.constant 0.166666672 : f32
    %236 = vector.broadcast %cst_84 : f32 to vector<8x8x4xf32>
    %237 = arith.mulf %235, %236 : vector<8x8x4xf32>
    %238 = vector.shape_cast %119 : vector<8x8x4xf32> to vector<64x4xf32>
    %239 = arith.truncf %238 : vector<64x4xf32> to vector<64x4xbf16>
    %240 = vector.shape_cast %237 : vector<8x8x4xf32> to vector<64x4xf32>
    %241 = arith.truncf %240 : vector<64x4xf32> to vector<64x4xbf16>
    %c0_85 = arith.constant 0 : index
    %c0_86 = arith.constant 0 : index
    %242 = vector.load %arg10[%c0_85, %c0_86] : memref<4x8xbf16, #tpu.memory_space<vmem>>, vector<4x8xbf16>
    %cst_87 = arith.constant dense<0.000000e+00> : vector<64x8xf32>
    %243 = tpu.matmul %239, %242, %cst_87 {dimension_numbers = #tpu.dot_dimension_numbers<[1], [0], [0], [1], [0, 0, 1, 1], [], []>} : vector<64x4xbf16>, vector<4x8xbf16>, vector<64x8xf32> -> vector<64x8xf32>
    %c0_88 = arith.constant 0 : index
    %c0_89 = arith.constant 0 : index
    %244 = vector.load %arg11[%c0_88, %c0_89] : memref<4x8xbf16, #tpu.memory_space<vmem>>, vector<4x8xbf16>
    %cst_90 = arith.constant dense<0.000000e+00> : vector<64x8xf32>
    %245 = tpu.matmul %241, %244, %cst_90 {dimension_numbers = #tpu.dot_dimension_numbers<[1], [0], [0], [1], [0, 0, 1, 1], [], []>} : vector<64x4xbf16>, vector<4x8xbf16>, vector<64x8xf32> -> vector<64x8xf32>
    %246 = arith.addf %243, %245 : vector<64x8xf32>
    %c0_91 = arith.constant 0 : index
    %c0_92 = arith.constant 0 : index
    %247 = vector.load %arg12[%c0_91, %c0_92] : memref<1x8xf32, #tpu.memory_space<vmem>>, vector<1x8xf32>
    %248 = vector.broadcast %247 : vector<1x8xf32> to vector<64x8xf32>
    %249 = arith.mulf %246, %248 : vector<64x8xf32>
    %c0_93 = arith.constant 0 : index
    %c0_94 = arith.constant 0 : index
    %250 = vector.load %arg13[%c0_93, %c0_94] : memref<1x8xf32, #tpu.memory_space<vmem>>, vector<1x8xf32>
    %251 = vector.broadcast %250 : vector<1x8xf32> to vector<64x8xf32>
    %252 = arith.addf %249, %251 : vector<64x8xf32>
    %cst_95 = arith.constant 3.000000e+00 : f32
    %253 = vector.broadcast %cst_95 : f32 to vector<64x8xf32>
    %254 = arith.addf %252, %253 : vector<64x8xf32>
    %cst_96 = arith.constant 0.000000e+00 : f32
    %cst_97 = arith.constant 6.000000e+00 : f32
    %255 = vector.broadcast %cst_96 : f32 to vector<64x8xf32>
    %256 = arith.maximumf %255, %254 : vector<64x8xf32>
    %257 = vector.broadcast %cst_97 : f32 to vector<64x8xf32>
    %258 = arith.minimumf %257, %256 : vector<64x8xf32>
    %259 = arith.mulf %252, %258 : vector<64x8xf32>
    %cst_98 = arith.constant 0.166666672 : f32
    %260 = vector.broadcast %cst_98 : f32 to vector<64x8xf32>
    %261 = arith.mulf %259, %260 : vector<64x8xf32>
    %262 = vector.shape_cast %261 : vector<64x8xf32> to vector<8x8x8xf32>
    %263 = arith.truncf %262 : vector<8x8x8xf32> to vector<8x8x8xbf16>
    %c0_99 = arith.constant 0 : index
    %c0_100 = arith.constant 0 : index
    %c0_101 = arith.constant 0 : index
    %c0_102 = arith.constant 0 : index
    %264 = vector.load %arg14[%c0_99, %c0_100, %c0_101, %c0_102] : memref<1x8x8x8xbf16, #tpu.memory_space<vmem>>, vector<1x8x8x8xbf16>
    %265 = vector.shape_cast %264 : vector<1x8x8x8xbf16> to vector<8x8x8xbf16>
    %266 = vector.shape_cast %263 : vector<8x8x8xbf16> to vector<1x8x8x8xbf16>
    tpu.vector_store %arg14[%c0_99, %c0_100, %c0_101, %c0_102], %266 {strides = array<i32>} : memref<1x8x8x8xbf16, #tpu.memory_space<vmem>>, vector<1x8x8x8xbf16>,
    return
  }
  func.func @transform_0(%arg0: i32, %arg1: i32) -> (i32, i32, i32, i32) {
    %c0_i32 = arith.constant 0 : i32
    %c0_i32_0 = arith.constant 0 : i32
    %c0_i32_1 = arith.constant 0 : i32
    %c0_i32_2 = arith.constant 0 : i32
    return %arg0, %c0_i32, %c0_i32_0, %c0_i32_1 : i32, i32, i32, i32
  }
  func.func @transform_1(%arg0: i32, %arg1: i32) -> (i32, i32, i32, i32) {
    %c0_i32 = arith.constant 0 : i32
    %c0_i32_0 = arith.constant 0 : i32
    %c0_i32_1 = arith.constant 0 : i32
    %c0_i32_2 = arith.constant 0 : i32
    return %arg0, %c0_i32, %c0_i32_0, %c0_i32_1 : i32, i32, i32, i32
  }
  func.func @transform_2(%arg0: i32, %arg1: i32) -> (i32, i32) {
    %c0_i32 = arith.constant 0 : i32
    %c0_i32_0 = arith.constant 0 : i32
    %c0_i32_1 = arith.constant 0 : i32
    return %c0_i32, %c0_i32_0 : i32, i32
  }
  func.func @transform_3(%arg0: i32, %arg1: i32) -> (i32, i32) {
    %c0_i32 = arith.constant 0 : i32
    %c0_i32_0 = arith.constant 0 : i32
    %c0_i32_1 = arith.constant 0 : i32
    return %c0_i32, %c0_i32_0 : i32, i32
  }
  func.func @transform_4(%arg0: i32, %arg1: i32) -> (i32, i32) {
    %c0_i32 = arith.constant 0 : i32
    %c0_i32_0 = arith.constant 0 : i32
    %c0_i32_1 = arith.constant 0 : i32
    return %c0_i32, %c0_i32_0 : i32, i32
  }
  func.func @transform_5(%arg0: i32, %arg1: i32) -> (i32, i32) {
    %c0_i32 = arith.constant 0 : i32
    %c0_i32_0 = arith.constant 0 : i32
    %c0_i32_1 = arith.constant 0 : i32
    return %c0_i32, %c0_i32_0 : i32, i32
  }
  func.func @transform_6(%arg0: i32, %arg1: i32) -> (i32, i32) {
    %c0_i32 = arith.constant 0 : i32
    %c0_i32_0 = arith.constant 0 : i32
    %c0_i32_1 = arith.constant 0 : i32
    return %c0_i32, %c0_i32_0 : i32, i32
  }
  func.func @transform_7(%arg0: i32, %arg1: i32) -> (i32, i32) {
    %c0_i32 = arith.constant 0 : i32
    %c0_i32_0 = arith.constant 0 : i32
    %c0_i32_1 = arith.constant 0 : i32
    return %c0_i32, %c0_i32_0 : i32, i32
  }
  func.func @transform_8(%arg0: i32, %arg1: i32) -> (i32, i32) {
    %c0_i32 = arith.constant 0 : i32
    %c0_i32_0 = arith.constant 0 : i32
    %c0_i32_1 = arith.constant 0 : i32
    return %c0_i32, %c0_i32_0 : i32, i32
  }
  func.func @transform_9(%arg0: i32, %arg1: i32) -> (i32, i32) {
    %c0_i32 = arith.constant 0 : i32
    %c0_i32_0 = arith.constant 0 : i32
    %c0_i32_1 = arith.constant 0 : i32
    return %c0_i32, %c0_i32_0 : i32, i32
  }
  func.func @transform_10(%arg0: i32, %arg1: i32) -> (i32, i32) {
    %c0_i32 = arith.constant 0 : i32
    %c0_i32_0 = arith.constant 0 : i32
    %c0_i32_1 = arith.constant 0 : i32
    return %c0_i32, %c0_i32_0 : i32, i32
  }
  func.func @transform_11(%arg0: i32, %arg1: i32) -> (i32, i32) {
    %c0_i32 = arith.constant 0 : i32
    %c0_i32_0 = arith.constant 0 : i32
    %c0_i32_1 = arith.constant 0 : i32
    return %c0_i32, %c0_i32_0 : i32, i32
  }
  func.func @transform_12(%arg0: i32, %arg1: i32) -> (i32, i32, i32, i32) {
    %c0_i32 = arith.constant 0 : i32
    %c0_i32_0 = arith.constant 0 : i32
    %c0_i32_1 = arith.constant 0 : i32
    return %arg0, %arg1, %c0_i32, %c0_i32_0 : i32, i32, i32, i32
  }
}

</mosaic_0001>

<llo_original>
// kernel: esblock2_forward.7
$region0: #{esblock2_forward.7}
  #allocation0 [shape = 'u32[]', space=smem, size = 0x4, offset = 0x4, fixed_abs, tag = 'smem constant byte address 0x4 - core index']
  #allocation1 [shape = 'u32[144,128]{1,0:T(1,128)}', space=vmem, size = 0x12000, scoped, tag = 'internal scratch']
  %s0 = inlined_call_operand.vmem [shape: bf16[2,256,4], index: 0, kind: input, shape index: {}]
  %s1 = inlined_call_operand.vmem [shape: bf16[4,4], index: 1, kind: input, shape index: {}]
  %s2 = inlined_call_operand.vmem [shape: f32[1,4], index: 2, kind: input, shape index: {}]
  %s3 = inlined_call_operand.vmem [shape: f32[1,4], index: 3, kind: input, shape index: {}]
  %s4 = inlined_call_operand.vmem [shape: bf16[2,256,4], index: 4, kind: output, shape index: {}]
  %s5 = sld [smem:[#allocation0]]
  $region49: #{esblock2_forward.7} parent=0
    _
  %s7 = ssub.s32 1, %s5
  %s8 = scalar_select 0, %s7, %s5
  loop: start=0, step=1, limit=4
  $region2: #{esblock2_forward.7} parent=0 // loop_pre_header
    _
  $region3: #{esblock2_forward.7} parent=0 // loop_header
    %s10 = sphi 0, %s14
    %p11 = scmp.ge.s32.totalorder %s10, 4
    %s17 = sphi 0, %s29
    %s18 = sphi 0, %s25
    %s19 = sphi 0, %s17
    %s20 = sphi 0, %s18
    %s21 = sphi 0, %s19
    %s22 = sphi 0, %s20
    %s34 = sphi 0, %s36
    %s37 = sphi 0, %s34
    %s38 = sphi 0, %s37
    %s54 = sphi 0, %s38
    %s58 = sphi 0, %s58
    %s60 = sphi 0, %s58
    %s61 = sphi 0, %s60
    %s75 = sphi 0, %s61
    %s79 = sphi 0, %s79
    %s81 = sphi 0, %s79
    %s82 = sphi 0, %s81
    %s96 = sphi 0, %s82
    %s100 = sphi 0, %s100
    %s102 = sphi 0, %s100
    %s103 = sphi 0, %s102
    %s117 = sphi 0, %s103
    %s125 = sphi 0, %s127
    %s128 = sphi 0, %s125
    %s129 = sphi 0, %s128
    %s145 = sphi 0, %s129
  $region4: #{esblock2_forward.7} parent=0 // loop_header_branch
    %13 = sbr.rel (%p11) target = $region8
  $region5: #{esblock2_forward.7} parent=0 // loop_body
    %s15 = ssub.s32 %s10, 1
    %s16 = ssub.s32 %s10, 2
    %s23 = sadd.s32 1, %s18
    %p24 = scmp.ge.s32.totalorder %s23, 1
    %s25 = scalar_select %p24, 0, %s23
    %s26 = sadd.s32 1, %s17
    %s27 = scalar_select %p24, %s26, %s17
    %p28 = scmp.ge.s32.totalorder %s27, 2
    %s29 = scalar_select %p28, 0, %s27
    %s30 = ssub.s32 %s17, %s29
    %s31 = ssub.s32 %s18, %s25
    %s32 = sor.u32 %s30, %s31
    %p33 = scmp.eq.s32.totalorder %s32, 0
    %s35 = sadd.s32 %s34, 1
    %s36 = scalar_select %p33, %s34, %s35
    %p39 = pneg %p33
    %p40 = scmp.eq.s32.totalorder %s10, 1
    %p41 = por %p39, %p40
    %p42 = scmp.ne.s32.totalorder %s34, %s37
    %p43 = scmp.eq.s32.totalorder %s10, 0
    %p44 = por %p42, %p43
    %p45 = scmp.ne.s32.totalorder %s34, %s37
    %p46 = scmp.eq.s32.totalorder %s15, 1
    %p47 = por %p45, %p46
    %p48 = scmp.ne.s32.totalorder %s37, %s38
    %p49 = scmp.eq.s32.totalorder %s15, 0
    %p50 = por %p48, %p49
    %p51 = scmp.ne.s32.totalorder %s37, %s38
    %p52 = scmp.eq.s32.totalorder %s16, 1
    %p53 = por %p51, %p52
    %p55 = scmp.ne.s32.totalorder %s38, %s54
    %p56 = scmp.eq.s32.totalorder %s16, 0
    %p57 = por %p55, %p56
    %s59 = sadd.s32 %s58, 1
    %p62 = scmp.eq.s32.totalorder %s10, 1
    %p63 = scmp.ne.s32.totalorder %s58, %s60
    %p64 = scmp.eq.s32.totalorder %s10, 0
    %p65 = por %p63, %p64
    %p66 = scmp.ne.s32.totalorder %s58, %s60
    %p67 = scmp.eq.s32.totalorder %s15, 1
    %p68 = por %p66, %p67
    %p69 = scmp.ne.s32.totalorder %s60, %s61
    %p70 = scmp.eq.s32.totalorder %s15, 0
    %p71 = por %p69, %p70
    %p72 = scmp.ne.s32.totalorder %s60, %s61
    %p73 = scmp.eq.s32.totalorder %s16, 1
    %p74 = por %p72, %p73
    %p76 = scmp.ne.s32.totalorder %s61, %s75
    %p77 = scmp.eq.s32.totalorder %s16, 0
    %p78 = por %p76, %p77
    %s80 = sadd.s32 %s79, 1
    %p83 = scmp.eq.s32.totalorder %s10, 1
    %p84 = scmp.ne.s32.totalorder %s79, %s81
    %p85 = scmp.eq.s32.totalorder %s10, 0
    %p86 = por %p84, %p85
    %p87 = scmp.ne.s32.totalorder %s79, %s81
    %p88 = scmp.eq.s32.totalorder %s15, 1
    %p89 = por %p87, %p88
    %p90 = scmp.ne.s32.totalorder %s81, %s82
    %p91 = scmp.eq.s32.totalorder %s15, 0
    %p92 = por %p90, %p91
    %p93 = scmp.ne.s32.totalorder %s81, %s82
    %p94 = scmp.eq.s32.totalorder %s16, 1
    %p95 = por %p93, %p94
    %p97 = scmp.ne.s32.totalorder %s82, %s96
    %p98 = scmp.eq.s32.totalorder %s16, 0
    %p99 = por %p97, %p98
    %s101 = sadd.s32 %s100, 1
    %p104 = scmp.eq.s32.totalorder %s10, 1
    %p105 = scmp.ne.s32.totalorder %s100, %s102
    %p106 = scmp.eq.s32.totalorder %s10, 0
    %p107 = por %p105, %p106
    %p108 = scmp.ne.s32.totalorder %s100, %s102
    %p109 = scmp.eq.s32.totalorder %s15, 1
    %p110 = por %p108, %p109
    %p111 = scmp.ne.s32.totalorder %s102, %s103
    %p112 = scmp.eq.s32.totalorder %s15, 0
    %p113 = por %p111, %p112
    %p114 = scmp.ne.s32.totalorder %s102, %s103
    %p115 = scmp.eq.s32.totalorder %s16, 1
    %p116 = por %p114, %p115
    %p118 = scmp.ne.s32.totalorder %s103, %s117
    %p119 = scmp.eq.s32.totalorder %s16, 0
    %p120 = por %p118, %p119
    %s121 = ssub.s32 %s17, %s29
    %s122 = ssub.s32 %s18, %s25
    %s123 = sor.u32 %s121, %s122
    %p124 = scmp.eq.s32.totalorder %s123, 0
    %s126 = sadd.s32 %s125, 1
    %s127 = scalar_select %p124, %s125, %s126
    %p130 = pneg %p124
    %p131 = scmp.eq.s32.totalorder %s10, 1
    %p132 = por %p130, %p131
    %p133 = scmp.ne.s32.totalorder %s125, %s128
    %p134 = scmp.eq.s32.totalorder %s10, 0
    %p135 = por %p133, %p134
    %p136 = scmp.ne.s32.totalorder %s125, %s128
    %p137 = scmp.eq.s32.totalorder %s15, 1
    %p138 = por %p136, %p137
    %p139 = scmp.ne.s32.totalorder %s128, %s129
    %p140 = scmp.eq.s32.totalorder %s15, 0
    %p141 = por %p139, %p140
    %p142 = scmp.ne.s32.totalorder %s128, %s129
    %p143 = scmp.eq.s32.totalorder %s16, 1
    %p144 = por %p142, %p143
    %p146 = scmp.ne.s32.totalorder %s129, %s145
    %p147 = scmp.eq.s32.totalorder %s16, 0
    %p148 = por %p146, %p147
    %p149 = scmp.le.s32.totalorder 1, %s10
    %p150 = scmp.lt.s32.totalorder %s10, 3
    %p151 = pnand %p149, %p150
    %p152 = pneg %p151
    // Predicated region
    $region9: #{esblock2_forward.7} parent=5 // pred_check
      _
    $region10: #{esblock2_forward.7} parent=5 // pred_check_branch
      %154 = sbr.rel (%p151) target = $region12
    $region11: #{esblock2_forward.7} parent=5 // pred_region
      %s155 = ssub.s32 %s10, 1
      // Predicated region
      $region13: #{esblock2_forward.7} parent=11 // pred_check
        %p156 = pneg %p71
      $region14: #{esblock2_forward.7} parent=11 // pred_check_branch
        %158 = sbr.rel (%p156) target = $region16
      $region15: #{esblock2_forward.7} parent=11 // pred_region
        _
      $region16: #{esblock2_forward.7} parent=11 // pred_fallthru
        _
      // Predicated region
      $region17: #{esblock2_forward.7} parent=11 // pred_check
        %p159 = pneg %p92
      $region18: #{esblock2_forward.7} parent=11 // pred_check_branch
        %161 = sbr.rel (%p159) target = $region20
      $region19: #{esblock2_forward.7} parent=11 // pred_region
        _
      $region20: #{esblock2_forward.7} parent=11 // pred_fallthru
        _
      // Predicated region
      $region21: #{esblock2_forward.7} parent=11 // pred_check
        %p162 = pneg %p113
      $region22: #{esblock2_forward.7} parent=11 // pred_check_branch
        %164 = sbr.rel (%p162) target = $region24
      $region23: #{esblock2_forward.7} parent=11 // pred_region
        _
      $region24: #{esblock2_forward.7} parent=11 // pred_fallthru
        _
    $region12: #{esblock2_forward.7} parent=5 // pred_fallthru
      _
    %p165 = scmp.lt.s32.totalorder %s10, 2
    // Predicated region
    $region25: #{esblock2_forward.7} parent=5 // pred_check
      %p166 = pneg %p165
    $region26: #{esblock2_forward.7} parent=5 // pred_check_branch
      %168 = sbr.rel (%p166) target = $region28
    $region27: #{esblock2_forward.7} parent=5 // pred_region
      // Predicated region
      $region29: #{esblock2_forward.7} parent=27 // pred_check
        %p169 = pneg %p44
      $region30: #{esblock2_forward.7} parent=27 // pred_check_branch
        %171 = sbr.rel (%p169) target = $region32
      $region31: #{esblock2_forward.7} parent=27 // pred_region
        %s172 = smul.u32 32, %s18
        %p173 = scmp.lt.s32.totalorder %s17, 1
        %s174 = scalar_select %p173, %s17, 1
        %p175 = scmp.lt.s32.totalorder %s172, 31
        %s176 = scalar_select %p175, %s172, 31
        %s177 = smul.addr %s174, 32
        %s178 = sadd.s32 %s176, %s177
        %s179 = smul.addr %s178, 4
        %s180 = scalar_lea.vmem %s0, %s179
        %s181 = smul.u32 32, %s18
      $region32: #{esblock2_forward.7} parent=27 // pred_fallthru
        _
    $region28: #{esblock2_forward.7} parent=5 // pred_fallthru
      _
    %p182 = scmp.le.s32.totalorder 1, %s10
    %p183 = scmp.lt.s32.totalorder %s10, 3
    %p184 = pnand %p182, %p183
    %p185 = pneg %p184
    // Predicated region
    $region33: #{esblock2_forward.7} parent=5 // pred_check
      _
    $region34: #{esblock2_forward.7} parent=5 // pred_check_branch
      %187 = sbr.rel (%p184) target = $region36
    $region35: #{esblock2_forward.7} parent=5 // pred_region
      %s188 = ssub.s32 %s10, 1
      %s189 = smul.u32 32, %s20
      %p190 = scmp.lt.s32.totalorder %s19, 1
      %s191 = scalar_select %p190, %s19, 1
      %p192 = scmp.lt.s32.totalorder %s189, 31
      %s193 = scalar_select %p192, %s189, 31
      %s194 = smul.addr %s191, 32
      %s195 = sadd.s32 %s193, %s194
      %s196 = smul.addr %s195, 4
      %s197 = scalar_lea.vmem %s0, %s196
      %p198 = pneg %p50
      %p199 = pneg %p47
      %p200 = pneg %p71
      %p201 = pneg %p68
      %p202 = pneg %p92
      %p203 = pneg %p89
      %p204 = pneg %p113
      %p205 = pneg %p110
      %p206 = pneg %p141
      %p207 = pneg %p138
      %s208 = smul.u32 32, %s20
      %p209 = scmp.lt.s32.totalorder %s19, 1
      %s210 = scalar_select %p209, %s19, 1
      %p211 = scmp.lt.s32.totalorder %s208, 31
      %s212 = scalar_select %p211, %s208, 31
      %s213 = smul.addr %s210, 32
      %s214 = sadd.s32 %s212, %s213
      %s215 = smul.addr %s214, 4
      %s216 = scalar_lea.vmem %s4, %s215
      %s217 = smul.u32 32, %s20
      %p218 = scmp.lt.s32.totalorder %s19, 1
      %s219 = scalar_select %p218, %s19, 1
      %p220 = scmp.lt.s32.totalorder %s217, 31
      %s221 = scalar_select %p220, %s217, 31
      %s222 = smul.addr %s219, 32
      %s223 = sadd.s32 %s221, %s222
      %s224 = smul.addr %s223, 4
      %s225 = scalar_lea.vmem %s0, %s224
      %s226 = smul.u32 32, %s20
      %s227 = smul.u32 32, %s20
      %p228 = scmp.lt.s32.totalorder %s19, 1
      %s229 = scalar_select %p228, %s19, 1
      %p230 = scmp.lt.s32.totalorder %s227, 31
      %s231 = scalar_select %p230, %s227, 31
      %s232 = smul.addr %s229, 32
      %s233 = sadd.s32 %s231, %s232
      %s234 = smul.addr %s233, 4
      %s235 = scalar_lea.vmem %s4, %s234
      %s236 = smul.u32 32, %s20
      %v238 = vld [vmem:[%s225] sm:$0xf]
      %v239 = vld [vmem:[%s225 + $0x4] sm:$0xf]
      %v240 = vld [vmem:[%s225 + $0x8] sm:$0xf]
      %v241 = vld [vmem:[%s225 + $0xc] sm:$0xf]
      %v242 = vld [vmem:[%s225 + $0x10] sm:$0xf]
      %v243 = vld [vmem:[%s225 + $0x14] sm:$0xf]
      %v244 = vld [vmem:[%s225 + $0x18] sm:$0xf]
      %v245 = vld [vmem:[%s225 + $0x1c] sm:$0xf]
      %v246 = vld [vmem:[%s225 + $0x20] sm:$0xf]
      %v247 = vld [vmem:[%s225 + $0x24] sm:$0xf]
      %v248 = vld [vmem:[%s225 + $0x28] sm:$0xf]
      %v249 = vld [vmem:[%s225 + $0x2c] sm:$0xf]
      %v250 = vld [vmem:[%s225 + $0x30] sm:$0xf]
      %v251 = vld [vmem:[%s225 + $0x34] sm:$0xf]
      %v252 = vld [vmem:[%s225 + $0x38] sm:$0xf]
      %v253 = vld [vmem:[%s225 + $0x3c] sm:$0xf]
      %v254 = vld [vmem:[%s225 + $0x40] sm:$0xf]
      %v255 = vld [vmem:[%s225 + $0x44] sm:$0xf]
      %v256 = vld [vmem:[%s225 + $0x48] sm:$0xf]
      %v257 = vld [vmem:[%s225 + $0x4c] sm:$0xf]
      %v258 = vld [vmem:[%s225 + $0x50] sm:$0xf]
      %v259 = vld [vmem:[%s225 + $0x54] sm:$0xf]
      %v260 = vld [vmem:[%s225 + $0x58] sm:$0xf]
      %v261 = vld [vmem:[%s225 + $0x5c] sm:$0xf]
      %v262 = vld [vmem:[%s225 + $0x60] sm:$0xf]
      %v263 = vld [vmem:[%s225 + $0x64] sm:$0xf]
      %v264 = vld [vmem:[%s225 + $0x68] sm:$0xf]
      %v265 = vld [vmem:[%s225 + $0x6c] sm:$0xf]
      %v266 = vld [vmem:[%s225 + $0x70] sm:$0xf]
      %v267 = vld [vmem:[%s225 + $0x74] sm:$0xf]
      %v268 = vld [vmem:[%s225 + $0x78] sm:$0xf]
      %v269 = vld [vmem:[%s225 + $0x7c] sm:$0xf]
      %v270 = vld [vmem:[%s1] sm:$0x3]
      %v303 = vunpack.c.l.b16 %v238
      %v304 = vunpack.c.l.b16 %v239
      %v305 = vunpack.c.l.b16 %v240
      %v306 = vunpack.c.l.b16 %v241
      %v307 = vunpack.c.l.b16 %v242
      %v308 = vunpack.c.l.b16 %v243
      %v309 = vunpack.c.l.b16 %v244
      %v310 = vunpack.c.l.b16 %v245
      %v311 = vunpack.c.l.b16 %v246
      %v312 = vunpack.c.l.b16 %v247
      %v313 = vunpack.c.l.b16 %v248
      %v314 = vunpack.c.l.b16 %v249
      %v315 = vunpack.c.l.b16 %v250
      %v316 = vunpack.c.l.b16 %v251
      %v317 = vunpack.c.l.b16 %v252
      %v318 = vunpack.c.l.b16 %v253
      %v319 = vunpack.c.l.b16 %v254
      %v320 = vunpack.c.l.b16 %v255
      %v321 = vunpack.c.l.b16 %v256
      %v322 = vunpack.c.l.b16 %v257
      %v323 = vunpack.c.l.b16 %v258
      %v324 = vunpack.c.l.b16 %v259
      %v325 = vunpack.c.l.b16 %v260
      %v326 = vunpack.c.l.b16 %v261
      %v327 = vunpack.c.l.b16 %v262
      %v328 = vunpack.c.l.b16 %v263
      %v329 = vunpack.c.l.b16 %v264
      %v330 = vunpack.c.l.b16 %v265
      %v331 = vunpack.c.l.b16 %v266
      %v332 = vunpack.c.l.b16 %v267
      %v333 = vunpack.c.l.b16 %v268
      %v334 = vunpack.c.l.b16 %v269
      %v335 = vpack.c.b16 %v304, %v303
      %v336 = vpack.c.b16 %v306, %v305
      %v337 = vpack.c.b16 %v308, %v307
      %v338 = vpack.c.b16 %v310, %v309
      %v339 = vpack.c.b16 %v312, %v311
      %v340 = vpack.c.b16 %v314, %v313
      %v341 = vpack.c.b16 %v316, %v315
      %v342 = vpack.c.b16 %v318, %v317
      %v343 = vpack.c.b16 %v320, %v319
      %v344 = vpack.c.b16 %v322, %v321
      %v345 = vpack.c.b16 %v324, %v323
      %v346 = vpack.c.b16 %v326, %v325
      %v347 = vpack.c.b16 %v328, %v327
      %v348 = vpack.c.b16 %v330, %v329
      %v349 = vpack.c.b16 %v332, %v331
      %v350 = vpack.c.b16 %v334, %v333
      %vm351 = vcmask 31744
      %v353 = vsel %vm351, %v335, 0
      %v356 = vsel %vm351, %v336, 0
      %v359 = vsel %vm351, %v337, 0
      %v362 = vsel %vm351, %v338, 0
      %v365 = vsel %vm351, %v339, 0
      %v368 = vsel %vm351, %v340, 0
      %v371 = vsel %vm351, %v341, 0
      %v374 = vsel %vm351, %v342, 0
      %v377 = vsel %vm351, %v343, 0
      %v380 = vsel %vm351, %v344, 0
      %v383 = vsel %vm351, %v345, 0
      %v386 = vsel %vm351, %v346, 0
      %v389 = vsel %vm351, %v347, 0
      %v392 = vsel %vm351, %v348, 0
      %v395 = vsel %vm351, %v349, 0
      %v398 = vsel %vm351, %v350, 0
      %vm400 = vcmask 1041408
      %v402 = vsel %vm400, %v270, 0
      %404 = vmatprep.subr.bf16.mxu0 0
      %405 = vmatpush1.bf16.msra.mxu0 %v402
      %406 = vmatprep.subr.bf16.mxu0 0
      %407 = vmatpush1.bf16.msra.mxu0 0
      %408 = vmatprep.subr.bf16.mxu0 0
      %409 = vmatpush1.bf16.msra.mxu0 0
      %410 = vmatprep.subr.bf16.mxu0 0
      %411 = vmatpush1.bf16.msra.mxu0 0
      %412 = vmatprep.subr.bf16.mxu0 0
      %413 = vmatpush1.bf16.msra.mxu0 0
      %414 = vmatprep.subr.bf16.mxu0 0
      %415 = vmatpush1.bf16.msra.mxu0 0
      %416 = vmatprep.subr.bf16.mxu0 0
      %417 = vmatpush1.bf16.msra.mxu0 0
      %418 = vmatprep.subr.bf16.mxu0 0
      %419 = vmatpush1.bf16.msra.mxu0 0
      %420 = vmatprep.subr.bf16.mxu0 0
      %421 = vmatpush1.bf16.msra.mxu0 0
      %422 = vmatprep.subr.bf16.mxu0 0
      %423 = vmatpush1.bf16.msra.mxu0 0
      %424 = vmatprep.subr.bf16.mxu0 0
      %425 = vmatpush1.bf16.msra.mxu0 0
      %426 = vmatprep.subr.bf16.mxu0 0
      %427 = vmatpush1.bf16.msra.mxu0 0
      %428 = vmatprep.subr.bf16.mxu0 0
      %429 = vmatpush1.bf16.msra.mxu0 0
      %430 = vmatprep.subr.bf16.mxu0 0
      %431 = vmatpush1.bf16.msra.mxu0 0
      %432 = vmatprep.subr.bf16.mxu0 0
      %433 = vmatpush1.bf16.msra.mxu0 0
      %434 = vmatprep.subr.bf16.mxu0 0
      %435 = vmatpush1.bf16.msra.mxu0 0
      %436 = vmatprep.mubr.bf16.mxu0 0
      %437 = vmatmul.mubr.bf16.gmra.mrb[0].mxu0 %v353
      %v438 = vpop.f32.mrb[0].mxu0
      %v439 = vadd.f32 0.0, %v438
      %v440 = vpop.f32.mrb[0].mxu0
      %v441 = vpop.f32.mrb[0].mxu0
      %v442 = vadd.f32 0.0, %v441
      %v443 = vpop.f32.mrb[0].mxu0
      %444 = vmatprep.mubr.bf16.mxu0 0
      %445 = vmatmul.mubr.bf16.gmra.mrb[0].mxu0 %v356
      %v446 = vpop.f32.mrb[0].mxu0
      %v447 = vadd.f32 0.0, %v446
      %v448 = vpop.f32.mrb[0].mxu0
      %v449 = vpop.f32.mrb[0].mxu0
      %v450 = vadd.f32 0.0, %v449
      %v451 = vpop.f32.mrb[0].mxu0
      %452 = vmatprep.mubr.bf16.mxu0 0
      %453 = vmatmul.mubr.bf16.gmra.mrb[0].mxu0 %v359
      %v454 = vpop.f32.mrb[0].mxu0
      %v455 = vadd.f32 0.0, %v454
      %v456 = vpop.f32.mrb[0].mxu0
      %v457 = vpop.f32.mrb[0].mxu0
      %v458 = vadd.f32 0.0, %v457
      %v459 = vpop.f32.mrb[0].mxu0
      %460 = vmatprep.mubr.bf16.mxu0 0
      %461 = vmatmul.mubr.bf16.gmra.mrb[0].mxu0 %v362
      %v462 = vpop.f32.mrb[0].mxu0
      %v463 = vadd.f32 0.0, %v462
      %v464 = vpop.f32.mrb[0].mxu0
      %v465 = vpop.f32.mrb[0].mxu0
      %v466 = vadd.f32 0.0, %v465
      %v467 = vpop.f32.mrb[0].mxu0
      %468 = vmatprep.mubr.bf16.mxu0 0
      %469 = vmatmul.mubr.bf16.gmra.mrb[0].mxu0 %v365
      %v470 = vpop.f32.mrb[0].mxu0
      %v471 = vadd.f32 0.0, %v470
      %v472 = vpop.f32.mrb[0].mxu0
      %v473 = vpop.f32.mrb[0].mxu0
      %v474 = vadd.f32 0.0, %v473
      %v475 = vpop.f32.mrb[0].mxu0
      %476 = vmatprep.mubr.bf16.mxu0 0
      %477 = vmatmul.mubr.bf16.gmra.mrb[0].mxu0 %v368
      %v478 = vpop.f32.mrb[0].mxu0
      %v479 = vadd.f32 0.0, %v478
      %v480 = vpop.f32.mrb[0].mxu0
      %v481 = vpop.f32.mrb[0].mxu0
      %v482 = vadd.f32 0.0, %v481
      %v483 = vpop.f32.mrb[0].mxu0
      %484 = vmatprep.mubr.bf16.mxu0 0
      %485 = vmatmul.mubr.bf16.gmra.mrb[0].mxu0 %v371
      %v486 = vpop.f32.mrb[0].mxu0
      %v487 = vadd.f32 0.0, %v486
      %v488 = vpop.f32.mrb[0].mxu0
      %v489 = vpop.f32.mrb[0].mxu0
      %v490 = vadd.f32 0.0, %v489
      %v491 = vpop.f32.mrb[0].mxu0
      %492 = vmatprep.mubr.bf16.mxu0 0
      %493 = vmatmul.mubr.bf16.gmra.mrb[0].mxu0 %v374
      %v494 = vpop.f32.mrb[0].mxu0
      %v495 = vadd.f32 0.0, %v494
      %v496 = vpop.f32.mrb[0].mxu0
      %v497 = vpop.f32.mrb[0].mxu0
      %v498 = vadd.f32 0.0, %v497
      %v499 = vpop.f32.mrb[0].mxu0
      %500 = vmatprep.mubr.bf16.mxu0 0
      %501 = vmatmul.mubr.bf16.gmra.mrb[0].mxu0 %v377
      %v502 = vpop.f32.mrb[0].mxu0
      %v503 = vadd.f32 0.0, %v502
      %v504 = vpop.f32.mrb[0].mxu0
      %v505 = vpop.f32.mrb[0].mxu0
      %v506 = vadd.f32 0.0, %v505
      %v507 = vpop.f32.mrb[0].mxu0
      %508 = vmatprep.mubr.bf16.mxu0 0
      %509 = vmatmul.mubr.bf16.gmra.mrb[0].mxu0 %v380
      %v510 = vpop.f32.mrb[0].mxu0
      %v511 = vadd.f32 0.0, %v510
      %v512 = vpop.f32.mrb[0].mxu0
      %v513 = vpop.f32.mrb[0].mxu0
      %v514 = vadd.f32 0.0, %v513
      %v515 = vpop.f32.mrb[0].mxu0
      %516 = vmatprep.mubr.bf16.mxu0 0
      %517 = vmatmul.mubr.bf16.gmra.mrb[0].mxu0 %v383
      %v518 = vpop.f32.mrb[0].mxu0
      %v519 = vadd.f32 0.0, %v518
      %v520 = vpop.f32.mrb[0].mxu0
      %v521 = vpop.f32.mrb[0].mxu0
      %v522 = vadd.f32 0.0, %v521
      %v523 = vpop.f32.mrb[0].mxu0
      %524 = vmatprep.mubr.bf16.mxu0 0
      %525 = vmatmul.mubr.bf16.gmra.mrb[0].mxu0 %v386
      %v526 = vpop.f32.mrb[0].mxu0
      %v527 = vadd.f32 0.0, %v526
      %v528 = vpop.f32.mrb[0].mxu0
      %v529 = vpop.f32.mrb[0].mxu0
      %v530 = vadd.f32 0.0, %v529
      %v531 = vpop.f32.mrb[0].mxu0
      %532 = vmatprep.mubr.bf16.mxu0 0
      %533 = vmatmul.mubr.bf16.gmra.mrb[0].mxu0 %v389
      %v534 = vpop.f32.mrb[0].mxu0
      %v535 = vadd.f32 0.0, %v534
      %v536 = vpop.f32.mrb[0].mxu0
      %v537 = vpop.f32.mrb[0].mxu0
      %v538 = vadd.f32 0.0, %v537
      %v539 = vpop.f32.mrb[0].mxu0
      %540 = vmatprep.mubr.bf16.mxu0 0
      %541 = vmatmul.mubr.bf16.gmra.mrb[0].mxu0 %v392
      %v542 = vpop.f32.mrb[0].mxu0
      %v543 = vadd.f32 0.0, %v542
      %v544 = vpop.f32.mrb[0].mxu0
      %v545 = vpop.f32.mrb[0].mxu0
      %v546 = vadd.f32 0.0, %v545
      %v547 = vpop.f32.mrb[0].mxu0
      %548 = vmatprep.mubr.bf16.mxu0 0
      %549 = vmatmul.mubr.bf16.gmra.mrb[0].mxu0 %v395
      %v550 = vpop.f32.mrb[0].mxu0
      %v551 = vadd.f32 0.0, %v550
      %v552 = vpop.f32.mrb[0].mxu0
      %v553 = vpop.f32.mrb[0].mxu0
      %v554 = vadd.f32 0.0, %v553
      %v555 = vpop.f32.mrb[0].mxu0
      %556 = vmatprep.mubr.bf16.mxu0 0
      %557 = vmatmul.mubr.bf16.gmra.mrb[0].mxu0 %v398
      %v558 = vpop.f32.mrb[0].mxu0
      %v559 = vadd.f32 0.0, %v558
      %v560 = vpop.f32.mrb[0].mxu0
      %v561 = vpop.f32.mrb[0].mxu0
      %v562 = vadd.f32 0.0, %v561
      %v563 = vpop.f32.mrb[0].mxu0
      %564 = vdwg.mxu0
      %v565 = vld [vmem:[%s2] sm:$0x1]
      %v567 = vlaneseq
      %v568 = vshrl.u32 %v567, 7
      %v569 = vsub.s32 0, %v568
      %v570 = vrot.slane %v565, %v569
      %v572 = vmul.f32 %v439, %v570
      %v573 = vmul.f32 %v442, %v570
      %v574 = vmul.f32 %v447, %v570
      %v575 = vmul.f32 %v450, %v570
      %v576 = vmul.f32 %v455, %v570
      %v577 = vmul.f32 %v458, %v570
      %v578 = vmul.f32 %v463, %v570
      %v579 = vmul.f32 %v466, %v570
      %v580 = vmul.f32 %v471, %v570
      %v581 = vmul.f32 %v474, %v570
      %v582 = vmul.f32 %v479, %v570
      %v583 = vmul.f32 %v482, %v570
      %v584 = vmul.f32 %v487, %v570
      %v585 = vmul.f32 %v490, %v570
      %v586 = vmul.f32 %v495, %v570
      %v587 = vmul.f32 %v498, %v570
      %v588 = vmul.f32 %v503, %v570
      %v589 = vmul.f32 %v506, %v570
      %v590 = vmul.f32 %v511, %v570
      %v591 = vmul.f32 %v514, %v570
      %v592 = vmul.f32 %v519, %v570
      %v593 = vmul.f32 %v522, %v570
      %v594 = vmul.f32 %v527, %v570
      %v595 = vmul.f32 %v530, %v570
      %v596 = vmul.f32 %v535, %v570
      %v597 = vmul.f32 %v538, %v570
      %v598 = vmul.f32 %v543, %v570
      %v599 = vmul.f32 %v546, %v570
      %v600 = vmul.f32 %v551, %v570
      %v601 = vmul.f32 %v554, %v570
      %v602 = vmul.f32 %v559, %v570
      %v603 = vmul.f32 %v562, %v570
      %v604 = vld [vmem:[%s3] sm:$0x1]
      %v606 = vlaneseq
      %v607 = vshrl.u32 %v606, 7
      %v608 = vsub.s32 0, %v607
      %v609 = vrot.slane %v604, %v608
      %v611 = vadd.f32 %v572, %v609
      %v612 = vadd.f32 %v573, %v609
      %v613 = vadd.f32 %v574, %v609
      %v614 = vadd.f32 %v575, %v609
      %v615 = vadd.f32 %v576, %v609
      %v616 = vadd.f32 %v577, %v609
      %v617 = vadd.f32 %v578, %v609
      %v618 = vadd.f32 %v579, %v609
      %v619 = vadd.f32 %v580, %v609
      %v620 = vadd.f32 %v581, %v609
      %v621 = vadd.f32 %v582, %v609
      %v622 = vadd.f32 %v583, %v609
      %v623 = vadd.f32 %v584, %v609
      %v624 = vadd.f32 %v585, %v609
      %v625 = vadd.f32 %v586, %v609
      %v626 = vadd.f32 %v587, %v609
      %v627 = vadd.f32 %v588, %v609
      %v628 = vadd.f32 %v589, %v609
      %v629 = vadd.f32 %v590, %v609
      %v630 = vadd.f32 %v591, %v609
      %v631 = vadd.f32 %v592, %v609
      %v632 = vadd.f32 %v593, %v609
      %v633 = vadd.f32 %v594, %v609
      %v634 = vadd.f32 %v595, %v609
      %v635 = vadd.f32 %v596, %v609
      %v636 = vadd.f32 %v597, %v609
      %v637 = vadd.f32 %v598, %v609
      %v638 = vadd.f32 %v599, %v609
      %v639 = vadd.f32 %v600, %v609
      %v640 = vadd.f32 %v601, %v609
      %v641 = vadd.f32 %v602, %v609
      %v642 = vadd.f32 %v603, %v609
      %v643 = vadd.f32 %v611, 3.0
      %v644 = vadd.f32 %v612, 3.0
      %v645 = vadd.f32 %v613, 3.0
      %v646 = vadd.f32 %v614, 3.0
      %v647 = vadd.f32 %v615, 3.0
      %v648 = vadd.f32 %v616, 3.0
      %v649 = vadd.f32 %v617, 3.0
      %v650 = vadd.f32 %v618, 3.0
      %v651 = vadd.f32 %v619, 3.0
      %v652 = vadd.f32 %v620, 3.0
      %v653 = vadd.f32 %v621, 3.0
      %v654 = vadd.f32 %v622, 3.0
      %v655 = vadd.f32 %v623, 3.0
      %v656 = vadd.f32 %v624, 3.0
      %v657 = vadd.f32 %v625, 3.0
      %v658 = vadd.f32 %v626, 3.0
      %v659 = vadd.f32 %v627, 3.0
      %v660 = vadd.f32 %v628, 3.0
      %v661 = vadd.f32 %v629, 3.0
      %v662 = vadd.f32 %v630, 3.0
      %v663 = vadd.f32 %v631, 3.0
      %v664 = vadd.f32 %v632, 3.0
      %v665 = vadd.f32 %v633, 3.0
      %v666 = vadd.f32 %v634, 3.0
      %v667 = vadd.f32 %v635, 3.0
      %v668 = vadd.f32 %v636, 3.0
      %v669 = vadd.f32 %v637, 3.0
      %v670 = vadd.f32 %v638, 3.0
      %v671 = vadd.f32 %v639, 3.0
      %v672 = vadd.f32 %v640, 3.0
      %v673 = vadd.f32 %v641, 3.0
      %v674 = vadd.f32 %v642, 3.0
      %v675 = vmax.f32 %v643, 0.0
      %v676 = vmax.f32 %v644, 0.0
      %v677 = vmax.f32 %v645, 0.0
      %v678 = vmax.f32 %v646, 0.0
      %v679 = vmax.f32 %v647, 0.0
      %v680 = vmax.f32 %v648, 0.0
      %v681 = vmax.f32 %v649, 0.0
      %v682 = vmax.f32 %v650, 0.0
      %v683 = vmax.f32 %v651, 0.0
      %v684 = vmax.f32 %v652, 0.0
      %v685 = vmax.f32 %v653, 0.0
      %v686 = vmax.f32 %v654, 0.0
      %v687 = vmax.f32 %v655, 0.0
      %v688 = vmax.f32 %v656, 0.0
      %v689 = vmax.f32 %v657, 0.0
      %v690 = vmax.f32 %v658, 0.0
      %v691 = vmax.f32 %v659, 0.0
      %v692 = vmax.f32 %v660, 0.0
      %v693 = vmax.f32 %v661, 0.0
      %v694 = vmax.f32 %v662, 0.0
      %v695 = vmax.f32 %v663, 0.0
      %v696 = vmax.f32 %v664, 0.0
      %v697 = vmax.f32 %v665, 0.0
      %v698 = vmax.f32 %v666, 0.0
      %v699 = vmax.f32 %v667, 0.0
      %v700 = vmax.f32 %v668, 0.0
      %v701 = vmax.f32 %v669, 0.0
      %v702 = vmax.f32 %v670, 0.0
      %v703 = vmax.f32 %v671, 0.0
      %v704 = vmax.f32 %v672, 0.0
      %v705 = vmax.f32 %v673, 0.0
      %v706 = vmax.f32 %v674, 0.0
      %v707 = vmin.f32 %v675, 6.0
      %v708 = vmin.f32 %v676, 6.0
      %v709 = vmin.f32 %v677, 6.0
      %v710 = vmin.f32 %v678, 6.0
      %v711 = vmin.f32 %v679, 6.0
      %v712 = vmin.f32 %v680, 6.0
      %v713 = vmin.f32 %v681, 6.0
      %v714 = vmin.f32 %v682, 6.0
      %v715 = vmin.f32 %v683, 6.0
      %v716 = vmin.f32 %v684, 6.0
      %v717 = vmin.f32 %v685, 6.0
      %v718 = vmin.f32 %v686, 6.0
      %v719 = vmin.f32 %v687, 6.0
      %v720 = vmin.f32 %v688, 6.0
      %v721 = vmin.f32 %v689, 6.0
      %v722 = vmin.f32 %v690, 6.0
      %v723 = vmin.f32 %v691, 6.0
      %v724 = vmin.f32 %v692, 6.0
      %v725 = vmin.f32 %v693, 6.0
      %v726 = vmin.f32 %v694, 6.0
      %v727 = vmin.f32 %v695, 6.0
      %v728 = vmin.f32 %v696, 6.0
      %v729 = vmin.f32 %v697, 6.0
      %v730 = vmin.f32 %v698, 6.0
      %v731 = vmin.f32 %v699, 6.0
      %v732 = vmin.f32 %v700, 6.0
      %v733 = vmin.f32 %v701, 6.0
      %v734 = vmin.f32 %v702, 6.0
      %v735 = vmin.f32 %v703, 6.0
      %v736 = vmin.f32 %v704, 6.0
      %v737 = vmin.f32 %v705, 6.0
      %v738 = vmin.f32 %v706, 6.0
      %v739 = vmul.f32 %v611, %v707
      %v740 = vmul.f32 %v612, %v708
      %v741 = vmul.f32 %v613, %v709
      %v742 = vmul.f32 %v614, %v710
      %v743 = vmul.f32 %v615, %v711
      %v744 = vmul.f32 %v616, %v712
      %v745 = vmul.f32 %v617, %v713
      %v746 = vmul.f32 %v618, %v714
      %v747 = vmul.f32 %v619, %v715
      %v748 = vmul.f32 %v620, %v716
      %v749 = vmul.f32 %v621, %v717
      %v750 = vmul.f32 %v622, %v718
      %v751 = vmul.f32 %v623, %v719
      %v752 = vmul.f32 %v624, %v720
      %v753 = vmul.f32 %v625, %v721
      %v754 = vmul.f32 %v626, %v722
      %v755 = vmul.f32 %v627, %v723
      %v756 = vmul.f32 %v628, %v724
      %v757 = vmul.f32 %v629, %v725
      %v758 = vmul.f32 %v630, %v726
      %v759 = vmul.f32 %v631, %v727
      %v760 = vmul.f32 %v632, %v728
      %v761 = vmul.f32 %v633, %v729
      %v762 = vmul.f32 %v634, %v730
      %v763 = vmul.f32 %v635, %v731
      %v764 = vmul.f32 %v636, %v732
      %v765 = vmul.f32 %v637, %v733
      %v766 = vmul.f32 %v638, %v734
      %v767 = vmul.f32 %v639, %v735
      %v768 = vmul.f32 %v640, %v736
      %v769 = vmul.f32 %v641, %v737
      %v770 = vmul.f32 %v642, %v738
      %v771 = vmul.f32 %v739, 0.16666667
      %v772 = vmul.f32 %v740, 0.16666667
      %v773 = vmul.f32 %v741, 0.16666667
      %v774 = vmul.f32 %v742, 0.16666667
      %v775 = vmul.f32 %v743, 0.16666667
      %v776 = vmul.f32 %v744, 0.16666667
      %v777 = vmul.f32 %v745, 0.16666667
      %v778 = vmul.f32 %v746, 0.16666667
      %v779 = vmul.f32 %v747, 0.16666667
      %v780 = vmul.f32 %v748, 0.16666667
      %v781 = vmul.f32 %v749, 0.16666667
      %v782 = vmul.f32 %v750, 0.16666667
      %v783 = vmul.f32 %v751, 0.16666667
      %v784 = vmul.f32 %v752, 0.16666667
      %v785 = vmul.f32 %v753, 0.16666667
      %v786 = vmul.f32 %v754, 0.16666667
      %v787 = vmul.f32 %v755, 0.16666667
      %v788 = vmul.f32 %v756, 0.16666667
      %v789 = vmul.f32 %v757, 0.16666667
      %v790 = vmul.f32 %v758, 0.16666667
      %v791 = vmul.f32 %v759, 0.16666667
      %v792 = vmul.f32 %v760, 0.16666667
      %v793 = vmul.f32 %v761, 0.16666667
      %v794 = vmul.f32 %v762, 0.16666667
      %v795 = vmul.f32 %v763, 0.16666667
      %v796 = vmul.f32 %v764, 0.16666667
      %v797 = vmul.f32 %v765, 0.16666667
      %v798 = vmul.f32 %v766, 0.16666667
      %v799 = vmul.f32 %v767, 0.16666667
      %v800 = vmul.f32 %v768, 0.16666667
      %v801 = vmul.f32 %v769, 0.16666667
      %v802 = vmul.f32 %v770, 0.16666667
      %v803 = vpack.c.bf16 %v772, %v771
      %v804 = vpack.c.bf16 %v774, %v773
      %v805 = vpack.c.bf16 %v776, %v775
      %v806 = vpack.c.bf16 %v778, %v777
      %v807 = vpack.c.bf16 %v780, %v779
      %v808 = vpack.c.bf16 %v782, %v781
      %v809 = vpack.c.bf16 %v784, %v783
      %v810 = vpack.c.bf16 %v786, %v785
      %v811 = vpack.c.bf16 %v788, %v787
      %v812 = vpack.c.bf16 %v790, %v789
      %v813 = vpack.c.bf16 %v792, %v791
      %v814 = vpack.c.bf16 %v794, %v793
      %v815 = vpack.c.bf16 %v796, %v795
      %v816 = vpack.c.bf16 %v798, %v797
      %v817 = vpack.c.bf16 %v800, %v799
      %v818 = vpack.c.bf16 %v802, %v801
      %v835 = vunpack.c.l.b16 %v803
      %v836 = vunpack.c.h.b16 %v803
      %v837 = vunpack.c.l.b16 %v804
      %v838 = vunpack.c.h.b16 %v804
      %v839 = vunpack.c.l.b16 %v805
      %v840 = vunpack.c.h.b16 %v805
      %v841 = vunpack.c.l.b16 %v806
      %v842 = vunpack.c.h.b16 %v806
      %v843 = vunpack.c.l.b16 %v807
      %v844 = vunpack.c.h.b16 %v807
      %v845 = vunpack.c.l.b16 %v808
      %v846 = vunpack.c.h.b16 %v808
      %v847 = vunpack.c.l.b16 %v809
      %v848 = vunpack.c.h.b16 %v809
      %v849 = vunpack.c.l.b16 %v810
      %v850 = vunpack.c.h.b16 %v810
      %v851 = vunpack.c.l.b16 %v811
      %v852 = vunpack.c.h.b16 %v811
      %v853 = vunpack.c.l.b16 %v812
      %v854 = vunpack.c.h.b16 %v812
      %v855 = vunpack.c.l.b16 %v813
      %v856 = vunpack.c.h.b16 %v813
      %v857 = vunpack.c.l.b16 %v814
      %v858 = vunpack.c.h.b16 %v814
      %v859 = vunpack.c.l.b16 %v815
      %v860 = vunpack.c.h.b16 %v815
      %v861 = vunpack.c.l.b16 %v816
      %v862 = vunpack.c.h.b16 %v816
      %v863 = vunpack.c.l.b16 %v817
      %v864 = vunpack.c.h.b16 %v817
      %v865 = vunpack.c.l.b16 %v818
      %v866 = vunpack.c.h.b16 %v818
      %v867 = vpack.c.b16 %v835, %v835
      %v868 = vpack.c.b16 %v836, %v836
      %v869 = vpack.c.b16 %v837, %v837
      %v870 = vpack.c.b16 %v838, %v838
      %v871 = vpack.c.b16 %v839, %v839
      %v872 = vpack.c.b16 %v840, %v840
      %v873 = vpack.c.b16 %v841, %v841
      %v874 = vpack.c.b16 %v842, %v842
      %v875 = vpack.c.b16 %v843, %v843
      %v876 = vpack.c.b16 %v844, %v844
      %v877 = vpack.c.b16 %v845, %v845
      %v878 = vpack.c.b16 %v846, %v846
      %v879 = vpack.c.b16 %v847, %v847
      %v880 = vpack.c.b16 %v848, %v848
      %v881 = vpack.c.b16 %v849, %v849
      %v882 = vpack.c.b16 %v850, %v850
      %v883 = vpack.c.b16 %v851, %v851
      %v884 = vpack.c.b16 %v852, %v852
      %v885 = vpack.c.b16 %v853, %v853
      %v886 = vpack.c.b16 %v854, %v854
      %v887 = vpack.c.b16 %v855, %v855
      %v888 = vpack.c.b16 %v856, %v856
      %v889 = vpack.c.b16 %v857, %v857
      %v890 = vpack.c.b16 %v858, %v858
      %v891 = vpack.c.b16 %v859, %v859
      %v892 = vpack.c.b16 %v860, %v860
      %v893 = vpack.c.b16 %v861, %v861
      %v894 = vpack.c.b16 %v862, %v862
      %v895 = vpack.c.b16 %v863, %v863
      %v896 = vpack.c.b16 %v864, %v864
      %v897 = vpack.c.b16 %v865, %v865
      %v898 = vpack.c.b16 %v866, %v866
      %vm931 = vcmask 27648
      %932 = vst.msk [vmem:[%s235] sm:$0xf] %vm931, %v867
      %933 = vst.msk [vmem:[%s235 + $0x4] sm:$0xf] %vm931, %v868
      %934 = vst.msk [vmem:[%s235 + $0x8] sm:$0xf] %vm931, %v869
      %935 = vst.msk [vmem:[%s235 + $0xc] sm:$0xf] %vm931, %v870
      %936 = vst.msk [vmem:[%s235 + $0x10] sm:$0xf] %vm931, %v871
      %937 = vst.msk [vmem:[%s235 + $0x14] sm:$0xf] %vm931, %v872
      %938 = vst.msk [vmem:[%s235 + $0x18] sm:$0xf] %vm931, %v873
      %939 = vst.msk [vmem:[%s235 + $0x1c] sm:$0xf] %vm931, %v874
      %940 = vst.msk [vmem:[%s235 + $0x20] sm:$0xf] %vm931, %v875
      %941 = vst.msk [vmem:[%s235 + $0x24] sm:$0xf] %vm931, %v876
      %942 = vst.msk [vmem:[%s235 + $0x28] sm:$0xf] %vm931, %v877
      %943 = vst.msk [vmem:[%s235 + $0x2c] sm:$0xf] %vm931, %v878
      %944 = vst.msk [vmem:[%s235 + $0x30] sm:$0xf] %vm931, %v879
      %945 = vst.msk [vmem:[%s235 + $0x34] sm:$0xf] %vm931, %v880
      %946 = vst.msk [vmem:[%s235 + $0x38] sm:$0xf] %vm931, %v881
      %947 = vst.msk [vmem:[%s235 + $0x3c] sm:$0xf] %vm931, %v882
      %948 = vst.msk [vmem:[%s235 + $0x40] sm:$0xf] %vm931, %v883
      %949 = vst.msk [vmem:[%s235 + $0x44] sm:$0xf] %vm931, %v884
      %950 = vst.msk [vmem:[%s235 + $0x48] sm:$0xf] %vm931, %v885
      %951 = vst.msk [vmem:[%s235 + $0x4c] sm:$0xf] %vm931, %v886
      %952 = vst.msk [vmem:[%s235 + $0x50] sm:$0xf] %vm931, %v887
      %953 = vst.msk [vmem:[%s235 + $0x54] sm:$0xf] %vm931, %v888
      %954 = vst.msk [vmem:[%s235 + $0x58] sm:$0xf] %vm931, %v889
      %955 = vst.msk [vmem:[%s235 + $0x5c] sm:$0xf] %vm931, %v890
      %956 = vst.msk [vmem:[%s235 + $0x60] sm:$0xf] %vm931, %v891
      %957 = vst.msk [vmem:[%s235 + $0x64] sm:$0xf] %vm931, %v892
      %958 = vst.msk [vmem:[%s235 + $0x68] sm:$0xf] %vm931, %v893
      %959 = vst.msk [vmem:[%s235 + $0x6c] sm:$0xf] %vm931, %v894
      %960 = vst.msk [vmem:[%s235 + $0x70] sm:$0xf] %vm931, %v895
      %961 = vst.msk [vmem:[%s235 + $0x74] sm:$0xf] %vm931, %v896
      %962 = vst.msk [vmem:[%s235 + $0x78] sm:$0xf] %vm931, %v897
      %963 = vst.msk [vmem:[%s235 + $0x7c] sm:$0xf] %vm931, %v898
      %s964 = smul.u32 32, %s20
      %p965 = scmp.lt.s32.totalorder %s19, 1
      %s966 = scalar_select %p965, %s19, 1
      %p967 = scmp.lt.s32.totalorder %s964, 31
      %s968 = scalar_select %p967, %s964, 31
      %s969 = smul.addr %s966, 32
      %s970 = sadd.s32 %s968, %s969
      %s971 = smul.addr %s970, 4
      %s972 = scalar_lea.vmem %s4, %s971
      // Predicated region
      $region37: #{esblock2_forward.7} parent=35 // pred_check
        %p973 = pneg %p138
      $region38: #{esblock2_forward.7} parent=35 // pred_check_branch
        %975 = sbr.rel (%p973) target = $region40
      $region39: #{esblock2_forward.7} parent=35 // pred_region
        %s976 = smul.u32 32, %s20
      $region40: #{esblock2_forward.7} parent=35 // pred_fallthru
        _
    $region36: #{esblock2_forward.7} parent=5 // pred_fallthru
      _
    %p977 = scmp.le.s32.totalorder 2, %s10
    // Predicated region
    $region41: #{esblock2_forward.7} parent=5 // pred_check
      %p978 = pneg %p977
    $region42: #{esblock2_forward.7} parent=5 // pred_check_branch
      %980 = sbr.rel (%p978) target = $region44
    $region43: #{esblock2_forward.7} parent=5 // pred_region
      %s981 = ssub.s32 %s10, 2
      // Predicated region
      $region45: #{esblock2_forward.7} parent=43 // pred_check
        %p982 = pneg %p144
      $region46: #{esblock2_forward.7} parent=43 // pred_check_branch
        %984 = sbr.rel (%p982) target = $region48
      $region47: #{esblock2_forward.7} parent=43 // pred_region
        %s985 = smul.u32 32, %s22
        %p986 = scmp.lt.s32.totalorder %s21, 1
        %s987 = scalar_select %p986, %s21, 1
        %p988 = scmp.lt.s32.totalorder %s985, 31
        %s989 = scalar_select %p988, %s985, 31
        %s990 = smul.addr %s987, 32
        %s991 = sadd.s32 %s989, %s990
        %s992 = smul.addr %s991, 4
        %s993 = scalar_lea.vmem %s4, %s992
      $region48: #{esblock2_forward.7} parent=43 // pred_fallthru
        _
    $region44: #{esblock2_forward.7} parent=5 // pred_fallthru
      _
  $region6: #{esblock2_forward.7} parent=0 // loop_footer
    %s14 = sadd.s32 1, %s10
  $region7: #{esblock2_forward.7} parent=0 // loop_footer_branch
    %9 = sbr.rel target = $region3
  $region8: #{esblock2_forward.7} parent=0 // loop_exit
    _

// kernel: esblock2_forward.9
$region0: #{esblock2_forward.9}
  #allocation0 [shape = 'u32[]', space=smem, size = 0x4, offset = 0x4, fixed_abs, tag = 'smem constant byte address 0x4 - core index']
  #allocation1 [shape = 'u32[144,128]{1,0:T(1,128)}', space=vmem, size = 0x12000, scoped, tag = 'internal scratch']
  #allocation2 [shape = 'f32[1,1]{1,0:T(1,128)S(1)}', space=vmem, size = 0x200, scoped, tag = 'scoped memory for esblock2_forward.9']
  %s0 = inlined_call_operand.vmem [shape: f32[2,1,4], index: 0, kind: input, shape index: {}]
  %s1 = inlined_call_operand.vmem [shape: f32[4,1], index: 1, kind: input, shape index: {}]
  %s2 = inlined_call_operand.<no memory space> [shape: f32[1,1], index: 2, kind: input, shape index: {}]
  %s3 = inlined_call_operand.vmem [shape: f32[1,4], index: 3, kind: input, shape index: {}]
  %s4 = inlined_call_operand.vmem [shape: f32[1,4], index: 4, kind: input, shape index: {}]
  %s5 = inlined_call_operand.vmem [shape: f32[2,1,4], index: 5, kind: output, shape index: {}]
  %s6 = sld [smem:[#allocation0]]
  $region30: #{esblock2_forward.9} parent=0
    _
  %s8 = ssub.s32 1, %s6
  %s9 = scalar_select 0, %s8, %s6
  %v10 = vstv %s2
  %11 = vst [vmem:[#allocation2] sm:$0x1] %v10
  // Predicated region
  $region2: #{esblock2_forward.9} parent=0 // pred_check
    _
  $region3: #{esblock2_forward.9} parent=0 // pred_check_branch
    %13 = sbr.rel (0) target = $region5
  $region4: #{esblock2_forward.9} parent=0 // pred_region
    _
  $region5: #{esblock2_forward.9} parent=0 // pred_fallthru
    _
  // Predicated region
  $region6: #{esblock2_forward.9} parent=0 // pred_check
    _
  $region7: #{esblock2_forward.9} parent=0 // pred_check_branch
    %15 = sbr.rel (0) target = $region9
  $region8: #{esblock2_forward.9} parent=0 // pred_region
    _
  $region9: #{esblock2_forward.9} parent=0 // pred_fallthru
    _
  // Predicated region
  $region10: #{esblock2_forward.9} parent=0 // pred_check
    _
  $region11: #{esblock2_forward.9} parent=0 // pred_check_branch
    %17 = sbr.rel (0) target = $region13
  $region12: #{esblock2_forward.9} parent=0 // pred_region
    _
  $region13: #{esblock2_forward.9} parent=0 // pred_fallthru
    _
  // Predicated region
  $region14: #{esblock2_forward.9} parent=0 // pred_check
    _
  $region15: #{esblock2_forward.9} parent=0 // pred_check_branch
    %19 = sbr.rel (0) target = $region17
  $region16: #{esblock2_forward.9} parent=0 // pred_region
    _
  $region17: #{esblock2_forward.9} parent=0 // pred_fallthru
    _
  // Predicated region
  $region18: #{esblock2_forward.9} parent=0 // pred_check
    _
  $region19: #{esblock2_forward.9} parent=0 // pred_check_branch
    %21 = sbr.rel (0) target = $region21
  $region20: #{esblock2_forward.9} parent=0 // pred_region
    _
  $region21: #{esblock2_forward.9} parent=0 // pred_fallthru
    _
  %v22 = vld [vmem:[%s0] sm:$0x1]
  %v23 = vld [vmem:[%s0 + $0x1] sm:$0x1]
  %v24 = vmul.f32 %v22, 0.015625
  %v25 = vmul.f32 %v23, 0.015625
  %v26 = vld [vmem:[%s1] sm:$0xf]
  %v27 = vld [vmem:[#allocation2] sm:$0x1]
  %v29 = vlaneseq
  %v30 = vshrl.u32 %v29, 7
  %v31 = vsub.s32 0, %v30
  %v32 = vrot.slane %v27, %v31
  %v36 = vcombine.low %v24, %v25
  %v38 = vunpack.c.l.s4 1966171168
  %v39 = vunpack.c.0.s8 %v38
  %v40 = vlaneseq
  %v41 = vshrl.u32 %v40, 7
  %v42 = vsub.s32 %v39, %v41
  %v43 = vrot.slane %v36, %v42
  %v45 = vunpack.c.l.s4 1966171168
  %v46 = vunpack.c.0.s8 %v45
  %v47 = vlaneseq
  %v48 = vshrl.u32 %v47, 7
  %v49 = vsub.s32 %v46, %v48
  %v50 = vrot.slane %v43, %v49
  %vm51 = vcmask 31744
  %v52 = vsel %vm51, %v50, 0
  %vm54 = vcmask 1043456
  %v56 = vsel %vm54, %v26, 0
  %58 = vmatprep.subr.mxu0 0.0
  %59 = vmatpush1.msra.mxu0 %v56
  %60 = vmatprep.subr.mxu0 0.0
  %61 = vmatpush1.msra.mxu0 0.0
  %62 = vmatprep.subr.mxu0 0.0
  %63 = vmatpush1.msra.mxu0 0.0
  %64 = vmatprep.subr.mxu0 0.0
  %65 = vmatpush1.msra.mxu0 0.0
  %66 = vmatprep.subr.mxu0 0.0
  %67 = vmatpush1.msra.mxu0 0.0
  %68 = vmatprep.subr.mxu0 0.0
  %69 = vmatpush1.msra.mxu0 0.0
  %70 = vmatprep.subr.mxu0 0.0
  %71 = vmatpush1.msra.mxu0 0.0
  %72 = vmatprep.subr.mxu0 0.0
  %73 = vmatpush1.msra.mxu0 0.0
  %74 = vmatprep.subr.mxu0 0.0
  %75 = vmatpush1.msra.mxu0 0.0
  %76 = vmatprep.subr.mxu0 0.0
  %77 = vmatpush1.msra.mxu0 0.0
  %78 = vmatprep.subr.mxu0 0.0
  %79 = vmatpush1.msra.mxu0 0.0
  %80 = vmatprep.subr.mxu0 0.0
  %81 = vmatpush1.msra.mxu0 0.0
  %82 = vmatprep.subr.mxu0 0.0
  %83 = vmatpush1.msra.mxu0 0.0
  %84 = vmatprep.subr.mxu0 0.0
  %85 = vmatpush1.msra.mxu0 0.0
  %86 = vmatprep.subr.mxu0 0.0
  %87 = vmatpush1.msra.mxu0 0.0
  %88 = vmatprep.subr.mxu0 0.0
  %89 = vmatpush1.msra.mxu0 0.0
  %90 = vmatprep.subr.mxu0 0.0
  %91 = vmatpush1.msra.mxu0 0.0
  %92 = vmatprep.subr.mxu0 0.0
  %93 = vmatpush1.msra.mxu0 0.0
  %94 = vmatprep.subr.mxu0 0.0
  %95 = vmatpush1.msra.mxu0 0.0
  %96 = vmatprep.subr.mxu0 0.0
  %97 = vmatpush1.msra.mxu0 0.0
  %98 = vmatprep.subr.mxu0 0.0
  %99 = vmatpush1.msra.mxu0 0.0
  %100 = vmatprep.subr.mxu0 0.0
  %101 = vmatpush1.msra.mxu0 0.0
  %102 = vmatprep.subr.mxu0 0.0
  %103 = vmatpush1.msra.mxu0 0.0
  %104 = vmatprep.subr.mxu0 0.0
  %105 = vmatpush1.msra.mxu0 0.0
  %106 = vmatprep.subr.mxu0 0.0
  %107 = vmatpush1.msra.mxu0 0.0
  %108 = vmatprep.subr.mxu0 0.0
  %109 = vmatpush1.msra.mxu0 0.0
  %110 = vmatprep.subr.mxu0 0.0
  %111 = vmatpush1.msra.mxu0 0.0
  %112 = vmatprep.subr.mxu0 0.0
  %113 = vmatpush1.msra.mxu0 0.0
  %114 = vmatprep.subr.mxu0 0.0
  %115 = vmatpush1.msra.mxu0 0.0
  %116 = vmatprep.subr.mxu0 0.0
  %117 = vmatpush1.msra.mxu0 0.0
  %118 = vmatprep.subr.mxu0 0.0
  %119 = vmatpush1.msra.mxu0 0.0
  %120 = vmatprep.subr.mxu0 0.0
  %121 = vmatpush1.msra.mxu0 0.0
  %122 = vmatprep.mubr.f32.mxu0 0.0
  %123 = vmatmul.mubr.f32.gmra.mrb[0].mxu0 %v52
  %v124 = vpop.f32.mrb[0].mxu0
  %v125 = vadd.f32 %v32, %v124
  %v126 = vpop.f32.mrb[0].mxu0
  %127 = vdwg.mxu0
  %v128 = vmax.f32 %v125, 0.0
  %v129 = vld [vmem:[%s3] sm:$0x1]
  %v130 = vld [vmem:[%s4] sm:$0x1]
  %v132 = vlaneseq
  %v133 = vshrl.u32 %v132, 7
  %v134 = vsub.s32 0, %v133
  %v135 = vrot.slane %v130, %v134
  %vm137 = vcmask 7168
  %v139 = vsel %vm137, %v128, 0
  %vm141 = vcmask 1040384
  %v143 = vsel %vm141, %v129, 0
  %145 = vmatprep.subr.mxu0 0.0
  %146 = vmatpush1.msra.mxu0 %v143
  %147 = vmatprep.subr.mxu0 0.0
  %148 = vmatpush1.msra.mxu0 0.0
  %149 = vmatprep.subr.mxu0 0.0
  %150 = vmatpush1.msra.mxu0 0.0
  %151 = vmatprep.subr.mxu0 0.0
  %152 = vmatpush1.msra.mxu0 0.0
  %153 = vmatprep.subr.mxu0 0.0
  %154 = vmatpush1.msra.mxu0 0.0
  %155 = vmatprep.subr.mxu0 0.0
  %156 = vmatpush1.msra.mxu0 0.0
  %157 = vmatprep.subr.mxu0 0.0
  %158 = vmatpush1.msra.mxu0 0.0
  %159 = vmatprep.subr.mxu0 0.0
  %160 = vmatpush1.msra.mxu0 0.0
  %161 = vmatprep.subr.mxu0 0.0
  %162 = vmatpush1.msra.mxu0 0.0
  %163 = vmatprep.subr.mxu0 0.0
  %164 = vmatpush1.msra.mxu0 0.0
  %165 = vmatprep.subr.mxu0 0.0
  %166 = vmatpush1.msra.mxu0 0.0
  %167 = vmatprep.subr.mxu0 0.0
  %168 = vmatpush1.msra.mxu0 0.0
  %169 = vmatprep.subr.mxu0 0.0
  %170 = vmatpush1.msra.mxu0 0.0
  %171 = vmatprep.subr.mxu0 0.0
  %172 = vmatpush1.msra.mxu0 0.0
  %173 = vmatprep.subr.mxu0 0.0
  %174 = vmatpush1.msra.mxu0 0.0
  %175 = vmatprep.subr.mxu0 0.0
  %176 = vmatpush1.msra.mxu0 0.0
  %177 = vmatprep.subr.mxu0 0.0
  %178 = vmatpush1.msra.mxu0 0.0
  %179 = vmatprep.subr.mxu0 0.0
  %180 = vmatpush1.msra.mxu0 0.0
  %181 = vmatprep.subr.mxu0 0.0
  %182 = vmatpush1.msra.mxu0 0.0
  %183 = vmatprep.subr.mxu0 0.0
  %184 = vmatpush1.msra.mxu0 0.0
  %185 = vmatprep.subr.mxu0 0.0
  %186 = vmatpush1.msra.mxu0 0.0
  %187 = vmatprep.subr.mxu0 0.0
  %188 = vmatpush1.msra.mxu0 0.0
  %189 = vmatprep.subr.mxu0 0.0
  %190 = vmatpush1.msra.mxu0 0.0
  %191 = vmatprep.subr.mxu0 0.0
  %192 = vmatpush1.msra.mxu0 0.0
  %193 = vmatprep.subr.mxu0 0.0
  %194 = vmatpush1.msra.mxu0 0.0
  %195 = vmatprep.subr.mxu0 0.0
  %196 = vmatpush1.msra.mxu0 0.0
  %197 = vmatprep.subr.mxu0 0.0
  %198 = vmatpush1.msra.mxu0 0.0
  %199 = vmatprep.subr.mxu0 0.0
  %200 = vmatpush1.msra.mxu0 0.0
  %201 = vmatprep.subr.mxu0 0.0
  %202 = vmatpush1.msra.mxu0 0.0
  %203 = vmatprep.subr.mxu0 0.0
  %204 = vmatpush1.msra.mxu0 0.0
  %205 = vmatprep.subr.mxu0 0.0
  %206 = vmatpush1.msra.mxu0 0.0
  %207 = vmatprep.subr.mxu0 0.0
  %208 = vmatpush1.msra.mxu0 0.0
  %209 = vmatprep.mubr.f32.mxu0 0.0
  %210 = vmatmul.mubr.f32.gmra.mrb[0].mxu0 %v139
  %v211 = vpop.f32.mrb[0].mxu0
  %v212 = vadd.f32 %v135, %v211
  %v213 = vpop.f32.mrb[0].mxu0
  %214 = vdwg.mxu0
  %v215 = vadd.f32 %v212, 3.0
  %v216 = vmax.f32 %v215, 0.0
  %v217 = vmin.f32 %v216, 6.0
  %v218 = vmul.f32 %v217, 0.16666667
  %v221 = vunpack.c.l.s4 1966171168
  %v222 = vunpack.c.0.s8 %v221
  %v223 = vlaneseq
  %v224 = vshrl.u32 %v223, 7
  %v225 = vsub.s32 %v222, %v224
  %v226 = vrot.slane %v218, %v225
  %v227 = vcombine.high %v226, %v226
  %v229 = vunpack.c.l.s4 1966171168
  %v230 = vunpack.c.0.s8 %v229
  %v231 = vlaneseq
  %v232 = vshrl.u32 %v231, 7
  %v233 = vsub.s32 %v230, %v232
  %v234 = vrot.slane %v226, %v233
  %v236 = vunpack.c.l.s4 1966171168
  %v237 = vunpack.c.0.s8 %v236
  %v238 = vlaneseq
  %v239 = vshrl.u32 %v238, 7
  %v240 = vsub.s32 %v237, %v239
  %v241 = vrot.slane %v227, %v240
  %vm244 = vcmask 24576
  %245 = vst.msk [vmem:[%s5] sm:$0x1] %vm244, %v234
  %246 = vst.msk [vmem:[%s5 + $0x1] sm:$0x1] %vm244, %v241
  // Predicated region
  $region22: #{esblock2_forward.9} parent=0 // pred_check
    _
  $region23: #{esblock2_forward.9} parent=0 // pred_check_branch
    %248 = sbr.rel (0) target = $region25
  $region24: #{esblock2_forward.9} parent=0 // pred_region
    _
  $region25: #{esblock2_forward.9} parent=0 // pred_fallthru
    _
  // Predicated region
  $region26: #{esblock2_forward.9} parent=0 // pred_check
    _
  $region27: #{esblock2_forward.9} parent=0 // pred_check_branch
    %250 = sbr.rel (0) target = $region29
  $region28: #{esblock2_forward.9} parent=0 // pred_region
    _
  $region29: #{esblock2_forward.9} parent=0 // pred_fallthru
    _

// kernel: esblock2_forward.10
$region0: #{esblock2_forward.10}
  #allocation0 [shape = 'u32[]', space=smem, size = 0x4, offset = 0x4, fixed_abs, tag = 'smem constant byte address 0x4 - core index']
  #allocation1 [shape = 'u32[144,128]{1,0:T(1,128)}', space=vmem, size = 0x12000, scoped, tag = 'internal scratch']
  %s0 = inlined_call_operand.vmem [shape: bf16[2,64,4], index: 0, kind: input, shape index: {}]
  %s1 = inlined_call_operand.vmem [shape: bf16[2,1,4], index: 1, kind: input, shape index: {}]
  %s2 = inlined_call_operand.vmem [shape: bf16[4,4], index: 2, kind: input, shape index: {}]
  %s3 = inlined_call_operand.vmem [shape: f32[1,4], index: 3, kind: input, shape index: {}]
  %s4 = inlined_call_operand.vmem [shape: f32[1,4], index: 4, kind: input, shape index: {}]
  %s5 = inlined_call_operand.vmem [shape: bf16[2,64,4], index: 5, kind: output, shape index: {}]
  %s6 = sld [smem:[#allocation0]]
  $region53: #{esblock2_forward.10} parent=0
    _
  %s8 = ssub.s32 1, %s6
  %s9 = scalar_select 0, %s8, %s6
  loop: start=0, step=1, limit=4
  $region2: #{esblock2_forward.10} parent=0 // loop_pre_header
    _
  $region3: #{esblock2_forward.10} parent=0 // loop_header
    %s11 = sphi 0, %s15
    %p12 = scmp.ge.s32.totalorder %s11, 4
    %s18 = sphi 0, %s30
    %s19 = sphi 0, %s26
    %s20 = sphi 0, %s18
    %s21 = sphi 0, %s19
    %s22 = sphi 0, %s20
    %s23 = sphi 0, %s21
    %s35 = sphi 0, %s37
    %s38 = sphi 0, %s35
    %s39 = sphi 0, %s38
    %s55 = sphi 0, %s39
    %s61 = sphi 0, %s63
    %s64 = sphi 0, %s61
    %s65 = sphi 0, %s64
    %s81 = sphi 0, %s65
    %s85 = sphi 0, %s85
    %s87 = sphi 0, %s85
    %s88 = sphi 0, %s87
    %s102 = sphi 0, %s88
    %s106 = sphi 0, %s106
    %s108 = sphi 0, %s106
    %s109 = sphi 0, %s108
    %s123 = sphi 0, %s109
    %s127 = sphi 0, %s127
    %s129 = sphi 0, %s127
    %s130 = sphi 0, %s129
    %s144 = sphi 0, %s130
    %s152 = sphi 0, %s154
    %s155 = sphi 0, %s152
    %s156 = sphi 0, %s155
    %s172 = sphi 0, %s156
  $region4: #{esblock2_forward.10} parent=0 // loop_header_branch
    %14 = sbr.rel (%p12) target = $region8
  $region5: #{esblock2_forward.10} parent=0 // loop_body
    %s16 = ssub.s32 %s11, 1
    %s17 = ssub.s32 %s11, 2
    %s24 = sadd.s32 1, %s19
    %p25 = scmp.ge.s32.totalorder %s24, 1
    %s26 = scalar_select %p25, 0, %s24
    %s27 = sadd.s32 1, %s18
    %s28 = scalar_select %p25, %s27, %s18
    %p29 = scmp.ge.s32.totalorder %s28, 2
    %s30 = scalar_select %p29, 0, %s28
    %s31 = ssub.s32 %s18, %s30
    %s32 = ssub.s32 %s19, %s26
    %s33 = sor.u32 %s31, %s32
    %p34 = scmp.eq.s32.totalorder %s33, 0
    %s36 = sadd.s32 %s35, 1
    %s37 = scalar_select %p34, %s35, %s36
    %p40 = pneg %p34
    %p41 = scmp.eq.s32.totalorder %s11, 1
    %p42 = por %p40, %p41
    %p43 = scmp.ne.s32.totalorder %s35, %s38
    %p44 = scmp.eq.s32.totalorder %s11, 0
    %p45 = por %p43, %p44
    %p46 = scmp.ne.s32.totalorder %s35, %s38
    %p47 = scmp.eq.s32.totalorder %s16, 1
    %p48 = por %p46, %p47
    %p49 = scmp.ne.s32.totalorder %s38, %s39
    %p50 = scmp.eq.s32.totalorder %s16, 0
    %p51 = por %p49, %p50
    %p52 = scmp.ne.s32.totalorder %s38, %s39
    %p53 = scmp.eq.s32.totalorder %s17, 1
    %p54 = por %p52, %p53
    %p56 = scmp.ne.s32.totalorder %s39, %s55
    %p57 = scmp.eq.s32.totalorder %s17, 0
    %p58 = por %p56, %p57
    %s59 = ssub.s32 %s18, %s30
    %p60 = scmp.eq.s32.totalorder %s59, 0
    %s62 = sadd.s32 %s61, 1
    %s63 = scalar_select %p60, %s61, %s62
    %p66 = pneg %p60
    %p67 = scmp.eq.s32.totalorder %s11, 1
    %p68 = por %p66, %p67
    %p69 = scmp.ne.s32.totalorder %s61, %s64
    %p70 = scmp.eq.s32.totalorder %s11, 0
    %p71 = por %p69, %p70
    %p72 = scmp.ne.s32.totalorder %s61, %s64
    %p73 = scmp.eq.s32.totalorder %s16, 1
    %p74 = por %p72, %p73
    %p75 = scmp.ne.s32.totalorder %s64, %s65
    %p76 = scmp.eq.s32.totalorder %s16, 0
    %p77 = por %p75, %p76
    %p78 = scmp.ne.s32.totalorder %s64, %s65
    %p79 = scmp.eq.s32.totalorder %s17, 1
    %p80 = por %p78, %p79
    %p82 = scmp.ne.s32.totalorder %s65, %s81
    %p83 = scmp.eq.s32.totalorder %s17, 0
    %p84 = por %p82, %p83
    %s86 = sadd.s32 %s85, 1
    %p89 = scmp.eq.s32.totalorder %s11, 1
    %p90 = scmp.ne.s32.totalorder %s85, %s87
    %p91 = scmp.eq.s32.totalorder %s11, 0
    %p92 = por %p90, %p91
    %p93 = scmp.ne.s32.totalorder %s85, %s87
    %p94 = scmp.eq.s32.totalorder %s16, 1
    %p95 = por %p93, %p94
    %p96 = scmp.ne.s32.totalorder %s87, %s88
    %p97 = scmp.eq.s32.totalorder %s16, 0
    %p98 = por %p96, %p97
    %p99 = scmp.ne.s32.totalorder %s87, %s88
    %p100 = scmp.eq.s32.totalorder %s17, 1
    %p101 = por %p99, %p100
    %p103 = scmp.ne.s32.totalorder %s88, %s102
    %p104 = scmp.eq.s32.totalorder %s17, 0
    %p105 = por %p103, %p104
    %s107 = sadd.s32 %s106, 1
    %p110 = scmp.eq.s32.totalorder %s11, 1
    %p111 = scmp.ne.s32.totalorder %s106, %s108
    %p112 = scmp.eq.s32.totalorder %s11, 0
    %p113 = por %p111, %p112
    %p114 = scmp.ne.s32.totalorder %s106, %s108
    %p115 = scmp.eq.s32.totalorder %s16, 1
    %p116 = por %p114, %p115
    %p117 = scmp.ne.s32.totalorder %s108, %s109
    %p118 = scmp.eq.s32.totalorder %s16, 0
    %p119 = por %p117, %p118
    %p120 = scmp.ne.s32.totalorder %s108, %s109
    %p121 = scmp.eq.s32.totalorder %s17, 1
    %p122 = por %p120, %p121
    %p124 = scmp.ne.s32.totalorder %s109, %s123
    %p125 = scmp.eq.s32.totalorder %s17, 0
    %p126 = por %p124, %p125
    %s128 = sadd.s32 %s127, 1
    %p131 = scmp.eq.s32.totalorder %s11, 1
    %p132 = scmp.ne.s32.totalorder %s127, %s129
    %p133 = scmp.eq.s32.totalorder %s11, 0
    %p134 = por %p132, %p133
    %p135 = scmp.ne.s32.totalorder %s127, %s129
    %p136 = scmp.eq.s32.totalorder %s16, 1
    %p137 = por %p135, %p136
    %p138 = scmp.ne.s32.totalorder %s129, %s130
    %p139 = scmp.eq.s32.totalorder %s16, 0
    %p140 = por %p138, %p139
    %p141 = scmp.ne.s32.totalorder %s129, %s130
    %p142 = scmp.eq.s32.totalorder %s17, 1
    %p143 = por %p141, %p142
    %p145 = scmp.ne.s32.totalorder %s130, %s144
    %p146 = scmp.eq.s32.totalorder %s17, 0
    %p147 = por %p145, %p146
    %s148 = ssub.s32 %s18, %s30
    %s149 = ssub.s32 %s19, %s26
    %s150 = sor.u32 %s148, %s149
    %p151 = scmp.eq.s32.totalorder %s150, 0
    %s153 = sadd.s32 %s152, 1
    %s154 = scalar_select %p151, %s152, %s153
    %p157 = pneg %p151
    %p158 = scmp.eq.s32.totalorder %s11, 1
    %p159 = por %p157, %p158
    %p160 = scmp.ne.s32.totalorder %s152, %s155
    %p161 = scmp.eq.s32.totalorder %s11, 0
    %p162 = por %p160, %p161
    %p163 = scmp.ne.s32.totalorder %s152, %s155
    %p164 = scmp.eq.s32.totalorder %s16, 1
    %p165 = por %p163, %p164
    %p166 = scmp.ne.s32.totalorder %s155, %s156
    %p167 = scmp.eq.s32.totalorder %s16, 0
    %p168 = por %p166, %p167
    %p169 = scmp.ne.s32.totalorder %s155, %s156
    %p170 = scmp.eq.s32.totalorder %s17, 1
    %p171 = por %p169, %p170
    %p173 = scmp.ne.s32.totalorder %s156, %s172
    %p174 = scmp.eq.s32.totalorder %s17, 0
    %p175 = por %p173, %p174
    %p176 = scmp.le.s32.totalorder 1, %s11
    %p177 = scmp.lt.s32.totalorder %s11, 3
    %p178 = pnand %p176, %p177
    %p179 = pneg %p178
    // Predicated region
    $region9: #{esblock2_forward.10} parent=5 // pred_check
      _
    $region10: #{esblock2_forward.10} parent=5 // pred_check_branch
      %181 = sbr.rel (%p178) target = $region12
    $region11: #{esblock2_forward.10} parent=5 // pred_region
      %s182 = ssub.s32 %s11, 1
      // Predicated region
      $region13: #{esblock2_forward.10} parent=11 // pred_check
        %p183 = pneg %p98
      $region14: #{esblock2_forward.10} parent=11 // pred_check_branch
        %185 = sbr.rel (%p183) target = $region16
      $region15: #{esblock2_forward.10} parent=11 // pred_region
        _
      $region16: #{esblock2_forward.10} parent=11 // pred_fallthru
        _
      // Predicated region
      $region17: #{esblock2_forward.10} parent=11 // pred_check
        %p186 = pneg %p119
      $region18: #{esblock2_forward.10} parent=11 // pred_check_branch
        %188 = sbr.rel (%p186) target = $region20
      $region19: #{esblock2_forward.10} parent=11 // pred_region
        _
      $region20: #{esblock2_forward.10} parent=11 // pred_fallthru
        _
      // Predicated region
      $region21: #{esblock2_forward.10} parent=11 // pred_check
        %p189 = pneg %p140
      $region22: #{esblock2_forward.10} parent=11 // pred_check_branch
        %191 = sbr.rel (%p189) target = $region24
      $region23: #{esblock2_forward.10} parent=11 // pred_region
        _
      $region24: #{esblock2_forward.10} parent=11 // pred_fallthru
        _
    $region12: #{esblock2_forward.10} parent=5 // pred_fallthru
      _
    %p192 = scmp.lt.s32.totalorder %s11, 2
    // Predicated region
    $region25: #{esblock2_forward.10} parent=5 // pred_check
      %p193 = pneg %p192
    $region26: #{esblock2_forward.10} parent=5 // pred_check_branch
      %195 = sbr.rel (%p193) target = $region28
    $region27: #{esblock2_forward.10} parent=5 // pred_region
      // Predicated region
      $region29: #{esblock2_forward.10} parent=27 // pred_check
        %p196 = pneg %p45
      $region30: #{esblock2_forward.10} parent=27 // pred_check_branch
        %198 = sbr.rel (%p196) target = $region32
      $region31: #{esblock2_forward.10} parent=27 // pred_region
        %s199 = smul.u32 8, %s19
        %p200 = scmp.lt.s32.totalorder %s18, 1
        %s201 = scalar_select %p200, %s18, 1
        %p202 = scmp.lt.s32.totalorder %s199, 7
        %s203 = scalar_select %p202, %s199, 7
        %s204 = smul.addr %s201, 8
        %s205 = sadd.s32 %s203, %s204
        %s206 = smul.addr %s205, 4
        %s207 = scalar_lea.vmem %s0, %s206
        %s208 = smul.u32 8, %s19
      $region32: #{esblock2_forward.10} parent=27 // pred_fallthru
        _
      // Predicated region
      $region33: #{esblock2_forward.10} parent=27 // pred_check
        %p209 = pneg %p71
      $region34: #{esblock2_forward.10} parent=27 // pred_check_branch
        %211 = sbr.rel (%p209) target = $region36
      $region35: #{esblock2_forward.10} parent=27 // pred_region
        %p212 = scmp.lt.s32.totalorder %s18, 1
        %s213 = scalar_select %p212, %s18, 1
        %s214 = scalar_lea.vmem %s1, %s213
      $region36: #{esblock2_forward.10} parent=27 // pred_fallthru
        _
    $region28: #{esblock2_forward.10} parent=5 // pred_fallthru
      _
    %p215 = scmp.le.s32.totalorder 1, %s11
    %p216 = scmp.lt.s32.totalorder %s11, 3
    %p217 = pnand %p215, %p216
    %p218 = pneg %p217
    // Predicated region
    $region37: #{esblock2_forward.10} parent=5 // pred_check
      _
    $region38: #{esblock2_forward.10} parent=5 // pred_check_branch
      %220 = sbr.rel (%p217) target = $region40
    $region39: #{esblock2_forward.10} parent=5 // pred_region
      %s221 = ssub.s32 %s11, 1
      %s222 = smul.u32 8, %s21
      %p223 = scmp.lt.s32.totalorder %s20, 1
      %s224 = scalar_select %p223, %s20, 1
      %p225 = scmp.lt.s32.totalorder %s222, 7
      %s226 = scalar_select %p225, %s222, 7
      %s227 = smul.addr %s224, 8
      %s228 = sadd.s32 %s226, %s227
      %s229 = smul.addr %s228, 4
      %s230 = scalar_lea.vmem %s0, %s229
      %p231 = pneg %p51
      %p232 = pneg %p48
      %p233 = scmp.lt.s32.totalorder %s20, 1
      %s234 = scalar_select %p233, %s20, 1
      %s235 = scalar_lea.vmem %s1, %s234
      %p236 = pneg %p77
      %p237 = pneg %p74
      %p238 = pneg %p98
      %p239 = pneg %p95
      %p240 = pneg %p119
      %p241 = pneg %p116
      %p242 = pneg %p140
      %p243 = pneg %p137
      %p244 = pneg %p168
      %p245 = pneg %p165
      %s246 = smul.u32 8, %s21
      %p247 = scmp.lt.s32.totalorder %s20, 1
      %s248 = scalar_select %p247, %s20, 1
      %p249 = scmp.lt.s32.totalorder %s246, 7
      %s250 = scalar_select %p249, %s246, 7
      %s251 = smul.addr %s248, 8
      %s252 = sadd.s32 %s250, %s251
      %s253 = smul.addr %s252, 4
      %s254 = scalar_lea.vmem %s5, %s253
      %s255 = smul.u32 8, %s21
      %p256 = scmp.lt.s32.totalorder %s20, 1
      %s257 = scalar_select %p256, %s20, 1
      %p258 = scmp.lt.s32.totalorder %s255, 7
      %s259 = scalar_select %p258, %s255, 7
      %s260 = smul.addr %s257, 8
      %s261 = sadd.s32 %s259, %s260
      %s262 = smul.addr %s261, 4
      %s263 = scalar_lea.vmem %s0, %s262
      %s264 = smul.u32 8, %s21
      %p265 = scmp.lt.s32.totalorder %s20, 1
      %s266 = scalar_select %p265, %s20, 1
      %s267 = scalar_lea.vmem %s1, %s266
      %s268 = smul.u32 8, %s21
      %p269 = scmp.lt.s32.totalorder %s20, 1
      %s270 = scalar_select %p269, %s20, 1
      %p271 = scmp.lt.s32.totalorder %s268, 7
      %s272 = scalar_select %p271, %s268, 7
      %s273 = smul.addr %s270, 8
      %s274 = sadd.s32 %s272, %s273
      %s275 = smul.addr %s274, 4
      %s276 = scalar_lea.vmem %s5, %s275
      %s277 = smul.u32 8, %s21
      %v279 = vld [vmem:[%s263] sm:$0xf]
      %v280 = vld [vmem:[%s263 + $0x4] sm:$0xf]
      %v281 = vld [vmem:[%s263 + $0x8] sm:$0xf]
      %v282 = vld [vmem:[%s263 + $0xc] sm:$0xf]
      %v283 = vld [vmem:[%s263 + $0x10] sm:$0xf]
      %v284 = vld [vmem:[%s263 + $0x14] sm:$0xf]
      %v285 = vld [vmem:[%s263 + $0x18] sm:$0xf]
      %v286 = vld [vmem:[%s263 + $0x1c] sm:$0xf]
      %v287 = vld [vmem:[%s267] sm:$0x1]
      %v289 = vpack.i.b16 %v287, %v287
      %v291 = vlaneseq
      %v292 = vshrl.u32 %v291, 7
      %v293 = vsub.s32 0, %v292
      %v294 = vrot.slane %v289, %v293
      %v296 = vunpack.c.l.b16 %v294
      %v297 = vpack.c.b16 %v296, %v296
      %v299 = vmul.bf16 %v279, %v297
      %v300 = vmul.bf16 %v280, %v297
      %v301 = vmul.bf16 %v281, %v297
      %v302 = vmul.bf16 %v282, %v297
      %v303 = vmul.bf16 %v283, %v297
      %v304 = vmul.bf16 %v284, %v297
      %v305 = vmul.bf16 %v285, %v297
      %v306 = vmul.bf16 %v286, %v297
      %v307 = vld [vmem:[%s2] sm:$0x3]
      %v316 = vunpack.c.l.b16 %v299
      %v317 = vunpack.c.l.b16 %v300
      %v318 = vunpack.c.l.b16 %v301
      %v319 = vunpack.c.l.b16 %v302
      %v320 = vunpack.c.l.b16 %v303
      %v321 = vunpack.c.l.b16 %v304
      %v322 = vunpack.c.l.b16 %v305
      %v323 = vunpack.c.l.b16 %v306
      %v324 = vpack.c.b16 %v317, %v316
      %v325 = vpack.c.b16 %v319, %v318
      %v326 = vpack.c.b16 %v321, %v320
      %v327 = vpack.c.b16 %v323, %v322
      %vm328 = vcmask 31744
      %v330 = vsel %vm328, %v324, 0
      %v333 = vsel %vm328, %v325, 0
      %v336 = vsel %vm328, %v326, 0
      %v339 = vsel %vm328, %v327, 0
      %vm341 = vcmask 1041408
      %v343 = vsel %vm341, %v307, 0
      %345 = vmatprep.subr.bf16.mxu0 0
      %346 = vmatpush1.bf16.msra.mxu0 %v343
      %347 = vmatprep.subr.bf16.mxu0 0
      %348 = vmatpush1.bf16.msra.mxu0 0
      %349 = vmatprep.subr.bf16.mxu0 0
      %350 = vmatpush1.bf16.msra.mxu0 0
      %351 = vmatprep.subr.bf16.mxu0 0
      %352 = vmatpush1.bf16.msra.mxu0 0
      %353 = vmatprep.subr.bf16.mxu0 0
      %354 = vmatpush1.bf16.msra.mxu0 0
      %355 = vmatprep.subr.bf16.mxu0 0
      %356 = vmatpush1.bf16.msra.mxu0 0
      %357 = vmatprep.subr.bf16.mxu0 0
      %358 = vmatpush1.bf16.msra.mxu0 0
      %359 = vmatprep.subr.bf16.mxu0 0
      %360 = vmatpush1.bf16.msra.mxu0 0
      %361 = vmatprep.subr.bf16.mxu0 0
      %362 = vmatpush1.bf16.msra.mxu0 0
      %363 = vmatprep.subr.bf16.mxu0 0
      %364 = vmatpush1.bf16.msra.mxu0 0
      %365 = vmatprep.subr.bf16.mxu0 0
      %366 = vmatpush1.bf16.msra.mxu0 0
      %367 = vmatprep.subr.bf16.mxu0 0
      %368 = vmatpush1.bf16.msra.mxu0 0
      %369 = vmatprep.subr.bf16.mxu0 0
      %370 = vmatpush1.bf16.msra.mxu0 0
      %371 = vmatprep.subr.bf16.mxu0 0
      %372 = vmatpush1.bf16.msra.mxu0 0
      %373 = vmatprep.subr.bf16.mxu0 0
      %374 = vmatpush1.bf16.msra.mxu0 0
      %375 = vmatprep.subr.bf16.mxu0 0
      %376 = vmatpush1.bf16.msra.mxu0 0
      %377 = vmatprep.mubr.bf16.mxu0 0
      %378 = vmatmul.mubr.bf16.gmra.mrb[0].mxu0 %v330
      %v379 = vpop.f32.mrb[0].mxu0
      %v380 = vadd.f32 0.0, %v379
      %v381 = vpop.f32.mrb[0].mxu0
      %v382 = vpop.f32.mrb[0].mxu0
      %v383 = vadd.f32 0.0, %v382
      %v384 = vpop.f32.mrb[0].mxu0
      %385 = vmatprep.mubr.bf16.mxu0 0
      %386 = vmatmul.mubr.bf16.gmra.mrb[0].mxu0 %v333
      %v387 = vpop.f32.mrb[0].mxu0
      %v388 = vadd.f32 0.0, %v387
      %v389 = vpop.f32.mrb[0].mxu0
      %v390 = vpop.f32.mrb[0].mxu0
      %v391 = vadd.f32 0.0, %v390
      %v392 = vpop.f32.mrb[0].mxu0
      %393 = vmatprep.mubr.bf16.mxu0 0
      %394 = vmatmul.mubr.bf16.gmra.mrb[0].mxu0 %v336
      %v395 = vpop.f32.mrb[0].mxu0
      %v396 = vadd.f32 0.0, %v395
      %v397 = vpop.f32.mrb[0].mxu0
      %v398 = vpop.f32.mrb[0].mxu0
      %v399 = vadd.f32 0.0, %v398
      %v400 = vpop.f32.mrb[0].mxu0
      %401 = vmatprep.mubr.bf16.mxu0 0
      %402 = vmatmul.mubr.bf16.gmra.mrb[0].mxu0 %v339
      %v403 = vpop.f32.mrb[0].mxu0
      %v404 = vadd.f32 0.0, %v403
      %v405 = vpop.f32.mrb[0].mxu0
      %v406 = vpop.f32.mrb[0].mxu0
      %v407 = vadd.f32 0.0, %v406
      %v408 = vpop.f32.mrb[0].mxu0
      %409 = vdwg.mxu0
      %v410 = vld [vmem:[%s3] sm:$0x1]
      %v412 = vlaneseq
      %v413 = vshrl.u32 %v412, 7
      %v414 = vsub.s32 0, %v413
      %v415 = vrot.slane %v410, %v414
      %v417 = vmul.f32 %v380, %v415
      %v418 = vmul.f32 %v383, %v415
      %v419 = vmul.f32 %v388, %v415
      %v420 = vmul.f32 %v391, %v415
      %v421 = vmul.f32 %v396, %v415
      %v422 = vmul.f32 %v399, %v415
      %v423 = vmul.f32 %v404, %v415
      %v424 = vmul.f32 %v407, %v415
      %v425 = vld [vmem:[%s4] sm:$0x1]
      %v427 = vlaneseq
      %v428 = vshrl.u32 %v427, 7
      %v429 = vsub.s32 0, %v428
      %v430 = vrot.slane %v425, %v429
      %v432 = vadd.f32 %v417, %v430
      %v433 = vadd.f32 %v418, %v430
      %v434 = vadd.f32 %v419, %v430
      %v435 = vadd.f32 %v420, %v430
      %v436 = vadd.f32 %v421, %v430
      %v437 = vadd.f32 %v422, %v430
      %v438 = vadd.f32 %v423, %v430
      %v439 = vadd.f32 %v424, %v430
      %v440 = vadd.f32 %v432, 3.0
      %v441 = vadd.f32 %v433, 3.0
      %v442 = vadd.f32 %v434, 3.0
      %v443 = vadd.f32 %v435, 3.0
      %v444 = vadd.f32 %v436, 3.0
      %v445 = vadd.f32 %v437, 3.0
      %v446 = vadd.f32 %v438, 3.0
      %v447 = vadd.f32 %v439, 3.0
      %v448 = vmax.f32 %v440, 0.0
      %v449 = vmax.f32 %v441, 0.0
      %v450 = vmax.f32 %v442, 0.0
      %v451 = vmax.f32 %v443, 0.0
      %v452 = vmax.f32 %v444, 0.0
      %v453 = vmax.f32 %v445, 0.0
      %v454 = vmax.f32 %v446, 0.0
      %v455 = vmax.f32 %v447, 0.0
      %v456 = vmin.f32 %v448, 6.0
      %v457 = vmin.f32 %v449, 6.0
      %v458 = vmin.f32 %v450, 6.0
      %v459 = vmin.f32 %v451, 6.0
      %v460 = vmin.f32 %v452, 6.0
      %v461 = vmin.f32 %v453, 6.0
      %v462 = vmin.f32 %v454, 6.0
      %v463 = vmin.f32 %v455, 6.0
      %v464 = vmul.f32 %v432, %v456
      %v465 = vmul.f32 %v433, %v457
      %v466 = vmul.f32 %v434, %v458
      %v467 = vmul.f32 %v435, %v459
      %v468 = vmul.f32 %v436, %v460
      %v469 = vmul.f32 %v437, %v461
      %v470 = vmul.f32 %v438, %v462
      %v471 = vmul.f32 %v439, %v463
      %v472 = vmul.f32 %v464, 0.16666667
      %v473 = vmul.f32 %v465, 0.16666667
      %v474 = vmul.f32 %v466, 0.16666667
      %v475 = vmul.f32 %v467, 0.16666667
      %v476 = vmul.f32 %v468, 0.16666667
      %v477 = vmul.f32 %v469, 0.16666667
      %v478 = vmul.f32 %v470, 0.16666667
      %v479 = vmul.f32 %v471, 0.16666667
      %v480 = vpack.c.bf16 %v473, %v472
      %v481 = vpack.c.bf16 %v475, %v474
      %v482 = vpack.c.bf16 %v477, %v476
      %v483 = vpack.c.bf16 %v479, %v478
      %v488 = vunpack.c.l.b16 %v480
      %v489 = vunpack.c.h.b16 %v480
      %v490 = vunpack.c.l.b16 %v481
      %v491 = vunpack.c.h.b16 %v481
      %v492 = vunpack.c.l.b16 %v482
      %v493 = vunpack.c.h.b16 %v482
      %v494 = vunpack.c.l.b16 %v483
      %v495 = vunpack.c.h.b16 %v483
      %v496 = vpack.c.b16 %v488, %v488
      %v497 = vpack.c.b16 %v489, %v489
      %v498 = vpack.c.b16 %v490, %v490
      %v499 = vpack.c.b16 %v491, %v491
      %v500 = vpack.c.b16 %v492, %v492
      %v501 = vpack.c.b16 %v493, %v493
      %v502 = vpack.c.b16 %v494, %v494
      %v503 = vpack.c.b16 %v495, %v495
      %vm512 = vcmask 27648
      %513 = vst.msk [vmem:[%s276] sm:$0xf] %vm512, %v496
      %514 = vst.msk [vmem:[%s276 + $0x4] sm:$0xf] %vm512, %v497
      %515 = vst.msk [vmem:[%s276 + $0x8] sm:$0xf] %vm512, %v498
      %516 = vst.msk [vmem:[%s276 + $0xc] sm:$0xf] %vm512, %v499
      %517 = vst.msk [vmem:[%s276 + $0x10] sm:$0xf] %vm512, %v500
      %518 = vst.msk [vmem:[%s276 + $0x14] sm:$0xf] %vm512, %v501
      %519 = vst.msk [vmem:[%s276 + $0x18] sm:$0xf] %vm512, %v502
      %520 = vst.msk [vmem:[%s276 + $0x1c] sm:$0xf] %vm512, %v503
      %s521 = smul.u32 8, %s21
      %p522 = scmp.lt.s32.totalorder %s20, 1
      %s523 = scalar_select %p522, %s20, 1
      %p524 = scmp.lt.s32.totalorder %s521, 7
      %s525 = scalar_select %p524, %s521, 7
      %s526 = smul.addr %s523, 8
      %s527 = sadd.s32 %s525, %s526
      %s528 = smul.addr %s527, 4
      %s529 = scalar_lea.vmem %s5, %s528
      // Predicated region
      $region41: #{esblock2_forward.10} parent=39 // pred_check
        %p530 = pneg %p165
      $region42: #{esblock2_forward.10} parent=39 // pred_check_branch
        %532 = sbr.rel (%p530) target = $region44
      $region43: #{esblock2_forward.10} parent=39 // pred_region
        %s533 = smul.u32 8, %s21
      $region44: #{esblock2_forward.10} parent=39 // pred_fallthru
        _
    $region40: #{esblock2_forward.10} parent=5 // pred_fallthru
      _
    %p534 = scmp.le.s32.totalorder 2, %s11
    // Predicated region
    $region45: #{esblock2_forward.10} parent=5 // pred_check
      %p535 = pneg %p534
    $region46: #{esblock2_forward.10} parent=5 // pred_check_branch
      %537 = sbr.rel (%p535) target = $region48
    $region47: #{esblock2_forward.10} parent=5 // pred_region
      %s538 = ssub.s32 %s11, 2
      // Predicated region
      $region49: #{esblock2_forward.10} parent=47 // pred_check
        %p539 = pneg %p171
      $region50: #{esblock2_forward.10} parent=47 // pred_check_branch
        %541 = sbr.rel (%p539) target = $region52
      $region51: #{esblock2_forward.10} parent=47 // pred_region
        %s542 = smul.u32 8, %s23
        %p543 = scmp.lt.s32.totalorder %s22, 1
        %s544 = scalar_select %p543, %s22, 1
        %p545 = scmp.lt.s32.totalorder %s542, 7
        %s546 = scalar_select %p545, %s542, 7
        %s547 = smul.addr %s544, 8
        %s548 = sadd.s32 %s546, %s547
        %s549 = smul.addr %s548, 4
        %s550 = scalar_lea.vmem %s5, %s549
      $region52: #{esblock2_forward.10} parent=47 // pred_fallthru
        _
    $region48: #{esblock2_forward.10} parent=5 // pred_fallthru
      _
  $region6: #{esblock2_forward.10} parent=0 // loop_footer
    %s15 = sadd.s32 1, %s11
  $region7: #{esblock2_forward.10} parent=0 // loop_footer_branch
    %10 = sbr.rel target = $region3
  $region8: #{esblock2_forward.10} parent=0 // loop_exit
    _

// kernel: esblock2_forward.8
$region0: #{esblock2_forward.8}
  #allocation0 [shape = 'u32[]', space=smem, size = 0x4, offset = 0x4, fixed_abs, tag = 'smem constant byte address 0x4 - core index']
  #allocation1 [shape = 'u32[144,128]{1,0:T(1,128)}', space=vmem, size = 0x12000, scoped, tag = 'internal scratch']
  %s0 = inlined_call_operand.vmem [shape: bf16[2,9,9,4], index: 0, kind: input, shape index: {}]
  %s1 = inlined_call_operand.vmem [shape: bf16[2,9,9,4], index: 1, kind: input, shape index: {}]
  %s2 = inlined_call_operand.vmem [shape: bf16[2,9,9,4], index: 2, kind: input, shape index: {}]
  %s3 = inlined_call_operand.vmem [shape: bf16[2,9,9,4], index: 3, kind: input, shape index: {}]
  %s4 = inlined_call_operand.vmem [shape: f32[9,4], index: 4, kind: input, shape index: {}]
  %s5 = inlined_call_operand.vmem [shape: f32[1,4], index: 5, kind: input, shape index: {}]
  %s6 = inlined_call_operand.vmem [shape: f32[1,4], index: 6, kind: input, shape index: {}]
  %s7 = inlined_call_operand.vmem [shape: bf16[2,8,8,4], index: 7, kind: output, shape index: {0}]
  %s8 = inlined_call_operand.vmem [shape: f32[2,1,4], index: 8, kind: output, shape index: {1}]
  %9 = xla_tuple %s7, %s8
  %s10 = sld [smem:[#allocation0]]
  $region73: #{esblock2_forward.8} parent=0
    _
  %s12 = ssub.s32 1, %s10
  %s13 = scalar_select 0, %s12, %s10
  loop: start=0, step=1, limit=4
  $region2: #{esblock2_forward.8} parent=0 // loop_pre_header
    _
  $region3: #{esblock2_forward.8} parent=0 // loop_header
    %s15 = sphi 0, %s19
    %p16 = scmp.ge.s32.totalorder %s15, 4
    %s22 = sphi 0, %s34
    %s23 = sphi 0, %s30
    %s24 = sphi 0, %s22
    %s25 = sphi 0, %s23
    %s26 = sphi 0, %s24
    %s27 = sphi 0, %s25
    %s37 = sphi 0, %s39
    %s40 = sphi 0, %s37
    %s41 = sphi 0, %s40
    %s57 = sphi 0, %s41
    %s63 = sphi 0, %s65
    %s66 = sphi 0, %s63
    %s67 = sphi 0, %s66
    %s83 = sphi 0, %s67
    %s89 = sphi 0, %s91
    %s92 = sphi 0, %s89
    %s93 = sphi 0, %s92
    %s109 = sphi 0, %s93
    %s115 = sphi 0, %s117
    %s118 = sphi 0, %s115
    %s119 = sphi 0, %s118
    %s135 = sphi 0, %s119
    %s139 = sphi 0, %s139
    %s141 = sphi 0, %s139
    %s142 = sphi 0, %s141
    %s156 = sphi 0, %s142
    %s160 = sphi 0, %s160
    %s162 = sphi 0, %s160
    %s163 = sphi 0, %s162
    %s177 = sphi 0, %s163
    %s181 = sphi 0, %s181
    %s183 = sphi 0, %s181
    %s184 = sphi 0, %s183
    %s198 = sphi 0, %s184
    %s206 = sphi 0, %s208
    %s209 = sphi 0, %s206
    %s210 = sphi 0, %s209
    %s226 = sphi 0, %s210
    %s232 = sphi 0, %s234
    %s235 = sphi 0, %s232
    %s236 = sphi 0, %s235
    %s252 = sphi 0, %s236
  $region4: #{esblock2_forward.8} parent=0 // loop_header_branch
    %18 = sbr.rel (%p16) target = $region8
  $region5: #{esblock2_forward.8} parent=0 // loop_body
    %s20 = ssub.s32 %s15, 1
    %s21 = ssub.s32 %s15, 2
    %s28 = sadd.s32 1, %s23
    %p29 = scmp.ge.s32.totalorder %s28, 1
    %s30 = scalar_select %p29, 0, %s28
    %s31 = sadd.s32 1, %s22
    %s32 = scalar_select %p29, %s31, %s22
    %p33 = scmp.ge.s32.totalorder %s32, 2
    %s34 = scalar_select %p33, 0, %s32
    %s35 = ssub.s32 %s22, %s34
    %p36 = scmp.eq.s32.totalorder %s35, 0
    %s38 = sadd.s32 %s37, 1
    %s39 = scalar_select %p36, %s37, %s38
    %p42 = pneg %p36
    %p43 = scmp.eq.s32.totalorder %s15, 1
    %p44 = por %p42, %p43
    %p45 = scmp.ne.s32.totalorder %s37, %s40
    %p46 = scmp.eq.s32.totalorder %s15, 0
    %p47 = por %p45, %p46
    %p48 = scmp.ne.s32.totalorder %s37, %s40
    %p49 = scmp.eq.s32.totalorder %s20, 1
    %p50 = por %p48, %p49
    %p51 = scmp.ne.s32.totalorder %s40, %s41
    %p52 = scmp.eq.s32.totalorder %s20, 0
    %p53 = por %p51, %p52
    %p54 = scmp.ne.s32.totalorder %s40, %s41
    %p55 = scmp.eq.s32.totalorder %s21, 1
    %p56 = por %p54, %p55
    %p58 = scmp.ne.s32.totalorder %s41, %s57
    %p59 = scmp.eq.s32.totalorder %s21, 0
    %p60 = por %p58, %p59
    %s61 = ssub.s32 %s22, %s34
    %p62 = scmp.eq.s32.totalorder %s61, 0
    %s64 = sadd.s32 %s63, 1
    %s65 = scalar_select %p62, %s63, %s64
    %p68 = pneg %p62
    %p69 = scmp.eq.s32.totalorder %s15, 1
    %p70 = por %p68, %p69
    %p71 = scmp.ne.s32.totalorder %s63, %s66
    %p72 = scmp.eq.s32.totalorder %s15, 0
    %p73 = por %p71, %p72
    %p74 = scmp.ne.s32.totalorder %s63, %s66
    %p75 = scmp.eq.s32.totalorder %s20, 1
    %p76 = por %p74, %p75
    %p77 = scmp.ne.s32.totalorder %s66, %s67
    %p78 = scmp.eq.s32.totalorder %s20, 0
    %p79 = por %p77, %p78
    %p80 = scmp.ne.s32.totalorder %s66, %s67
    %p81 = scmp.eq.s32.totalorder %s21, 1
    %p82 = por %p80, %p81
    %p84 = scmp.ne.s32.totalorder %s67, %s83
    %p85 = scmp.eq.s32.totalorder %s21, 0
    %p86 = por %p84, %p85
    %s87 = ssub.s32 %s22, %s34
    %p88 = scmp.eq.s32.totalorder %s87, 0
    %s90 = sadd.s32 %s89, 1
    %s91 = scalar_select %p88, %s89, %s90
    %p94 = pneg %p88
    %p95 = scmp.eq.s32.totalorder %s15, 1
    %p96 = por %p94, %p95
    %p97 = scmp.ne.s32.totalorder %s89, %s92
    %p98 = scmp.eq.s32.totalorder %s15, 0
    %p99 = por %p97, %p98
    %p100 = scmp.ne.s32.totalorder %s89, %s92
    %p101 = scmp.eq.s32.totalorder %s20, 1
    %p102 = por %p100, %p101
    %p103 = scmp.ne.s32.totalorder %s92, %s93
    %p104 = scmp.eq.s32.totalorder %s20, 0
    %p105 = por %p103, %p104
    %p106 = scmp.ne.s32.totalorder %s92, %s93
    %p107 = scmp.eq.s32.totalorder %s21, 1
    %p108 = por %p106, %p107
    %p110 = scmp.ne.s32.totalorder %s93, %s109
    %p111 = scmp.eq.s32.totalorder %s21, 0
    %p112 = por %p110, %p111
    %s113 = ssub.s32 %s22, %s34
    %p114 = scmp.eq.s32.totalorder %s113, 0
    %s116 = sadd.s32 %s115, 1
    %s117 = scalar_select %p114, %s115, %s116
    %p120 = pneg %p114
    %p121 = scmp.eq.s32.totalorder %s15, 1
    %p122 = por %p120, %p121
    %p123 = scmp.ne.s32.totalorder %s115, %s118
    %p124 = scmp.eq.s32.totalorder %s15, 0
    %p125 = por %p123, %p124
    %p126 = scmp.ne.s32.totalorder %s115, %s118
    %p127 = scmp.eq.s32.totalorder %s20, 1
    %p128 = por %p126, %p127
    %p129 = scmp.ne.s32.totalorder %s118, %s119
    %p130 = scmp.eq.s32.totalorder %s20, 0
    %p131 = por %p129, %p130
    %p132 = scmp.ne.s32.totalorder %s118, %s119
    %p133 = scmp.eq.s32.totalorder %s21, 1
    %p134 = por %p132, %p133
    %p136 = scmp.ne.s32.totalorder %s119, %s135
    %p137 = scmp.eq.s32.totalorder %s21, 0
    %p138 = por %p136, %p137
    %s140 = sadd.s32 %s139, 1
    %p143 = scmp.eq.s32.totalorder %s15, 1
    %p144 = scmp.ne.s32.totalorder %s139, %s141
    %p145 = scmp.eq.s32.totalorder %s15, 0
    %p146 = por %p144, %p145
    %p147 = scmp.ne.s32.totalorder %s139, %s141
    %p148 = scmp.eq.s32.totalorder %s20, 1
    %p149 = por %p147, %p148
    %p150 = scmp.ne.s32.totalorder %s141, %s142
    %p151 = scmp.eq.s32.totalorder %s20, 0
    %p152 = por %p150, %p151
    %p153 = scmp.ne.s32.totalorder %s141, %s142
    %p154 = scmp.eq.s32.totalorder %s21, 1
    %p155 = por %p153, %p154
    %p157 = scmp.ne.s32.totalorder %s142, %s156
    %p158 = scmp.eq.s32.totalorder %s21, 0
    %p159 = por %p157, %p158
    %s161 = sadd.s32 %s160, 1
    %p164 = scmp.eq.s32.totalorder %s15, 1
    %p165 = scmp.ne.s32.totalorder %s160, %s162
    %p166 = scmp.eq.s32.totalorder %s15, 0
    %p167 = por %p165, %p166
    %p168 = scmp.ne.s32.totalorder %s160, %s162
    %p169 = scmp.eq.s32.totalorder %s20, 1
    %p170 = por %p168, %p169
    %p171 = scmp.ne.s32.totalorder %s162, %s163
    %p172 = scmp.eq.s32.totalorder %s20, 0
    %p173 = por %p171, %p172
    %p174 = scmp.ne.s32.totalorder %s162, %s163
    %p175 = scmp.eq.s32.totalorder %s21, 1
    %p176 = por %p174, %p175
    %p178 = scmp.ne.s32.totalorder %s163, %s177
    %p179 = scmp.eq.s32.totalorder %s21, 0
    %p180 = por %p178, %p179
    %s182 = sadd.s32 %s181, 1
    %p185 = scmp.eq.s32.totalorder %s15, 1
    %p186 = scmp.ne.s32.totalorder %s181, %s183
    %p187 = scmp.eq.s32.totalorder %s15, 0
    %p188 = por %p186, %p187
    %p189 = scmp.ne.s32.totalorder %s181, %s183
    %p190 = scmp.eq.s32.totalorder %s20, 1
    %p191 = por %p189, %p190
    %p192 = scmp.ne.s32.totalorder %s183, %s184
    %p193 = scmp.eq.s32.totalorder %s20, 0
    %p194 = por %p192, %p193
    %p195 = scmp.ne.s32.totalorder %s183, %s184
    %p196 = scmp.eq.s32.totalorder %s21, 1
    %p197 = por %p195, %p196
    %p199 = scmp.ne.s32.totalorder %s184, %s198
    %p200 = scmp.eq.s32.totalorder %s21, 0
    %p201 = por %p199, %p200
    %s202 = ssub.s32 %s22, %s34
    %s203 = ssub.s32 %s23, %s30
    %s204 = sor.u32 %s202, %s203
    %p205 = scmp.eq.s32.totalorder %s204, 0
    %s207 = sadd.s32 %s206, 1
    %s208 = scalar_select %p205, %s206, %s207
    %p211 = pneg %p205
    %p212 = scmp.eq.s32.totalorder %s15, 1
    %p213 = por %p211, %p212
    %p214 = scmp.ne.s32.totalorder %s206, %s209
    %p215 = scmp.eq.s32.totalorder %s15, 0
    %p216 = por %p214, %p215
    %p217 = scmp.ne.s32.totalorder %s206, %s209
    %p218 = scmp.eq.s32.totalorder %s20, 1
    %p219 = por %p217, %p218
    %p220 = scmp.ne.s32.totalorder %s209, %s210
    %p221 = scmp.eq.s32.totalorder %s20, 0
    %p222 = por %p220, %p221
    %p223 = scmp.ne.s32.totalorder %s209, %s210
    %p224 = scmp.eq.s32.totalorder %s21, 1
    %p225 = por %p223, %p224
    %p227 = scmp.ne.s32.totalorder %s210, %s226
    %p228 = scmp.eq.s32.totalorder %s21, 0
    %p229 = por %p227, %p228
    %s230 = ssub.s32 %s22, %s34
    %p231 = scmp.eq.s32.totalorder %s230, 0
    %s233 = sadd.s32 %s232, 1
    %s234 = scalar_select %p231, %s232, %s233
    %p237 = pneg %p231
    %p238 = scmp.eq.s32.totalorder %s15, 1
    %p239 = por %p237, %p238
    %p240 = scmp.ne.s32.totalorder %s232, %s235
    %p241 = scmp.eq.s32.totalorder %s15, 0
    %p242 = por %p240, %p241
    %p243 = scmp.ne.s32.totalorder %s232, %s235
    %p244 = scmp.eq.s32.totalorder %s20, 1
    %p245 = por %p243, %p244
    %p246 = scmp.ne.s32.totalorder %s235, %s236
    %p247 = scmp.eq.s32.totalorder %s20, 0
    %p248 = por %p246, %p247
    %p249 = scmp.ne.s32.totalorder %s235, %s236
    %p250 = scmp.eq.s32.totalorder %s21, 1
    %p251 = por %p249, %p250
    %p253 = scmp.ne.s32.totalorder %s236, %s252
    %p254 = scmp.eq.s32.totalorder %s21, 0
    %p255 = por %p253, %p254
    %p256 = scmp.le.s32.totalorder 1, %s15
    %p257 = scmp.lt.s32.totalorder %s15, 3
    %p258 = pnand %p256, %p257
    %p259 = pneg %p258
    // Predicated region
    $region9: #{esblock2_forward.8} parent=5 // pred_check
      _
    $region10: #{esblock2_forward.8} parent=5 // pred_check_branch
      %261 = sbr.rel (%p258) target = $region12
    $region11: #{esblock2_forward.8} parent=5 // pred_region
      %s262 = ssub.s32 %s15, 1
      // Predicated region
      $region13: #{esblock2_forward.8} parent=11 // pred_check
        %p263 = pneg %p152
      $region14: #{esblock2_forward.8} parent=11 // pred_check_branch
        %265 = sbr.rel (%p263) target = $region16
      $region15: #{esblock2_forward.8} parent=11 // pred_region
        _
      $region16: #{esblock2_forward.8} parent=11 // pred_fallthru
        _
      // Predicated region
      $region17: #{esblock2_forward.8} parent=11 // pred_check
        %p266 = pneg %p173
      $region18: #{esblock2_forward.8} parent=11 // pred_check_branch
        %268 = sbr.rel (%p266) target = $region20
      $region19: #{esblock2_forward.8} parent=11 // pred_region
        _
      $region20: #{esblock2_forward.8} parent=11 // pred_fallthru
        _
      // Predicated region
      $region21: #{esblock2_forward.8} parent=11 // pred_check
        %p269 = pneg %p194
      $region22: #{esblock2_forward.8} parent=11 // pred_check_branch
        %271 = sbr.rel (%p269) target = $region24
      $region23: #{esblock2_forward.8} parent=11 // pred_region
        _
      $region24: #{esblock2_forward.8} parent=11 // pred_fallthru
        _
    $region12: #{esblock2_forward.8} parent=5 // pred_fallthru
      _
    %p272 = scmp.lt.s32.totalorder %s15, 2
    // Predicated region
    $region25: #{esblock2_forward.8} parent=5 // pred_check
      %p273 = pneg %p272
    $region26: #{esblock2_forward.8} parent=5 // pred_check_branch
      %275 = sbr.rel (%p273) target = $region28
    $region27: #{esblock2_forward.8} parent=5 // pred_region
      // Predicated region
      $region29: #{esblock2_forward.8} parent=27 // pred_check
        %p276 = pneg %p47
      $region30: #{esblock2_forward.8} parent=27 // pred_check_branch
        %278 = sbr.rel (%p276) target = $region32
      $region31: #{esblock2_forward.8} parent=27 // pred_region
        %p279 = scmp.lt.s32.totalorder %s22, 1
        %s280 = scalar_select %p279, %s22, 1
        %s281 = smul.addr %s280, 18
        %s282 = smul.addr %s281, 4
        %s283 = scalar_lea.vmem %s0, %s282
      $region32: #{esblock2_forward.8} parent=27 // pred_fallthru
        _
      // Predicated region
      $region33: #{esblock2_forward.8} parent=27 // pred_check
        %p284 = pneg %p73
      $region34: #{esblock2_forward.8} parent=27 // pred_check_branch
        %286 = sbr.rel (%p284) target = $region36
      $region35: #{esblock2_forward.8} parent=27 // pred_region
        %p287 = scmp.lt.s32.totalorder %s22, 1
        %s288 = scalar_select %p287, %s22, 1
        %s289 = smul.addr %s288, 18
        %s290 = smul.addr %s289, 4
        %s291 = scalar_lea.vmem %s1, %s290
      $region36: #{esblock2_forward.8} parent=27 // pred_fallthru
        _
      // Predicated region
      $region37: #{esblock2_forward.8} parent=27 // pred_check
        %p292 = pneg %p99
      $region38: #{esblock2_forward.8} parent=27 // pred_check_branch
        %294 = sbr.rel (%p292) target = $region40
      $region39: #{esblock2_forward.8} parent=27 // pred_region
        %p295 = scmp.lt.s32.totalorder %s22, 1
        %s296 = scalar_select %p295, %s22, 1
        %s297 = smul.addr %s296, 18
        %s298 = smul.addr %s297, 4
        %s299 = scalar_lea.vmem %s2, %s298
      $region40: #{esblock2_forward.8} parent=27 // pred_fallthru
        _
      // Predicated region
      $region41: #{esblock2_forward.8} parent=27 // pred_check
        %p300 = pneg %p125
      $region42: #{esblock2_forward.8} parent=27 // pred_check_branch
        %302 = sbr.rel (%p300) target = $region44
      $region43: #{esblock2_forward.8} parent=27 // pred_region
        %p303 = scmp.lt.s32.totalorder %s22, 1
        %s304 = scalar_select %p303, %s22, 1
        %s305 = smul.addr %s304, 18
        %s306 = smul.addr %s305, 4
        %s307 = scalar_lea.vmem %s3, %s306
      $region44: #{esblock2_forward.8} parent=27 // pred_fallthru
        _
    $region28: #{esblock2_forward.8} parent=5 // pred_fallthru
      _
    %p308 = scmp.le.s32.totalorder 1, %s15
    %p309 = scmp.lt.s32.totalorder %s15, 3
    %p310 = pnand %p308, %p309
    %p311 = pneg %p310
    // Predicated region
    $region45: #{esblock2_forward.8} parent=5 // pred_check
      _
    $region46: #{esblock2_forward.8} parent=5 // pred_check_branch
      %313 = sbr.rel (%p310) target = $region48
    $region47: #{esblock2_forward.8} parent=5 // pred_region
      %s314 = ssub.s32 %s15, 1
      %p315 = scmp.lt.s32.totalorder %s24, 1
      %s316 = scalar_select %p315, %s24, 1
      %s317 = smul.addr %s316, 18
      %s318 = smul.addr %s317, 4
      %s319 = scalar_lea.vmem %s0, %s318
      %p320 = pneg %p53
      %p321 = pneg %p50
      %p322 = scmp.lt.s32.totalorder %s24, 1
      %s323 = scalar_select %p322, %s24, 1
      %s324 = smul.addr %s323, 18
      %s325 = smul.addr %s324, 4
      %s326 = scalar_lea.vmem %s1, %s325
      %p327 = pneg %p79
      %p328 = pneg %p76
      %p329 = scmp.lt.s32.totalorder %s24, 1
      %s330 = scalar_select %p329, %s24, 1
      %s331 = smul.addr %s330, 18
      %s332 = smul.addr %s331, 4
      %s333 = scalar_lea.vmem %s2, %s332
      %p334 = pneg %p105
      %p335 = pneg %p102
      %p336 = scmp.lt.s32.totalorder %s24, 1
      %s337 = scalar_select %p336, %s24, 1
      %s338 = smul.addr %s337, 18
      %s339 = smul.addr %s338, 4
      %s340 = scalar_lea.vmem %s3, %s339
      %p341 = pneg %p131
      %p342 = pneg %p128
      %p343 = pneg %p152
      %p344 = pneg %p149
      %p345 = pneg %p173
      %p346 = pneg %p170
      %p347 = pneg %p194
      %p348 = pneg %p191
      %p349 = pneg %p222
      %p350 = pneg %p219
      %s351 = smul.u32 8, %s25
      %p352 = scmp.lt.s32.totalorder %s24, 1
      %s353 = scalar_select %p352, %s24, 1
      %p354 = scmp.lt.s32.totalorder %s351, 7
      %s355 = scalar_select %p354, %s351, 7
      %s356 = smul.addr %s353, 8
      %s357 = sadd.s32 %s355, %s356
      %s358 = smul.addr %s357, 4
      %s359 = scalar_lea.vmem %s7, %s358
      %p360 = pneg %p248
      %p361 = pneg %p245
      %p362 = scmp.lt.s32.totalorder %s24, 1
      %s363 = scalar_select %p362, %s24, 1
      %s364 = scalar_lea.vmem %s8, %s363
      %p365 = scmp.lt.s32.totalorder %s24, 1
      %s366 = scalar_select %p365, %s24, 1
      %s367 = smul.addr %s366, 18
      %s368 = smul.addr %s367, 4
      %s369 = scalar_lea.vmem %s0, %s368
      %p370 = scmp.lt.s32.totalorder %s24, 1
      %s371 = scalar_select %p370, %s24, 1
      %s372 = smul.addr %s371, 18
      %s373 = smul.addr %s372, 4
      %s374 = scalar_lea.vmem %s1, %s373
      %p375 = scmp.lt.s32.totalorder %s24, 1
      %s376 = scalar_select %p375, %s24, 1
      %s377 = smul.addr %s376, 18
      %s378 = smul.addr %s377, 4
      %s379 = scalar_lea.vmem %s2, %s378
      %p380 = scmp.lt.s32.totalorder %s24, 1
      %s381 = scalar_select %p380, %s24, 1
      %s382 = smul.addr %s381, 18
      %s383 = smul.addr %s382, 4
      %s384 = scalar_lea.vmem %s3, %s383
      %s385 = smul.u32 8, %s25
      %p386 = scmp.lt.s32.totalorder %s24, 1
      %s387 = scalar_select %p386, %s24, 1
      %p388 = scmp.lt.s32.totalorder %s385, 7
      %s389 = scalar_select %p388, %s385, 7
      %s390 = smul.addr %s387, 8
      %s391 = sadd.s32 %s389, %s390
      %s392 = smul.addr %s391, 4
      %s393 = scalar_lea.vmem %s7, %s392
      %s394 = smul.u32 8, %s25
      %p395 = scmp.lt.s32.totalorder %s24, 1
      %s396 = scalar_select %p395, %s24, 1
      %s397 = scalar_lea.vmem %s8, %s396
      %v398 = vld [vmem:[%s4] sm:$0xff]
      %v399 = vld [vmem:[%s4 + $0x8] sm:$0x1]
      %v400 = vld [vmem:[%s5] sm:$0x1]
      %v401 = vld [vmem:[%s6] sm:$0x1]
      %s402 = smul.u32 %s25, 8
      %s403 = smul.u32 %s402, 2
      %s404 = smul.addr %s403, 4
      %s405 = scalar_lea.vmem %s369, %s404
      %v406 = vld [vmem:[%s405] sm:$0xf]
      %v407 = vld [vmem:[%s405 + $0x8] sm:$0xf]
      %v408 = vld [vmem:[%s405 + $0x10] sm:$0xf]
      %v409 = vld [vmem:[%s405 + $0x18] sm:$0xf]
      %v410 = vld [vmem:[%s405 + $0x20] sm:$0xf]
      %v411 = vld [vmem:[%s405 + $0x28] sm:$0xf]
      %v412 = vld [vmem:[%s405 + $0x30] sm:$0xf]
      %v413 = vld [vmem:[%s405 + $0x38] sm:$0xf]
      %v414 = vunpack.c.l.bf16 %v406
      %v415 = vunpack.c.l.bf16 %v407
      %v416 = vunpack.c.l.bf16 %v408
      %v417 = vunpack.c.l.bf16 %v409
      %v418 = vunpack.c.l.bf16 %v410
      %v419 = vunpack.c.l.bf16 %v411
      %v420 = vunpack.c.l.bf16 %v412
      %v421 = vunpack.c.l.bf16 %v413
      %v422 = vlaneseq
      %v423 = vshrl.u32 %v422, 7
      %v424 = vsub.s32 0, %v423
      %v425 = vrot.slane %v398, %v424
      %v426 = vmul.f32 %v414, %v425
      %v427 = vmul.f32 %v415, %v425
      %v428 = vmul.f32 %v416, %v425
      %v429 = vmul.f32 %v417, %v425
      %v430 = vmul.f32 %v418, %v425
      %v431 = vmul.f32 %v419, %v425
      %v432 = vmul.f32 %v420, %v425
      %v433 = vmul.f32 %v421, %v425
      %s434 = smul.addr %s403, 4
      %s435 = scalar_lea.vmem %s374, %s434
      %v436 = vld [vmem:[%s435] sm:$0xf]
      %v437 = vld [vmem:[%s435 + $0x8] sm:$0xf]
      %v438 = vld [vmem:[%s435 + $0x10] sm:$0xf]
      %v439 = vld [vmem:[%s435 + $0x18] sm:$0xf]
      %v440 = vld [vmem:[%s435 + $0x20] sm:$0xf]
      %v441 = vld [vmem:[%s435 + $0x28] sm:$0xf]
      %v442 = vld [vmem:[%s435 + $0x30] sm:$0xf]
      %v443 = vld [vmem:[%s435 + $0x38] sm:$0xf]
      %v444 = vunpack.c.l.bf16 %v436
      %v445 = vunpack.c.l.bf16 %v437
      %v446 = vunpack.c.l.bf16 %v438
      %v447 = vunpack.c.l.bf16 %v439
      %v448 = vunpack.c.l.bf16 %v440
      %v449 = vunpack.c.l.bf16 %v441
      %v450 = vunpack.c.l.bf16 %v442
      %v451 = vunpack.c.l.bf16 %v443
      %v452 = vlaneseq
      %v453 = vshrl.u32 %v452, 7
      %v454 = vsub.s32 1, %v453
      %v455 = vrot.slane %v398, %v454
      %v456 = vmul.f32 %v444, %v455
      %v457 = vmul.f32 %v445, %v455
      %v458 = vmul.f32 %v446, %v455
      %v459 = vmul.f32 %v447, %v455
      %v460 = vmul.f32 %v448, %v455
      %v461 = vmul.f32 %v449, %v455
      %v462 = vmul.f32 %v450, %v455
      %v463 = vmul.f32 %v451, %v455
      %v464 = vadd.f32 %v426, %v456
      %v465 = vadd.f32 %v427, %v457
      %v466 = vadd.f32 %v428, %v458
      %v467 = vadd.f32 %v429, %v459
      %v468 = vadd.f32 %v430, %v460
      %v469 = vadd.f32 %v431, %v461
      %v470 = vadd.f32 %v432, %v462
      %v471 = vadd.f32 %v433, %v463
      %v472 = vld [vmem:[%s405 + $0x4] sm:$0x1]
      %v473 = vld [vmem:[%s405 + $0xc] sm:$0x1]
      %v474 = vld [vmem:[%s405 + $0x14] sm:$0x1]
      %v475 = vld [vmem:[%s405 + $0x1c] sm:$0x1]
      %v476 = vld [vmem:[%s405 + $0x24] sm:$0x1]
      %v477 = vld [vmem:[%s405 + $0x2c] sm:$0x1]
      %v478 = vld [vmem:[%s405 + $0x34] sm:$0x1]
      %v479 = vld [vmem:[%s405 + $0x3c] sm:$0x1]
      %v480 = vunpack.c.l.bf16 %v472
      %v481 = vunpack.c.l.bf16 %v473
      %v482 = vunpack.c.l.bf16 %v474
      %v483 = vunpack.c.l.bf16 %v475
      %v484 = vunpack.c.l.bf16 %v476
      %v485 = vunpack.c.l.bf16 %v477
      %v486 = vunpack.c.l.bf16 %v478
      %v487 = vunpack.c.l.bf16 %v479
      %v488 = vlaneseq
      %v489 = vshrl.u32 %v488, 7
      %v490 = vsub.s32 2, %v489
      %v491 = vrot.slane %v398, %v490
      %v492 = vmul.f32 %v414, %v491
      %v493 = vmul.f32 %v480, %v491
      %v494 = vmul.f32 %v415, %v491
      %v495 = vmul.f32 %v481, %v491
      %v496 = vmul.f32 %v416, %v491
      %v497 = vmul.f32 %v482, %v491
      %v498 = vmul.f32 %v417, %v491
      %v499 = vmul.f32 %v483, %v491
      %v500 = vmul.f32 %v418, %v491
      %v501 = vmul.f32 %v484, %v491
      %v502 = vmul.f32 %v419, %v491
      %v503 = vmul.f32 %v485, %v491
      %v504 = vmul.f32 %v420, %v491
      %v505 = vmul.f32 %v486, %v491
      %v506 = vmul.f32 %v421, %v491
      %v507 = vmul.f32 %v487, %v491
      %vm524 = vcmask 1046528
      %v525 = vrot.slane %v492, 1
      %v526 = vrot.slane %v493, 1
      %v527 = vsel %vm524, %v525, %v526
      %v528 = vrot.slane %v494, 1
      %v529 = vrot.slane %v495, 1
      %v530 = vsel %vm524, %v528, %v529
      %v531 = vrot.slane %v496, 1
      %v532 = vrot.slane %v497, 1
      %v533 = vsel %vm524, %v531, %v532
      %v534 = vrot.slane %v498, 1
      %v535 = vrot.slane %v499, 1
      %v536 = vsel %vm524, %v534, %v535
      %v537 = vrot.slane %v500, 1
      %v538 = vrot.slane %v501, 1
      %v539 = vsel %vm524, %v537, %v538
      %v540 = vrot.slane %v502, 1
      %v541 = vrot.slane %v503, 1
      %v542 = vsel %vm524, %v540, %v541
      %v543 = vrot.slane %v504, 1
      %v544 = vrot.slane %v505, 1
      %v545 = vsel %vm524, %v543, %v544
      %v546 = vrot.slane %v506, 1
      %v547 = vrot.slane %v507, 1
      %v548 = vsel %vm524, %v546, %v547
      %v557 = vadd.f32 %v464, %v527
      %v558 = vadd.f32 %v465, %v530
      %v559 = vadd.f32 %v466, %v533
      %v560 = vadd.f32 %v467, %v536
      %v561 = vadd.f32 %v468, %v539
      %v562 = vadd.f32 %v469, %v542
      %v563 = vadd.f32 %v470, %v545
      %v564 = vadd.f32 %v471, %v548
      %s565 = smul.addr %s403, 4
      %s566 = scalar_lea.vmem %s379, %s565
      %v567 = vld [vmem:[%s566] sm:$0xf]
      %v568 = vld [vmem:[%s566 + $0x8] sm:$0xf]
      %v569 = vld [vmem:[%s566 + $0x10] sm:$0xf]
      %v570 = vld [vmem:[%s566 + $0x18] sm:$0xf]
      %v571 = vld [vmem:[%s566 + $0x20] sm:$0xf]
      %v572 = vld [vmem:[%s566 + $0x28] sm:$0xf]
      %v573 = vld [vmem:[%s566 + $0x30] sm:$0xf]
      %v574 = vld [vmem:[%s566 + $0x38] sm:$0xf]
      %v575 = vunpack.c.l.bf16 %v567
      %v576 = vunpack.c.l.bf16 %v568
      %v577 = vunpack.c.l.bf16 %v569
      %v578 = vunpack.c.l.bf16 %v570
      %v579 = vunpack.c.l.bf16 %v571
      %v580 = vunpack.c.l.bf16 %v572
      %v581 = vunpack.c.l.bf16 %v573
      %v582 = vunpack.c.l.bf16 %v574
      %v583 = vlaneseq
      %v584 = vshrl.u32 %v583, 7
      %v585 = vsub.s32 3, %v584
      %v586 = vrot.slane %v398, %v585
      %v587 = vmul.f32 %v575, %v586
      %v588 = vmul.f32 %v576, %v586
      %v589 = vmul.f32 %v577, %v586
      %v590 = vmul.f32 %v578, %v586
      %v591 = vmul.f32 %v579, %v586
      %v592 = vmul.f32 %v580, %v586
      %v593 = vmul.f32 %v581, %v586
      %v594 = vmul.f32 %v582, %v586
      %v595 = vadd.f32 %v557, %v587
      %v596 = vadd.f32 %v558, %v588
      %v597 = vadd.f32 %v559, %v589
      %v598 = vadd.f32 %v560, %v590
      %v599 = vadd.f32 %v561, %v591
      %v600 = vadd.f32 %v562, %v592
      %v601 = vadd.f32 %v563, %v593
      %v602 = vadd.f32 %v564, %v594
      %s603 = smul.addr %s403, 4
      %s604 = scalar_lea.vmem %s384, %s603
      %v605 = vld [vmem:[%s604] sm:$0xf]
      %v606 = vld [vmem:[%s604 + $0x8] sm:$0xf]
      %v607 = vld [vmem:[%s604 + $0x10] sm:$0xf]
      %v608 = vld [vmem:[%s604 + $0x18] sm:$0xf]
      %v609 = vld [vmem:[%s604 + $0x20] sm:$0xf]
      %v610 = vld [vmem:[%s604 + $0x28] sm:$0xf]
      %v611 = vld [vmem:[%s604 + $0x30] sm:$0xf]
      %v612 = vld [vmem:[%s604 + $0x38] sm:$0xf]
      %v613 = vunpack.c.l.bf16 %v605
      %v614 = vunpack.c.l.bf16 %v606
      %v615 = vunpack.c.l.bf16 %v607
      %v616 = vunpack.c.l.bf16 %v608
      %v617 = vunpack.c.l.bf16 %v609
      %v618 = vunpack.c.l.bf16 %v610
      %v619 = vunpack.c.l.bf16 %v611
      %v620 = vunpack.c.l.bf16 %v612
      %v621 = vlaneseq
      %v622 = vshrl.u32 %v621, 7
      %v623 = vsub.s32 4, %v622
      %v624 = vrot.slane %v398, %v623
      %v625 = vmul.f32 %v613, %v624
      %v626 = vmul.f32 %v614, %v624
      %v627 = vmul.f32 %v615, %v624
      %v628 = vmul.f32 %v616, %v624
      %v629 = vmul.f32 %v617, %v624
      %v630 = vmul.f32 %v618, %v624
      %v631 = vmul.f32 %v619, %v624
      %v632 = vmul.f32 %v620, %v624
      %v633 = vadd.f32 %v595, %v625
      %v634 = vadd.f32 %v596, %v626
      %v635 = vadd.f32 %v597, %v627
      %v636 = vadd.f32 %v598, %v628
      %v637 = vadd.f32 %v599, %v629
      %v638 = vadd.f32 %v600, %v630
      %v639 = vadd.f32 %v601, %v631
      %v640 = vadd.f32 %v602, %v632
      %v641 = vld [vmem:[%s566 + $0x4] sm:$0x1]
      %v642 = vld [vmem:[%s566 + $0xc] sm:$0x1]
      %v643 = vld [vmem:[%s566 + $0x14] sm:$0x1]
      %v644 = vld [vmem:[%s566 + $0x1c] sm:$0x1]
      %v645 = vld [vmem:[%s566 + $0x24] sm:$0x1]
      %v646 = vld [vmem:[%s566 + $0x2c] sm:$0x1]
      %v647 = vld [vmem:[%s566 + $0x34] sm:$0x1]
      %v648 = vld [vmem:[%s566 + $0x3c] sm:$0x1]
      %v649 = vunpack.c.l.bf16 %v641
      %v650 = vunpack.c.l.bf16 %v642
      %v651 = vunpack.c.l.bf16 %v643
      %v652 = vunpack.c.l.bf16 %v644
      %v653 = vunpack.c.l.bf16 %v645
      %v654 = vunpack.c.l.bf16 %v646
      %v655 = vunpack.c.l.bf16 %v647
      %v656 = vunpack.c.l.bf16 %v648
      %v657 = vlaneseq
      %v658 = vshrl.u32 %v657, 7
      %v659 = vsub.s32 5, %v658
      %v660 = vrot.slane %v398, %v659
      %v661 = vmul.f32 %v575, %v660
      %v662 = vmul.f32 %v649, %v660
      %v663 = vmul.f32 %v576, %v660
      %v664 = vmul.f32 %v650, %v660
      %v665 = vmul.f32 %v577, %v660
      %v666 = vmul.f32 %v651, %v660
      %v667 = vmul.f32 %v578, %v660
      %v668 = vmul.f32 %v652, %v660
      %v669 = vmul.f32 %v579, %v660
      %v670 = vmul.f32 %v653, %v660
      %v671 = vmul.f32 %v580, %v660
      %v672 = vmul.f32 %v654, %v660
      %v673 = vmul.f32 %v581, %v660
      %v674 = vmul.f32 %v655, %v660
      %v675 = vmul.f32 %v582, %v660
      %v676 = vmul.f32 %v656, %v660
      %v693 = vrot.slane %v661, 1
      %v694 = vrot.slane %v662, 1
      %v695 = vsel %vm524, %v693, %v694
      %v696 = vrot.slane %v663, 1
      %v697 = vrot.slane %v664, 1
      %v698 = vsel %vm524, %v696, %v697
      %v699 = vrot.slane %v665, 1
      %v700 = vrot.slane %v666, 1
      %v701 = vsel %vm524, %v699, %v700
      %v702 = vrot.slane %v667, 1
      %v703 = vrot.slane %v668, 1
      %v704 = vsel %vm524, %v702, %v703
      %v705 = vrot.slane %v669, 1
      %v706 = vrot.slane %v670, 1
      %v707 = vsel %vm524, %v705, %v706
      %v708 = vrot.slane %v671, 1
      %v709 = vrot.slane %v672, 1
      %v710 = vsel %vm524, %v708, %v709
      %v711 = vrot.slane %v673, 1
      %v712 = vrot.slane %v674, 1
      %v713 = vsel %vm524, %v711, %v712
      %v714 = vrot.slane %v675, 1
      %v715 = vrot.slane %v676, 1
      %v716 = vsel %vm524, %v714, %v715
      %v725 = vadd.f32 %v633, %v695
      %v726 = vadd.f32 %v634, %v698
      %v727 = vadd.f32 %v635, %v701
      %v728 = vadd.f32 %v636, %v704
      %v729 = vadd.f32 %v637, %v707
      %v730 = vadd.f32 %v638, %v710
      %v731 = vadd.f32 %v639, %v713
      %v732 = vadd.f32 %v640, %v716
      %s733 = sadd.s32 %s402, 1
      %s734 = smul.u32 %s733, 2
      %s735 = smul.addr %s734, 4
      %s736 = scalar_lea.vmem %s369, %s735
      %v737 = vld [vmem:[%s736] sm:$0xf]
      %v738 = vld [vmem:[%s736 + $0x8] sm:$0xf]
      %v739 = vld [vmem:[%s736 + $0x10] sm:$0xf]
      %v740 = vld [vmem:[%s736 + $0x18] sm:$0xf]
      %v741 = vld [vmem:[%s736 + $0x20] sm:$0xf]
      %v742 = vld [vmem:[%s736 + $0x28] sm:$0xf]
      %v743 = vld [vmem:[%s736 + $0x30] sm:$0xf]
      %v744 = vld [vmem:[%s736 + $0x38] sm:$0xf]
      %v745 = vunpack.c.l.bf16 %v737
      %v746 = vunpack.c.l.bf16 %v738
      %v747 = vunpack.c.l.bf16 %v739
      %v748 = vunpack.c.l.bf16 %v740
      %v749 = vunpack.c.l.bf16 %v741
      %v750 = vunpack.c.l.bf16 %v742
      %v751 = vunpack.c.l.bf16 %v743
      %v752 = vunpack.c.l.bf16 %v744
      %v753 = vlaneseq
      %v754 = vshrl.u32 %v753, 7
      %v755 = vsub.s32 6, %v754
      %v756 = vrot.slane %v398, %v755
      %v757 = vmul.f32 %v745, %v756
      %v758 = vmul.f32 %v746, %v756
      %v759 = vmul.f32 %v747, %v756
      %v760 = vmul.f32 %v748, %v756
      %v761 = vmul.f32 %v749, %v756
      %v762 = vmul.f32 %v750, %v756
      %v763 = vmul.f32 %v751, %v756
      %v764 = vmul.f32 %v752, %v756
      %v765 = vadd.f32 %v725, %v757
      %v766 = vadd.f32 %v726, %v758
      %v767 = vadd.f32 %v727, %v759
      %v768 = vadd.f32 %v728, %v760
      %v769 = vadd.f32 %v729, %v761
      %v770 = vadd.f32 %v730, %v762
      %v771 = vadd.f32 %v731, %v763
      %v772 = vadd.f32 %v732, %v764
      %s773 = smul.addr %s734, 4
      %s774 = scalar_lea.vmem %s374, %s773
      %v775 = vld [vmem:[%s774] sm:$0xf]
      %v776 = vld [vmem:[%s774 + $0x8] sm:$0xf]
      %v777 = vld [vmem:[%s774 + $0x10] sm:$0xf]
      %v778 = vld [vmem:[%s774 + $0x18] sm:$0xf]
      %v779 = vld [vmem:[%s774 + $0x20] sm:$0xf]
      %v780 = vld [vmem:[%s774 + $0x28] sm:$0xf]
      %v781 = vld [vmem:[%s774 + $0x30] sm:$0xf]
      %v782 = vld [vmem:[%s774 + $0x38] sm:$0xf]
      %v783 = vunpack.c.l.bf16 %v775
      %v784 = vunpack.c.l.bf16 %v776
      %v785 = vunpack.c.l.bf16 %v777
      %v786 = vunpack.c.l.bf16 %v778
      %v787 = vunpack.c.l.bf16 %v779
      %v788 = vunpack.c.l.bf16 %v780
      %v789 = vunpack.c.l.bf16 %v781
      %v790 = vunpack.c.l.bf16 %v782
      %v791 = vlaneseq
      %v792 = vshrl.u32 %v791, 7
      %v793 = vsub.s32 7, %v792
      %v794 = vrot.slane %v398, %v793
      %v795 = vmul.f32 %v783, %v794
      %v796 = vmul.f32 %v784, %v794
      %v797 = vmul.f32 %v785, %v794
      %v798 = vmul.f32 %v786, %v794
      %v799 = vmul.f32 %v787, %v794
      %v800 = vmul.f32 %v788, %v794
      %v801 = vmul.f32 %v789, %v794
      %v802 = vmul.f32 %v790, %v794
      %v803 = vadd.f32 %v765, %v795
      %v804 = vadd.f32 %v766, %v796
      %v805 = vadd.f32 %v767, %v797
      %v806 = vadd.f32 %v768, %v798
      %v807 = vadd.f32 %v769, %v799
      %v808 = vadd.f32 %v770, %v800
      %v809 = vadd.f32 %v771, %v801
      %v810 = vadd.f32 %v772, %v802
      %v811 = vld [vmem:[%s736 + $0x4] sm:$0x1]
      %v812 = vld [vmem:[%s736 + $0xc] sm:$0x1]
      %v813 = vld [vmem:[%s736 + $0x14] sm:$0x1]
      %v814 = vld [vmem:[%s736 + $0x1c] sm:$0x1]
      %v815 = vld [vmem:[%s736 + $0x24] sm:$0x1]
      %v816 = vld [vmem:[%s736 + $0x2c] sm:$0x1]
      %v817 = vld [vmem:[%s736 + $0x34] sm:$0x1]
      %v818 = vld [vmem:[%s736 + $0x3c] sm:$0x1]
      %v819 = vunpack.c.l.bf16 %v811
      %v820 = vunpack.c.l.bf16 %v812
      %v821 = vunpack.c.l.bf16 %v813
      %v822 = vunpack.c.l.bf16 %v814
      %v823 = vunpack.c.l.bf16 %v815
      %v824 = vunpack.c.l.bf16 %v816
      %v825 = vunpack.c.l.bf16 %v817
      %v826 = vunpack.c.l.bf16 %v818
      %v827 = vlaneseq
      %v828 = vshrl.u32 %v827, 7
      %v829 = vsub.s32 0, %v828
      %v830 = vrot.slane %v399, %v829
      %v831 = vmul.f32 %v745, %v830
      %v832 = vmul.f32 %v819, %v830
      %v833 = vmul.f32 %v746, %v830
      %v834 = vmul.f32 %v820, %v830
      %v835 = vmul.f32 %v747, %v830
      %v836 = vmul.f32 %v821, %v830
      %v837 = vmul.f32 %v748, %v830
      %v838 = vmul.f32 %v822, %v830
      %v839 = vmul.f32 %v749, %v830
      %v840 = vmul.f32 %v823, %v830
      %v841 = vmul.f32 %v750, %v830
      %v842 = vmul.f32 %v824, %v830
      %v843 = vmul.f32 %v751, %v830
      %v844 = vmul.f32 %v825, %v830
      %v845 = vmul.f32 %v752, %v830
      %v846 = vmul.f32 %v826, %v830
      %v863 = vrot.slane %v831, 1
      %v864 = vrot.slane %v832, 1
      %v865 = vsel %vm524, %v863, %v864
      %v866 = vrot.slane %v833, 1
      %v867 = vrot.slane %v834, 1
      %v868 = vsel %vm524, %v866, %v867
      %v869 = vrot.slane %v835, 1
      %v870 = vrot.slane %v836, 1
      %v871 = vsel %vm524, %v869, %v870
      %v872 = vrot.slane %v837, 1
      %v873 = vrot.slane %v838, 1
      %v874 = vsel %vm524, %v872, %v873
      %v875 = vrot.slane %v839, 1
      %v876 = vrot.slane %v840, 1
      %v877 = vsel %vm524, %v875, %v876
      %v878 = vrot.slane %v841, 1
      %v879 = vrot.slane %v842, 1
      %v880 = vsel %vm524, %v878, %v879
      %v881 = vrot.slane %v843, 1
      %v882 = vrot.slane %v844, 1
      %v883 = vsel %vm524, %v881, %v882
      %v884 = vrot.slane %v845, 1
      %v885 = vrot.slane %v846, 1
      %v886 = vsel %vm524, %v884, %v885
      %v895 = vadd.f32 %v803, %v865
      %v896 = vadd.f32 %v804, %v868
      %v897 = vadd.f32 %v805, %v871
      %v898 = vadd.f32 %v806, %v874
      %v899 = vadd.f32 %v807, %v877
      %v900 = vadd.f32 %v808, %v880
      %v901 = vadd.f32 %v809, %v883
      %v902 = vadd.f32 %v810, %v886
      %v904 = vlaneseq
      %v905 = vshrl.u32 %v904, 7
      %v906 = vsub.s32 0, %v905
      %v907 = vrot.slane %v400, %v906
      %v909 = vmul.f32 %v895, %v907
      %v910 = vmul.f32 %v896, %v907
      %v911 = vmul.f32 %v897, %v907
      %v912 = vmul.f32 %v898, %v907
      %v913 = vmul.f32 %v899, %v907
      %v914 = vmul.f32 %v900, %v907
      %v915 = vmul.f32 %v901, %v907
      %v916 = vmul.f32 %v902, %v907
      %v918 = vlaneseq
      %v919 = vshrl.u32 %v918, 7
      %v920 = vsub.s32 0, %v919
      %v921 = vrot.slane %v401, %v920
      %v923 = vadd.f32 %v909, %v921
      %v924 = vadd.f32 %v910, %v921
      %v925 = vadd.f32 %v911, %v921
      %v926 = vadd.f32 %v912, %v921
      %v927 = vadd.f32 %v913, %v921
      %v928 = vadd.f32 %v914, %v921
      %v929 = vadd.f32 %v915, %v921
      %v930 = vadd.f32 %v916, %v921
      %v931 = vpack.c.bf16 %v923, %v923
      %v932 = vpack.c.bf16 %v924, %v924
      %v933 = vpack.c.bf16 %v925, %v925
      %v934 = vpack.c.bf16 %v926, %v926
      %v935 = vpack.c.bf16 %v927, %v927
      %v936 = vpack.c.bf16 %v928, %v928
      %v937 = vpack.c.bf16 %v929, %v929
      %v938 = vpack.c.bf16 %v930, %v930
      %vm939 = vcmask 27648
      %940 = vst.msk [vmem:[%s393] sm:$0xf] %vm939, %v931
      %941 = vst.msk [vmem:[%s393 + $0x4] sm:$0xf] %vm939, %v932
      %942 = vst.msk [vmem:[%s393 + $0x8] sm:$0xf] %vm939, %v933
      %943 = vst.msk [vmem:[%s393 + $0xc] sm:$0xf] %vm939, %v934
      %944 = vst.msk [vmem:[%s393 + $0x10] sm:$0xf] %vm939, %v935
      %945 = vst.msk [vmem:[%s393 + $0x14] sm:$0xf] %vm939, %v936
      %946 = vst.msk [vmem:[%s393 + $0x18] sm:$0xf] %vm939, %v937
      %947 = vst.msk [vmem:[%s393 + $0x1c] sm:$0xf] %vm939, %v938
      %p948 = scmp.eq.s32.totalorder %s25, 0
      // Predicated region
      $region49: #{esblock2_forward.8} parent=47 // pred_check
        %p949 = pneg %p948
      $region50: #{esblock2_forward.8} parent=47 // pred_check_branch
        %951 = sbr.rel (%p949) target = $region52
      $region51: #{esblock2_forward.8} parent=47 // pred_region
        %vm952 = vcmask 24576
        %953 = vst.msk [vmem:[%s397] sm:$0x1] %vm952, 0.0
      $region52: #{esblock2_forward.8} parent=47 // pred_fallthru
        _
      %v954 = vld [vmem:[%s397] sm:$0x1]
      %vm955 = vcmask 31744
      %v956 = vsel %vm955, %v923, 0.0
      %v957 = vsel %vm955, %v924, 0.0
      %v958 = vadd.f32 %v956, %v957
      %v959 = vsel %vm955, %v925, 0.0
      %v960 = vadd.f32 %v958, %v959
      %v961 = vsel %vm955, %v926, 0.0
      %v962 = vadd.f32 %v960, %v961
      %v963 = vsel %vm955, %v927, 0.0
      %v964 = vadd.f32 %v962, %v963
      %v965 = vsel %vm955, %v928, 0.0
      %v966 = vadd.f32 %v964, %v965
      %v967 = vsel %vm955, %v929, 0.0
      %v968 = vadd.f32 %v966, %v967
      %v969 = vsel %vm955, %v930, 0.0
      %v970 = vadd.f32 %v968, %v969
      %v971 = vrot.slane %v970, 4
      %v972 = vadd.f32 %v970, %v971
      %v973 = vrot.slane %v972, 2
      %v974 = vadd.f32 %v972, %v973
      %v975 = vrot.slane %v974, 1
      %v976 = vadd.f32 %v974, %v975
      %v977 = vadd.f32 %v954, %v976
      %vm978 = vcmask 24576
      %979 = vst.msk [vmem:[%s397] sm:$0x1] %vm978, %v977
      %s980 = smul.u32 8, %s25
      %p981 = scmp.lt.s32.totalorder %s24, 1
      %s982 = scalar_select %p981, %s24, 1
      %p983 = scmp.lt.s32.totalorder %s980, 7
      %s984 = scalar_select %p983, %s980, 7
      %s985 = smul.addr %s982, 8
      %s986 = sadd.s32 %s984, %s985
      %s987 = smul.addr %s986, 4
      %s988 = scalar_lea.vmem %s7, %s987
      %p989 = scmp.lt.s32.totalorder %s24, 1
      %s990 = scalar_select %p989, %s24, 1
      %s991 = scalar_lea.vmem %s8, %s990
      // Predicated region
      $region53: #{esblock2_forward.8} parent=47 // pred_check
        %p992 = pneg %p219
      $region54: #{esblock2_forward.8} parent=47 // pred_check_branch
        %994 = sbr.rel (%p992) target = $region56
      $region55: #{esblock2_forward.8} parent=47 // pred_region
        %s995 = smul.u32 8, %s25
      $region56: #{esblock2_forward.8} parent=47 // pred_fallthru
        _
      // Predicated region
      $region57: #{esblock2_forward.8} parent=47 // pred_check
        %p996 = pneg %p245
      $region58: #{esblock2_forward.8} parent=47 // pred_check_branch
        %998 = sbr.rel (%p996) target = $region60
      $region59: #{esblock2_forward.8} parent=47 // pred_region
        _
      $region60: #{esblock2_forward.8} parent=47 // pred_fallthru
        _
    $region48: #{esblock2_forward.8} parent=5 // pred_fallthru
      _
    %p999 = scmp.le.s32.totalorder 2, %s15
    // Predicated region
    $region61: #{esblock2_forward.8} parent=5 // pred_check
      %p1000 = pneg %p999
    $region62: #{esblock2_forward.8} parent=5 // pred_check_branch
      %1002 = sbr.rel (%p1000) target = $region64
    $region63: #{esblock2_forward.8} parent=5 // pred_region
      %s1003 = ssub.s32 %s15, 2
      // Predicated region
      $region65: #{esblock2_forward.8} parent=63 // pred_check
        %p1004 = pneg %p225
      $region66: #{esblock2_forward.8} parent=63 // pred_check_branch
        %1006 = sbr.rel (%p1004) target = $region68
      $region67: #{esblock2_forward.8} parent=63 // pred_region
        %s1007 = smul.u32 8, %s27
        %p1008 = scmp.lt.s32.totalorder %s26, 1
        %s1009 = scalar_select %p1008, %s26, 1
        %p1010 = scmp.lt.s32.totalorder %s1007, 7
        %s1011 = scalar_select %p1010, %s1007, 7
        %s1012 = smul.addr %s1009, 8
        %s1013 = sadd.s32 %s1011, %s1012
        %s1014 = smul.addr %s1013, 4
        %s1015 = scalar_lea.vmem %s7, %s1014
      $region68: #{esblock2_forward.8} parent=63 // pred_fallthru
        _
      // Predicated region
      $region69: #{esblock2_forward.8} parent=63 // pred_check
        %p1016 = pneg %p251
      $region70: #{esblock2_forward.8} parent=63 // pred_check_branch
        %1018 = sbr.rel (%p1016) target = $region72
      $region71: #{esblock2_forward.8} parent=63 // pred_region
        %p1019 = scmp.lt.s32.totalorder %s26, 1
        %s1020 = scalar_select %p1019, %s26, 1
        %s1021 = scalar_lea.vmem %s8, %s1020
      $region72: #{esblock2_forward.8} parent=63 // pred_fallthru
        _
    $region64: #{esblock2_forward.8} parent=5 // pred_fallthru
      _
  $region6: #{esblock2_forward.8} parent=0 // loop_footer
    %s19 = sadd.s32 1, %s15
  $region7: #{esblock2_forward.8} parent=0 // loop_footer_branch
    %14 = sbr.rel target = $region3
  $region8: #{esblock2_forward.8} parent=0 // loop_exit
    _

// kernel: esblock2_forward.6
$region0: #{esblock2_forward.6}
  #allocation0 [shape = 'u32[]', space=smem, size = 0x4, offset = 0x4, fixed_abs, tag = 'smem constant byte address 0x4 - core index']
  #allocation1 [shape = 'u32[144,128]{1,0:T(1,128)}', space=vmem, size = 0x12000, scoped, tag = 'internal scratch']
  %s0 = inlined_call_operand.vmem [shape: bf16[2,9,9,4], index: 0, kind: input, shape index: {}]
  %s1 = inlined_call_operand.vmem [shape: bf16[2,9,9,4], index: 1, kind: input, shape index: {}]
  %s2 = inlined_call_operand.vmem [shape: bf16[2,9,9,4], index: 2, kind: input, shape index: {}]
  %s3 = inlined_call_operand.vmem [shape: bf16[2,9,9,4], index: 3, kind: input, shape index: {}]
  %s4 = inlined_call_operand.vmem [shape: f32[9,4], index: 4, kind: input, shape index: {}]
  %s5 = inlined_call_operand.vmem [shape: f32[1,4], index: 5, kind: input, shape index: {}]
  %s6 = inlined_call_operand.vmem [shape: f32[1,4], index: 6, kind: input, shape index: {}]
  %s7 = inlined_call_operand.vmem [shape: bf16[4,4], index: 7, kind: input, shape index: {}]
  %s8 = inlined_call_operand.vmem [shape: f32[1,4], index: 8, kind: input, shape index: {}]
  %s9 = inlined_call_operand.vmem [shape: f32[1,4], index: 9, kind: input, shape index: {}]
  %s10 = inlined_call_operand.vmem [shape: bf16[2,8,8,4], index: 10, kind: output, shape index: {}]
  %s11 = sld [smem:[#allocation0]]
  $region73: #{esblock2_forward.6} parent=0
    _
  %s13 = ssub.s32 1, %s11
  %s14 = scalar_select 0, %s13, %s11
  loop: start=0, step=1, limit=4
  $region2: #{esblock2_forward.6} parent=0 // loop_pre_header
    _
  $region3: #{esblock2_forward.6} parent=0 // loop_header
    %s16 = sphi 0, %s20
    %p17 = scmp.ge.s32.totalorder %s16, 4
    %s23 = sphi 0, %s35
    %s24 = sphi 0, %s31
    %s25 = sphi 0, %s23
    %s26 = sphi 0, %s24
    %s27 = sphi 0, %s25
    %s28 = sphi 0, %s26
    %s38 = sphi 0, %s40
    %s41 = sphi 0, %s38
    %s42 = sphi 0, %s41
    %s58 = sphi 0, %s42
    %s64 = sphi 0, %s66
    %s67 = sphi 0, %s64
    %s68 = sphi 0, %s67
    %s84 = sphi 0, %s68
    %s90 = sphi 0, %s92
    %s93 = sphi 0, %s90
    %s94 = sphi 0, %s93
    %s110 = sphi 0, %s94
    %s116 = sphi 0, %s118
    %s119 = sphi 0, %s116
    %s120 = sphi 0, %s119
    %s136 = sphi 0, %s120
    %s140 = sphi 0, %s140
    %s142 = sphi 0, %s140
    %s143 = sphi 0, %s142
    %s157 = sphi 0, %s143
    %s161 = sphi 0, %s161
    %s163 = sphi 0, %s161
    %s164 = sphi 0, %s163
    %s178 = sphi 0, %s164
    %s182 = sphi 0, %s182
    %s184 = sphi 0, %s182
    %s185 = sphi 0, %s184
    %s199 = sphi 0, %s185
    %s203 = sphi 0, %s203
    %s205 = sphi 0, %s203
    %s206 = sphi 0, %s205
    %s220 = sphi 0, %s206
    %s224 = sphi 0, %s224
    %s226 = sphi 0, %s224
    %s227 = sphi 0, %s226
    %s241 = sphi 0, %s227
    %s245 = sphi 0, %s245
    %s247 = sphi 0, %s245
    %s248 = sphi 0, %s247
    %s262 = sphi 0, %s248
    %s270 = sphi 0, %s272
    %s273 = sphi 0, %s270
    %s274 = sphi 0, %s273
    %s290 = sphi 0, %s274
  $region4: #{esblock2_forward.6} parent=0 // loop_header_branch
    %19 = sbr.rel (%p17) target = $region8
  $region5: #{esblock2_forward.6} parent=0 // loop_body
    %s21 = ssub.s32 %s16, 1
    %s22 = ssub.s32 %s16, 2
    %s29 = sadd.s32 1, %s24
    %p30 = scmp.ge.s32.totalorder %s29, 1
    %s31 = scalar_select %p30, 0, %s29
    %s32 = sadd.s32 1, %s23
    %s33 = scalar_select %p30, %s32, %s23
    %p34 = scmp.ge.s32.totalorder %s33, 2
    %s35 = scalar_select %p34, 0, %s33
    %s36 = ssub.s32 %s23, %s35
    %p37 = scmp.eq.s32.totalorder %s36, 0
    %s39 = sadd.s32 %s38, 1
    %s40 = scalar_select %p37, %s38, %s39
    %p43 = pneg %p37
    %p44 = scmp.eq.s32.totalorder %s16, 1
    %p45 = por %p43, %p44
    %p46 = scmp.ne.s32.totalorder %s38, %s41
    %p47 = scmp.eq.s32.totalorder %s16, 0
    %p48 = por %p46, %p47
    %p49 = scmp.ne.s32.totalorder %s38, %s41
    %p50 = scmp.eq.s32.totalorder %s21, 1
    %p51 = por %p49, %p50
    %p52 = scmp.ne.s32.totalorder %s41, %s42
    %p53 = scmp.eq.s32.totalorder %s21, 0
    %p54 = por %p52, %p53
    %p55 = scmp.ne.s32.totalorder %s41, %s42
    %p56 = scmp.eq.s32.totalorder %s22, 1
    %p57 = por %p55, %p56
    %p59 = scmp.ne.s32.totalorder %s42, %s58
    %p60 = scmp.eq.s32.totalorder %s22, 0
    %p61 = por %p59, %p60
    %s62 = ssub.s32 %s23, %s35
    %p63 = scmp.eq.s32.totalorder %s62, 0
    %s65 = sadd.s32 %s64, 1
    %s66 = scalar_select %p63, %s64, %s65
    %p69 = pneg %p63
    %p70 = scmp.eq.s32.totalorder %s16, 1
    %p71 = por %p69, %p70
    %p72 = scmp.ne.s32.totalorder %s64, %s67
    %p73 = scmp.eq.s32.totalorder %s16, 0
    %p74 = por %p72, %p73
    %p75 = scmp.ne.s32.totalorder %s64, %s67
    %p76 = scmp.eq.s32.totalorder %s21, 1
    %p77 = por %p75, %p76
    %p78 = scmp.ne.s32.totalorder %s67, %s68
    %p79 = scmp.eq.s32.totalorder %s21, 0
    %p80 = por %p78, %p79
    %p81 = scmp.ne.s32.totalorder %s67, %s68
    %p82 = scmp.eq.s32.totalorder %s22, 1
    %p83 = por %p81, %p82
    %p85 = scmp.ne.s32.totalorder %s68, %s84
    %p86 = scmp.eq.s32.totalorder %s22, 0
    %p87 = por %p85, %p86
    %s88 = ssub.s32 %s23, %s35
    %p89 = scmp.eq.s32.totalorder %s88, 0
    %s91 = sadd.s32 %s90, 1
    %s92 = scalar_select %p89, %s90, %s91
    %p95 = pneg %p89
    %p96 = scmp.eq.s32.totalorder %s16, 1
    %p97 = por %p95, %p96
    %p98 = scmp.ne.s32.totalorder %s90, %s93
    %p99 = scmp.eq.s32.totalorder %s16, 0
    %p100 = por %p98, %p99
    %p101 = scmp.ne.s32.totalorder %s90, %s93
    %p102 = scmp.eq.s32.totalorder %s21, 1
    %p103 = por %p101, %p102
    %p104 = scmp.ne.s32.totalorder %s93, %s94
    %p105 = scmp.eq.s32.totalorder %s21, 0
    %p106 = por %p104, %p105
    %p107 = scmp.ne.s32.totalorder %s93, %s94
    %p108 = scmp.eq.s32.totalorder %s22, 1
    %p109 = por %p107, %p108
    %p111 = scmp.ne.s32.totalorder %s94, %s110
    %p112 = scmp.eq.s32.totalorder %s22, 0
    %p113 = por %p111, %p112
    %s114 = ssub.s32 %s23, %s35
    %p115 = scmp.eq.s32.totalorder %s114, 0
    %s117 = sadd.s32 %s116, 1
    %s118 = scalar_select %p115, %s116, %s117
    %p121 = pneg %p115
    %p122 = scmp.eq.s32.totalorder %s16, 1
    %p123 = por %p121, %p122
    %p124 = scmp.ne.s32.totalorder %s116, %s119
    %p125 = scmp.eq.s32.totalorder %s16, 0
    %p126 = por %p124, %p125
    %p127 = scmp.ne.s32.totalorder %s116, %s119
    %p128 = scmp.eq.s32.totalorder %s21, 1
    %p129 = por %p127, %p128
    %p130 = scmp.ne.s32.totalorder %s119, %s120
    %p131 = scmp.eq.s32.totalorder %s21, 0
    %p132 = por %p130, %p131
    %p133 = scmp.ne.s32.totalorder %s119, %s120
    %p134 = scmp.eq.s32.totalorder %s22, 1
    %p135 = por %p133, %p134
    %p137 = scmp.ne.s32.totalorder %s120, %s136
    %p138 = scmp.eq.s32.totalorder %s22, 0
    %p139 = por %p137, %p138
    %s141 = sadd.s32 %s140, 1
    %p144 = scmp.eq.s32.totalorder %s16, 1
    %p145 = scmp.ne.s32.totalorder %s140, %s142
    %p146 = scmp.eq.s32.totalorder %s16, 0
    %p147 = por %p145, %p146
    %p148 = scmp.ne.s32.totalorder %s140, %s142
    %p149 = scmp.eq.s32.totalorder %s21, 1
    %p150 = por %p148, %p149
    %p151 = scmp.ne.s32.totalorder %s142, %s143
    %p152 = scmp.eq.s32.totalorder %s21, 0
    %p153 = por %p151, %p152
    %p154 = scmp.ne.s32.totalorder %s142, %s143
    %p155 = scmp.eq.s32.totalorder %s22, 1
    %p156 = por %p154, %p155
    %p158 = scmp.ne.s32.totalorder %s143, %s157
    %p159 = scmp.eq.s32.totalorder %s22, 0
    %p160 = por %p158, %p159
    %s162 = sadd.s32 %s161, 1
    %p165 = scmp.eq.s32.totalorder %s16, 1
    %p166 = scmp.ne.s32.totalorder %s161, %s163
    %p167 = scmp.eq.s32.totalorder %s16, 0
    %p168 = por %p166, %p167
    %p169 = scmp.ne.s32.totalorder %s161, %s163
    %p170 = scmp.eq.s32.totalorder %s21, 1
    %p171 = por %p169, %p170
    %p172 = scmp.ne.s32.totalorder %s163, %s164
    %p173 = scmp.eq.s32.totalorder %s21, 0
    %p174 = por %p172, %p173
    %p175 = scmp.ne.s32.totalorder %s163, %s164
    %p176 = scmp.eq.s32.totalorder %s22, 1
    %p177 = por %p175, %p176
    %p179 = scmp.ne.s32.totalorder %s164, %s178
    %p180 = scmp.eq.s32.totalorder %s22, 0
    %p181 = por %p179, %p180
    %s183 = sadd.s32 %s182, 1
    %p186 = scmp.eq.s32.totalorder %s16, 1
    %p187 = scmp.ne.s32.totalorder %s182, %s184
    %p188 = scmp.eq.s32.totalorder %s16, 0
    %p189 = por %p187, %p188
    %p190 = scmp.ne.s32.totalorder %s182, %s184
    %p191 = scmp.eq.s32.totalorder %s21, 1
    %p192 = por %p190, %p191
    %p193 = scmp.ne.s32.totalorder %s184, %s185
    %p194 = scmp.eq.s32.totalorder %s21, 0
    %p195 = por %p193, %p194
    %p196 = scmp.ne.s32.totalorder %s184, %s185
    %p197 = scmp.eq.s32.totalorder %s22, 1
    %p198 = por %p196, %p197
    %p200 = scmp.ne.s32.totalorder %s185, %s199
    %p201 = scmp.eq.s32.totalorder %s22, 0
    %p202 = por %p200, %p201
    %s204 = sadd.s32 %s203, 1
    %p207 = scmp.eq.s32.totalorder %s16, 1
    %p208 = scmp.ne.s32.totalorder %s203, %s205
    %p209 = scmp.eq.s32.totalorder %s16, 0
    %p210 = por %p208, %p209
    %p211 = scmp.ne.s32.totalorder %s203, %s205
    %p212 = scmp.eq.s32.totalorder %s21, 1
    %p213 = por %p211, %p212
    %p214 = scmp.ne.s32.totalorder %s205, %s206
    %p215 = scmp.eq.s32.totalorder %s21, 0
    %p216 = por %p214, %p215
    %p217 = scmp.ne.s32.totalorder %s205, %s206
    %p218 = scmp.eq.s32.totalorder %s22, 1
    %p219 = por %p217, %p218
    %p221 = scmp.ne.s32.totalorder %s206, %s220
    %p222 = scmp.eq.s32.totalorder %s22, 0
    %p223 = por %p221, %p222
    %s225 = sadd.s32 %s224, 1
    %p228 = scmp.eq.s32.totalorder %s16, 1
    %p229 = scmp.ne.s32.totalorder %s224, %s226
    %p230 = scmp.eq.s32.totalorder %s16, 0
    %p231 = por %p229, %p230
    %p232 = scmp.ne.s32.totalorder %s224, %s226
    %p233 = scmp.eq.s32.totalorder %s21, 1
    %p234 = por %p232, %p233
    %p235 = scmp.ne.s32.totalorder %s226, %s227
    %p236 = scmp.eq.s32.totalorder %s21, 0
    %p237 = por %p235, %p236
    %p238 = scmp.ne.s32.totalorder %s226, %s227
    %p239 = scmp.eq.s32.totalorder %s22, 1
    %p240 = por %p238, %p239
    %p242 = scmp.ne.s32.totalorder %s227, %s241
    %p243 = scmp.eq.s32.totalorder %s22, 0
    %p244 = por %p242, %p243
    %s246 = sadd.s32 %s245, 1
    %p249 = scmp.eq.s32.totalorder %s16, 1
    %p250 = scmp.ne.s32.totalorder %s245, %s247
    %p251 = scmp.eq.s32.totalorder %s16, 0
    %p252 = por %p250, %p251
    %p253 = scmp.ne.s32.totalorder %s245, %s247
    %p254 = scmp.eq.s32.totalorder %s21, 1
    %p255 = por %p253, %p254
    %p256 = scmp.ne.s32.totalorder %s247, %s248
    %p257 = scmp.eq.s32.totalorder %s21, 0
    %p258 = por %p256, %p257
    %p259 = scmp.ne.s32.totalorder %s247, %s248
    %p260 = scmp.eq.s32.totalorder %s22, 1
    %p261 = por %p259, %p260
    %p263 = scmp.ne.s32.totalorder %s248, %s262
    %p264 = scmp.eq.s32.totalorder %s22, 0
    %p265 = por %p263, %p264
    %s266 = ssub.s32 %s23, %s35
    %s267 = ssub.s32 %s24, %s31
    %s268 = sor.u32 %s266, %s267
    %p269 = scmp.eq.s32.totalorder %s268, 0
    %s271 = sadd.s32 %s270, 1
    %s272 = scalar_select %p269, %s270, %s271
    %p275 = pneg %p269
    %p276 = scmp.eq.s32.totalorder %s16, 1
    %p277 = por %p275, %p276
    %p278 = scmp.ne.s32.totalorder %s270, %s273
    %p279 = scmp.eq.s32.totalorder %s16, 0
    %p280 = por %p278, %p279
    %p281 = scmp.ne.s32.totalorder %s270, %s273
    %p282 = scmp.eq.s32.totalorder %s21, 1
    %p283 = por %p281, %p282
    %p284 = scmp.ne.s32.totalorder %s273, %s274
    %p285 = scmp.eq.s32.totalorder %s21, 0
    %p286 = por %p284, %p285
    %p287 = scmp.ne.s32.totalorder %s273, %s274
    %p288 = scmp.eq.s32.totalorder %s22, 1
    %p289 = por %p287, %p288
    %p291 = scmp.ne.s32.totalorder %s274, %s290
    %p292 = scmp.eq.s32.totalorder %s22, 0
    %p293 = por %p291, %p292
    %p294 = scmp.le.s32.totalorder 1, %s16
    %p295 = scmp.lt.s32.totalorder %s16, 3
    %p296 = pnand %p294, %p295
    %p297 = pneg %p296
    // Predicated region
    $region9: #{esblock2_forward.6} parent=5 // pred_check
      _
    $region10: #{esblock2_forward.6} parent=5 // pred_check_branch
      %299 = sbr.rel (%p296) target = $region12
    $region11: #{esblock2_forward.6} parent=5 // pred_region
      %s300 = ssub.s32 %s16, 1
      // Predicated region
      $region13: #{esblock2_forward.6} parent=11 // pred_check
        %p301 = pneg %p153
      $region14: #{esblock2_forward.6} parent=11 // pred_check_branch
        %303 = sbr.rel (%p301) target = $region16
      $region15: #{esblock2_forward.6} parent=11 // pred_region
        _
      $region16: #{esblock2_forward.6} parent=11 // pred_fallthru
        _
      // Predicated region
      $region17: #{esblock2_forward.6} parent=11 // pred_check
        %p304 = pneg %p174
      $region18: #{esblock2_forward.6} parent=11 // pred_check_branch
        %306 = sbr.rel (%p304) target = $region20
      $region19: #{esblock2_forward.6} parent=11 // pred_region
        _
      $region20: #{esblock2_forward.6} parent=11 // pred_fallthru
        _
      // Predicated region
      $region21: #{esblock2_forward.6} parent=11 // pred_check
        %p307 = pneg %p195
      $region22: #{esblock2_forward.6} parent=11 // pred_check_branch
        %309 = sbr.rel (%p307) target = $region24
      $region23: #{esblock2_forward.6} parent=11 // pred_region
        _
      $region24: #{esblock2_forward.6} parent=11 // pred_fallthru
        _
      // Predicated region
      $region25: #{esblock2_forward.6} parent=11 // pred_check
        %p310 = pneg %p216
      $region26: #{esblock2_forward.6} parent=11 // pred_check_branch
        %312 = sbr.rel (%p310) target = $region28
      $region27: #{esblock2_forward.6} parent=11 // pred_region
        _
      $region28: #{esblock2_forward.6} parent=11 // pred_fallthru
        _
      // Predicated region
      $region29: #{esblock2_forward.6} parent=11 // pred_check
        %p313 = pneg %p237
      $region30: #{esblock2_forward.6} parent=11 // pred_check_branch
        %315 = sbr.rel (%p313) target = $region32
      $region31: #{esblock2_forward.6} parent=11 // pred_region
        _
      $region32: #{esblock2_forward.6} parent=11 // pred_fallthru
        _
      // Predicated region
      $region33: #{esblock2_forward.6} parent=11 // pred_check
        %p316 = pneg %p258
      $region34: #{esblock2_forward.6} parent=11 // pred_check_branch
        %318 = sbr.rel (%p316) target = $region36
      $region35: #{esblock2_forward.6} parent=11 // pred_region
        _
      $region36: #{esblock2_forward.6} parent=11 // pred_fallthru
        _
    $region12: #{esblock2_forward.6} parent=5 // pred_fallthru
      _
    %p319 = scmp.lt.s32.totalorder %s16, 2
    // Predicated region
    $region37: #{esblock2_forward.6} parent=5 // pred_check
      %p320 = pneg %p319
    $region38: #{esblock2_forward.6} parent=5 // pred_check_branch
      %322 = sbr.rel (%p320) target = $region40
    $region39: #{esblock2_forward.6} parent=5 // pred_region
      // Predicated region
      $region41: #{esblock2_forward.6} parent=39 // pred_check
        %p323 = pneg %p48
      $region42: #{esblock2_forward.6} parent=39 // pred_check_branch
        %325 = sbr.rel (%p323) target = $region44
      $region43: #{esblock2_forward.6} parent=39 // pred_region
        %p326 = scmp.lt.s32.totalorder %s23, 1
        %s327 = scalar_select %p326, %s23, 1
        %s328 = smul.addr %s327, 18
        %s329 = smul.addr %s328, 4
        %s330 = scalar_lea.vmem %s0, %s329
      $region44: #{esblock2_forward.6} parent=39 // pred_fallthru
        _
      // Predicated region
      $region45: #{esblock2_forward.6} parent=39 // pred_check
        %p331 = pneg %p74
      $region46: #{esblock2_forward.6} parent=39 // pred_check_branch
        %333 = sbr.rel (%p331) target = $region48
      $region47: #{esblock2_forward.6} parent=39 // pred_region
        %p334 = scmp.lt.s32.totalorder %s23, 1
        %s335 = scalar_select %p334, %s23, 1
        %s336 = smul.addr %s335, 18
        %s337 = smul.addr %s336, 4
        %s338 = scalar_lea.vmem %s1, %s337
      $region48: #{esblock2_forward.6} parent=39 // pred_fallthru
        _
      // Predicated region
      $region49: #{esblock2_forward.6} parent=39 // pred_check
        %p339 = pneg %p100
      $region50: #{esblock2_forward.6} parent=39 // pred_check_branch
        %341 = sbr.rel (%p339) target = $region52
      $region51: #{esblock2_forward.6} parent=39 // pred_region
        %p342 = scmp.lt.s32.totalorder %s23, 1
        %s343 = scalar_select %p342, %s23, 1
        %s344 = smul.addr %s343, 18
        %s345 = smul.addr %s344, 4
        %s346 = scalar_lea.vmem %s2, %s345
      $region52: #{esblock2_forward.6} parent=39 // pred_fallthru
        _
      // Predicated region
      $region53: #{esblock2_forward.6} parent=39 // pred_check
        %p347 = pneg %p126
      $region54: #{esblock2_forward.6} parent=39 // pred_check_branch
        %349 = sbr.rel (%p347) target = $region56
      $region55: #{esblock2_forward.6} parent=39 // pred_region
        %p350 = scmp.lt.s32.totalorder %s23, 1
        %s351 = scalar_select %p350, %s23, 1
        %s352 = smul.addr %s351, 18
        %s353 = smul.addr %s352, 4
        %s354 = scalar_lea.vmem %s3, %s353
      $region56: #{esblock2_forward.6} parent=39 // pred_fallthru
        _
    $region40: #{esblock2_forward.6} parent=5 // pred_fallthru
      _
    %p355 = scmp.le.s32.totalorder 1, %s16
    %p356 = scmp.lt.s32.totalorder %s16, 3
    %p357 = pnand %p355, %p356
    %p358 = pneg %p357
    // Predicated region
    $region57: #{esblock2_forward.6} parent=5 // pred_check
      _
    $region58: #{esblock2_forward.6} parent=5 // pred_check_branch
      %360 = sbr.rel (%p357) target = $region60
    $region59: #{esblock2_forward.6} parent=5 // pred_region
      %s361 = ssub.s32 %s16, 1
      %p362 = scmp.lt.s32.totalorder %s25, 1
      %s363 = scalar_select %p362, %s25, 1
      %s364 = smul.addr %s363, 18
      %s365 = smul.addr %s364, 4
      %s366 = scalar_lea.vmem %s0, %s365
      %p367 = pneg %p54
      %p368 = pneg %p51
      %p369 = scmp.lt.s32.totalorder %s25, 1
      %s370 = scalar_select %p369, %s25, 1
      %s371 = smul.addr %s370, 18
      %s372 = smul.addr %s371, 4
      %s373 = scalar_lea.vmem %s1, %s372
      %p374 = pneg %p80
      %p375 = pneg %p77
      %p376 = scmp.lt.s32.totalorder %s25, 1
      %s377 = scalar_select %p376, %s25, 1
      %s378 = smul.addr %s377, 18
      %s379 = smul.addr %s378, 4
      %s380 = scalar_lea.vmem %s2, %s379
      %p381 = pneg %p106
      %p382 = pneg %p103
      %p383 = scmp.lt.s32.totalorder %s25, 1
      %s384 = scalar_select %p383, %s25, 1
      %s385 = smul.addr %s384, 18
      %s386 = smul.addr %s385, 4
      %s387 = scalar_lea.vmem %s3, %s386
      %p388 = pneg %p132
      %p389 = pneg %p129
      %p390 = pneg %p153
      %p391 = pneg %p150
      %p392 = pneg %p174
      %p393 = pneg %p171
      %p394 = pneg %p195
      %p395 = pneg %p192
      %p396 = pneg %p216
      %p397 = pneg %p213
      %p398 = pneg %p237
      %p399 = pneg %p234
      %p400 = pneg %p258
      %p401 = pneg %p255
      %p402 = pneg %p286
      %p403 = pneg %p283
      %s404 = smul.u32 8, %s26
      %p405 = scmp.lt.s32.totalorder %s25, 1
      %s406 = scalar_select %p405, %s25, 1
      %p407 = scmp.lt.s32.totalorder %s404, 7
      %s408 = scalar_select %p407, %s404, 7
      %s409 = smul.addr %s406, 8
      %s410 = sadd.s32 %s408, %s409
      %s411 = smul.addr %s410, 4
      %s412 = scalar_lea.vmem %s10, %s411
      %p413 = scmp.lt.s32.totalorder %s25, 1
      %s414 = scalar_select %p413, %s25, 1
      %s415 = smul.addr %s414, 18
      %s416 = smul.addr %s415, 4
      %s417 = scalar_lea.vmem %s0, %s416
      %p418 = scmp.lt.s32.totalorder %s25, 1
      %s419 = scalar_select %p418, %s25, 1
      %s420 = smul.addr %s419, 18
      %s421 = smul.addr %s420, 4
      %s422 = scalar_lea.vmem %s1, %s421
      %p423 = scmp.lt.s32.totalorder %s25, 1
      %s424 = scalar_select %p423, %s25, 1
      %s425 = smul.addr %s424, 18
      %s426 = smul.addr %s425, 4
      %s427 = scalar_lea.vmem %s2, %s426
      %p428 = scmp.lt.s32.totalorder %s25, 1
      %s429 = scalar_select %p428, %s25, 1
      %s430 = smul.addr %s429, 18
      %s431 = smul.addr %s430, 4
      %s432 = scalar_lea.vmem %s3, %s431
      %s433 = smul.u32 8, %s26
      %p434 = scmp.lt.s32.totalorder %s25, 1
      %s435 = scalar_select %p434, %s25, 1
      %p436 = scmp.lt.s32.totalorder %s433, 7
      %s437 = scalar_select %p436, %s433, 7
      %s438 = smul.addr %s435, 8
      %s439 = sadd.s32 %s437, %s438
      %s440 = smul.addr %s439, 4
      %s441 = scalar_lea.vmem %s10, %s440
      %s442 = smul.u32 8, %s26
      %v444 = vld [vmem:[%s4] sm:$0xff]
      %v445 = vld [vmem:[%s4 + $0x8] sm:$0x1]
      %v446 = vld [vmem:[%s5] sm:$0x1]
      %v447 = vld [vmem:[%s6] sm:$0x1]
      %s448 = smul.u32 %s26, 8
      %s449 = smul.u32 %s448, 2
      %s450 = smul.addr %s449, 4
      %s451 = scalar_lea.vmem %s417, %s450
      %v452 = vld [vmem:[%s451] sm:$0xf]
      %v453 = vld [vmem:[%s451 + $0x8] sm:$0xf]
      %v454 = vld [vmem:[%s451 + $0x10] sm:$0xf]
      %v455 = vld [vmem:[%s451 + $0x18] sm:$0xf]
      %v456 = vld [vmem:[%s451 + $0x20] sm:$0xf]
      %v457 = vld [vmem:[%s451 + $0x28] sm:$0xf]
      %v458 = vld [vmem:[%s451 + $0x30] sm:$0xf]
      %v459 = vld [vmem:[%s451 + $0x38] sm:$0xf]
      %v460 = vunpack.c.l.bf16 %v452
      %v461 = vunpack.c.l.bf16 %v453
      %v462 = vunpack.c.l.bf16 %v454
      %v463 = vunpack.c.l.bf16 %v455
      %v464 = vunpack.c.l.bf16 %v456
      %v465 = vunpack.c.l.bf16 %v457
      %v466 = vunpack.c.l.bf16 %v458
      %v467 = vunpack.c.l.bf16 %v459
      %v468 = vlaneseq
      %v469 = vshrl.u32 %v468, 7
      %v470 = vsub.s32 0, %v469
      %v471 = vrot.slane %v444, %v470
      %v472 = vmul.f32 %v460, %v471
      %v473 = vmul.f32 %v461, %v471
      %v474 = vmul.f32 %v462, %v471
      %v475 = vmul.f32 %v463, %v471
      %v476 = vmul.f32 %v464, %v471
      %v477 = vmul.f32 %v465, %v471
      %v478 = vmul.f32 %v466, %v471
      %v479 = vmul.f32 %v467, %v471
      %s480 = smul.addr %s449, 4
      %s481 = scalar_lea.vmem %s422, %s480
      %v482 = vld [vmem:[%s481] sm:$0xf]
      %v483 = vld [vmem:[%s481 + $0x8] sm:$0xf]
      %v484 = vld [vmem:[%s481 + $0x10] sm:$0xf]
      %v485 = vld [vmem:[%s481 + $0x18] sm:$0xf]
      %v486 = vld [vmem:[%s481 + $0x20] sm:$0xf]
      %v487 = vld [vmem:[%s481 + $0x28] sm:$0xf]
      %v488 = vld [vmem:[%s481 + $0x30] sm:$0xf]
      %v489 = vld [vmem:[%s481 + $0x38] sm:$0xf]
      %v490 = vunpack.c.l.bf16 %v482
      %v491 = vunpack.c.l.bf16 %v483
      %v492 = vunpack.c.l.bf16 %v484
      %v493 = vunpack.c.l.bf16 %v485
      %v494 = vunpack.c.l.bf16 %v486
      %v495 = vunpack.c.l.bf16 %v487
      %v496 = vunpack.c.l.bf16 %v488
      %v497 = vunpack.c.l.bf16 %v489
      %v498 = vlaneseq
      %v499 = vshrl.u32 %v498, 7
      %v500 = vsub.s32 1, %v499
      %v501 = vrot.slane %v444, %v500
      %v502 = vmul.f32 %v490, %v501
      %v503 = vmul.f32 %v491, %v501
      %v504 = vmul.f32 %v492, %v501
      %v505 = vmul.f32 %v493, %v501
      %v506 = vmul.f32 %v494, %v501
      %v507 = vmul.f32 %v495, %v501
      %v508 = vmul.f32 %v496, %v501
      %v509 = vmul.f32 %v497, %v501
      %v510 = vadd.f32 %v472, %v502
      %v511 = vadd.f32 %v473, %v503
      %v512 = vadd.f32 %v474, %v504
      %v513 = vadd.f32 %v475, %v505
      %v514 = vadd.f32 %v476, %v506
      %v515 = vadd.f32 %v477, %v507
      %v516 = vadd.f32 %v478, %v508
      %v517 = vadd.f32 %v479, %v509
      %v518 = vld [vmem:[%s451 + $0x4] sm:$0x1]
      %v519 = vld [vmem:[%s451 + $0xc] sm:$0x1]
      %v520 = vld [vmem:[%s451 + $0x14] sm:$0x1]
      %v521 = vld [vmem:[%s451 + $0x1c] sm:$0x1]
      %v522 = vld [vmem:[%s451 + $0x24] sm:$0x1]
      %v523 = vld [vmem:[%s451 + $0x2c] sm:$0x1]
      %v524 = vld [vmem:[%s451 + $0x34] sm:$0x1]
      %v525 = vld [vmem:[%s451 + $0x3c] sm:$0x1]
      %v526 = vunpack.c.l.bf16 %v518
      %v527 = vunpack.c.l.bf16 %v519
      %v528 = vunpack.c.l.bf16 %v520
      %v529 = vunpack.c.l.bf16 %v521
      %v530 = vunpack.c.l.bf16 %v522
      %v531 = vunpack.c.l.bf16 %v523
      %v532 = vunpack.c.l.bf16 %v524
      %v533 = vunpack.c.l.bf16 %v525
      %v534 = vlaneseq
      %v535 = vshrl.u32 %v534, 7
      %v536 = vsub.s32 2, %v535
      %v537 = vrot.slane %v444, %v536
      %v538 = vmul.f32 %v460, %v537
      %v539 = vmul.f32 %v526, %v537
      %v540 = vmul.f32 %v461, %v537
      %v541 = vmul.f32 %v527, %v537
      %v542 = vmul.f32 %v462, %v537
      %v543 = vmul.f32 %v528, %v537
      %v544 = vmul.f32 %v463, %v537
      %v545 = vmul.f32 %v529, %v537
      %v546 = vmul.f32 %v464, %v537
      %v547 = vmul.f32 %v530, %v537
      %v548 = vmul.f32 %v465, %v537
      %v549 = vmul.f32 %v531, %v537
      %v550 = vmul.f32 %v466, %v537
      %v551 = vmul.f32 %v532, %v537
      %v552 = vmul.f32 %v467, %v537
      %v553 = vmul.f32 %v533, %v537
      %vm570 = vcmask 1046528
      %v571 = vrot.slane %v538, 1
      %v572 = vrot.slane %v539, 1
      %v573 = vsel %vm570, %v571, %v572
      %v574 = vrot.slane %v540, 1
      %v575 = vrot.slane %v541, 1
      %v576 = vsel %vm570, %v574, %v575
      %v577 = vrot.slane %v542, 1
      %v578 = vrot.slane %v543, 1
      %v579 = vsel %vm570, %v577, %v578
      %v580 = vrot.slane %v544, 1
      %v581 = vrot.slane %v545, 1
      %v582 = vsel %vm570, %v580, %v581
      %v583 = vrot.slane %v546, 1
      %v584 = vrot.slane %v547, 1
      %v585 = vsel %vm570, %v583, %v584
      %v586 = vrot.slane %v548, 1
      %v587 = vrot.slane %v549, 1
      %v588 = vsel %vm570, %v586, %v587
      %v589 = vrot.slane %v550, 1
      %v590 = vrot.slane %v551, 1
      %v591 = vsel %vm570, %v589, %v590
      %v592 = vrot.slane %v552, 1
      %v593 = vrot.slane %v553, 1
      %v594 = vsel %vm570, %v592, %v593
      %v603 = vadd.f32 %v510, %v573
      %v604 = vadd.f32 %v511, %v576
      %v605 = vadd.f32 %v512, %v579
      %v606 = vadd.f32 %v513, %v582
      %v607 = vadd.f32 %v514, %v585
      %v608 = vadd.f32 %v515, %v588
      %v609 = vadd.f32 %v516, %v591
      %v610 = vadd.f32 %v517, %v594
      %s611 = smul.addr %s449, 4
      %s612 = scalar_lea.vmem %s427, %s611
      %v613 = vld [vmem:[%s612] sm:$0xf]
      %v614 = vld [vmem:[%s612 + $0x8] sm:$0xf]
      %v615 = vld [vmem:[%s612 + $0x10] sm:$0xf]
      %v616 = vld [vmem:[%s612 + $0x18] sm:$0xf]
      %v617 = vld [vmem:[%s612 + $0x20] sm:$0xf]
      %v618 = vld [vmem:[%s612 + $0x28] sm:$0xf]
      %v619 = vld [vmem:[%s612 + $0x30] sm:$0xf]
      %v620 = vld [vmem:[%s612 + $0x38] sm:$0xf]
      %v621 = vunpack.c.l.bf16 %v613
      %v622 = vunpack.c.l.bf16 %v614
      %v623 = vunpack.c.l.bf16 %v615
      %v624 = vunpack.c.l.bf16 %v616
      %v625 = vunpack.c.l.bf16 %v617
      %v626 = vunpack.c.l.bf16 %v618
      %v627 = vunpack.c.l.bf16 %v619
      %v628 = vunpack.c.l.bf16 %v620
      %v629 = vlaneseq
      %v630 = vshrl.u32 %v629, 7
      %v631 = vsub.s32 3, %v630
      %v632 = vrot.slane %v444, %v631
      %v633 = vmul.f32 %v621, %v632
      %v634 = vmul.f32 %v622, %v632
      %v635 = vmul.f32 %v623, %v632
      %v636 = vmul.f32 %v624, %v632
      %v637 = vmul.f32 %v625, %v632
      %v638 = vmul.f32 %v626, %v632
      %v639 = vmul.f32 %v627, %v632
      %v640 = vmul.f32 %v628, %v632
      %v641 = vadd.f32 %v603, %v633
      %v642 = vadd.f32 %v604, %v634
      %v643 = vadd.f32 %v605, %v635
      %v644 = vadd.f32 %v606, %v636
      %v645 = vadd.f32 %v607, %v637
      %v646 = vadd.f32 %v608, %v638
      %v647 = vadd.f32 %v609, %v639
      %v648 = vadd.f32 %v610, %v640
      %s649 = smul.addr %s449, 4
      %s650 = scalar_lea.vmem %s432, %s649
      %v651 = vld [vmem:[%s650] sm:$0xf]
      %v652 = vld [vmem:[%s650 + $0x8] sm:$0xf]
      %v653 = vld [vmem:[%s650 + $0x10] sm:$0xf]
      %v654 = vld [vmem:[%s650 + $0x18] sm:$0xf]
      %v655 = vld [vmem:[%s650 + $0x20] sm:$0xf]
      %v656 = vld [vmem:[%s650 + $0x28] sm:$0xf]
      %v657 = vld [vmem:[%s650 + $0x30] sm:$0xf]
      %v658 = vld [vmem:[%s650 + $0x38] sm:$0xf]
      %v659 = vunpack.c.l.bf16 %v651
      %v660 = vunpack.c.l.bf16 %v652
      %v661 = vunpack.c.l.bf16 %v653
      %v662 = vunpack.c.l.bf16 %v654
      %v663 = vunpack.c.l.bf16 %v655
      %v664 = vunpack.c.l.bf16 %v656
      %v665 = vunpack.c.l.bf16 %v657
      %v666 = vunpack.c.l.bf16 %v658
      %v667 = vlaneseq
      %v668 = vshrl.u32 %v667, 7
      %v669 = vsub.s32 4, %v668
      %v670 = vrot.slane %v444, %v669
      %v671 = vmul.f32 %v659, %v670
      %v672 = vmul.f32 %v660, %v670
      %v673 = vmul.f32 %v661, %v670
      %v674 = vmul.f32 %v662, %v670
      %v675 = vmul.f32 %v663, %v670
      %v676 = vmul.f32 %v664, %v670
      %v677 = vmul.f32 %v665, %v670
      %v678 = vmul.f32 %v666, %v670
      %v679 = vadd.f32 %v641, %v671
      %v680 = vadd.f32 %v642, %v672
      %v681 = vadd.f32 %v643, %v673
      %v682 = vadd.f32 %v644, %v674
      %v683 = vadd.f32 %v645, %v675
      %v684 = vadd.f32 %v646, %v676
      %v685 = vadd.f32 %v647, %v677
      %v686 = vadd.f32 %v648, %v678
      %v687 = vld [vmem:[%s612 + $0x4] sm:$0x1]
      %v688 = vld [vmem:[%s612 + $0xc] sm:$0x1]
      %v689 = vld [vmem:[%s612 + $0x14] sm:$0x1]
      %v690 = vld [vmem:[%s612 + $0x1c] sm:$0x1]
      %v691 = vld [vmem:[%s612 + $0x24] sm:$0x1]
      %v692 = vld [vmem:[%s612 + $0x2c] sm:$0x1]
      %v693 = vld [vmem:[%s612 + $0x34] sm:$0x1]
      %v694 = vld [vmem:[%s612 + $0x3c] sm:$0x1]
      %v695 = vunpack.c.l.bf16 %v687
      %v696 = vunpack.c.l.bf16 %v688
      %v697 = vunpack.c.l.bf16 %v689
      %v698 = vunpack.c.l.bf16 %v690
      %v699 = vunpack.c.l.bf16 %v691
      %v700 = vunpack.c.l.bf16 %v692
      %v701 = vunpack.c.l.bf16 %v693
      %v702 = vunpack.c.l.bf16 %v694
      %v703 = vlaneseq
      %v704 = vshrl.u32 %v703, 7
      %v705 = vsub.s32 5, %v704
      %v706 = vrot.slane %v444, %v705
      %v707 = vmul.f32 %v621, %v706
      %v708 = vmul.f32 %v695, %v706
      %v709 = vmul.f32 %v622, %v706
      %v710 = vmul.f32 %v696, %v706
      %v711 = vmul.f32 %v623, %v706
      %v712 = vmul.f32 %v697, %v706
      %v713 = vmul.f32 %v624, %v706
      %v714 = vmul.f32 %v698, %v706
      %v715 = vmul.f32 %v625, %v706
      %v716 = vmul.f32 %v699, %v706
      %v717 = vmul.f32 %v626, %v706
      %v718 = vmul.f32 %v700, %v706
      %v719 = vmul.f32 %v627, %v706
      %v720 = vmul.f32 %v701, %v706
      %v721 = vmul.f32 %v628, %v706
      %v722 = vmul.f32 %v702, %v706
      %v739 = vrot.slane %v707, 1
      %v740 = vrot.slane %v708, 1
      %v741 = vsel %vm570, %v739, %v740
      %v742 = vrot.slane %v709, 1
      %v743 = vrot.slane %v710, 1
      %v744 = vsel %vm570, %v742, %v743
      %v745 = vrot.slane %v711, 1
      %v746 = vrot.slane %v712, 1
      %v747 = vsel %vm570, %v745, %v746
      %v748 = vrot.slane %v713, 1
      %v749 = vrot.slane %v714, 1
      %v750 = vsel %vm570, %v748, %v749
      %v751 = vrot.slane %v715, 1
      %v752 = vrot.slane %v716, 1
      %v753 = vsel %vm570, %v751, %v752
      %v754 = vrot.slane %v717, 1
      %v755 = vrot.slane %v718, 1
      %v756 = vsel %vm570, %v754, %v755
      %v757 = vrot.slane %v719, 1
      %v758 = vrot.slane %v720, 1
      %v759 = vsel %vm570, %v757, %v758
      %v760 = vrot.slane %v721, 1
      %v761 = vrot.slane %v722, 1
      %v762 = vsel %vm570, %v760, %v761
      %v771 = vadd.f32 %v679, %v741
      %v772 = vadd.f32 %v680, %v744
      %v773 = vadd.f32 %v681, %v747
      %v774 = vadd.f32 %v682, %v750
      %v775 = vadd.f32 %v683, %v753
      %v776 = vadd.f32 %v684, %v756
      %v777 = vadd.f32 %v685, %v759
      %v778 = vadd.f32 %v686, %v762
      %s779 = sadd.s32 %s448, 1
      %s780 = smul.u32 %s779, 2
      %s781 = smul.addr %s780, 4
      %s782 = scalar_lea.vmem %s417, %s781
      %v783 = vld [vmem:[%s782] sm:$0xf]
      %v784 = vld [vmem:[%s782 + $0x8] sm:$0xf]
      %v785 = vld [vmem:[%s782 + $0x10] sm:$0xf]
      %v786 = vld [vmem:[%s782 + $0x18] sm:$0xf]
      %v787 = vld [vmem:[%s782 + $0x20] sm:$0xf]
      %v788 = vld [vmem:[%s782 + $0x28] sm:$0xf]
      %v789 = vld [vmem:[%s782 + $0x30] sm:$0xf]
      %v790 = vld [vmem:[%s782 + $0x38] sm:$0xf]
      %v791 = vunpack.c.l.bf16 %v783
      %v792 = vunpack.c.l.bf16 %v784
      %v793 = vunpack.c.l.bf16 %v785
      %v794 = vunpack.c.l.bf16 %v786
      %v795 = vunpack.c.l.bf16 %v787
      %v796 = vunpack.c.l.bf16 %v788
      %v797 = vunpack.c.l.bf16 %v789
      %v798 = vunpack.c.l.bf16 %v790
      %v799 = vlaneseq
      %v800 = vshrl.u32 %v799, 7
      %v801 = vsub.s32 6, %v800
      %v802 = vrot.slane %v444, %v801
      %v803 = vmul.f32 %v791, %v802
      %v804 = vmul.f32 %v792, %v802
      %v805 = vmul.f32 %v793, %v802
      %v806 = vmul.f32 %v794, %v802
      %v807 = vmul.f32 %v795, %v802
      %v808 = vmul.f32 %v796, %v802
      %v809 = vmul.f32 %v797, %v802
      %v810 = vmul.f32 %v798, %v802
      %v811 = vadd.f32 %v771, %v803
      %v812 = vadd.f32 %v772, %v804
      %v813 = vadd.f32 %v773, %v805
      %v814 = vadd.f32 %v774, %v806
      %v815 = vadd.f32 %v775, %v807
      %v816 = vadd.f32 %v776, %v808
      %v817 = vadd.f32 %v777, %v809
      %v818 = vadd.f32 %v778, %v810
      %s819 = smul.addr %s780, 4
      %s820 = scalar_lea.vmem %s422, %s819
      %v821 = vld [vmem:[%s820] sm:$0xf]
      %v822 = vld [vmem:[%s820 + $0x8] sm:$0xf]
      %v823 = vld [vmem:[%s820 + $0x10] sm:$0xf]
      %v824 = vld [vmem:[%s820 + $0x18] sm:$0xf]
      %v825 = vld [vmem:[%s820 + $0x20] sm:$0xf]
      %v826 = vld [vmem:[%s820 + $0x28] sm:$0xf]
      %v827 = vld [vmem:[%s820 + $0x30] sm:$0xf]
      %v828 = vld [vmem:[%s820 + $0x38] sm:$0xf]
      %v829 = vunpack.c.l.bf16 %v821
      %v830 = vunpack.c.l.bf16 %v822
      %v831 = vunpack.c.l.bf16 %v823
      %v832 = vunpack.c.l.bf16 %v824
      %v833 = vunpack.c.l.bf16 %v825
      %v834 = vunpack.c.l.bf16 %v826
      %v835 = vunpack.c.l.bf16 %v827
      %v836 = vunpack.c.l.bf16 %v828
      %v837 = vlaneseq
      %v838 = vshrl.u32 %v837, 7
      %v839 = vsub.s32 7, %v838
      %v840 = vrot.slane %v444, %v839
      %v841 = vmul.f32 %v829, %v840
      %v842 = vmul.f32 %v830, %v840
      %v843 = vmul.f32 %v831, %v840
      %v844 = vmul.f32 %v832, %v840
      %v845 = vmul.f32 %v833, %v840
      %v846 = vmul.f32 %v834, %v840
      %v847 = vmul.f32 %v835, %v840
      %v848 = vmul.f32 %v836, %v840
      %v849 = vadd.f32 %v811, %v841
      %v850 = vadd.f32 %v812, %v842
      %v851 = vadd.f32 %v813, %v843
      %v852 = vadd.f32 %v814, %v844
      %v853 = vadd.f32 %v815, %v845
      %v854 = vadd.f32 %v816, %v846
      %v855 = vadd.f32 %v817, %v847
      %v856 = vadd.f32 %v818, %v848
      %v857 = vld [vmem:[%s782 + $0x4] sm:$0x1]
      %v858 = vld [vmem:[%s782 + $0xc] sm:$0x1]
      %v859 = vld [vmem:[%s782 + $0x14] sm:$0x1]
      %v860 = vld [vmem:[%s782 + $0x1c] sm:$0x1]
      %v861 = vld [vmem:[%s782 + $0x24] sm:$0x1]
      %v862 = vld [vmem:[%s782 + $0x2c] sm:$0x1]
      %v863 = vld [vmem:[%s782 + $0x34] sm:$0x1]
      %v864 = vld [vmem:[%s782 + $0x3c] sm:$0x1]
      %v865 = vunpack.c.l.bf16 %v857
      %v866 = vunpack.c.l.bf16 %v858
      %v867 = vunpack.c.l.bf16 %v859
      %v868 = vunpack.c.l.bf16 %v860
      %v869 = vunpack.c.l.bf16 %v861
      %v870 = vunpack.c.l.bf16 %v862
      %v871 = vunpack.c.l.bf16 %v863
      %v872 = vunpack.c.l.bf16 %v864
      %v873 = vlaneseq
      %v874 = vshrl.u32 %v873, 7
      %v875 = vsub.s32 0, %v874
      %v876 = vrot.slane %v445, %v875
      %v877 = vmul.f32 %v791, %v876
      %v878 = vmul.f32 %v865, %v876
      %v879 = vmul.f32 %v792, %v876
      %v880 = vmul.f32 %v866, %v876
      %v881 = vmul.f32 %v793, %v876
      %v882 = vmul.f32 %v867, %v876
      %v883 = vmul.f32 %v794, %v876
      %v884 = vmul.f32 %v868, %v876
      %v885 = vmul.f32 %v795, %v876
      %v886 = vmul.f32 %v869, %v876
      %v887 = vmul.f32 %v796, %v876
      %v888 = vmul.f32 %v870, %v876
      %v889 = vmul.f32 %v797, %v876
      %v890 = vmul.f32 %v871, %v876
      %v891 = vmul.f32 %v798, %v876
      %v892 = vmul.f32 %v872, %v876
      %v909 = vrot.slane %v877, 1
      %v910 = vrot.slane %v878, 1
      %v911 = vsel %vm570, %v909, %v910
      %v912 = vrot.slane %v879, 1
      %v913 = vrot.slane %v880, 1
      %v914 = vsel %vm570, %v912, %v913
      %v915 = vrot.slane %v881, 1
      %v916 = vrot.slane %v882, 1
      %v917 = vsel %vm570, %v915, %v916
      %v918 = vrot.slane %v883, 1
      %v919 = vrot.slane %v884, 1
      %v920 = vsel %vm570, %v918, %v919
      %v921 = vrot.slane %v885, 1
      %v922 = vrot.slane %v886, 1
      %v923 = vsel %vm570, %v921, %v922
      %v924 = vrot.slane %v887, 1
      %v925 = vrot.slane %v888, 1
      %v926 = vsel %vm570, %v924, %v925
      %v927 = vrot.slane %v889, 1
      %v928 = vrot.slane %v890, 1
      %v929 = vsel %vm570, %v927, %v928
      %v930 = vrot.slane %v891, 1
      %v931 = vrot.slane %v892, 1
      %v932 = vsel %vm570, %v930, %v931
      %v941 = vadd.f32 %v849, %v911
      %v942 = vadd.f32 %v850, %v914
      %v943 = vadd.f32 %v851, %v917
      %v944 = vadd.f32 %v852, %v920
      %v945 = vadd.f32 %v853, %v923
      %v946 = vadd.f32 %v854, %v926
      %v947 = vadd.f32 %v855, %v929
      %v948 = vadd.f32 %v856, %v932
      %v950 = vlaneseq
      %v951 = vshrl.u32 %v950, 7
      %v952 = vsub.s32 0, %v951
      %v953 = vrot.slane %v446, %v952
      %v955 = vmul.f32 %v941, %v953
      %v956 = vmul.f32 %v942, %v953
      %v957 = vmul.f32 %v943, %v953
      %v958 = vmul.f32 %v944, %v953
      %v959 = vmul.f32 %v945, %v953
      %v960 = vmul.f32 %v946, %v953
      %v961 = vmul.f32 %v947, %v953
      %v962 = vmul.f32 %v948, %v953
      %v964 = vlaneseq
      %v965 = vshrl.u32 %v964, 7
      %v966 = vsub.s32 0, %v965
      %v967 = vrot.slane %v447, %v966
      %v969 = vadd.f32 %v955, %v967
      %v970 = vadd.f32 %v956, %v967
      %v971 = vadd.f32 %v957, %v967
      %v972 = vadd.f32 %v958, %v967
      %v973 = vadd.f32 %v959, %v967
      %v974 = vadd.f32 %v960, %v967
      %v975 = vadd.f32 %v961, %v967
      %v976 = vadd.f32 %v962, %v967
      %v977 = vpack.c.bf16 %v970, %v969
      %v978 = vpack.c.bf16 %v972, %v971
      %v979 = vpack.c.bf16 %v974, %v973
      %v980 = vpack.c.bf16 %v976, %v975
      %v981 = vld [vmem:[%s7] sm:$0x3]
      %vm982 = vcmask 31744
      %v984 = vsel %vm982, %v977, 0
      %v987 = vsel %vm982, %v978, 0
      %v990 = vsel %vm982, %v979, 0
      %v993 = vsel %vm982, %v980, 0
      %vm995 = vcmask 1041408
      %v997 = vsel %vm995, %v981, 0
      %999 = vmatprep.subr.bf16.mxu0 0
      %1000 = vmatpush1.bf16.msra.mxu0 %v997
      %1001 = vmatprep.subr.bf16.mxu0 0
      %1002 = vmatpush1.bf16.msra.mxu0 0
      %1003 = vmatprep.subr.bf16.mxu0 0
      %1004 = vmatpush1.bf16.msra.mxu0 0
      %1005 = vmatprep.subr.bf16.mxu0 0
      %1006 = vmatpush1.bf16.msra.mxu0 0
      %1007 = vmatprep.subr.bf16.mxu0 0
      %1008 = vmatpush1.bf16.msra.mxu0 0
      %1009 = vmatprep.subr.bf16.mxu0 0
      %1010 = vmatpush1.bf16.msra.mxu0 0
      %1011 = vmatprep.subr.bf16.mxu0 0
      %1012 = vmatpush1.bf16.msra.mxu0 0
      %1013 = vmatprep.subr.bf16.mxu0 0
      %1014 = vmatpush1.bf16.msra.mxu0 0
      %1015 = vmatprep.subr.bf16.mxu0 0
      %1016 = vmatpush1.bf16.msra.mxu0 0
      %1017 = vmatprep.subr.bf16.mxu0 0
      %1018 = vmatpush1.bf16.msra.mxu0 0
      %1019 = vmatprep.subr.bf16.mxu0 0
      %1020 = vmatpush1.bf16.msra.mxu0 0
      %1021 = vmatprep.subr.bf16.mxu0 0
      %1022 = vmatpush1.bf16.msra.mxu0 0
      %1023 = vmatprep.subr.bf16.mxu0 0
      %1024 = vmatpush1.bf16.msra.mxu0 0
      %1025 = vmatprep.subr.bf16.mxu0 0
      %1026 = vmatpush1.bf16.msra.mxu0 0
      %1027 = vmatprep.subr.bf16.mxu0 0
      %1028 = vmatpush1.bf16.msra.mxu0 0
      %1029 = vmatprep.subr.bf16.mxu0 0
      %1030 = vmatpush1.bf16.msra.mxu0 0
      %1031 = vmatprep.mubr.bf16.mxu0 0
      %1032 = vmatmul.mubr.bf16.gmra.mrb[0].mxu0 %v984
      %v1033 = vpop.f32.mrb[0].mxu0
      %v1034 = vadd.f32 0.0, %v1033
      %v1035 = vpop.f32.mrb[0].mxu0
      %v1036 = vpop.f32.mrb[0].mxu0
      %v1037 = vadd.f32 0.0, %v1036
      %v1038 = vpop.f32.mrb[0].mxu0
      %1039 = vmatprep.mubr.bf16.mxu0 0
      %1040 = vmatmul.mubr.bf16.gmra.mrb[0].mxu0 %v987
      %v1041 = vpop.f32.mrb[0].mxu0
      %v1042 = vadd.f32 0.0, %v1041
      %v1043 = vpop.f32.mrb[0].mxu0
      %v1044 = vpop.f32.mrb[0].mxu0
      %v1045 = vadd.f32 0.0, %v1044
      %v1046 = vpop.f32.mrb[0].mxu0
      %1047 = vmatprep.mubr.bf16.mxu0 0
      %1048 = vmatmul.mubr.bf16.gmra.mrb[0].mxu0 %v990
      %v1049 = vpop.f32.mrb[0].mxu0
      %v1050 = vadd.f32 0.0, %v1049
      %v1051 = vpop.f32.mrb[0].mxu0
      %v1052 = vpop.f32.mrb[0].mxu0
      %v1053 = vadd.f32 0.0, %v1052
      %v1054 = vpop.f32.mrb[0].mxu0
      %1055 = vmatprep.mubr.bf16.mxu0 0
      %1056 = vmatmul.mubr.bf16.gmra.mrb[0].mxu0 %v993
      %v1057 = vpop.f32.mrb[0].mxu0
      %v1058 = vadd.f32 0.0, %v1057
      %v1059 = vpop.f32.mrb[0].mxu0
      %v1060 = vpop.f32.mrb[0].mxu0
      %v1061 = vadd.f32 0.0, %v1060
      %v1062 = vpop.f32.mrb[0].mxu0
      %1063 = vdwg.mxu0
      %v1064 = vld [vmem:[%s8] sm:$0x1]
      %v1066 = vlaneseq
      %v1067 = vshrl.u32 %v1066, 7
      %v1068 = vsub.s32 0, %v1067
      %v1069 = vrot.slane %v1064, %v1068
      %v1071 = vmul.f32 %v1034, %v1069
      %v1072 = vmul.f32 %v1037, %v1069
      %v1073 = vmul.f32 %v1042, %v1069
      %v1074 = vmul.f32 %v1045, %v1069
      %v1075 = vmul.f32 %v1050, %v1069
      %v1076 = vmul.f32 %v1053, %v1069
      %v1077 = vmul.f32 %v1058, %v1069
      %v1078 = vmul.f32 %v1061, %v1069
      %v1079 = vld [vmem:[%s9] sm:$0x1]
      %v1081 = vlaneseq
      %v1082 = vshrl.u32 %v1081, 7
      %v1083 = vsub.s32 0, %v1082
      %v1084 = vrot.slane %v1079, %v1083
      %v1086 = vadd.f32 %v1071, %v1084
      %v1087 = vadd.f32 %v1072, %v1084
      %v1088 = vadd.f32 %v1073, %v1084
      %v1089 = vadd.f32 %v1074, %v1084
      %v1090 = vadd.f32 %v1075, %v1084
      %v1091 = vadd.f32 %v1076, %v1084
      %v1092 = vadd.f32 %v1077, %v1084
      %v1093 = vadd.f32 %v1078, %v1084
      %v1094 = vadd.f32 %v1086, 3.0
      %v1095 = vadd.f32 %v1087, 3.0
      %v1096 = vadd.f32 %v1088, 3.0
      %v1097 = vadd.f32 %v1089, 3.0
      %v1098 = vadd.f32 %v1090, 3.0
      %v1099 = vadd.f32 %v1091, 3.0
      %v1100 = vadd.f32 %v1092, 3.0
      %v1101 = vadd.f32 %v1093, 3.0
      %v1102 = vmax.f32 %v1094, 0.0
      %v1103 = vmax.f32 %v1095, 0.0
      %v1104 = vmax.f32 %v1096, 0.0
      %v1105 = vmax.f32 %v1097, 0.0
      %v1106 = vmax.f32 %v1098, 0.0
      %v1107 = vmax.f32 %v1099, 0.0
      %v1108 = vmax.f32 %v1100, 0.0
      %v1109 = vmax.f32 %v1101, 0.0
      %v1110 = vmin.f32 %v1102, 6.0
      %v1111 = vmin.f32 %v1103, 6.0
      %v1112 = vmin.f32 %v1104, 6.0
      %v1113 = vmin.f32 %v1105, 6.0
      %v1114 = vmin.f32 %v1106, 6.0
      %v1115 = vmin.f32 %v1107, 6.0
      %v1116 = vmin.f32 %v1108, 6.0
      %v1117 = vmin.f32 %v1109, 6.0
      %v1118 = vmul.f32 %v1086, %v1110
      %v1119 = vmul.f32 %v1087, %v1111
      %v1120 = vmul.f32 %v1088, %v1112
      %v1121 = vmul.f32 %v1089, %v1113
      %v1122 = vmul.f32 %v1090, %v1114
      %v1123 = vmul.f32 %v1091, %v1115
      %v1124 = vmul.f32 %v1092, %v1116
      %v1125 = vmul.f32 %v1093, %v1117
      %v1126 = vmul.f32 %v1118, 0.16666667
      %v1127 = vmul.f32 %v1119, 0.16666667
      %v1128 = vmul.f32 %v1120, 0.16666667
      %v1129 = vmul.f32 %v1121, 0.16666667
      %v1130 = vmul.f32 %v1122, 0.16666667
      %v1131 = vmul.f32 %v1123, 0.16666667
      %v1132 = vmul.f32 %v1124, 0.16666667
      %v1133 = vmul.f32 %v1125, 0.16666667
      %v1134 = vpack.c.bf16 %v1126, %v1126
      %v1135 = vpack.c.bf16 %v1127, %v1127
      %v1136 = vpack.c.bf16 %v1128, %v1128
      %v1137 = vpack.c.bf16 %v1129, %v1129
      %v1138 = vpack.c.bf16 %v1130, %v1130
      %v1139 = vpack.c.bf16 %v1131, %v1131
      %v1140 = vpack.c.bf16 %v1132, %v1132
      %v1141 = vpack.c.bf16 %v1133, %v1133
      %vm1142 = vcmask 27648
      %1143 = vst.msk [vmem:[%s441] sm:$0xf] %vm1142, %v1134
      %1144 = vst.msk [vmem:[%s441 + $0x4] sm:$0xf] %vm1142, %v1135
      %1145 = vst.msk [vmem:[%s441 + $0x8] sm:$0xf] %vm1142, %v1136
      %1146 = vst.msk [vmem:[%s441 + $0xc] sm:$0xf] %vm1142, %v1137
      %1147 = vst.msk [vmem:[%s441 + $0x10] sm:$0xf] %vm1142, %v1138
      %1148 = vst.msk [vmem:[%s441 + $0x14] sm:$0xf] %vm1142, %v1139
      %1149 = vst.msk [vmem:[%s441 + $0x18] sm:$0xf] %vm1142, %v1140
      %1150 = vst.msk [vmem:[%s441 + $0x1c] sm:$0xf] %vm1142, %v1141
      %s1151 = smul.u32 8, %s26
      %p1152 = scmp.lt.s32.totalorder %s25, 1
      %s1153 = scalar_select %p1152, %s25, 1
      %p1154 = scmp.lt.s32.totalorder %s1151, 7
      %s1155 = scalar_select %p1154, %s1151, 7
      %s1156 = smul.addr %s1153, 8
      %s1157 = sadd.s32 %s1155, %s1156
      %s1158 = smul.addr %s1157, 4
      %s1159 = scalar_lea.vmem %s10, %s1158
      // Predicated region
      $region61: #{esblock2_forward.6} parent=59 // pred_check
        %p1160 = pneg %p283
      $region62: #{esblock2_forward.6} parent=59 // pred_check_branch
        %1162 = sbr.rel (%p1160) target = $region64
      $region63: #{esblock2_forward.6} parent=59 // pred_region
        %s1163 = smul.u32 8, %s26
      $region64: #{esblock2_forward.6} parent=59 // pred_fallthru
        _
    $region60: #{esblock2_forward.6} parent=5 // pred_fallthru
      _
    %p1164 = scmp.le.s32.totalorder 2, %s16
    // Predicated region
    $region65: #{esblock2_forward.6} parent=5 // pred_check
      %p1165 = pneg %p1164
    $region66: #{esblock2_forward.6} parent=5 // pred_check_branch
      %1167 = sbr.rel (%p1165) target = $region68
    $region67: #{esblock2_forward.6} parent=5 // pred_region
      %s1168 = ssub.s32 %s16, 2
      // Predicated region
      $region69: #{esblock2_forward.6} parent=67 // pred_check
        %p1169 = pneg %p289
      $region70: #{esblock2_forward.6} parent=67 // pred_check_branch
        %1171 = sbr.rel (%p1169) target = $region72
      $region71: #{esblock2_forward.6} parent=67 // pred_region
        %s1172 = smul.u32 8, %s28
        %p1173 = scmp.lt.s32.totalorder %s27, 1
        %s1174 = scalar_select %p1173, %s27, 1
        %p1175 = scmp.lt.s32.totalorder %s1172, 7
        %s1176 = scalar_select %p1175, %s1172, 7
        %s1177 = smul.addr %s1174, 8
        %s1178 = sadd.s32 %s1176, %s1177
        %s1179 = smul.addr %s1178, 4
        %s1180 = scalar_lea.vmem %s10, %s1179
      $region72: #{esblock2_forward.6} parent=67 // pred_fallthru
        _
    $region68: #{esblock2_forward.6} parent=5 // pred_fallthru
      _
  $region6: #{esblock2_forward.6} parent=0 // loop_footer
    %s20 = sadd.s32 1, %s16
  $region7: #{esblock2_forward.6} parent=0 // loop_footer_branch
    %15 = sbr.rel target = $region3
  $region8: #{esblock2_forward.6} parent=0 // loop_exit
    _

// kernel: esblock2_forward.11
$region0: #{esblock2_forward.11}
  #allocation0 [shape = 'u32[]', space=smem, size = 0x4, offset = 0x4, fixed_abs, tag = 'smem constant byte address 0x4 - core index']
  #allocation1 [shape = 'u32[144,128]{1,0:T(1,128)}', space=vmem, size = 0x12000, scoped, tag = 'internal scratch']
  %s0 = inlined_call_operand.vmem [shape: bf16[2,10,10,4], index: 0, kind: input, shape index: {}]
  %s1 = inlined_call_operand.vmem [shape: bf16[2,10,10,4], index: 1, kind: input, shape index: {}]
  %s2 = inlined_call_operand.vmem [shape: f32[9,4], index: 2, kind: input, shape index: {}]
  %s3 = inlined_call_operand.vmem [shape: f32[1,4], index: 3, kind: input, shape index: {}]
  %s4 = inlined_call_operand.vmem [shape: f32[1,4], index: 4, kind: input, shape index: {}]
  %s5 = inlined_call_operand.vmem [shape: f32[9,4], index: 5, kind: input, shape index: {}]
  %s6 = inlined_call_operand.vmem [shape: f32[1,4], index: 6, kind: input, shape index: {}]
  %s7 = inlined_call_operand.vmem [shape: f32[1,4], index: 7, kind: input, shape index: {}]
  %s8 = inlined_call_operand.vmem [shape: bf16[4,8], index: 8, kind: input, shape index: {}]
  %s9 = inlined_call_operand.vmem [shape: bf16[4,8], index: 9, kind: input, shape index: {}]
  %s10 = inlined_call_operand.vmem [shape: f32[1,8], index: 10, kind: input, shape index: {}]
  %s11 = inlined_call_operand.vmem [shape: f32[1,8], index: 11, kind: input, shape index: {}]
  %s12 = inlined_call_operand.vmem [shape: bf16[2,8,8,8], index: 12, kind: output, shape index: {}]
  %s13 = sld [smem:[#allocation0]]
  $region81: #{esblock2_forward.11} parent=0
    _
  %s15 = ssub.s32 1, %s13
  %s16 = scalar_select 0, %s15, %s13
  loop: start=0, step=1, limit=4
  $region2: #{esblock2_forward.11} parent=0 // loop_pre_header
    _
  $region3: #{esblock2_forward.11} parent=0 // loop_header
    %s18 = sphi 0, %s22
    %p19 = scmp.ge.s32.totalorder %s18, 4
    %s25 = sphi 0, %s37
    %s26 = sphi 0, %s33
    %s27 = sphi 0, %s25
    %s28 = sphi 0, %s26
    %s29 = sphi 0, %s27
    %s30 = sphi 0, %s28
    %s40 = sphi 0, %s42
    %s43 = sphi 0, %s40
    %s44 = sphi 0, %s43
    %s60 = sphi 0, %s44
    %s66 = sphi 0, %s68
    %s69 = sphi 0, %s66
    %s70 = sphi 0, %s69
    %s86 = sphi 0, %s70
    %s90 = sphi 0, %s90
    %s92 = sphi 0, %s90
    %s93 = sphi 0, %s92
    %s107 = sphi 0, %s93
    %s111 = sphi 0, %s111
    %s113 = sphi 0, %s111
    %s114 = sphi 0, %s113
    %s128 = sphi 0, %s114
    %s132 = sphi 0, %s132
    %s134 = sphi 0, %s132
    %s135 = sphi 0, %s134
    %s149 = sphi 0, %s135
    %s153 = sphi 0, %s153
    %s155 = sphi 0, %s153
    %s156 = sphi 0, %s155
    %s170 = sphi 0, %s156
    %s174 = sphi 0, %s174
    %s176 = sphi 0, %s174
    %s177 = sphi 0, %s176
    %s191 = sphi 0, %s177
    %s195 = sphi 0, %s195
    %s197 = sphi 0, %s195
    %s198 = sphi 0, %s197
    %s212 = sphi 0, %s198
    %s216 = sphi 0, %s216
    %s218 = sphi 0, %s216
    %s219 = sphi 0, %s218
    %s233 = sphi 0, %s219
    %s237 = sphi 0, %s237
    %s239 = sphi 0, %s237
    %s240 = sphi 0, %s239
    %s254 = sphi 0, %s240
    %s258 = sphi 0, %s258
    %s260 = sphi 0, %s258
    %s261 = sphi 0, %s260
    %s275 = sphi 0, %s261
    %s279 = sphi 0, %s279
    %s281 = sphi 0, %s279
    %s282 = sphi 0, %s281
    %s296 = sphi 0, %s282
    %s304 = sphi 0, %s306
    %s307 = sphi 0, %s304
    %s308 = sphi 0, %s307
    %s324 = sphi 0, %s308
  $region4: #{esblock2_forward.11} parent=0 // loop_header_branch
    %21 = sbr.rel (%p19) target = $region8
  $region5: #{esblock2_forward.11} parent=0 // loop_body
    %s23 = ssub.s32 %s18, 1
    %s24 = ssub.s32 %s18, 2
    %s31 = sadd.s32 1, %s26
    %p32 = scmp.ge.s32.totalorder %s31, 1
    %s33 = scalar_select %p32, 0, %s31
    %s34 = sadd.s32 1, %s25
    %s35 = scalar_select %p32, %s34, %s25
    %p36 = scmp.ge.s32.totalorder %s35, 2
    %s37 = scalar_select %p36, 0, %s35
    %s38 = ssub.s32 %s25, %s37
    %p39 = scmp.eq.s32.totalorder %s38, 0
    %s41 = sadd.s32 %s40, 1
    %s42 = scalar_select %p39, %s40, %s41
    %p45 = pneg %p39
    %p46 = scmp.eq.s32.totalorder %s18, 1
    %p47 = por %p45, %p46
    %p48 = scmp.ne.s32.totalorder %s40, %s43
    %p49 = scmp.eq.s32.totalorder %s18, 0
    %p50 = por %p48, %p49
    %p51 = scmp.ne.s32.totalorder %s40, %s43
    %p52 = scmp.eq.s32.totalorder %s23, 1
    %p53 = por %p51, %p52
    %p54 = scmp.ne.s32.totalorder %s43, %s44
    %p55 = scmp.eq.s32.totalorder %s23, 0
    %p56 = por %p54, %p55
    %p57 = scmp.ne.s32.totalorder %s43, %s44
    %p58 = scmp.eq.s32.totalorder %s24, 1
    %p59 = por %p57, %p58
    %p61 = scmp.ne.s32.totalorder %s44, %s60
    %p62 = scmp.eq.s32.totalorder %s24, 0
    %p63 = por %p61, %p62
    %s64 = ssub.s32 %s25, %s37
    %p65 = scmp.eq.s32.totalorder %s64, 0
    %s67 = sadd.s32 %s66, 1
    %s68 = scalar_select %p65, %s66, %s67
    %p71 = pneg %p65
    %p72 = scmp.eq.s32.totalorder %s18, 1
    %p73 = por %p71, %p72
    %p74 = scmp.ne.s32.totalorder %s66, %s69
    %p75 = scmp.eq.s32.totalorder %s18, 0
    %p76 = por %p74, %p75
    %p77 = scmp.ne.s32.totalorder %s66, %s69
    %p78 = scmp.eq.s32.totalorder %s23, 1
    %p79 = por %p77, %p78
    %p80 = scmp.ne.s32.totalorder %s69, %s70
    %p81 = scmp.eq.s32.totalorder %s23, 0
    %p82 = por %p80, %p81
    %p83 = scmp.ne.s32.totalorder %s69, %s70
    %p84 = scmp.eq.s32.totalorder %s24, 1
    %p85 = por %p83, %p84
    %p87 = scmp.ne.s32.totalorder %s70, %s86
    %p88 = scmp.eq.s32.totalorder %s24, 0
    %p89 = por %p87, %p88
    %s91 = sadd.s32 %s90, 1
    %p94 = scmp.eq.s32.totalorder %s18, 1
    %p95 = scmp.ne.s32.totalorder %s90, %s92
    %p96 = scmp.eq.s32.totalorder %s18, 0
    %p97 = por %p95, %p96
    %p98 = scmp.ne.s32.totalorder %s90, %s92
    %p99 = scmp.eq.s32.totalorder %s23, 1
    %p100 = por %p98, %p99
    %p101 = scmp.ne.s32.totalorder %s92, %s93
    %p102 = scmp.eq.s32.totalorder %s23, 0
    %p103 = por %p101, %p102
    %p104 = scmp.ne.s32.totalorder %s92, %s93
    %p105 = scmp.eq.s32.totalorder %s24, 1
    %p106 = por %p104, %p105
    %p108 = scmp.ne.s32.totalorder %s93, %s107
    %p109 = scmp.eq.s32.totalorder %s24, 0
    %p110 = por %p108, %p109
    %s112 = sadd.s32 %s111, 1
    %p115 = scmp.eq.s32.totalorder %s18, 1
    %p116 = scmp.ne.s32.totalorder %s111, %s113
    %p117 = scmp.eq.s32.totalorder %s18, 0
    %p118 = por %p116, %p117
    %p119 = scmp.ne.s32.totalorder %s111, %s113
    %p120 = scmp.eq.s32.totalorder %s23, 1
    %p121 = por %p119, %p120
    %p122 = scmp.ne.s32.totalorder %s113, %s114
    %p123 = scmp.eq.s32.totalorder %s23, 0
    %p124 = por %p122, %p123
    %p125 = scmp.ne.s32.totalorder %s113, %s114
    %p126 = scmp.eq.s32.totalorder %s24, 1
    %p127 = por %p125, %p126
    %p129 = scmp.ne.s32.totalorder %s114, %s128
    %p130 = scmp.eq.s32.totalorder %s24, 0
    %p131 = por %p129, %p130
    %s133 = sadd.s32 %s132, 1
    %p136 = scmp.eq.s32.totalorder %s18, 1
    %p137 = scmp.ne.s32.totalorder %s132, %s134
    %p138 = scmp.eq.s32.totalorder %s18, 0
    %p139 = por %p137, %p138
    %p140 = scmp.ne.s32.totalorder %s132, %s134
    %p141 = scmp.eq.s32.totalorder %s23, 1
    %p142 = por %p140, %p141
    %p143 = scmp.ne.s32.totalorder %s134, %s135
    %p144 = scmp.eq.s32.totalorder %s23, 0
    %p145 = por %p143, %p144
    %p146 = scmp.ne.s32.totalorder %s134, %s135
    %p147 = scmp.eq.s32.totalorder %s24, 1
    %p148 = por %p146, %p147
    %p150 = scmp.ne.s32.totalorder %s135, %s149
    %p151 = scmp.eq.s32.totalorder %s24, 0
    %p152 = por %p150, %p151
    %s154 = sadd.s32 %s153, 1
    %p157 = scmp.eq.s32.totalorder %s18, 1
    %p158 = scmp.ne.s32.totalorder %s153, %s155
    %p159 = scmp.eq.s32.totalorder %s18, 0
    %p160 = por %p158, %p159
    %p161 = scmp.ne.s32.totalorder %s153, %s155
    %p162 = scmp.eq.s32.totalorder %s23, 1
    %p163 = por %p161, %p162
    %p164 = scmp.ne.s32.totalorder %s155, %s156
    %p165 = scmp.eq.s32.totalorder %s23, 0
    %p166 = por %p164, %p165
    %p167 = scmp.ne.s32.totalorder %s155, %s156
    %p168 = scmp.eq.s32.totalorder %s24, 1
    %p169 = por %p167, %p168
    %p171 = scmp.ne.s32.totalorder %s156, %s170
    %p172 = scmp.eq.s32.totalorder %s24, 0
    %p173 = por %p171, %p172
    %s175 = sadd.s32 %s174, 1
    %p178 = scmp.eq.s32.totalorder %s18, 1
    %p179 = scmp.ne.s32.totalorder %s174, %s176
    %p180 = scmp.eq.s32.totalorder %s18, 0
    %p181 = por %p179, %p180
    %p182 = scmp.ne.s32.totalorder %s174, %s176
    %p183 = scmp.eq.s32.totalorder %s23, 1
    %p184 = por %p182, %p183
    %p185 = scmp.ne.s32.totalorder %s176, %s177
    %p186 = scmp.eq.s32.totalorder %s23, 0
    %p187 = por %p185, %p186
    %p188 = scmp.ne.s32.totalorder %s176, %s177
    %p189 = scmp.eq.s32.totalorder %s24, 1
    %p190 = por %p188, %p189
    %p192 = scmp.ne.s32.totalorder %s177, %s191
    %p193 = scmp.eq.s32.totalorder %s24, 0
    %p194 = por %p192, %p193
    %s196 = sadd.s32 %s195, 1
    %p199 = scmp.eq.s32.totalorder %s18, 1
    %p200 = scmp.ne.s32.totalorder %s195, %s197
    %p201 = scmp.eq.s32.totalorder %s18, 0
    %p202 = por %p200, %p201
    %p203 = scmp.ne.s32.totalorder %s195, %s197
    %p204 = scmp.eq.s32.totalorder %s23, 1
    %p205 = por %p203, %p204
    %p206 = scmp.ne.s32.totalorder %s197, %s198
    %p207 = scmp.eq.s32.totalorder %s23, 0
    %p208 = por %p206, %p207
    %p209 = scmp.ne.s32.totalorder %s197, %s198
    %p210 = scmp.eq.s32.totalorder %s24, 1
    %p211 = por %p209, %p210
    %p213 = scmp.ne.s32.totalorder %s198, %s212
    %p214 = scmp.eq.s32.totalorder %s24, 0
    %p215 = por %p213, %p214
    %s217 = sadd.s32 %s216, 1
    %p220 = scmp.eq.s32.totalorder %s18, 1
    %p221 = scmp.ne.s32.totalorder %s216, %s218
    %p222 = scmp.eq.s32.totalorder %s18, 0
    %p223 = por %p221, %p222
    %p224 = scmp.ne.s32.totalorder %s216, %s218
    %p225 = scmp.eq.s32.totalorder %s23, 1
    %p226 = por %p224, %p225
    %p227 = scmp.ne.s32.totalorder %s218, %s219
    %p228 = scmp.eq.s32.totalorder %s23, 0
    %p229 = por %p227, %p228
    %p230 = scmp.ne.s32.totalorder %s218, %s219
    %p231 = scmp.eq.s32.totalorder %s24, 1
    %p232 = por %p230, %p231
    %p234 = scmp.ne.s32.totalorder %s219, %s233
    %p235 = scmp.eq.s32.totalorder %s24, 0
    %p236 = por %p234, %p235
    %s238 = sadd.s32 %s237, 1
    %p241 = scmp.eq.s32.totalorder %s18, 1
    %p242 = scmp.ne.s32.totalorder %s237, %s239
    %p243 = scmp.eq.s32.totalorder %s18, 0
    %p244 = por %p242, %p243
    %p245 = scmp.ne.s32.totalorder %s237, %s239
    %p246 = scmp.eq.s32.totalorder %s23, 1
    %p247 = por %p245, %p246
    %p248 = scmp.ne.s32.totalorder %s239, %s240
    %p249 = scmp.eq.s32.totalorder %s23, 0
    %p250 = por %p248, %p249
    %p251 = scmp.ne.s32.totalorder %s239, %s240
    %p252 = scmp.eq.s32.totalorder %s24, 1
    %p253 = por %p251, %p252
    %p255 = scmp.ne.s32.totalorder %s240, %s254
    %p256 = scmp.eq.s32.totalorder %s24, 0
    %p257 = por %p255, %p256
    %s259 = sadd.s32 %s258, 1
    %p262 = scmp.eq.s32.totalorder %s18, 1
    %p263 = scmp.ne.s32.totalorder %s258, %s260
    %p264 = scmp.eq.s32.totalorder %s18, 0
    %p265 = por %p263, %p264
    %p266 = scmp.ne.s32.totalorder %s258, %s260
    %p267 = scmp.eq.s32.totalorder %s23, 1
    %p268 = por %p266, %p267
    %p269 = scmp.ne.s32.totalorder %s260, %s261
    %p270 = scmp.eq.s32.totalorder %s23, 0
    %p271 = por %p269, %p270
    %p272 = scmp.ne.s32.totalorder %s260, %s261
    %p273 = scmp.eq.s32.totalorder %s24, 1
    %p274 = por %p272, %p273
    %p276 = scmp.ne.s32.totalorder %s261, %s275
    %p277 = scmp.eq.s32.totalorder %s24, 0
    %p278 = por %p276, %p277
    %s280 = sadd.s32 %s279, 1
    %p283 = scmp.eq.s32.totalorder %s18, 1
    %p284 = scmp.ne.s32.totalorder %s279, %s281
    %p285 = scmp.eq.s32.totalorder %s18, 0
    %p286 = por %p284, %p285
    %p287 = scmp.ne.s32.totalorder %s279, %s281
    %p288 = scmp.eq.s32.totalorder %s23, 1
    %p289 = por %p287, %p288
    %p290 = scmp.ne.s32.totalorder %s281, %s282
    %p291 = scmp.eq.s32.totalorder %s23, 0
    %p292 = por %p290, %p291
    %p293 = scmp.ne.s32.totalorder %s281, %s282
    %p294 = scmp.eq.s32.totalorder %s24, 1
    %p295 = por %p293, %p294
    %p297 = scmp.ne.s32.totalorder %s282, %s296
    %p298 = scmp.eq.s32.totalorder %s24, 0
    %p299 = por %p297, %p298
    %s300 = ssub.s32 %s25, %s37
    %s301 = ssub.s32 %s26, %s33
    %s302 = sor.u32 %s300, %s301
    %p303 = scmp.eq.s32.totalorder %s302, 0
    %s305 = sadd.s32 %s304, 1
    %s306 = scalar_select %p303, %s304, %s305
    %p309 = pneg %p303
    %p310 = scmp.eq.s32.totalorder %s18, 1
    %p311 = por %p309, %p310
    %p312 = scmp.ne.s32.totalorder %s304, %s307
    %p313 = scmp.eq.s32.totalorder %s18, 0
    %p314 = por %p312, %p313
    %p315 = scmp.ne.s32.totalorder %s304, %s307
    %p316 = scmp.eq.s32.totalorder %s23, 1
    %p317 = por %p315, %p316
    %p318 = scmp.ne.s32.totalorder %s307, %s308
    %p319 = scmp.eq.s32.totalorder %s23, 0
    %p320 = por %p318, %p319
    %p321 = scmp.ne.s32.totalorder %s307, %s308
    %p322 = scmp.eq.s32.totalorder %s24, 1
    %p323 = por %p321, %p322
    %p325 = scmp.ne.s32.totalorder %s308, %s324
    %p326 = scmp.eq.s32.totalorder %s24, 0
    %p327 = por %p325, %p326
    %p328 = scmp.le.s32.totalorder 1, %s18
    %p329 = scmp.lt.s32.totalorder %s18, 3
    %p330 = pnand %p328, %p329
    %p331 = pneg %p330
    // Predicated region
    $region9: #{esblock2_forward.11} parent=5 // pred_check
      _
    $region10: #{esblock2_forward.11} parent=5 // pred_check_branch
      %333 = sbr.rel (%p330) target = $region12
    $region11: #{esblock2_forward.11} parent=5 // pred_region
      %s334 = ssub.s32 %s18, 1
      // Predicated region
      $region13: #{esblock2_forward.11} parent=11 // pred_check
        %p335 = pneg %p103
      $region14: #{esblock2_forward.11} parent=11 // pred_check_branch
        %337 = sbr.rel (%p335) target = $region16
      $region15: #{esblock2_forward.11} parent=11 // pred_region
        _
      $region16: #{esblock2_forward.11} parent=11 // pred_fallthru
        _
      // Predicated region
      $region17: #{esblock2_forward.11} parent=11 // pred_check
        %p338 = pneg %p124
      $region18: #{esblock2_forward.11} parent=11 // pred_check_branch
        %340 = sbr.rel (%p338) target = $region20
      $region19: #{esblock2_forward.11} parent=11 // pred_region
        _
      $region20: #{esblock2_forward.11} parent=11 // pred_fallthru
        _
      // Predicated region
      $region21: #{esblock2_forward.11} parent=11 // pred_check
        %p341 = pneg %p145
      $region22: #{esblock2_forward.11} parent=11 // pred_check_branch
        %343 = sbr.rel (%p341) target = $region24
      $region23: #{esblock2_forward.11} parent=11 // pred_region
        _
      $region24: #{esblock2_forward.11} parent=11 // pred_fallthru
        _
      // Predicated region
      $region25: #{esblock2_forward.11} parent=11 // pred_check
        %p344 = pneg %p166
      $region26: #{esblock2_forward.11} parent=11 // pred_check_branch
        %346 = sbr.rel (%p344) target = $region28
      $region27: #{esblock2_forward.11} parent=11 // pred_region
        _
      $region28: #{esblock2_forward.11} parent=11 // pred_fallthru
        _
      // Predicated region
      $region29: #{esblock2_forward.11} parent=11 // pred_check
        %p347 = pneg %p187
      $region30: #{esblock2_forward.11} parent=11 // pred_check_branch
        %349 = sbr.rel (%p347) target = $region32
      $region31: #{esblock2_forward.11} parent=11 // pred_region
        _
      $region32: #{esblock2_forward.11} parent=11 // pred_fallthru
        _
      // Predicated region
      $region33: #{esblock2_forward.11} parent=11 // pred_check
        %p350 = pneg %p208
      $region34: #{esblock2_forward.11} parent=11 // pred_check_branch
        %352 = sbr.rel (%p350) target = $region36
      $region35: #{esblock2_forward.11} parent=11 // pred_region
        _
      $region36: #{esblock2_forward.11} parent=11 // pred_fallthru
        _
      // Predicated region
      $region37: #{esblock2_forward.11} parent=11 // pred_check
        %p353 = pneg %p229
      $region38: #{esblock2_forward.11} parent=11 // pred_check_branch
        %355 = sbr.rel (%p353) target = $region40
      $region39: #{esblock2_forward.11} parent=11 // pred_region
        _
      $region40: #{esblock2_forward.11} parent=11 // pred_fallthru
        _
      // Predicated region
      $region41: #{esblock2_forward.11} parent=11 // pred_check
        %p356 = pneg %p250
      $region42: #{esblock2_forward.11} parent=11 // pred_check_branch
        %358 = sbr.rel (%p356) target = $region44
      $region43: #{esblock2_forward.11} parent=11 // pred_region
        _
      $region44: #{esblock2_forward.11} parent=11 // pred_fallthru
        _
      // Predicated region
      $region45: #{esblock2_forward.11} parent=11 // pred_check
        %p359 = pneg %p271
      $region46: #{esblock2_forward.11} parent=11 // pred_check_branch
        %361 = sbr.rel (%p359) target = $region48
      $region47: #{esblock2_forward.11} parent=11 // pred_region
        _
      $region48: #{esblock2_forward.11} parent=11 // pred_fallthru
        _
      // Predicated region
      $region49: #{esblock2_forward.11} parent=11 // pred_check
        %p362 = pneg %p292
      $region50: #{esblock2_forward.11} parent=11 // pred_check_branch
        %364 = sbr.rel (%p362) target = $region52
      $region51: #{esblock2_forward.11} parent=11 // pred_region
        _
      $region52: #{esblock2_forward.11} parent=11 // pred_fallthru
        _
    $region12: #{esblock2_forward.11} parent=5 // pred_fallthru
      _
    %p365 = scmp.lt.s32.totalorder %s18, 2
    // Predicated region
    $region53: #{esblock2_forward.11} parent=5 // pred_check
      %p366 = pneg %p365
    $region54: #{esblock2_forward.11} parent=5 // pred_check_branch
      %368 = sbr.rel (%p366) target = $region56
    $region55: #{esblock2_forward.11} parent=5 // pred_region
      // Predicated region
      $region57: #{esblock2_forward.11} parent=55 // pred_check
        %p369 = pneg %p50
      $region58: #{esblock2_forward.11} parent=55 // pred_check_branch
        %371 = sbr.rel (%p369) target = $region60
      $region59: #{esblock2_forward.11} parent=55 // pred_region
        %p372 = scmp.lt.s32.totalorder %s25, 1
        %s373 = scalar_select %p372, %s25, 1
        %s374 = smul.addr %s373, 20
        %s375 = smul.addr %s374, 4
        %s376 = scalar_lea.vmem %s0, %s375
      $region60: #{esblock2_forward.11} parent=55 // pred_fallthru
        _
      // Predicated region
      $region61: #{esblock2_forward.11} parent=55 // pred_check
        %p377 = pneg %p76
      $region62: #{esblock2_forward.11} parent=55 // pred_check_branch
        %379 = sbr.rel (%p377) target = $region64
      $region63: #{esblock2_forward.11} parent=55 // pred_region
        %p380 = scmp.lt.s32.totalorder %s25, 1
        %s381 = scalar_select %p380, %s25, 1
        %s382 = smul.addr %s381, 20
        %s383 = smul.addr %s382, 4
        %s384 = scalar_lea.vmem %s1, %s383
      $region64: #{esblock2_forward.11} parent=55 // pred_fallthru
        _
    $region56: #{esblock2_forward.11} parent=5 // pred_fallthru
      _
    %p385 = scmp.le.s32.totalorder 1, %s18
    %p386 = scmp.lt.s32.totalorder %s18, 3
    %p387 = pnand %p385, %p386
    %p388 = pneg %p387
    // Predicated region
    $region65: #{esblock2_forward.11} parent=5 // pred_check
      _
    $region66: #{esblock2_forward.11} parent=5 // pred_check_branch
      %390 = sbr.rel (%p387) target = $region68
    $region67: #{esblock2_forward.11} parent=5 // pred_region
      %s391 = ssub.s32 %s18, 1
      %p392 = scmp.lt.s32.totalorder %s27, 1
      %s393 = scalar_select %p392, %s27, 1
      %s394 = smul.addr %s393, 20
      %s395 = smul.addr %s394, 4
      %s396 = scalar_lea.vmem %s0, %s395
      %p397 = pneg %p56
      %p398 = pneg %p53
      %p399 = scmp.lt.s32.totalorder %s27, 1
      %s400 = scalar_select %p399, %s27, 1
      %s401 = smul.addr %s400, 20
      %s402 = smul.addr %s401, 4
      %s403 = scalar_lea.vmem %s1, %s402
      %p404 = pneg %p82
      %p405 = pneg %p79
      %p406 = pneg %p103
      %p407 = pneg %p100
      %p408 = pneg %p124
      %p409 = pneg %p121
      %p410 = pneg %p145
      %p411 = pneg %p142
      %p412 = pneg %p166
      %p413 = pneg %p163
      %p414 = pneg %p187
      %p415 = pneg %p184
      %p416 = pneg %p208
      %p417 = pneg %p205
      %p418 = pneg %p229
      %p419 = pneg %p226
      %p420 = pneg %p250
      %p421 = pneg %p247
      %p422 = pneg %p271
      %p423 = pneg %p268
      %p424 = pneg %p292
      %p425 = pneg %p289
      %p426 = pneg %p320
      %p427 = pneg %p317
      %s428 = smul.u32 8, %s28
      %p429 = scmp.lt.s32.totalorder %s27, 1
      %s430 = scalar_select %p429, %s27, 1
      %p431 = scmp.lt.s32.totalorder %s428, 7
      %s432 = scalar_select %p431, %s428, 7
      %s433 = smul.addr %s430, 8
      %s434 = sadd.s32 %s432, %s433
      %s435 = smul.addr %s434, 4
      %s436 = scalar_lea.vmem %s12, %s435
      %p437 = scmp.lt.s32.totalorder %s27, 1
      %s438 = scalar_select %p437, %s27, 1
      %s439 = smul.addr %s438, 20
      %s440 = smul.addr %s439, 4
      %s441 = scalar_lea.vmem %s0, %s440
      %p442 = scmp.lt.s32.totalorder %s27, 1
      %s443 = scalar_select %p442, %s27, 1
      %s444 = smul.addr %s443, 20
      %s445 = smul.addr %s444, 4
      %s446 = scalar_lea.vmem %s1, %s445
      %s447 = smul.u32 8, %s28
      %p448 = scmp.lt.s32.totalorder %s27, 1
      %s449 = scalar_select %p448, %s27, 1
      %p450 = scmp.lt.s32.totalorder %s447, 7
      %s451 = scalar_select %p450, %s447, 7
      %s452 = smul.addr %s449, 8
      %s453 = sadd.s32 %s451, %s452
      %s454 = smul.addr %s453, 4
      %s455 = scalar_lea.vmem %s12, %s454
      %s456 = smul.u32 8, %s28
      %s458 = smul.u32 %s28, 8
      %v459 = vld [vmem:[%s2] sm:$0xff]
      %v460 = vld [vmem:[%s2 + $0x8] sm:$0x1]
      %v461 = vld [vmem:[%s3] sm:$0x1]
      %v462 = vld [vmem:[%s4] sm:$0x1]
      %s463 = smul.u32 %s458, 2
      %s464 = smul.addr %s463, 4
      %s465 = scalar_lea.vmem %s441, %s464
      %v466 = vld [vmem:[%s465] sm:$0xf]
      %v467 = vld [vmem:[%s465 + $0x8] sm:$0xf]
      %v468 = vld [vmem:[%s465 + $0x10] sm:$0xf]
      %v469 = vld [vmem:[%s465 + $0x18] sm:$0xf]
      %v470 = vld [vmem:[%s465 + $0x20] sm:$0xf]
      %v471 = vld [vmem:[%s465 + $0x28] sm:$0xf]
      %v472 = vld [vmem:[%s465 + $0x30] sm:$0xf]
      %v473 = vld [vmem:[%s465 + $0x38] sm:$0xf]
      %v474 = vunpack.c.l.bf16 %v466
      %v475 = vunpack.c.l.bf16 %v467
      %v476 = vunpack.c.l.bf16 %v468
      %v477 = vunpack.c.l.bf16 %v469
      %v478 = vunpack.c.l.bf16 %v470
      %v479 = vunpack.c.l.bf16 %v471
      %v480 = vunpack.c.l.bf16 %v472
      %v481 = vunpack.c.l.bf16 %v473
      %v482 = vlaneseq
      %v483 = vshrl.u32 %v482, 7
      %v484 = vsub.s32 0, %v483
      %v485 = vrot.slane %v459, %v484
      %v486 = vmul.f32 %v474, %v485
      %v487 = vmul.f32 %v475, %v485
      %v488 = vmul.f32 %v476, %v485
      %v489 = vmul.f32 %v477, %v485
      %v490 = vmul.f32 %v478, %v485
      %v491 = vmul.f32 %v479, %v485
      %v492 = vmul.f32 %v480, %v485
      %v493 = vmul.f32 %v481, %v485
      %v494 = vld [vmem:[%s465 + $0x4] sm:$0x1]
      %v495 = vld [vmem:[%s465 + $0xc] sm:$0x1]
      %v496 = vld [vmem:[%s465 + $0x14] sm:$0x1]
      %v497 = vld [vmem:[%s465 + $0x1c] sm:$0x1]
      %v498 = vld [vmem:[%s465 + $0x24] sm:$0x1]
      %v499 = vld [vmem:[%s465 + $0x2c] sm:$0x1]
      %v500 = vld [vmem:[%s465 + $0x34] sm:$0x1]
      %v501 = vld [vmem:[%s465 + $0x3c] sm:$0x1]
      %v502 = vunpack.c.l.bf16 %v494
      %v503 = vunpack.c.l.bf16 %v495
      %v504 = vunpack.c.l.bf16 %v496
      %v505 = vunpack.c.l.bf16 %v497
      %v506 = vunpack.c.l.bf16 %v498
      %v507 = vunpack.c.l.bf16 %v499
      %v508 = vunpack.c.l.bf16 %v500
      %v509 = vunpack.c.l.bf16 %v501
      %v510 = vlaneseq
      %v511 = vshrl.u32 %v510, 7
      %v512 = vsub.s32 1, %v511
      %v513 = vrot.slane %v459, %v512
      %v514 = vmul.f32 %v474, %v513
      %v515 = vmul.f32 %v502, %v513
      %v516 = vmul.f32 %v475, %v513
      %v517 = vmul.f32 %v503, %v513
      %v518 = vmul.f32 %v476, %v513
      %v519 = vmul.f32 %v504, %v513
      %v520 = vmul.f32 %v477, %v513
      %v521 = vmul.f32 %v505, %v513
      %v522 = vmul.f32 %v478, %v513
      %v523 = vmul.f32 %v506, %v513
      %v524 = vmul.f32 %v479, %v513
      %v525 = vmul.f32 %v507, %v513
      %v526 = vmul.f32 %v480, %v513
      %v527 = vmul.f32 %v508, %v513
      %v528 = vmul.f32 %v481, %v513
      %v529 = vmul.f32 %v509, %v513
      %vm546 = vcmask 1046528
      %v547 = vrot.slane %v514, 1
      %v548 = vrot.slane %v515, 1
      %v549 = vsel %vm546, %v547, %v548
      %v550 = vrot.slane %v516, 1
      %v551 = vrot.slane %v517, 1
      %v552 = vsel %vm546, %v550, %v551
      %v553 = vrot.slane %v518, 1
      %v554 = vrot.slane %v519, 1
      %v555 = vsel %vm546, %v553, %v554
      %v556 = vrot.slane %v520, 1
      %v557 = vrot.slane %v521, 1
      %v558 = vsel %vm546, %v556, %v557
      %v559 = vrot.slane %v522, 1
      %v560 = vrot.slane %v523, 1
      %v561 = vsel %vm546, %v559, %v560
      %v562 = vrot.slane %v524, 1
      %v563 = vrot.slane %v525, 1
      %v564 = vsel %vm546, %v562, %v563
      %v565 = vrot.slane %v526, 1
      %v566 = vrot.slane %v527, 1
      %v567 = vsel %vm546, %v565, %v566
      %v568 = vrot.slane %v528, 1
      %v569 = vrot.slane %v529, 1
      %v570 = vsel %vm546, %v568, %v569
      %v579 = vadd.f32 %v486, %v549
      %v580 = vadd.f32 %v487, %v552
      %v581 = vadd.f32 %v488, %v555
      %v582 = vadd.f32 %v489, %v558
      %v583 = vadd.f32 %v490, %v561
      %v584 = vadd.f32 %v491, %v564
      %v585 = vadd.f32 %v492, %v567
      %v586 = vadd.f32 %v493, %v570
      %v587 = vld [vmem:[%s465] sm:$0xe]
      %v588 = vld [vmem:[%s465 + $0x8] sm:$0xe]
      %v589 = vld [vmem:[%s465 + $0x10] sm:$0xe]
      %v590 = vld [vmem:[%s465 + $0x18] sm:$0xe]
      %v591 = vld [vmem:[%s465 + $0x20] sm:$0xe]
      %v592 = vld [vmem:[%s465 + $0x28] sm:$0xe]
      %v593 = vld [vmem:[%s465 + $0x30] sm:$0xe]
      %v594 = vld [vmem:[%s465 + $0x38] sm:$0xe]
      %v595 = vunpack.c.l.bf16 %v587
      %v596 = vunpack.c.l.bf16 %v588
      %v597 = vunpack.c.l.bf16 %v589
      %v598 = vunpack.c.l.bf16 %v590
      %v599 = vunpack.c.l.bf16 %v591
      %v600 = vunpack.c.l.bf16 %v592
      %v601 = vunpack.c.l.bf16 %v593
      %v602 = vunpack.c.l.bf16 %v594
      %v603 = vlaneseq
      %v604 = vshrl.u32 %v603, 7
      %v605 = vsub.s32 2, %v604
      %v606 = vrot.slane %v459, %v605
      %v607 = vmul.f32 %v595, %v606
      %v608 = vmul.f32 %v502, %v606
      %v609 = vmul.f32 %v596, %v606
      %v610 = vmul.f32 %v503, %v606
      %v611 = vmul.f32 %v597, %v606
      %v612 = vmul.f32 %v504, %v606
      %v613 = vmul.f32 %v598, %v606
      %v614 = vmul.f32 %v505, %v606
      %v615 = vmul.f32 %v599, %v606
      %v616 = vmul.f32 %v506, %v606
      %v617 = vmul.f32 %v600, %v606
      %v618 = vmul.f32 %v507, %v606
      %v619 = vmul.f32 %v601, %v606
      %v620 = vmul.f32 %v508, %v606
      %v621 = vmul.f32 %v602, %v606
      %v622 = vmul.f32 %v509, %v606
      %vm639 = vcmask 1045504
      %v640 = vrot.slane %v607, 2
      %v641 = vrot.slane %v608, 2
      %v642 = vsel %vm639, %v640, %v641
      %v643 = vrot.slane %v609, 2
      %v644 = vrot.slane %v610, 2
      %v645 = vsel %vm639, %v643, %v644
      %v646 = vrot.slane %v611, 2
      %v647 = vrot.slane %v612, 2
      %v648 = vsel %vm639, %v646, %v647
      %v649 = vrot.slane %v613, 2
      %v650 = vrot.slane %v614, 2
      %v651 = vsel %vm639, %v649, %v650
      %v652 = vrot.slane %v615, 2
      %v653 = vrot.slane %v616, 2
      %v654 = vsel %vm639, %v652, %v653
      %v655 = vrot.slane %v617, 2
      %v656 = vrot.slane %v618, 2
      %v657 = vsel %vm639, %v655, %v656
      %v658 = vrot.slane %v619, 2
      %v659 = vrot.slane %v620, 2
      %v660 = vsel %vm639, %v658, %v659
      %v661 = vrot.slane %v621, 2
      %v662 = vrot.slane %v622, 2
      %v663 = vsel %vm639, %v661, %v662
      %v672 = vadd.f32 %v579, %v642
      %v673 = vadd.f32 %v580, %v645
      %v674 = vadd.f32 %v581, %v648
      %v675 = vadd.f32 %v582, %v651
      %v676 = vadd.f32 %v583, %v654
      %v677 = vadd.f32 %v584, %v657
      %v678 = vadd.f32 %v585, %v660
      %v679 = vadd.f32 %v586, %v663
      %s680 = sadd.s32 %s458, 1
      %s681 = smul.u32 %s680, 2
      %s682 = smul.addr %s681, 4
      %s683 = scalar_lea.vmem %s441, %s682
      %v684 = vld [vmem:[%s683] sm:$0xf]
      %v685 = vld [vmem:[%s683 + $0x8] sm:$0xf]
      %v686 = vld [vmem:[%s683 + $0x10] sm:$0xf]
      %v687 = vld [vmem:[%s683 + $0x18] sm:$0xf]
      %v688 = vld [vmem:[%s683 + $0x20] sm:$0xf]
      %v689 = vld [vmem:[%s683 + $0x28] sm:$0xf]
      %v690 = vld [vmem:[%s683 + $0x30] sm:$0xf]
      %v691 = vld [vmem:[%s683 + $0x38] sm:$0xf]
      %v692 = vunpack.c.l.bf16 %v684
      %v693 = vunpack.c.l.bf16 %v685
      %v694 = vunpack.c.l.bf16 %v686
      %v695 = vunpack.c.l.bf16 %v687
      %v696 = vunpack.c.l.bf16 %v688
      %v697 = vunpack.c.l.bf16 %v689
      %v698 = vunpack.c.l.bf16 %v690
      %v699 = vunpack.c.l.bf16 %v691
      %v700 = vlaneseq
      %v701 = vshrl.u32 %v700, 7
      %v702 = vsub.s32 3, %v701
      %v703 = vrot.slane %v459, %v702
      %v704 = vmul.f32 %v692, %v703
      %v705 = vmul.f32 %v693, %v703
      %v706 = vmul.f32 %v694, %v703
      %v707 = vmul.f32 %v695, %v703
      %v708 = vmul.f32 %v696, %v703
      %v709 = vmul.f32 %v697, %v703
      %v710 = vmul.f32 %v698, %v703
      %v711 = vmul.f32 %v699, %v703
      %v712 = vadd.f32 %v672, %v704
      %v713 = vadd.f32 %v673, %v705
      %v714 = vadd.f32 %v674, %v706
      %v715 = vadd.f32 %v675, %v707
      %v716 = vadd.f32 %v676, %v708
      %v717 = vadd.f32 %v677, %v709
      %v718 = vadd.f32 %v678, %v710
      %v719 = vadd.f32 %v679, %v711
      %v720 = vld [vmem:[%s683 + $0x4] sm:$0x1]
      %v721 = vld [vmem:[%s683 + $0xc] sm:$0x1]
      %v722 = vld [vmem:[%s683 + $0x14] sm:$0x1]
      %v723 = vld [vmem:[%s683 + $0x1c] sm:$0x1]
      %v724 = vld [vmem:[%s683 + $0x24] sm:$0x1]
      %v725 = vld [vmem:[%s683 + $0x2c] sm:$0x1]
      %v726 = vld [vmem:[%s683 + $0x34] sm:$0x1]
      %v727 = vld [vmem:[%s683 + $0x3c] sm:$0x1]
      %v728 = vunpack.c.l.bf16 %v720
      %v729 = vunpack.c.l.bf16 %v721
      %v730 = vunpack.c.l.bf16 %v722
      %v731 = vunpack.c.l.bf16 %v723
      %v732 = vunpack.c.l.bf16 %v724
      %v733 = vunpack.c.l.bf16 %v725
      %v734 = vunpack.c.l.bf16 %v726
      %v735 = vunpack.c.l.bf16 %v727
      %v736 = vlaneseq
      %v737 = vshrl.u32 %v736, 7
      %v738 = vsub.s32 4, %v737
      %v739 = vrot.slane %v459, %v738
      %v740 = vmul.f32 %v692, %v739
      %v741 = vmul.f32 %v728, %v739
      %v742 = vmul.f32 %v693, %v739
      %v743 = vmul.f32 %v729, %v739
      %v744 = vmul.f32 %v694, %v739
      %v745 = vmul.f32 %v730, %v739
      %v746 = vmul.f32 %v695, %v739
      %v747 = vmul.f32 %v731, %v739
      %v748 = vmul.f32 %v696, %v739
      %v749 = vmul.f32 %v732, %v739
      %v750 = vmul.f32 %v697, %v739
      %v751 = vmul.f32 %v733, %v739
      %v752 = vmul.f32 %v698, %v739
      %v753 = vmul.f32 %v734, %v739
      %v754 = vmul.f32 %v699, %v739
      %v755 = vmul.f32 %v735, %v739
      %v772 = vrot.slane %v740, 1
      %v773 = vrot.slane %v741, 1
      %v774 = vsel %vm546, %v772, %v773
      %v775 = vrot.slane %v742, 1
      %v776 = vrot.slane %v743, 1
      %v777 = vsel %vm546, %v775, %v776
      %v778 = vrot.slane %v744, 1
      %v779 = vrot.slane %v745, 1
      %v780 = vsel %vm546, %v778, %v779
      %v781 = vrot.slane %v746, 1
      %v782 = vrot.slane %v747, 1
      %v783 = vsel %vm546, %v781, %v782
      %v784 = vrot.slane %v748, 1
      %v785 = vrot.slane %v749, 1
      %v786 = vsel %vm546, %v784, %v785
      %v787 = vrot.slane %v750, 1
      %v788 = vrot.slane %v751, 1
      %v789 = vsel %vm546, %v787, %v788
      %v790 = vrot.slane %v752, 1
      %v791 = vrot.slane %v753, 1
      %v792 = vsel %vm546, %v790, %v791
      %v793 = vrot.slane %v754, 1
      %v794 = vrot.slane %v755, 1
      %v795 = vsel %vm546, %v793, %v794
      %v804 = vadd.f32 %v712, %v774
      %v805 = vadd.f32 %v713, %v777
      %v806 = vadd.f32 %v714, %v780
      %v807 = vadd.f32 %v715, %v783
      %v808 = vadd.f32 %v716, %v786
      %v809 = vadd.f32 %v717, %v789
      %v810 = vadd.f32 %v718, %v792
      %v811 = vadd.f32 %v719, %v795
      %v812 = vld [vmem:[%s683] sm:$0xe]
      %v813 = vld [vmem:[%s683 + $0x8] sm:$0xe]
      %v814 = vld [vmem:[%s683 + $0x10] sm:$0xe]
      %v815 = vld [vmem:[%s683 + $0x18] sm:$0xe]
      %v816 = vld [vmem:[%s683 + $0x20] sm:$0xe]
      %v817 = vld [vmem:[%s683 + $0x28] sm:$0xe]
      %v818 = vld [vmem:[%s683 + $0x30] sm:$0xe]
      %v819 = vld [vmem:[%s683 + $0x38] sm:$0xe]
      %v820 = vunpack.c.l.bf16 %v812
      %v821 = vunpack.c.l.bf16 %v813
      %v822 = vunpack.c.l.bf16 %v814
      %v823 = vunpack.c.l.bf16 %v815
      %v824 = vunpack.c.l.bf16 %v816
      %v825 = vunpack.c.l.bf16 %v817
      %v826 = vunpack.c.l.bf16 %v818
      %v827 = vunpack.c.l.bf16 %v819
      %v828 = vlaneseq
      %v829 = vshrl.u32 %v828, 7
      %v830 = vsub.s32 5, %v829
      %v831 = vrot.slane %v459, %v830
      %v832 = vmul.f32 %v820, %v831
      %v833 = vmul.f32 %v728, %v831
      %v834 = vmul.f32 %v821, %v831
      %v835 = vmul.f32 %v729, %v831
      %v836 = vmul.f32 %v822, %v831
      %v837 = vmul.f32 %v730, %v831
      %v838 = vmul.f32 %v823, %v831
      %v839 = vmul.f32 %v731, %v831
      %v840 = vmul.f32 %v824, %v831
      %v841 = vmul.f32 %v732, %v831
      %v842 = vmul.f32 %v825, %v831
      %v843 = vmul.f32 %v733, %v831
      %v844 = vmul.f32 %v826, %v831
      %v845 = vmul.f32 %v734, %v831
      %v846 = vmul.f32 %v827, %v831
      %v847 = vmul.f32 %v735, %v831
      %v864 = vrot.slane %v832, 2
      %v865 = vrot.slane %v833, 2
      %v866 = vsel %vm639, %v864, %v865
      %v867 = vrot.slane %v834, 2
      %v868 = vrot.slane %v835, 2
      %v869 = vsel %vm639, %v867, %v868
      %v870 = vrot.slane %v836, 2
      %v871 = vrot.slane %v837, 2
      %v872 = vsel %vm639, %v870, %v871
      %v873 = vrot.slane %v838, 2
      %v874 = vrot.slane %v839, 2
      %v875 = vsel %vm639, %v873, %v874
      %v876 = vrot.slane %v840, 2
      %v877 = vrot.slane %v841, 2
      %v878 = vsel %vm639, %v876, %v877
      %v879 = vrot.slane %v842, 2
      %v880 = vrot.slane %v843, 2
      %v881 = vsel %vm639, %v879, %v880
      %v882 = vrot.slane %v844, 2
      %v883 = vrot.slane %v845, 2
      %v884 = vsel %vm639, %v882, %v883
      %v885 = vrot.slane %v846, 2
      %v886 = vrot.slane %v847, 2
      %v887 = vsel %vm639, %v885, %v886
      %v896 = vadd.f32 %v804, %v866
      %v897 = vadd.f32 %v805, %v869
      %v898 = vadd.f32 %v806, %v872
      %v899 = vadd.f32 %v807, %v875
      %v900 = vadd.f32 %v808, %v878
      %v901 = vadd.f32 %v809, %v881
      %v902 = vadd.f32 %v810, %v884
      %v903 = vadd.f32 %v811, %v887
      %s904 = sadd.s32 %s458, 2
      %s905 = smul.u32 %s904, 2
      %s906 = smul.addr %s905, 4
      %s907 = scalar_lea.vmem %s441, %s906
      %v908 = vld [vmem:[%s907] sm:$0xf]
      %v909 = vld [vmem:[%s907 + $0x8] sm:$0xf]
      %v910 = vld [vmem:[%s907 + $0x10] sm:$0xf]
      %v911 = vld [vmem:[%s907 + $0x18] sm:$0xf]
      %v912 = vld [vmem:[%s907 + $0x20] sm:$0xf]
      %v913 = vld [vmem:[%s907 + $0x28] sm:$0xf]
      %v914 = vld [vmem:[%s907 + $0x30] sm:$0xf]
      %v915 = vld [vmem:[%s907 + $0x38] sm:$0xf]
      %v916 = vunpack.c.l.bf16 %v908
      %v917 = vunpack.c.l.bf16 %v909
      %v918 = vunpack.c.l.bf16 %v910
      %v919 = vunpack.c.l.bf16 %v911
      %v920 = vunpack.c.l.bf16 %v912
      %v921 = vunpack.c.l.bf16 %v913
      %v922 = vunpack.c.l.bf16 %v914
      %v923 = vunpack.c.l.bf16 %v915
      %v924 = vlaneseq
      %v925 = vshrl.u32 %v924, 7
      %v926 = vsub.s32 6, %v925
      %v927 = vrot.slane %v459, %v926
      %v928 = vmul.f32 %v916, %v927
      %v929 = vmul.f32 %v917, %v927
      %v930 = vmul.f32 %v918, %v927
      %v931 = vmul.f32 %v919, %v927
      %v932 = vmul.f32 %v920, %v927
      %v933 = vmul.f32 %v921, %v927
      %v934 = vmul.f32 %v922, %v927
      %v935 = vmul.f32 %v923, %v927
      %v936 = vadd.f32 %v896, %v928
      %v937 = vadd.f32 %v897, %v929
      %v938 = vadd.f32 %v898, %v930
      %v939 = vadd.f32 %v899, %v931
      %v940 = vadd.f32 %v900, %v932
      %v941 = vadd.f32 %v901, %v933
      %v942 = vadd.f32 %v902, %v934
      %v943 = vadd.f32 %v903, %v935
      %v944 = vld [vmem:[%s907 + $0x4] sm:$0x1]
      %v945 = vld [vmem:[%s907 + $0xc] sm:$0x1]
      %v946 = vld [vmem:[%s907 + $0x14] sm:$0x1]
      %v947 = vld [vmem:[%s907 + $0x1c] sm:$0x1]
      %v948 = vld [vmem:[%s907 + $0x24] sm:$0x1]
      %v949 = vld [vmem:[%s907 + $0x2c] sm:$0x1]
      %v950 = vld [vmem:[%s907 + $0x34] sm:$0x1]
      %v951 = vld [vmem:[%s907 + $0x3c] sm:$0x1]
      %v952 = vunpack.c.l.bf16 %v944
      %v953 = vunpack.c.l.bf16 %v945
      %v954 = vunpack.c.l.bf16 %v946
      %v955 = vunpack.c.l.bf16 %v947
      %v956 = vunpack.c.l.bf16 %v948
      %v957 = vunpack.c.l.bf16 %v949
      %v958 = vunpack.c.l.bf16 %v950
      %v959 = vunpack.c.l.bf16 %v951
      %v960 = vlaneseq
      %v961 = vshrl.u32 %v960, 7
      %v962 = vsub.s32 7, %v961
      %v963 = vrot.slane %v459, %v962
      %v964 = vmul.f32 %v916, %v963
      %v965 = vmul.f32 %v952, %v963
      %v966 = vmul.f32 %v917, %v963
      %v967 = vmul.f32 %v953, %v963
      %v968 = vmul.f32 %v918, %v963
      %v969 = vmul.f32 %v954, %v963
      %v970 = vmul.f32 %v919, %v963
      %v971 = vmul.f32 %v955, %v963
      %v972 = vmul.f32 %v920, %v963
      %v973 = vmul.f32 %v956, %v963
      %v974 = vmul.f32 %v921, %v963
      %v975 = vmul.f32 %v957, %v963
      %v976 = vmul.f32 %v922, %v963
      %v977 = vmul.f32 %v958, %v963
      %v978 = vmul.f32 %v923, %v963
      %v979 = vmul.f32 %v959, %v963
      %v996 = vrot.slane %v964, 1
      %v997 = vrot.slane %v965, 1
      %v998 = vsel %vm546, %v996, %v997
      %v999 = vrot.slane %v966, 1
      %v1000 = vrot.slane %v967, 1
      %v1001 = vsel %vm546, %v999, %v1000
      %v1002 = vrot.slane %v968, 1
      %v1003 = vrot.slane %v969, 1
      %v1004 = vsel %vm546, %v1002, %v1003
      %v1005 = vrot.slane %v970, 1
      %v1006 = vrot.slane %v971, 1
      %v1007 = vsel %vm546, %v1005, %v1006
      %v1008 = vrot.slane %v972, 1
      %v1009 = vrot.slane %v973, 1
      %v1010 = vsel %vm546, %v1008, %v1009
      %v1011 = vrot.slane %v974, 1
      %v1012 = vrot.slane %v975, 1
      %v1013 = vsel %vm546, %v1011, %v1012
      %v1014 = vrot.slane %v976, 1
      %v1015 = vrot.slane %v977, 1
      %v1016 = vsel %vm546, %v1014, %v1015
      %v1017 = vrot.slane %v978, 1
      %v1018 = vrot.slane %v979, 1
      %v1019 = vsel %vm546, %v1017, %v1018
      %v1028 = vadd.f32 %v936, %v998
      %v1029 = vadd.f32 %v937, %v1001
      %v1030 = vadd.f32 %v938, %v1004
      %v1031 = vadd.f32 %v939, %v1007
      %v1032 = vadd.f32 %v940, %v1010
      %v1033 = vadd.f32 %v941, %v1013
      %v1034 = vadd.f32 %v942, %v1016
      %v1035 = vadd.f32 %v943, %v1019
      %v1036 = vld [vmem:[%s907] sm:$0xe]
      %v1037 = vld [vmem:[%s907 + $0x8] sm:$0xe]
      %v1038 = vld [vmem:[%s907 + $0x10] sm:$0xe]
      %v1039 = vld [vmem:[%s907 + $0x18] sm:$0xe]
      %v1040 = vld [vmem:[%s907 + $0x20] sm:$0xe]
      %v1041 = vld [vmem:[%s907 + $0x28] sm:$0xe]
      %v1042 = vld [vmem:[%s907 + $0x30] sm:$0xe]
      %v1043 = vld [vmem:[%s907 + $0x38] sm:$0xe]
      %v1044 = vunpack.c.l.bf16 %v1036
      %v1045 = vunpack.c.l.bf16 %v1037
      %v1046 = vunpack.c.l.bf16 %v1038
      %v1047 = vunpack.c.l.bf16 %v1039
      %v1048 = vunpack.c.l.bf16 %v1040
      %v1049 = vunpack.c.l.bf16 %v1041
      %v1050 = vunpack.c.l.bf16 %v1042
      %v1051 = vunpack.c.l.bf16 %v1043
      %v1052 = vlaneseq
      %v1053 = vshrl.u32 %v1052, 7
      %v1054 = vsub.s32 0, %v1053
      %v1055 = vrot.slane %v460, %v1054
      %v1056 = vmul.f32 %v1044, %v1055
      %v1057 = vmul.f32 %v952, %v1055
      %v1058 = vmul.f32 %v1045, %v1055
      %v1059 = vmul.f32 %v953, %v1055
      %v1060 = vmul.f32 %v1046, %v1055
      %v1061 = vmul.f32 %v954, %v1055
      %v1062 = vmul.f32 %v1047, %v1055
      %v1063 = vmul.f32 %v955, %v1055
      %v1064 = vmul.f32 %v1048, %v1055
      %v1065 = vmul.f32 %v956, %v1055
      %v1066 = vmul.f32 %v1049, %v1055
      %v1067 = vmul.f32 %v957, %v1055
      %v1068 = vmul.f32 %v1050, %v1055
      %v1069 = vmul.f32 %v958, %v1055
      %v1070 = vmul.f32 %v1051, %v1055
      %v1071 = vmul.f32 %v959, %v1055
      %v1088 = vrot.slane %v1056, 2
      %v1089 = vrot.slane %v1057, 2
      %v1090 = vsel %vm639, %v1088, %v1089
      %v1091 = vrot.slane %v1058, 2
      %v1092 = vrot.slane %v1059, 2
      %v1093 = vsel %vm639, %v1091, %v1092
      %v1094 = vrot.slane %v1060, 2
      %v1095 = vrot.slane %v1061, 2
      %v1096 = vsel %vm639, %v1094, %v1095
      %v1097 = vrot.slane %v1062, 2
      %v1098 = vrot.slane %v1063, 2
      %v1099 = vsel %vm639, %v1097, %v1098
      %v1100 = vrot.slane %v1064, 2
      %v1101 = vrot.slane %v1065, 2
      %v1102 = vsel %vm639, %v1100, %v1101
      %v1103 = vrot.slane %v1066, 2
      %v1104 = vrot.slane %v1067, 2
      %v1105 = vsel %vm639, %v1103, %v1104
      %v1106 = vrot.slane %v1068, 2
      %v1107 = vrot.slane %v1069, 2
      %v1108 = vsel %vm639, %v1106, %v1107
      %v1109 = vrot.slane %v1070, 2
      %v1110 = vrot.slane %v1071, 2
      %v1111 = vsel %vm639, %v1109, %v1110
      %v1120 = vadd.f32 %v1028, %v1090
      %v1121 = vadd.f32 %v1029, %v1093
      %v1122 = vadd.f32 %v1030, %v1096
      %v1123 = vadd.f32 %v1031, %v1099
      %v1124 = vadd.f32 %v1032, %v1102
      %v1125 = vadd.f32 %v1033, %v1105
      %v1126 = vadd.f32 %v1034, %v1108
      %v1127 = vadd.f32 %v1035, %v1111
      %v1129 = vlaneseq
      %v1130 = vshrl.u32 %v1129, 7
      %v1131 = vsub.s32 0, %v1130
      %v1132 = vrot.slane %v461, %v1131
      %v1134 = vmul.f32 %v1120, %v1132
      %v1135 = vmul.f32 %v1121, %v1132
      %v1136 = vmul.f32 %v1122, %v1132
      %v1137 = vmul.f32 %v1123, %v1132
      %v1138 = vmul.f32 %v1124, %v1132
      %v1139 = vmul.f32 %v1125, %v1132
      %v1140 = vmul.f32 %v1126, %v1132
      %v1141 = vmul.f32 %v1127, %v1132
      %v1143 = vlaneseq
      %v1144 = vshrl.u32 %v1143, 7
      %v1145 = vsub.s32 0, %v1144
      %v1146 = vrot.slane %v462, %v1145
      %v1148 = vadd.f32 %v1134, %v1146
      %v1149 = vadd.f32 %v1135, %v1146
      %v1150 = vadd.f32 %v1136, %v1146
      %v1151 = vadd.f32 %v1137, %v1146
      %v1152 = vadd.f32 %v1138, %v1146
      %v1153 = vadd.f32 %v1139, %v1146
      %v1154 = vadd.f32 %v1140, %v1146
      %v1155 = vadd.f32 %v1141, %v1146
      %v1156 = vadd.f32 %v1148, 3.0
      %v1157 = vadd.f32 %v1149, 3.0
      %v1158 = vadd.f32 %v1150, 3.0
      %v1159 = vadd.f32 %v1151, 3.0
      %v1160 = vadd.f32 %v1152, 3.0
      %v1161 = vadd.f32 %v1153, 3.0
      %v1162 = vadd.f32 %v1154, 3.0
      %v1163 = vadd.f32 %v1155, 3.0
      %v1164 = vmax.f32 %v1156, 0.0
      %v1165 = vmax.f32 %v1157, 0.0
      %v1166 = vmax.f32 %v1158, 0.0
      %v1167 = vmax.f32 %v1159, 0.0
      %v1168 = vmax.f32 %v1160, 0.0
      %v1169 = vmax.f32 %v1161, 0.0
      %v1170 = vmax.f32 %v1162, 0.0
      %v1171 = vmax.f32 %v1163, 0.0
      %v1172 = vmin.f32 %v1164, 6.0
      %v1173 = vmin.f32 %v1165, 6.0
      %v1174 = vmin.f32 %v1166, 6.0
      %v1175 = vmin.f32 %v1167, 6.0
      %v1176 = vmin.f32 %v1168, 6.0
      %v1177 = vmin.f32 %v1169, 6.0
      %v1178 = vmin.f32 %v1170, 6.0
      %v1179 = vmin.f32 %v1171, 6.0
      %v1180 = vmul.f32 %v1148, %v1172
      %v1181 = vmul.f32 %v1149, %v1173
      %v1182 = vmul.f32 %v1150, %v1174
      %v1183 = vmul.f32 %v1151, %v1175
      %v1184 = vmul.f32 %v1152, %v1176
      %v1185 = vmul.f32 %v1153, %v1177
      %v1186 = vmul.f32 %v1154, %v1178
      %v1187 = vmul.f32 %v1155, %v1179
      %v1188 = vmul.f32 %v1180, 0.16666667
      %v1189 = vmul.f32 %v1181, 0.16666667
      %v1190 = vmul.f32 %v1182, 0.16666667
      %v1191 = vmul.f32 %v1183, 0.16666667
      %v1192 = vmul.f32 %v1184, 0.16666667
      %v1193 = vmul.f32 %v1185, 0.16666667
      %v1194 = vmul.f32 %v1186, 0.16666667
      %v1195 = vmul.f32 %v1187, 0.16666667
      %v1196 = vld [vmem:[%s5] sm:$0xff]
      %v1197 = vld [vmem:[%s5 + $0x8] sm:$0x1]
      %v1198 = vld [vmem:[%s6] sm:$0x1]
      %v1199 = vld [vmem:[%s7] sm:$0x1]
      %s1200 = smul.addr %s463, 4
      %s1201 = scalar_lea.vmem %s446, %s1200
      %v1202 = vld [vmem:[%s1201] sm:$0xf]
      %v1203 = vld [vmem:[%s1201 + $0x8] sm:$0xf]
      %v1204 = vld [vmem:[%s1201 + $0x10] sm:$0xf]
      %v1205 = vld [vmem:[%s1201 + $0x18] sm:$0xf]
      %v1206 = vld [vmem:[%s1201 + $0x20] sm:$0xf]
      %v1207 = vld [vmem:[%s1201 + $0x28] sm:$0xf]
      %v1208 = vld [vmem:[%s1201 + $0x30] sm:$0xf]
      %v1209 = vld [vmem:[%s1201 + $0x38] sm:$0xf]
      %v1210 = vunpack.c.l.bf16 %v1202
      %v1211 = vunpack.c.l.bf16 %v1203
      %v1212 = vunpack.c.l.bf16 %v1204
      %v1213 = vunpack.c.l.bf16 %v1205
      %v1214 = vunpack.c.l.bf16 %v1206
      %v1215 = vunpack.c.l.bf16 %v1207
      %v1216 = vunpack.c.l.bf16 %v1208
      %v1217 = vunpack.c.l.bf16 %v1209
      %v1218 = vlaneseq
      %v1219 = vshrl.u32 %v1218, 7
      %v1220 = vsub.s32 0, %v1219
      %v1221 = vrot.slane %v1196, %v1220
      %v1222 = vmul.f32 %v1210, %v1221
      %v1223 = vmul.f32 %v1211, %v1221
      %v1224 = vmul.f32 %v1212, %v1221
      %v1225 = vmul.f32 %v1213, %v1221
      %v1226 = vmul.f32 %v1214, %v1221
      %v1227 = vmul.f32 %v1215, %v1221
      %v1228 = vmul.f32 %v1216, %v1221
      %v1229 = vmul.f32 %v1217, %v1221
      %v1230 = vld [vmem:[%s1201 + $0x4] sm:$0x1]
      %v1231 = vld [vmem:[%s1201 + $0xc] sm:$0x1]
      %v1232 = vld [vmem:[%s1201 + $0x14] sm:$0x1]
      %v1233 = vld [vmem:[%s1201 + $0x1c] sm:$0x1]
      %v1234 = vld [vmem:[%s1201 + $0x24] sm:$0x1]
      %v1235 = vld [vmem:[%s1201 + $0x2c] sm:$0x1]
      %v1236 = vld [vmem:[%s1201 + $0x34] sm:$0x1]
      %v1237 = vld [vmem:[%s1201 + $0x3c] sm:$0x1]
      %v1238 = vunpack.c.l.bf16 %v1230
      %v1239 = vunpack.c.l.bf16 %v1231
      %v1240 = vunpack.c.l.bf16 %v1232
      %v1241 = vunpack.c.l.bf16 %v1233
      %v1242 = vunpack.c.l.bf16 %v1234
      %v1243 = vunpack.c.l.bf16 %v1235
      %v1244 = vunpack.c.l.bf16 %v1236
      %v1245 = vunpack.c.l.bf16 %v1237
      %v1246 = vlaneseq
      %v1247 = vshrl.u32 %v1246, 7
      %v1248 = vsub.s32 1, %v1247
      %v1249 = vrot.slane %v1196, %v1248
      %v1250 = vmul.f32 %v1210, %v1249
      %v1251 = vmul.f32 %v1238, %v1249
      %v1252 = vmul.f32 %v1211, %v1249
      %v1253 = vmul.f32 %v1239, %v1249
      %v1254 = vmul.f32 %v1212, %v1249
      %v1255 = vmul.f32 %v1240, %v1249
      %v1256 = vmul.f32 %v1213, %v1249
      %v1257 = vmul.f32 %v1241, %v1249
      %v1258 = vmul.f32 %v1214, %v1249
      %v1259 = vmul.f32 %v1242, %v1249
      %v1260 = vmul.f32 %v1215, %v1249
      %v1261 = vmul.f32 %v1243, %v1249
      %v1262 = vmul.f32 %v1216, %v1249
      %v1263 = vmul.f32 %v1244, %v1249
      %v1264 = vmul.f32 %v1217, %v1249
      %v1265 = vmul.f32 %v1245, %v1249
      %v1282 = vrot.slane %v1250, 1
      %v1283 = vrot.slane %v1251, 1
      %v1284 = vsel %vm546, %v1282, %v1283
      %v1285 = vrot.slane %v1252, 1
      %v1286 = vrot.slane %v1253, 1
      %v1287 = vsel %vm546, %v1285, %v1286
      %v1288 = vrot.slane %v1254, 1
      %v1289 = vrot.slane %v1255, 1
      %v1290 = vsel %vm546, %v1288, %v1289
      %v1291 = vrot.slane %v1256, 1
      %v1292 = vrot.slane %v1257, 1
      %v1293 = vsel %vm546, %v1291, %v1292
      %v1294 = vrot.slane %v1258, 1
      %v1295 = vrot.slane %v1259, 1
      %v1296 = vsel %vm546, %v1294, %v1295
      %v1297 = vrot.slane %v1260, 1
      %v1298 = vrot.slane %v1261, 1
      %v1299 = vsel %vm546, %v1297, %v1298
      %v1300 = vrot.slane %v1262, 1
      %v1301 = vrot.slane %v1263, 1
      %v1302 = vsel %vm546, %v1300, %v1301
      %v1303 = vrot.slane %v1264, 1
      %v1304 = vrot.slane %v1265, 1
      %v1305 = vsel %vm546, %v1303, %v1304
      %v1314 = vadd.f32 %v1222, %v1284
      %v1315 = vadd.f32 %v1223, %v1287
      %v1316 = vadd.f32 %v1224, %v1290
      %v1317 = vadd.f32 %v1225, %v1293
      %v1318 = vadd.f32 %v1226, %v1296
      %v1319 = vadd.f32 %v1227, %v1299
      %v1320 = vadd.f32 %v1228, %v1302
      %v1321 = vadd.f32 %v1229, %v1305
      %v1322 = vld [vmem:[%s1201] sm:$0xe]
      %v1323 = vld [vmem:[%s1201 + $0x8] sm:$0xe]
      %v1324 = vld [vmem:[%s1201 + $0x10] sm:$0xe]
      %v1325 = vld [vmem:[%s1201 + $0x18] sm:$0xe]
      %v1326 = vld [vmem:[%s1201 + $0x20] sm:$0xe]
      %v1327 = vld [vmem:[%s1201 + $0x28] sm:$0xe]
      %v1328 = vld [vmem:[%s1201 + $0x30] sm:$0xe]
      %v1329 = vld [vmem:[%s1201 + $0x38] sm:$0xe]
      %v1330 = vunpack.c.l.bf16 %v1322
      %v1331 = vunpack.c.l.bf16 %v1323
      %v1332 = vunpack.c.l.bf16 %v1324
      %v1333 = vunpack.c.l.bf16 %v1325
      %v1334 = vunpack.c.l.bf16 %v1326
      %v1335 = vunpack.c.l.bf16 %v1327
      %v1336 = vunpack.c.l.bf16 %v1328
      %v1337 = vunpack.c.l.bf16 %v1329
      %v1338 = vlaneseq
      %v1339 = vshrl.u32 %v1338, 7
      %v1340 = vsub.s32 2, %v1339
      %v1341 = vrot.slane %v1196, %v1340
      %v1342 = vmul.f32 %v1330, %v1341
      %v1343 = vmul.f32 %v1238, %v1341
      %v1344 = vmul.f32 %v1331, %v1341
      %v1345 = vmul.f32 %v1239, %v1341
      %v1346 = vmul.f32 %v1332, %v1341
      %v1347 = vmul.f32 %v1240, %v1341
      %v1348 = vmul.f32 %v1333, %v1341
      %v1349 = vmul.f32 %v1241, %v1341
      %v1350 = vmul.f32 %v1334, %v1341
      %v1351 = vmul.f32 %v1242, %v1341
      %v1352 = vmul.f32 %v1335, %v1341
      %v1353 = vmul.f32 %v1243, %v1341
      %v1354 = vmul.f32 %v1336, %v1341
      %v1355 = vmul.f32 %v1244, %v1341
      %v1356 = vmul.f32 %v1337, %v1341
      %v1357 = vmul.f32 %v1245, %v1341
      %v1374 = vrot.slane %v1342, 2
      %v1375 = vrot.slane %v1343, 2
      %v1376 = vsel %vm639, %v1374, %v1375
      %v1377 = vrot.slane %v1344, 2
      %v1378 = vrot.slane %v1345, 2
      %v1379 = vsel %vm639, %v1377, %v1378
      %v1380 = vrot.slane %v1346, 2
      %v1381 = vrot.slane %v1347, 2
      %v1382 = vsel %vm639, %v1380, %v1381
      %v1383 = vrot.slane %v1348, 2
      %v1384 = vrot.slane %v1349, 2
      %v1385 = vsel %vm639, %v1383, %v1384
      %v1386 = vrot.slane %v1350, 2
      %v1387 = vrot.slane %v1351, 2
      %v1388 = vsel %vm639, %v1386, %v1387
      %v1389 = vrot.slane %v1352, 2
      %v1390 = vrot.slane %v1353, 2
      %v1391 = vsel %vm639, %v1389, %v1390
      %v1392 = vrot.slane %v1354, 2
      %v1393 = vrot.slane %v1355, 2
      %v1394 = vsel %vm639, %v1392, %v1393
      %v1395 = vrot.slane %v1356, 2
      %v1396 = vrot.slane %v1357, 2
      %v1397 = vsel %vm639, %v1395, %v1396
      %v1406 = vadd.f32 %v1314, %v1376
      %v1407 = vadd.f32 %v1315, %v1379
      %v1408 = vadd.f32 %v1316, %v1382
      %v1409 = vadd.f32 %v1317, %v1385
      %v1410 = vadd.f32 %v1318, %v1388
      %v1411 = vadd.f32 %v1319, %v1391
      %v1412 = vadd.f32 %v1320, %v1394
      %v1413 = vadd.f32 %v1321, %v1397
      %s1414 = smul.addr %s681, 4
      %s1415 = scalar_lea.vmem %s446, %s1414
      %v1416 = vld [vmem:[%s1415] sm:$0xf]
      %v1417 = vld [vmem:[%s1415 + $0x8] sm:$0xf]
      %v1418 = vld [vmem:[%s1415 + $0x10] sm:$0xf]
      %v1419 = vld [vmem:[%s1415 + $0x18] sm:$0xf]
      %v1420 = vld [vmem:[%s1415 + $0x20] sm:$0xf]
      %v1421 = vld [vmem:[%s1415 + $0x28] sm:$0xf]
      %v1422 = vld [vmem:[%s1415 + $0x30] sm:$0xf]
      %v1423 = vld [vmem:[%s1415 + $0x38] sm:$0xf]
      %v1424 = vunpack.c.l.bf16 %v1416
      %v1425 = vunpack.c.l.bf16 %v1417
      %v1426 = vunpack.c.l.bf16 %v1418
      %v1427 = vunpack.c.l.bf16 %v1419
      %v1428 = vunpack.c.l.bf16 %v1420
      %v1429 = vunpack.c.l.bf16 %v1421
      %v1430 = vunpack.c.l.bf16 %v1422
      %v1431 = vunpack.c.l.bf16 %v1423
      %v1432 = vlaneseq
      %v1433 = vshrl.u32 %v1432, 7
      %v1434 = vsub.s32 3, %v1433
      %v1435 = vrot.slane %v1196, %v1434
      %v1436 = vmul.f32 %v1424, %v1435
      %v1437 = vmul.f32 %v1425, %v1435
      %v1438 = vmul.f32 %v1426, %v1435
      %v1439 = vmul.f32 %v1427, %v1435
      %v1440 = vmul.f32 %v1428, %v1435
      %v1441 = vmul.f32 %v1429, %v1435
      %v1442 = vmul.f32 %v1430, %v1435
      %v1443 = vmul.f32 %v1431, %v1435
      %v1444 = vadd.f32 %v1406, %v1436
      %v1445 = vadd.f32 %v1407, %v1437
      %v1446 = vadd.f32 %v1408, %v1438
      %v1447 = vadd.f32 %v1409, %v1439
      %v1448 = vadd.f32 %v1410, %v1440
      %v1449 = vadd.f32 %v1411, %v1441
      %v1450 = vadd.f32 %v1412, %v1442
      %v1451 = vadd.f32 %v1413, %v1443
      %v1452 = vld [vmem:[%s1415 + $0x4] sm:$0x1]
      %v1453 = vld [vmem:[%s1415 + $0xc] sm:$0x1]
      %v1454 = vld [vmem:[%s1415 + $0x14] sm:$0x1]
      %v1455 = vld [vmem:[%s1415 + $0x1c] sm:$0x1]
      %v1456 = vld [vmem:[%s1415 + $0x24] sm:$0x1]
      %v1457 = vld [vmem:[%s1415 + $0x2c] sm:$0x1]
      %v1458 = vld [vmem:[%s1415 + $0x34] sm:$0x1]
      %v1459 = vld [vmem:[%s1415 + $0x3c] sm:$0x1]
      %v1460 = vunpack.c.l.bf16 %v1452
      %v1461 = vunpack.c.l.bf16 %v1453
      %v1462 = vunpack.c.l.bf16 %v1454
      %v1463 = vunpack.c.l.bf16 %v1455
      %v1464 = vunpack.c.l.bf16 %v1456
      %v1465 = vunpack.c.l.bf16 %v1457
      %v1466 = vunpack.c.l.bf16 %v1458
      %v1467 = vunpack.c.l.bf16 %v1459
      %v1468 = vlaneseq
      %v1469 = vshrl.u32 %v1468, 7
      %v1470 = vsub.s32 4, %v1469
      %v1471 = vrot.slane %v1196, %v1470
      %v1472 = vmul.f32 %v1424, %v1471
      %v1473 = vmul.f32 %v1460, %v1471
      %v1474 = vmul.f32 %v1425, %v1471
      %v1475 = vmul.f32 %v1461, %v1471
      %v1476 = vmul.f32 %v1426, %v1471
      %v1477 = vmul.f32 %v1462, %v1471
      %v1478 = vmul.f32 %v1427, %v1471
      %v1479 = vmul.f32 %v1463, %v1471
      %v1480 = vmul.f32 %v1428, %v1471
      %v1481 = vmul.f32 %v1464, %v1471
      %v1482 = vmul.f32 %v1429, %v1471
      %v1483 = vmul.f32 %v1465, %v1471
      %v1484 = vmul.f32 %v1430, %v1471
      %v1485 = vmul.f32 %v1466, %v1471
      %v1486 = vmul.f32 %v1431, %v1471
      %v1487 = vmul.f32 %v1467, %v1471
      %v1504 = vrot.slane %v1472, 1
      %v1505 = vrot.slane %v1473, 1
      %v1506 = vsel %vm546, %v1504, %v1505
      %v1507 = vrot.slane %v1474, 1
      %v1508 = vrot.slane %v1475, 1
      %v1509 = vsel %vm546, %v1507, %v1508
      %v1510 = vrot.slane %v1476, 1
      %v1511 = vrot.slane %v1477, 1
      %v1512 = vsel %vm546, %v1510, %v1511
      %v1513 = vrot.slane %v1478, 1
      %v1514 = vrot.slane %v1479, 1
      %v1515 = vsel %vm546, %v1513, %v1514
      %v1516 = vrot.slane %v1480, 1
      %v1517 = vrot.slane %v1481, 1
      %v1518 = vsel %vm546, %v1516, %v1517
      %v1519 = vrot.slane %v1482, 1
      %v1520 = vrot.slane %v1483, 1
      %v1521 = vsel %vm546, %v1519, %v1520
      %v1522 = vrot.slane %v1484, 1
      %v1523 = vrot.slane %v1485, 1
      %v1524 = vsel %vm546, %v1522, %v1523
      %v1525 = vrot.slane %v1486, 1
      %v1526 = vrot.slane %v1487, 1
      %v1527 = vsel %vm546, %v1525, %v1526
      %v1536 = vadd.f32 %v1444, %v1506
      %v1537 = vadd.f32 %v1445, %v1509
      %v1538 = vadd.f32 %v1446, %v1512
      %v1539 = vadd.f32 %v1447, %v1515
      %v1540 = vadd.f32 %v1448, %v1518
      %v1541 = vadd.f32 %v1449, %v1521
      %v1542 = vadd.f32 %v1450, %v1524
      %v1543 = vadd.f32 %v1451, %v1527
      %v1544 = vld [vmem:[%s1415] sm:$0xe]
      %v1545 = vld [vmem:[%s1415 + $0x8] sm:$0xe]
      %v1546 = vld [vmem:[%s1415 + $0x10] sm:$0xe]
      %v1547 = vld [vmem:[%s1415 + $0x18] sm:$0xe]
      %v1548 = vld [vmem:[%s1415 + $0x20] sm:$0xe]
      %v1549 = vld [vmem:[%s1415 + $0x28] sm:$0xe]
      %v1550 = vld [vmem:[%s1415 + $0x30] sm:$0xe]
      %v1551 = vld [vmem:[%s1415 + $0x38] sm:$0xe]
      %v1552 = vunpack.c.l.bf16 %v1544
      %v1553 = vunpack.c.l.bf16 %v1545
      %v1554 = vunpack.c.l.bf16 %v1546
      %v1555 = vunpack.c.l.bf16 %v1547
      %v1556 = vunpack.c.l.bf16 %v1548
      %v1557 = vunpack.c.l.bf16 %v1549
      %v1558 = vunpack.c.l.bf16 %v1550
      %v1559 = vunpack.c.l.bf16 %v1551
      %v1560 = vlaneseq
      %v1561 = vshrl.u32 %v1560, 7
      %v1562 = vsub.s32 5, %v1561
      %v1563 = vrot.slane %v1196, %v1562
      %v1564 = vmul.f32 %v1552, %v1563
      %v1565 = vmul.f32 %v1460, %v1563
      %v1566 = vmul.f32 %v1553, %v1563
      %v1567 = vmul.f32 %v1461, %v1563
      %v1568 = vmul.f32 %v1554, %v1563
      %v1569 = vmul.f32 %v1462, %v1563
      %v1570 = vmul.f32 %v1555, %v1563
      %v1571 = vmul.f32 %v1463, %v1563
      %v1572 = vmul.f32 %v1556, %v1563
      %v1573 = vmul.f32 %v1464, %v1563
      %v1574 = vmul.f32 %v1557, %v1563
      %v1575 = vmul.f32 %v1465, %v1563
      %v1576 = vmul.f32 %v1558, %v1563
      %v1577 = vmul.f32 %v1466, %v1563
      %v1578 = vmul.f32 %v1559, %v1563
      %v1579 = vmul.f32 %v1467, %v1563
      %v1596 = vrot.slane %v1564, 2
      %v1597 = vrot.slane %v1565, 2
      %v1598 = vsel %vm639, %v1596, %v1597
      %v1599 = vrot.slane %v1566, 2
      %v1600 = vrot.slane %v1567, 2
      %v1601 = vsel %vm639, %v1599, %v1600
      %v1602 = vrot.slane %v1568, 2
      %v1603 = vrot.slane %v1569, 2
      %v1604 = vsel %vm639, %v1602, %v1603
      %v1605 = vrot.slane %v1570, 2
      %v1606 = vrot.slane %v1571, 2
      %v1607 = vsel %vm639, %v1605, %v1606
      %v1608 = vrot.slane %v1572, 2
      %v1609 = vrot.slane %v1573, 2
      %v1610 = vsel %vm639, %v1608, %v1609
      %v1611 = vrot.slane %v1574, 2
      %v1612 = vrot.slane %v1575, 2
      %v1613 = vsel %vm639, %v1611, %v1612
      %v1614 = vrot.slane %v1576, 2
      %v1615 = vrot.slane %v1577, 2
      %v1616 = vsel %vm639, %v1614, %v1615
      %v1617 = vrot.slane %v1578, 2
      %v1618 = vrot.slane %v1579, 2
      %v1619 = vsel %vm639, %v1617, %v1618
      %v1628 = vadd.f32 %v1536, %v1598
      %v1629 = vadd.f32 %v1537, %v1601
      %v1630 = vadd.f32 %v1538, %v1604
      %v1631 = vadd.f32 %v1539, %v1607
      %v1632 = vadd.f32 %v1540, %v1610
      %v1633 = vadd.f32 %v1541, %v1613
      %v1634 = vadd.f32 %v1542, %v1616
      %v1635 = vadd.f32 %v1543, %v1619
      %s1636 = smul.addr %s905, 4
      %s1637 = scalar_lea.vmem %s446, %s1636
      %v1638 = vld [vmem:[%s1637] sm:$0xf]
      %v1639 = vld [vmem:[%s1637 + $0x8] sm:$0xf]
      %v1640 = vld [vmem:[%s1637 + $0x10] sm:$0xf]
      %v1641 = vld [vmem:[%s1637 + $0x18] sm:$0xf]
      %v1642 = vld [vmem:[%s1637 + $0x20] sm:$0xf]
      %v1643 = vld [vmem:[%s1637 + $0x28] sm:$0xf]
      %v1644 = vld [vmem:[%s1637 + $0x30] sm:$0xf]
      %v1645 = vld [vmem:[%s1637 + $0x38] sm:$0xf]
      %v1646 = vunpack.c.l.bf16 %v1638
      %v1647 = vunpack.c.l.bf16 %v1639
      %v1648 = vunpack.c.l.bf16 %v1640
      %v1649 = vunpack.c.l.bf16 %v1641
      %v1650 = vunpack.c.l.bf16 %v1642
      %v1651 = vunpack.c.l.bf16 %v1643
      %v1652 = vunpack.c.l.bf16 %v1644
      %v1653 = vunpack.c.l.bf16 %v1645
      %v1654 = vlaneseq
      %v1655 = vshrl.u32 %v1654, 7
      %v1656 = vsub.s32 6, %v1655
      %v1657 = vrot.slane %v1196, %v1656
      %v1658 = vmul.f32 %v1646, %v1657
      %v1659 = vmul.f32 %v1647, %v1657
      %v1660 = vmul.f32 %v1648, %v1657
      %v1661 = vmul.f32 %v1649, %v1657
      %v1662 = vmul.f32 %v1650, %v1657
      %v1663 = vmul.f32 %v1651, %v1657
      %v1664 = vmul.f32 %v1652, %v1657
      %v1665 = vmul.f32 %v1653, %v1657
      %v1666 = vadd.f32 %v1628, %v1658
      %v1667 = vadd.f32 %v1629, %v1659
      %v1668 = vadd.f32 %v1630, %v1660
      %v1669 = vadd.f32 %v1631, %v1661
      %v1670 = vadd.f32 %v1632, %v1662
      %v1671 = vadd.f32 %v1633, %v1663
      %v1672 = vadd.f32 %v1634, %v1664
      %v1673 = vadd.f32 %v1635, %v1665
      %v1674 = vld [vmem:[%s1637 + $0x4] sm:$0x1]
      %v1675 = vld [vmem:[%s1637 + $0xc] sm:$0x1]
      %v1676 = vld [vmem:[%s1637 + $0x14] sm:$0x1]
      %v1677 = vld [vmem:[%s1637 + $0x1c] sm:$0x1]
      %v1678 = vld [vmem:[%s1637 + $0x24] sm:$0x1]
      %v1679 = vld [vmem:[%s1637 + $0x2c] sm:$0x1]
      %v1680 = vld [vmem:[%s1637 + $0x34] sm:$0x1]
      %v1681 = vld [vmem:[%s1637 + $0x3c] sm:$0x1]
      %v1682 = vunpack.c.l.bf16 %v1674
      %v1683 = vunpack.c.l.bf16 %v1675
      %v1684 = vunpack.c.l.bf16 %v1676
      %v1685 = vunpack.c.l.bf16 %v1677
      %v1686 = vunpack.c.l.bf16 %v1678
      %v1687 = vunpack.c.l.bf16 %v1679
      %v1688 = vunpack.c.l.bf16 %v1680
      %v1689 = vunpack.c.l.bf16 %v1681
      %v1690 = vlaneseq
      %v1691 = vshrl.u32 %v1690, 7
      %v1692 = vsub.s32 7, %v1691
      %v1693 = vrot.slane %v1196, %v1692
      %v1694 = vmul.f32 %v1646, %v1693
      %v1695 = vmul.f32 %v1682, %v1693
      %v1696 = vmul.f32 %v1647, %v1693
      %v1697 = vmul.f32 %v1683, %v1693
      %v1698 = vmul.f32 %v1648, %v1693
      %v1699 = vmul.f32 %v1684, %v1693
      %v1700 = vmul.f32 %v1649, %v1693
      %v1701 = vmul.f32 %v1685, %v1693
      %v1702 = vmul.f32 %v1650, %v1693
      %v1703 = vmul.f32 %v1686, %v1693
      %v1704 = vmul.f32 %v1651, %v1693
      %v1705 = vmul.f32 %v1687, %v1693
      %v1706 = vmul.f32 %v1652, %v1693
      %v1707 = vmul.f32 %v1688, %v1693
      %v1708 = vmul.f32 %v1653, %v1693
      %v1709 = vmul.f32 %v1689, %v1693
      %v1726 = vrot.slane %v1694, 1
      %v1727 = vrot.slane %v1695, 1
      %v1728 = vsel %vm546, %v1726, %v1727
      %v1729 = vrot.slane %v1696, 1
      %v1730 = vrot.slane %v1697, 1
      %v1731 = vsel %vm546, %v1729, %v1730
      %v1732 = vrot.slane %v1698, 1
      %v1733 = vrot.slane %v1699, 1
      %v1734 = vsel %vm546, %v1732, %v1733
      %v1735 = vrot.slane %v1700, 1
      %v1736 = vrot.slane %v1701, 1
      %v1737 = vsel %vm546, %v1735, %v1736
      %v1738 = vrot.slane %v1702, 1
      %v1739 = vrot.slane %v1703, 1
      %v1740 = vsel %vm546, %v1738, %v1739
      %v1741 = vrot.slane %v1704, 1
      %v1742 = vrot.slane %v1705, 1
      %v1743 = vsel %vm546, %v1741, %v1742
      %v1744 = vrot.slane %v1706, 1
      %v1745 = vrot.slane %v1707, 1
      %v1746 = vsel %vm546, %v1744, %v1745
      %v1747 = vrot.slane %v1708, 1
      %v1748 = vrot.slane %v1709, 1
      %v1749 = vsel %vm546, %v1747, %v1748
      %v1758 = vadd.f32 %v1666, %v1728
      %v1759 = vadd.f32 %v1667, %v1731
      %v1760 = vadd.f32 %v1668, %v1734
      %v1761 = vadd.f32 %v1669, %v1737
      %v1762 = vadd.f32 %v1670, %v1740
      %v1763 = vadd.f32 %v1671, %v1743
      %v1764 = vadd.f32 %v1672, %v1746
      %v1765 = vadd.f32 %v1673, %v1749
      %v1766 = vld [vmem:[%s1637] sm:$0xe]
      %v1767 = vld [vmem:[%s1637 + $0x8] sm:$0xe]
      %v1768 = vld [vmem:[%s1637 + $0x10] sm:$0xe]
      %v1769 = vld [vmem:[%s1637 + $0x18] sm:$0xe]
      %v1770 = vld [vmem:[%s1637 + $0x20] sm:$0xe]
      %v1771 = vld [vmem:[%s1637 + $0x28] sm:$0xe]
      %v1772 = vld [vmem:[%s1637 + $0x30] sm:$0xe]
      %v1773 = vld [vmem:[%s1637 + $0x38] sm:$0xe]
      %v1774 = vunpack.c.l.bf16 %v1766
      %v1775 = vunpack.c.l.bf16 %v1767
      %v1776 = vunpack.c.l.bf16 %v1768
      %v1777 = vunpack.c.l.bf16 %v1769
      %v1778 = vunpack.c.l.bf16 %v1770
      %v1779 = vunpack.c.l.bf16 %v1771
      %v1780 = vunpack.c.l.bf16 %v1772
      %v1781 = vunpack.c.l.bf16 %v1773
      %v1782 = vlaneseq
      %v1783 = vshrl.u32 %v1782, 7
      %v1784 = vsub.s32 0, %v1783
      %v1785 = vrot.slane %v1197, %v1784
      %v1786 = vmul.f32 %v1774, %v1785
      %v1787 = vmul.f32 %v1682, %v1785
      %v1788 = vmul.f32 %v1775, %v1785
      %v1789 = vmul.f32 %v1683, %v1785
      %v1790 = vmul.f32 %v1776, %v1785
      %v1791 = vmul.f32 %v1684, %v1785
      %v1792 = vmul.f32 %v1777, %v1785
      %v1793 = vmul.f32 %v1685, %v1785
      %v1794 = vmul.f32 %v1778, %v1785
      %v1795 = vmul.f32 %v1686, %v1785
      %v1796 = vmul.f32 %v1779, %v1785
      %v1797 = vmul.f32 %v1687, %v1785
      %v1798 = vmul.f32 %v1780, %v1785
      %v1799 = vmul.f32 %v1688, %v1785
      %v1800 = vmul.f32 %v1781, %v1785
      %v1801 = vmul.f32 %v1689, %v1785
      %v1818 = vrot.slane %v1786, 2
      %v1819 = vrot.slane %v1787, 2
      %v1820 = vsel %vm639, %v1818, %v1819
      %v1821 = vrot.slane %v1788, 2
      %v1822 = vrot.slane %v1789, 2
      %v1823 = vsel %vm639, %v1821, %v1822
      %v1824 = vrot.slane %v1790, 2
      %v1825 = vrot.slane %v1791, 2
      %v1826 = vsel %vm639, %v1824, %v1825
      %v1827 = vrot.slane %v1792, 2
      %v1828 = vrot.slane %v1793, 2
      %v1829 = vsel %vm639, %v1827, %v1828
      %v1830 = vrot.slane %v1794, 2
      %v1831 = vrot.slane %v1795, 2
      %v1832 = vsel %vm639, %v1830, %v1831
      %v1833 = vrot.slane %v1796, 2
      %v1834 = vrot.slane %v1797, 2
      %v1835 = vsel %vm639, %v1833, %v1834
      %v1836 = vrot.slane %v1798, 2
      %v1837 = vrot.slane %v1799, 2
      %v1838 = vsel %vm639, %v1836, %v1837
      %v1839 = vrot.slane %v1800, 2
      %v1840 = vrot.slane %v1801, 2
      %v1841 = vsel %vm639, %v1839, %v1840
      %v1850 = vadd.f32 %v1758, %v1820
      %v1851 = vadd.f32 %v1759, %v1823
      %v1852 = vadd.f32 %v1760, %v1826
      %v1853 = vadd.f32 %v1761, %v1829
      %v1854 = vadd.f32 %v1762, %v1832
      %v1855 = vadd.f32 %v1763, %v1835
      %v1856 = vadd.f32 %v1764, %v1838
      %v1857 = vadd.f32 %v1765, %v1841
      %v1859 = vlaneseq
      %v1860 = vshrl.u32 %v1859, 7
      %v1861 = vsub.s32 0, %v1860
      %v1862 = vrot.slane %v1198, %v1861
      %v1864 = vmul.f32 %v1850, %v1862
      %v1865 = vmul.f32 %v1851, %v1862
      %v1866 = vmul.f32 %v1852, %v1862
      %v1867 = vmul.f32 %v1853, %v1862
      %v1868 = vmul.f32 %v1854, %v1862
      %v1869 = vmul.f32 %v1855, %v1862
      %v1870 = vmul.f32 %v1856, %v1862
      %v1871 = vmul.f32 %v1857, %v1862
      %v1873 = vlaneseq
      %v1874 = vshrl.u32 %v1873, 7
      %v1875 = vsub.s32 0, %v1874
      %v1876 = vrot.slane %v1199, %v1875
      %v1878 = vadd.f32 %v1864, %v1876
      %v1879 = vadd.f32 %v1865, %v1876
      %v1880 = vadd.f32 %v1866, %v1876
      %v1881 = vadd.f32 %v1867, %v1876
      %v1882 = vadd.f32 %v1868, %v1876
      %v1883 = vadd.f32 %v1869, %v1876
      %v1884 = vadd.f32 %v1870, %v1876
      %v1885 = vadd.f32 %v1871, %v1876
      %v1886 = vadd.f32 %v1878, 3.0
      %v1887 = vadd.f32 %v1879, 3.0
      %v1888 = vadd.f32 %v1880, 3.0
      %v1889 = vadd.f32 %v1881, 3.0
      %v1890 = vadd.f32 %v1882, 3.0
      %v1891 = vadd.f32 %v1883, 3.0
      %v1892 = vadd.f32 %v1884, 3.0
      %v1893 = vadd.f32 %v1885, 3.0
      %v1894 = vmax.f32 %v1886, 0.0
      %v1895 = vmax.f32 %v1887, 0.0
      %v1896 = vmax.f32 %v1888, 0.0
      %v1897 = vmax.f32 %v1889, 0.0
      %v1898 = vmax.f32 %v1890, 0.0
      %v1899 = vmax.f32 %v1891, 0.0
      %v1900 = vmax.f32 %v1892, 0.0
      %v1901 = vmax.f32 %v1893, 0.0
      %v1902 = vmin.f32 %v1894, 6.0
      %v1903 = vmin.f32 %v1895, 6.0
      %v1904 = vmin.f32 %v1896, 6.0
      %v1905 = vmin.f32 %v1897, 6.0
      %v1906 = vmin.f32 %v1898, 6.0
      %v1907 = vmin.f32 %v1899, 6.0
      %v1908 = vmin.f32 %v1900, 6.0
      %v1909 = vmin.f32 %v1901, 6.0
      %v1910 = vmul.f32 %v1878, %v1902
      %v1911 = vmul.f32 %v1879, %v1903
      %v1912 = vmul.f32 %v1880, %v1904
      %v1913 = vmul.f32 %v1881, %v1905
      %v1914 = vmul.f32 %v1882, %v1906
      %v1915 = vmul.f32 %v1883, %v1907
      %v1916 = vmul.f32 %v1884, %v1908
      %v1917 = vmul.f32 %v1885, %v1909
      %v1918 = vmul.f32 %v1910, 0.16666667
      %v1919 = vmul.f32 %v1911, 0.16666667
      %v1920 = vmul.f32 %v1912, 0.16666667
      %v1921 = vmul.f32 %v1913, 0.16666667
      %v1922 = vmul.f32 %v1914, 0.16666667
      %v1923 = vmul.f32 %v1915, 0.16666667
      %v1924 = vmul.f32 %v1916, 0.16666667
      %v1925 = vmul.f32 %v1917, 0.16666667
      %v1926 = vpack.c.bf16 %v1189, %v1188
      %v1927 = vpack.c.bf16 %v1191, %v1190
      %v1928 = vpack.c.bf16 %v1193, %v1192
      %v1929 = vpack.c.bf16 %v1195, %v1194
      %v1930 = vpack.c.bf16 %v1919, %v1918
      %v1931 = vpack.c.bf16 %v1921, %v1920
      %v1932 = vpack.c.bf16 %v1923, %v1922
      %v1933 = vpack.c.bf16 %v1925, %v1924
      %v1934 = vld [vmem:[%s8] sm:$0x3]
      %v1935 = vld [vmem:[%s9] sm:$0x3]
      %vm1936 = vcmask 31744
      %v1938 = vsel %vm1936, %v1930, 0
      %v1941 = vsel %vm1936, %v1931, 0
      %v1944 = vsel %vm1936, %v1932, 0
      %v1947 = vsel %vm1936, %v1933, 0
      %vm1949 = vcmask 1041408
      %v1951 = vsel %vm1949, %v1935, 0
      %1953 = vmatprep.subr.bf16.mxu0 0
      %1954 = vmatpush1.bf16.msra.mxu0 %v1951
      %1955 = vmatprep.subr.bf16.mxu0 0
      %1956 = vmatpush1.bf16.msra.mxu0 0
      %1957 = vmatprep.subr.bf16.mxu0 0
      %1958 = vmatpush1.bf16.msra.mxu0 0
      %1959 = vmatprep.subr.bf16.mxu0 0
      %1960 = vmatpush1.bf16.msra.mxu0 0
      %1961 = vmatprep.subr.bf16.mxu0 0
      %1962 = vmatpush1.bf16.msra.mxu0 0
      %1963 = vmatprep.subr.bf16.mxu0 0
      %1964 = vmatpush1.bf16.msra.mxu0 0
      %1965 = vmatprep.subr.bf16.mxu0 0
      %1966 = vmatpush1.bf16.msra.mxu0 0
      %1967 = vmatprep.subr.bf16.mxu0 0
      %1968 = vmatpush1.bf16.msra.mxu0 0
      %1969 = vmatprep.subr.bf16.mxu0 0
      %1970 = vmatpush1.bf16.msra.mxu0 0
      %1971 = vmatprep.subr.bf16.mxu0 0
      %1972 = vmatpush1.bf16.msra.mxu0 0
      %1973 = vmatprep.subr.bf16.mxu0 0
      %1974 = vmatpush1.bf16.msra.mxu0 0
      %1975 = vmatprep.subr.bf16.mxu0 0
      %1976 = vmatpush1.bf16.msra.mxu0 0
      %1977 = vmatprep.subr.bf16.mxu0 0
      %1978 = vmatpush1.bf16.msra.mxu0 0
      %1979 = vmatprep.subr.bf16.mxu0 0
      %1980 = vmatpush1.bf16.msra.mxu0 0
      %1981 = vmatprep.subr.bf16.mxu0 0
      %1982 = vmatpush1.bf16.msra.mxu0 0
      %1983 = vmatprep.subr.bf16.mxu0 0
      %1984 = vmatpush1.bf16.msra.mxu0 0
      %1985 = vmatprep.mubr.bf16.mxu0 0
      %1986 = vmatmul.mubr.bf16.gmra.mrb[0].mxu0 %v1938
      %v1987 = vpop.f32.mrb[0].mxu0
      %v1988 = vadd.f32 0.0, %v1987
      %v1989 = vpop.f32.mrb[0].mxu0
      %v1990 = vpop.f32.mrb[0].mxu0
      %v1991 = vadd.f32 0.0, %v1990
      %v1992 = vpop.f32.mrb[0].mxu0
      %1993 = vmatprep.mubr.bf16.mxu0 0
      %1994 = vmatmul.mubr.bf16.gmra.mrb[0].mxu0 %v1941
      %v1995 = vpop.f32.mrb[0].mxu0
      %v1996 = vadd.f32 0.0, %v1995
      %v1997 = vpop.f32.mrb[0].mxu0
      %v1998 = vpop.f32.mrb[0].mxu0
      %v1999 = vadd.f32 0.0, %v1998
      %v2000 = vpop.f32.mrb[0].mxu0
      %2001 = vmatprep.mubr.bf16.mxu0 0
      %2002 = vmatmul.mubr.bf16.gmra.mrb[0].mxu0 %v1944
      %v2003 = vpop.f32.mrb[0].mxu0
      %v2004 = vadd.f32 0.0, %v2003
      %v2005 = vpop.f32.mrb[0].mxu0
      %v2006 = vpop.f32.mrb[0].mxu0
      %v2007 = vadd.f32 0.0, %v2006
      %v2008 = vpop.f32.mrb[0].mxu0
      %2009 = vmatprep.mubr.bf16.mxu0 0
      %2010 = vmatmul.mubr.bf16.gmra.mrb[0].mxu0 %v1947
      %v2011 = vpop.f32.mrb[0].mxu0
      %v2012 = vadd.f32 0.0, %v2011
      %v2013 = vpop.f32.mrb[0].mxu0
      %v2014 = vpop.f32.mrb[0].mxu0
      %v2015 = vadd.f32 0.0, %v2014
      %v2016 = vpop.f32.mrb[0].mxu0
      %2017 = vdwg.mxu0
      %v2019 = vsel %vm1936, %v1926, 0
      %v2022 = vsel %vm1936, %v1927, 0
      %v2025 = vsel %vm1936, %v1928, 0
      %v2028 = vsel %vm1936, %v1929, 0
      %v2031 = vsel %vm1949, %v1934, 0
      %2033 = vmatprep.subr.bf16.mxu0 0
      %2034 = vmatpush1.bf16.msra.mxu0 %v2031
      %2035 = vmatprep.subr.bf16.mxu0 0
      %2036 = vmatpush1.bf16.msra.mxu0 0
      %2037 = vmatprep.subr.bf16.mxu0 0
      %2038 = vmatpush1.bf16.msra.mxu0 0
      %2039 = vmatprep.subr.bf16.mxu0 0
      %2040 = vmatpush1.bf16.msra.mxu0 0
      %2041 = vmatprep.subr.bf16.mxu0 0
      %2042 = vmatpush1.bf16.msra.mxu0 0
      %2043 = vmatprep.subr.bf16.mxu0 0
      %2044 = vmatpush1.bf16.msra.mxu0 0
      %2045 = vmatprep.subr.bf16.mxu0 0
      %2046 = vmatpush1.bf16.msra.mxu0 0
      %2047 = vmatprep.subr.bf16.mxu0 0
      %2048 = vmatpush1.bf16.msra.mxu0 0
      %2049 = vmatprep.subr.bf16.mxu0 0
      %2050 = vmatpush1.bf16.msra.mxu0 0
      %2051 = vmatprep.subr.bf16.mxu0 0
      %2052 = vmatpush1.bf16.msra.mxu0 0
      %2053 = vmatprep.subr.bf16.mxu0 0
      %2054 = vmatpush1.bf16.msra.mxu0 0
      %2055 = vmatprep.subr.bf16.mxu0 0
      %2056 = vmatpush1.bf16.msra.mxu0 0
      %2057 = vmatprep.subr.bf16.mxu0 0
      %2058 = vmatpush1.bf16.msra.mxu0 0
      %2059 = vmatprep.subr.bf16.mxu0 0
      %2060 = vmatpush1.bf16.msra.mxu0 0
      %2061 = vmatprep.subr.bf16.mxu0 0
      %2062 = vmatpush1.bf16.msra.mxu0 0
      %2063 = vmatprep.subr.bf16.mxu0 0
      %2064 = vmatpush1.bf16.msra.mxu0 0
      %2065 = vmatprep.mubr.bf16.mxu0 0
      %2066 = vmatmul.mubr.bf16.gmra.mrb[0].mxu0 %v2019
      %v2067 = vpop.f32.mrb[0].mxu0
      %v2068 = vadd.f32 %v1988, %v2067
      %v2069 = vpop.f32.mrb[0].mxu0
      %v2070 = vpop.f32.mrb[0].mxu0
      %v2071 = vadd.f32 %v1991, %v2070
      %v2072 = vpop.f32.mrb[0].mxu0
      %2073 = vmatprep.mubr.bf16.mxu0 0
      %2074 = vmatmul.mubr.bf16.gmra.mrb[0].mxu0 %v2022
      %v2075 = vpop.f32.mrb[0].mxu0
      %v2076 = vadd.f32 %v1996, %v2075
      %v2077 = vpop.f32.mrb[0].mxu0
      %v2078 = vpop.f32.mrb[0].mxu0
      %v2079 = vadd.f32 %v1999, %v2078
      %v2080 = vpop.f32.mrb[0].mxu0
      %2081 = vmatprep.mubr.bf16.mxu0 0
      %2082 = vmatmul.mubr.bf16.gmra.mrb[0].mxu0 %v2025
      %v2083 = vpop.f32.mrb[0].mxu0
      %v2084 = vadd.f32 %v2004, %v2083
      %v2085 = vpop.f32.mrb[0].mxu0
      %v2086 = vpop.f32.mrb[0].mxu0
      %v2087 = vadd.f32 %v2007, %v2086
      %v2088 = vpop.f32.mrb[0].mxu0
      %2089 = vmatprep.mubr.bf16.mxu0 0
      %2090 = vmatmul.mubr.bf16.gmra.mrb[0].mxu0 %v2028
      %v2091 = vpop.f32.mrb[0].mxu0
      %v2092 = vadd.f32 %v2012, %v2091
      %v2093 = vpop.f32.mrb[0].mxu0
      %v2094 = vpop.f32.mrb[0].mxu0
      %v2095 = vadd.f32 %v2015, %v2094
      %v2096 = vpop.f32.mrb[0].mxu0
      %2097 = vdwg.mxu0
      %v2098 = vld [vmem:[%s10] sm:$0x1]
      %v2100 = vlaneseq
      %v2101 = vshrl.u32 %v2100, 7
      %v2102 = vsub.s32 0, %v2101
      %v2103 = vrot.slane %v2098, %v2102
      %v2105 = vmul.f32 %v2068, %v2103
      %v2106 = vmul.f32 %v2071, %v2103
      %v2107 = vmul.f32 %v2076, %v2103
      %v2108 = vmul.f32 %v2079, %v2103
      %v2109 = vmul.f32 %v2084, %v2103
      %v2110 = vmul.f32 %v2087, %v2103
      %v2111 = vmul.f32 %v2092, %v2103
      %v2112 = vmul.f32 %v2095, %v2103
      %v2113 = vld [vmem:[%s11] sm:$0x1]
      %v2115 = vlaneseq
      %v2116 = vshrl.u32 %v2115, 7
      %v2117 = vsub.s32 0, %v2116
      %v2118 = vrot.slane %v2113, %v2117
      %v2120 = vadd.f32 %v2105, %v2118
      %v2121 = vadd.f32 %v2106, %v2118
      %v2122 = vadd.f32 %v2107, %v2118
      %v2123 = vadd.f32 %v2108, %v2118
      %v2124 = vadd.f32 %v2109, %v2118
      %v2125 = vadd.f32 %v2110, %v2118
      %v2126 = vadd.f32 %v2111, %v2118
      %v2127 = vadd.f32 %v2112, %v2118
      %v2128 = vadd.f32 %v2120, 3.0
      %v2129 = vadd.f32 %v2121, 3.0
      %v2130 = vadd.f32 %v2122, 3.0
      %v2131 = vadd.f32 %v2123, 3.0
      %v2132 = vadd.f32 %v2124, 3.0
      %v2133 = vadd.f32 %v2125, 3.0
      %v2134 = vadd.f32 %v2126, 3.0
      %v2135 = vadd.f32 %v2127, 3.0
      %v2136 = vmax.f32 %v2128, 0.0
      %v2137 = vmax.f32 %v2129, 0.0
      %v2138 = vmax.f32 %v2130, 0.0
      %v2139 = vmax.f32 %v2131, 0.0
      %v2140 = vmax.f32 %v2132, 0.0
      %v2141 = vmax.f32 %v2133, 0.0
      %v2142 = vmax.f32 %v2134, 0.0
      %v2143 = vmax.f32 %v2135, 0.0
      %v2144 = vmin.f32 %v2136, 6.0
      %v2145 = vmin.f32 %v2137, 6.0
      %v2146 = vmin.f32 %v2138, 6.0
      %v2147 = vmin.f32 %v2139, 6.0
      %v2148 = vmin.f32 %v2140, 6.0
      %v2149 = vmin.f32 %v2141, 6.0
      %v2150 = vmin.f32 %v2142, 6.0
      %v2151 = vmin.f32 %v2143, 6.0
      %v2152 = vmul.f32 %v2120, %v2144
      %v2153 = vmul.f32 %v2121, %v2145
      %v2154 = vmul.f32 %v2122, %v2146
      %v2155 = vmul.f32 %v2123, %v2147
      %v2156 = vmul.f32 %v2124, %v2148
      %v2157 = vmul.f32 %v2125, %v2149
      %v2158 = vmul.f32 %v2126, %v2150
      %v2159 = vmul.f32 %v2127, %v2151
      %v2160 = vmul.f32 %v2152, 0.16666667
      %v2161 = vmul.f32 %v2153, 0.16666667
      %v2162 = vmul.f32 %v2154, 0.16666667
      %v2163 = vmul.f32 %v2155, 0.16666667
      %v2164 = vmul.f32 %v2156, 0.16666667
      %v2165 = vmul.f32 %v2157, 0.16666667
      %v2166 = vmul.f32 %v2158, 0.16666667
      %v2167 = vmul.f32 %v2159, 0.16666667
      %v2168 = vpack.c.bf16 %v2160, %v2160
      %v2169 = vpack.c.bf16 %v2161, %v2161
      %v2170 = vpack.c.bf16 %v2162, %v2162
      %v2171 = vpack.c.bf16 %v2163, %v2163
      %v2172 = vpack.c.bf16 %v2164, %v2164
      %v2173 = vpack.c.bf16 %v2165, %v2165
      %v2174 = vpack.c.bf16 %v2166, %v2166
      %v2175 = vpack.c.bf16 %v2167, %v2167
      %vm2176 = vcmask 60416
      %2177 = vst.msk [vmem:[%s455] sm:$0xf] %vm2176, %v2168
      %2178 = vst.msk [vmem:[%s455 + $0x4] sm:$0xf] %vm2176, %v2169
      %2179 = vst.msk [vmem:[%s455 + $0x8] sm:$0xf] %vm2176, %v2170
      %2180 = vst.msk [vmem:[%s455 + $0xc] sm:$0xf] %vm2176, %v2171
      %2181 = vst.msk [vmem:[%s455 + $0x10] sm:$0xf] %vm2176, %v2172
      %2182 = vst.msk [vmem:[%s455 + $0x14] sm:$0xf] %vm2176, %v2173
      %2183 = vst.msk [vmem:[%s455 + $0x18] sm:$0xf] %vm2176, %v2174
      %2184 = vst.msk [vmem:[%s455 + $0x1c] sm:$0xf] %vm2176, %v2175
      %s2185 = smul.u32 8, %s28
      %p2186 = scmp.lt.s32.totalorder %s27, 1
      %s2187 = scalar_select %p2186, %s27, 1
      %p2188 = scmp.lt.s32.totalorder %s2185, 7
      %s2189 = scalar_select %p2188, %s2185, 7
      %s2190 = smul.addr %s2187, 8
      %s2191 = sadd.s32 %s2189, %s2190
      %s2192 = smul.addr %s2191, 4
      %s2193 = scalar_lea.vmem %s12, %s2192
      // Predicated region
      $region69: #{esblock2_forward.11} parent=67 // pred_check
        %p2194 = pneg %p317
      $region70: #{esblock2_forward.11} parent=67 // pred_check_branch
        %2196 = sbr.rel (%p2194) target = $region72
      $region71: #{esblock2_forward.11} parent=67 // pred_region
        %s2197 = smul.u32 8, %s28
      $region72: #{esblock2_forward.11} parent=67 // pred_fallthru
        _
    $region68: #{esblock2_forward.11} parent=5 // pred_fallthru
      _
    %p2198 = scmp.le.s32.totalorder 2, %s18
    // Predicated region
    $region73: #{esblock2_forward.11} parent=5 // pred_check
      %p2199 = pneg %p2198
    $region74: #{esblock2_forward.11} parent=5 // pred_check_branch
      %2201 = sbr.rel (%p2199) target = $region76
    $region75: #{esblock2_forward.11} parent=5 // pred_region
      %s2202 = ssub.s32 %s18, 2
      // Predicated region
      $region77: #{esblock2_forward.11} parent=75 // pred_check
        %p2203 = pneg %p323
      $region78: #{esblock2_forward.11} parent=75 // pred_check_branch
        %2205 = sbr.rel (%p2203) target = $region80
      $region79: #{esblock2_forward.11} parent=75 // pred_region
        %s2206 = smul.u32 8, %s30
        %p2207 = scmp.lt.s32.totalorder %s29, 1
        %s2208 = scalar_select %p2207, %s29, 1
        %p2209 = scmp.lt.s32.totalorder %s2206, 7
        %s2210 = scalar_select %p2209, %s2206, 7
        %s2211 = smul.addr %s2208, 8
        %s2212 = sadd.s32 %s2210, %s2211
        %s2213 = smul.addr %s2212, 4
        %s2214 = scalar_lea.vmem %s12, %s2213
      $region80: #{esblock2_forward.11} parent=75 // pred_fallthru
        _
    $region76: #{esblock2_forward.11} parent=5 // pred_fallthru
      _
  $region6: #{esblock2_forward.11} parent=0 // loop_footer
    %s22 = sadd.s32 1, %s18
  $region7: #{esblock2_forward.11} parent=0 // loop_footer_branch
    %17 = sbr.rel target = $region3
  $region8: #{esblock2_forward.11} parent=0 // loop_exit
    _

</llo_original>
